<compile_context>
chip_gen: v6e
topology: v6e:2x2x1
jax: 0.10.0
libtpu: 0.0.40
codegen_flags: <defaults>
</compile_context>

<pallas_src>
import jax
import jax.numpy as jnp
from jax.experimental import pallas as pl
from jax.experimental.pallas import tpu as pltpu

# ---------------- synthetic model config (small shapes) ----------------
INPUT_SIZE = 32                 # feature dim D (== encoder d_model here)
VOCAB = 25088                   # >= textnorm token ids 25016/25017, 196*128
NUM_LAYERS = 2
NUM_HEADS = 4
HEAD_DIM = INPUT_SIZE // NUM_HEADS
FFN_DIM = 64
IGNORE_ID = -1
BLANK_ID = 0
EMBED_ROWS = 7 + 7 + 2          # 7 + len(lid_dict) + len(textnorm_dict)
NEG_INF = -1e30
TILE_V = 3584                   # 28*128, divides VOCAB (7 tiles); raise on v6e (128MiB VMEM), keep <=7168 on v7x
GATHER_PAD = 16                 # target-token gather columns padded to a sublane multiple

LID_INT = {24884: 3, 24885: 4, 24888: 7, 24892: 11, 24896: 12, 24992: 13}
TEXTNORM_INT = {25016: 14, 25017: 15}

ENC_PARAM_ORDER = ('ln1_g', 'ln1_b', 'wqkv', 'bqkv', 'wo', 'bo',
                   'ln2_g', 'ln2_b', 'w1', 'b1', 'w2', 'b2')


# ---------------- in-kernel helpers ----------------
def _ln(x, g, b, eps=1e-5):     # torch.nn.LayerNorm default eps
    mu = jnp.mean(x, axis=-1, keepdims=True)
    var = jnp.mean((x - mu) ** 2, axis=-1, keepdims=True)
    return (x - mu) * jax.lax.rsqrt(var + eps) * g + b


# ---------------- Pallas kernel: transformer encoder, grid=(B, L) ------------
# TODO(synk): the real encoder class is table-resolved in FunASR (SANM encoder);
# here it is a pre-LN MHSA+FFN transformer with the same (B, T, D) interface.
def encoder_kernel(len_ref, x_ref, ln1_g, ln1_b, wqkv, bqkv, wo, bo,
                   ln2_g, ln2_b, w1, b1, w2, b2, out_ref):
    b = pl.program_id(0)

    # activation is resident in out_ref across the (inner, "arbitrary") layer axis
    @pl.when(pl.program_id(1) == 0)
    def _():
        out_ref[...] = x_ref[...]

    x = out_ref[0]                                  # (S, D) f32
    S, D = x.shape
    hd = D // NUM_HEADS

    # key-padding mask generated in-kernel from prefetched speech_lengths
    col = jax.lax.broadcasted_iota(jnp.int32, (1, S), 1)
    mask = jnp.where(col < len_ref[b], 0.0, NEG_INF).astype(jnp.float32)   # (1, S)

    h = _ln(x, ln1_g[0], ln1_b[0]).astype(jnp.bfloat16)
    # fused QKV projection (bf16 weights, f32 accumulation); 1/sqrt(hd) is folded
    # into the Q columns of wqkv at init time.
    qkv = jnp.dot(h, wqkv[0], preferred_element_type=jnp.float32) + bqkv[0]   # (S, 3D)

    # TODO(synk): at the real hd=128 these per-head column slices are lane-aligned;
    # a single batched einsum would need an in-kernel (S,D)->(S,H,hd) reshape of
    # the lane dim, so the static head loop is kept for compile safety.
    ctxs = []
    for hh in range(NUM_HEADS):
        q_h = qkv[:, hh * hd:(hh + 1) * hd].astype(jnp.bfloat16)
        k_h = qkv[:, D + hh * hd:D + (hh + 1) * hd].astype(jnp.bfloat16)
        v_h = qkv[:, 2 * D + hh * hd:2 * D + (hh + 1) * hd].astype(jnp.bfloat16)
        s = jnp.einsum('qd,kd->qk', q_h, k_h,
                       preferred_element_type=jnp.float32) + mask
        m = jnp.max(s, axis=-1, keepdims=True)
        e = jnp.exp(s - m)
        # approx reciprocal on the EUP: rows sum to ~1 (tiny deviation from torch softmax)
        p = e * pl.reciprocal(jnp.sum(e, axis=-1, keepdims=True), approx=True)
        ctxs.append(jnp.dot(p.astype(jnp.bfloat16), v_h,
                            preferred_element_type=jnp.float32))
    ctx = jnp.concatenate(ctxs, axis=-1)                          # (S, D)
    attn = jnp.dot(ctx.astype(jnp.bfloat16), wo[0],
                   preferred_element_type=jnp.float32) + bo[0]
    x = x + attn

    h2 = _ln(x, ln2_g[0], ln2_b[0]).astype(jnp.bfloat16)
    f = jnp.maximum(jnp.dot(h2, w1[0], preferred_element_type=jnp.float32) + b1[0], 0.0)
    f = jnp.dot(f.astype(jnp.bfloat16), w2[0], preferred_element_type=jnp.float32) + b2[0]
    out_ref[0] = x + f


def run_encoder(x3d, lengths, enc_args):
    B, S, D = x3d.shape
    L = enc_args[0].shape[0]

    def wspec(arr):
        n = arr.ndim - 1
        return pl.BlockSpec((1,) + arr.shape[1:],
                            lambda b, l, lens, _n=n: (l,) + (0,) * _n)

    grid_spec = pltpu.PrefetchScalarGridSpec(
        num_scalar_prefetch=1,
        grid=(B, L),
        in_specs=[pl.BlockSpec((1, S, D), lambda b, l, lens: (b, 0, 0))]
                 + [wspec(a) for a in enc_args],
        out_specs=pl.BlockSpec((1, S, D), lambda b, l, lens: (b, 0, 0)),
    )
    return pl.pallas_call(
        encoder_kernel,
        out_shape=jax.ShapeDtypeStruct((B, S, D), jnp.float32),
        grid_spec=grid_spec,
        compiler_params=pltpu.CompilerParams(
            dimension_semantics=("parallel", "arbitrary")),
    )(lengths.astype(jnp.int32), x3d, *enc_args)


# ---------------- Pallas kernel: after_norm + ctc_lo head, V-tiled -----------
# Streams (D, TILE_V) bf16 weight tiles; per tile updates an online max/logsumexp,
# a rich-frame-only online argmax, and a per-example one-hot gather of the target
# tokens.  The (B, S, V) log-probs never hit HBM.
def ctc_head_kernel(x_ref, g_ref, b_ref, w_ref, bias_ref, tok_ref,
                    lp_ref, pred_ref,
                    xbf_ref, acc_ref, m_ref, l_ref, amax_ref, aidx_ref):
    v = pl.program_id(0)
    nv = pl.num_programs(0)
    tv = w_ref.shape[1]
    B = x_ref.shape[0]
    Gp = tok_ref.shape[1]

    @pl.when(v == 0)
    def _():
        # after_norm LayerNorm + f32->bf16 cast hoisted out of the vocab-tile loop
        xbf_ref[...] = _ln(x_ref[...], g_ref[...], b_ref[...]).astype(jnp.bfloat16)
        acc_ref[...] = jnp.zeros_like(acc_ref)
        m_ref[...] = jnp.full_like(m_ref, NEG_INF)
        l_ref[...] = jnp.zeros_like(l_ref)
        amax_ref[...] = jnp.full_like(amax_ref, NEG_INF)
        aidx_ref[...] = jnp.zeros_like(aidx_ref)

    wv = w_ref[...]                      # (D, tv) bf16
    bias = bias_ref[...]                 # (1, tv) f32
    voff = (v * tv).astype(jnp.float32)

    # static unroll over the (small) batch: keeps every matmul 2-D and the
    # gather strictly per-example (no cross-batch waste).
    for b in range(B):
        logits = jnp.dot(xbf_ref[b], wv,
                         preferred_element_type=jnp.float32) + bias     # (S, tv)

        # online logsumexp over the vocab axis
        tile_max = jnp.max(logits, axis=-1, keepdims=True)               # (S, 1)
        m_old = m_ref[b]
        m_new = jnp.maximum(m_old, tile_max)
        l_ref[b] = (l_ref[b] * jnp.exp(m_old - m_new)
                    + jnp.sum(jnp.exp(logits - m_new), axis=-1, keepdims=True))
        m_ref[b] = m_new

        # online argmax, only the 4 rich-token frames (all that forward() uses)
        rich = logits[:4, :]
        rmax = jnp.max(rich, axis=-1, keepdims=True)                     # (4, 1)
        colf = jax.lax.broadcasted_iota(jnp.int32, rich.shape, 1).astype(jnp.float32)
        local_arg = jnp.min(jnp.where(rich == rmax, colf, 1e9),
                            axis=-1, keepdims=True)
        better = rmax > amax_ref[b]
        # argmax index carried in f32: exact for V < 2^24
        aidx_ref[b] = jnp.where(better, local_arg + voff, aidx_ref[b])
        amax_ref[b] = jnp.where(better, rmax, amax_ref[b])

        # per-example gather of the target-token logits (one-hot contraction)
        col_i = jax.lax.broadcasted_iota(jnp.int32, (Gp, tv), 1) + v * tv
        onehot = (col_i == tok_ref[b]).astype(jnp.float32)               # (Gp, tv)
        acc_ref[b] += jnp.einsum('sk,gk->sg', logits, onehot,
                                 preferred_element_type=jnp.float32)

    @pl.when(v == nv - 1)
    def _():
        lse = m_ref[...] + jnp.log(l_ref[...])                           # (B, S, 1)
        lp_ref[...] = acc_ref[...] - lse                                 # (B, S, Gp)
        pred_ref[...] = aidx_ref[...].astype(jnp.int32)                  # (B, 4, 1)


def run_ctc_head(enc, ln_g, ln_b, w_bf16, bias, tok3):
    B, S, D = enc.shape
    V = w_bf16.shape[1]
    Gp = tok3.shape[1]
    assert V % TILE_V == 0
    nv = V // TILE_V
    return pl.pallas_call(
        ctc_head_kernel,
        out_shape=(jax.ShapeDtypeStruct((B, S, Gp), jnp.float32),
                   jax.ShapeDtypeStruct((B, 4, 1), jnp.int32)),
        grid=(nv,),
        in_specs=[
            pl.BlockSpec((B, S, D), lambda v: (0, 0, 0)),
            pl.BlockSpec((1, D), lambda v: (0, 0)),
            pl.BlockSpec((1, D), lambda v: (0, 0)),
            pl.BlockSpec((D, TILE_V), lambda v: (0, v)),
            pl.BlockSpec((1, TILE_V), lambda v: (0, v)),
            pl.BlockSpec((B, Gp, 1), lambda v: (0, 0, 0)),
        ],
        out_specs=(pl.BlockSpec((B, S, Gp), lambda v: (0, 0, 0)),
                   pl.BlockSpec((B, 4, 1), lambda v: (0, 0, 0))),
        scratch_shapes=[
            pltpu.VMEM((B, S, D), jnp.bfloat16),   # after_norm'd activation (hoisted)
            pltpu.VMEM((B, S, Gp), jnp.float32),   # gathered-logit accumulator
            pltpu.VMEM((B, S, 1), jnp.float32),    # running max
            pltpu.VMEM((B, S, 1), jnp.float32),    # running sum-exp
            pltpu.VMEM((B, 4, 1), jnp.float32),    # argmax value (rich frames only)
            pltpu.VMEM((B, 4, 1), jnp.float32),    # argmax index (rich frames only)
        ],
        compiler_params=pltpu.CompilerParams(dimension_semantics=("arbitrary",)),
    )(enc, ln_g, ln_b, w_bf16, bias, tok3)


# ---------------- parameters ----------------
def init_params(key):
    keys = iter(jax.random.split(key, 32))

    def nrm(shape, scale=0.02, dtype=jnp.float32):
        return (scale * jax.random.normal(next(keys), shape, jnp.float32)).astype(dtype)

    D, F, L = INPUT_SIZE, FFN_DIM, NUM_LAYERS
    params = {}
    params['embed'] = nrm((EMBED_ROWS, D), 1.0)              # nn.Embedding(16, input_size)

    # fold the 1/sqrt(head_dim) attention scale into the Q projection weights
    # (bias is zero-init so it needs no folding).
    qk_scale = 1.0 / (HEAD_DIM ** 0.5)
    wqkv = nrm((L, D, 3 * D))
    wqkv = wqkv.at[:, :, :D].multiply(qk_scale)

    params['enc'] = dict(
        ln1_g=jnp.ones((L, 1, D), jnp.float32), ln1_b=jnp.zeros((L, 1, D), jnp.float32),
        wqkv=wqkv.astype(jnp.bfloat16), bqkv=jnp.zeros((L, 1, 3 * D), jnp.float32),
        wo=nrm((L, D, D), dtype=jnp.bfloat16), bo=jnp.zeros((L, 1, D), jnp.float32),
        ln2_g=jnp.ones((L, 1, D), jnp.float32), ln2_b=jnp.zeros((L, 1, D), jnp.float32),
        w1=nrm((L, D, F), dtype=jnp.bfloat16), b1=jnp.zeros((L, 1, F), jnp.float32),
        w2=nrm((L, F, D), dtype=jnp.bfloat16), b2=jnp.zeros((L, 1, D), jnp.float32),
    )
    params['after_norm_g'] = jnp.ones((1, D), jnp.float32)
    params['after_norm_b'] = jnp.zeros((1, D), jnp.float32)
    # TODO(synk): on v5e/v6e ctc_lo could be int8 with per-column scales; bf16 is kept
    # as the generation-portable choice (v7x MXU has no integer path).
    params['ctc_w'] = nrm((D, VOCAB), dtype=jnp.bfloat16)    # ctc.ctc_lo
    params['ctc_b'] = jnp.zeros((1, VOCAB), jnp.float32)
    return params


# ---------------- plain-JAX glue ----------------
def _map_tokens(tokens, table, default):
    out = jnp.full_like(tokens, default)
    for k, v in table.items():
        out = jnp.where(tokens == k, v, out)
    return out


def encode(params, speech, speech_lengths, text):
    B, T, D = speech.shape
    # TODO(synk): real model drops the lid token with p=0.2 (torch.rand) during
    # training; made deterministic here (unmapped tokens -> 0 either way).
    lids = _map_tokens(text[:, 0], LID_INT, 0)
    styles = _map_tokens(text[:, 3], TEXTNORM_INT, 15)
    embed = params['embed']
    language_query = embed[lids][:, None, :]                 # (B,1,D)
    style_query = embed[styles][:, None, :]                  # (B,1,D)
    speech = jnp.concatenate([style_query, speech], axis=1)
    speech_lengths = speech_lengths + 1
    event_emo_query = jnp.broadcast_to(embed[jnp.array([1, 2])][None], (B, 2, D))
    input_query = jnp.concatenate([language_query, event_emo_query], axis=1)
    speech = jnp.concatenate([input_query, speech], axis=1)  # (B, 4+T, D)
    speech_lengths = speech_lengths + 3

    S = speech.shape[1]
    x3d = speech.astype(jnp.float32)
    enc_args = [params['enc'][k] for k in ENC_PARAM_ORDER]
    enc = run_encoder(x3d, speech_lengths.astype(jnp.int32), enc_args)   # (B, S, D)
    return enc, speech_lengths, S


# TODO(synk): torch.nn.CTCLoss forward-backward DP has no clean Pallas mapping;
# implemented as a lax.scan dynamic program in plain JAX on the pre-gathered
# (B, T, 2U+1) emission log-probs produced by the Pallas CTC head.
def ctc_forward_nll(emissions, input_lengths, target_lengths, ext, blank):
    B, T, L = emissions.shape
    lp0 = emissions[:, 0, :]
    alpha0 = jnp.full((B, L), NEG_INF, jnp.float32)
    alpha0 = alpha0.at[:, 0].set(lp0[:, 0])                  # ext[:,0] is blank
    alpha0 = alpha0.at[:, 1].set(jnp.where(target_lengths >= 1, lp0[:, 1], NEG_INF))
    ext_shift2 = jnp.concatenate([jnp.full((B, 2), -1, jnp.int32), ext[:, :-2]], axis=1)
    allow_skip = (ext != blank) & (ext != ext_shift2)

    def step(alpha, t):
        emit = jax.lax.dynamic_index_in_dim(emissions, t, axis=1, keepdims=False)  # (B,L)
        a1 = jnp.concatenate([jnp.full((B, 1), NEG_INF, jnp.float32), alpha[:, :-1]], axis=1)
        a2 = jnp.concatenate([jnp.full((B, 2), NEG_INF, jnp.float32), alpha[:, :-2]], axis=1)
        cand = jnp.logaddexp(alpha, a1)
        cand = jnp.where(allow_skip, jnp.logaddexp(cand, a2), cand)
        new_alpha = cand + emit
        valid = (t < input_lengths)[:, None]
        return jnp.where(valid, new_alpha, alpha), None

    alpha, _ = jax.lax.scan(step, alpha0, jnp.arange(1, T))
    idx_last = (2 * target_lengths).astype(jnp.int32)
    idx_prev = jnp.maximum(idx_last - 1, 0)
    a_last = jnp.take_along_axis(alpha, idx_last[:, None], axis=1)[:, 0]
    a_prev = jnp.take_along_axis(alpha, idx_prev[:, None], axis=1)[:, 0]
    return -jnp.logaddexp(a_last, a_prev)


@jax.jit
def forward(params, speech, speech_lengths, text, text_lengths):
    if text_lengths.ndim > 1:
        text_lengths = text_lengths[:, 0]
    if speech_lengths.ndim > 1:
        speech_lengths = speech_lengths[:, 0]
    B = speech.shape[0]
    enc, encoder_out_lens, S = encode(params, speech, speech_lengths, text)

    # gather token table: [CTC extended labels (2U+1) | 4 rich-token targets | pad]
    U = text.shape[1] - 4
    L_ext = 2 * U + 1
    G = L_ext + 4
    assert G <= GATHER_PAD
    targets = text[:, 4:].astype(jnp.int32)
    ext = jnp.full((B, L_ext), BLANK_ID, jnp.int32).at[:, 1::2].set(targets)
    tgt_rich = text[:, :4].astype(jnp.int32)
    ignore = tgt_rich == IGNORE_ID
    tgt_safe = jnp.where(ignore, 0, tgt_rich)
    tok_table = jnp.concatenate(
        [jnp.maximum(ext, 0), tgt_safe,
         jnp.zeros((B, GATHER_PAD - G), jnp.int32)], axis=1)          # (B, Gp)
    tok3 = tok_table[:, :, None]                                       # (B, Gp, 1)

    gathered, pred = run_ctc_head(enc, params['after_norm_g'], params['after_norm_b'],
                                  params['ctc_w'], params['ctc_b'], tok3)
    # gathered: (B, S, Gp) per-example target log-probs; pred: (B, 4, 1) argmax ids

    # ---- CTC branch: encoder_out[:, 4:, :] vs text[:, 4:] ----
    emissions = gathered[:, 4:, :L_ext]                                # (B, S-4, L_ext)
    nll = ctc_forward_nll(emissions, encoder_out_lens - 4, text_lengths - 4,
                          ext, BLANK_ID)
    loss_ctc = jnp.sum(nll) / B                                        # CTCLoss sum / batch

    # ---- rich CE branch: LabelSmoothingLoss(smoothing=0, normalize_length=False) ----
    rich_lp = gathered[:, :4, L_ext:L_ext + 4]                         # (B,4,4)
    tok_lp = jnp.diagonal(rich_lp, axis1=1, axis2=2)                   # (B,4)
    loss_rich = jnp.sum(jnp.where(ignore, 0.0, -tok_lp)) / B
    pred2 = pred.reshape(B, 4)
    mask = ~ignore
    acc_rich = jnp.sum(jnp.where(mask, pred2 == tgt_rich, False)) / jnp.maximum(jnp.sum(mask), 1)

    loss = loss_ctc + loss_rich
    stats = dict(loss_ctc=loss_ctc, loss_rich=loss_rich, loss=loss, acc_rich=acc_rich)
    weight = jnp.array(B, jnp.float32)   # TODO(synk): force_gatherable/DDP bookkeeping omitted
    return loss, stats, weight


if __name__ == "__main__":
    key = jax.random.PRNGKey(0)
    pkey, skey = jax.random.split(key)
    params = init_params(pkey)

    B, T = 2, 8
    speech = jax.random.normal(skey, (B, T, INPUT_SIZE), jnp.float32)   # (B, T, D) fbank-like
    speech_lengths = jnp.array([T, T], jnp.int32)
    # text layout: [:,0]=lid token, [:,1:3]=event/emo slots, [:,3]=textnorm token, [:,4:]=CTC targets
    text = jnp.array([[5, 1, 2, 25016, 3, 7],
                      [5, 1, 2, 25017, 2, 9]], jnp.int32)
    text_lengths = jnp.array([6, 6], jnp.int32)

    loss, stats, weight = forward(params, speech, speech_lengths, text, text_lengths)
    jax.block_until_ready(loss)
    jax.block_until_ready(stats['loss_ctc'])
    jax.block_until_ready(stats['loss_rich'])
    jax.block_until_ready(stats['acc_rich'])
    assert jnp.isfinite(loss), "loss is not finite"
    print("KERNEL_OK")
</pallas_src>

<mosaic_0001>
module attributes {stable_mosaic.version = 11 : i64} {
  func.func @encoder_kernel(%arg0: i32, %arg1: i32, %arg2: memref<2xi32, #tpu.memory_space<smem>>, %arg3: memref<1x12x32xf32, #tpu.memory_space<vmem>>, %arg4: memref<1x1x32xf32, #tpu.memory_space<vmem>>, %arg5: memref<1x1x32xf32, #tpu.memory_space<vmem>>, %arg6: memref<1x32x96xbf16, #tpu.memory_space<vmem>>, %arg7: memref<1x1x96xf32, #tpu.memory_space<vmem>>, %arg8: memref<1x32x32xbf16, #tpu.memory_space<vmem>>, %arg9: memref<1x1x32xf32, #tpu.memory_space<vmem>>, %arg10: memref<1x1x32xf32, #tpu.memory_space<vmem>>, %arg11: memref<1x1x32xf32, #tpu.memory_space<vmem>>, %arg12: memref<1x32x64xbf16, #tpu.memory_space<vmem>>, %arg13: memref<1x1x64xf32, #tpu.memory_space<vmem>>, %arg14: memref<1x64x32xbf16, #tpu.memory_space<vmem>>, %arg15: memref<1x1x32xf32, #tpu.memory_space<vmem>>, %arg16: memref<1x12x32xf32, #tpu.memory_space<vmem>>) attributes {dimension_semantics = [#tpu.dimension_semantics<parallel>, #tpu.dimension_semantics<arbitrary>], iteration_bounds = array<i64: 2, 2>, scalar_prefetch = 1 : i64, scratch_operands = 0 : i64, tpu.core_type = #tpu.core_type<tc>, window_params = [{transform_indices = @transform_0, window_bounds = array<i64: 1, 12, 32>}, {transform_indices = @transform_1, window_bounds = array<i64: 1, 1, 32>}, {transform_indices = @transform_2, window_bounds = array<i64: 1, 1, 32>}, {transform_indices = @transform_3, window_bounds = array<i64: 1, 32, 96>}, {transform_indices = @transform_4, window_bounds = array<i64: 1, 1, 96>}, {transform_indices = @transform_5, window_bounds = array<i64: 1, 32, 32>}, {transform_indices = @transform_6, window_bounds = array<i64: 1, 1, 32>}, {transform_indices = @transform_7, window_bounds = array<i64: 1, 1, 32>}, {transform_indices = @transform_8, window_bounds = array<i64: 1, 1, 32>}, {transform_indices = @transform_9, window_bounds = array<i64: 1, 32, 64>}, {transform_indices = @transform_10, window_bounds = array<i64: 1, 1, 64>}, {transform_indices = @transform_11, window_bounds = array<i64: 1, 64, 32>}, {transform_indices = @transform_12, window_bounds = array<i64: 1, 1, 32>}, {transform_indices = @transform_13, window_bounds = array<i64: 1, 12, 32>}]} {
    %c0_i32 = arith.constant 0 : i32
    %0 = arith.cmpi eq, %arg1, %c0_i32 : i32
    %1 = arith.extui %0 : i1 to i32
    %c0_i32_0 = arith.constant 0 : i32
    %2 = arith.cmpi ne, %1, %c0_i32_0 : i32
    scf.if %2 {
      %c0_74 = arith.constant 0 : index
      %c0_75 = arith.constant 0 : index
      %c0_76 = arith.constant 0 : index
      %189 = vector.load %arg3[%c0_74, %c0_75, %c0_76] : memref<1x12x32xf32, #tpu.memory_space<vmem>>, vector<1x12x32xf32>
      %c0_77 = arith.constant 0 : index
      %c0_78 = arith.constant 0 : index
      %c0_79 = arith.constant 0 : index
      %190 = vector.load %arg16[%c0_77, %c0_78, %c0_79] : memref<1x12x32xf32, #tpu.memory_space<vmem>>, vector<1x12x32xf32>
      tpu.vector_store %arg16[%c0_77, %c0_78, %c0_79], %189 {strides = array<i32>} : memref<1x12x32xf32, #tpu.memory_space<vmem>>, vector<1x12x32xf32>,
    } else {
    }
    %c0 = arith.constant 0 : index
    %c0_1 = arith.constant 0 : index
    %c0_2 = arith.constant 0 : index
    %3 = vector.load %arg16[%c0, %c0_1, %c0_2] : memref<1x12x32xf32, #tpu.memory_space<vmem>>, vector<1x12x32xf32>
    %4 = vector.shape_cast %3 : vector<1x12x32xf32> to vector<12x32xf32>
    %5 = tpu.iota {dimensions = array<i32: 1>} : vector<1x12xi32>
    %6 = arith.index_cast %arg0 : i32 to index
    %7 = memref.load %arg2[%6] : memref<2xi32, #tpu.memory_space<smem>>
    %8 = vector.broadcast %7 : i32 to vector<1x12xi32>
    %9 = arith.cmpi slt, %5, %8 : vector<1x12xi32>
    %cst = arith.constant 0.000000e+00 : f32
    %cst_3 = arith.constant -1.000000e+30 : f32
    %10 = vector.broadcast %cst : f32 to vector<1x12xf32>
    %11 = vector.broadcast %cst_3 : f32 to vector<1x12xf32>
    %12 = arith.select %9, %10, %11 : vector<1x12xi1>, vector<1x12xf32>
    %c0_4 = arith.constant 0 : index
    %c0_5 = arith.constant 0 : index
    %c0_6 = arith.constant 0 : index
    %13 = vector.load %arg4[%c0_4, %c0_5, %c0_6] : memref<1x1x32xf32, #tpu.memory_space<vmem>>, vector<1x1x32xf32>
    %14 = vector.shape_cast %13 : vector<1x1x32xf32> to vector<1x32xf32>
    %c0_7 = arith.constant 0 : index
    %c0_8 = arith.constant 0 : index
    %c0_9 = arith.constant 0 : index
    %15 = vector.load %arg5[%c0_7, %c0_8, %c0_9] : memref<1x1x32xf32, #tpu.memory_space<vmem>>, vector<1x1x32xf32>
    %16 = vector.shape_cast %15 : vector<1x1x32xf32> to vector<1x32xf32>
    %cst_10 = arith.constant dense<0.000000e+00> : vector<12xf32>
    %17 = vector.multi_reduction <add>, %4, %cst_10 [1] : vector<12x32xf32> to vector<12xf32>
    %18 = vector.shape_cast %17 : vector<12xf32> to vector<12x1xf32>
    %cst_11 = arith.constant 3.200000e+01 : f32
    %19 = vector.broadcast %cst_11 : f32 to vector<12x1xf32>
    %20 = arith.divf %18, %19 : vector<12x1xf32>
    %21 = vector.broadcast %20 : vector<12x1xf32> to vector<12x32xf32>
    %22 = arith.subf %4, %21 : vector<12x32xf32>
    %23 = arith.mulf %22, %22 : vector<12x32xf32>
    %cst_12 = arith.constant dense<0.000000e+00> : vector<12xf32>
    %24 = vector.multi_reduction <add>, %23, %cst_12 [1] : vector<12x32xf32> to vector<12xf32>
    %25 = vector.shape_cast %24 : vector<12xf32> to vector<12x1xf32>
    %cst_13 = arith.constant 3.200000e+01 : f32
    %26 = vector.broadcast %cst_13 : f32 to vector<12x1xf32>
    %27 = arith.divf %25, %26 : vector<12x1xf32>
    %28 = vector.broadcast %20 : vector<12x1xf32> to vector<12x32xf32>
    %29 = arith.subf %4, %28 : vector<12x32xf32>
    %cst_14 = arith.constant 9.99999974E-6 : f32
    %30 = vector.broadcast %cst_14 : f32 to vector<12x1xf32>
    %31 = arith.addf %27, %30 : vector<12x1xf32>
    %32 = math.rsqrt %31 : vector<12x1xf32>
    %33 = vector.broadcast %32 : vector<12x1xf32> to vector<12x32xf32>
    %34 = arith.mulf %29, %33 : vector<12x32xf32>
    %35 = vector.broadcast %14 : vector<1x32xf32> to vector<12x32xf32>
    %36 = arith.mulf %34, %35 : vector<12x32xf32>
    %37 = vector.broadcast %16 : vector<1x32xf32> to vector<12x32xf32>
    %38 = arith.addf %36, %37 : vector<12x32xf32>
    %39 = arith.truncf %38 : vector<12x32xf32> to vector<12x32xbf16>
    %c0_15 = arith.constant 0 : index
    %c0_16 = arith.constant 0 : index
    %c0_17 = arith.constant 0 : index
    %40 = vector.load %arg6[%c0_15, %c0_16, %c0_17] : memref<1x32x96xbf16, #tpu.memory_space<vmem>>, vector<1x32x96xbf16>
    %41 = vector.shape_cast %40 : vector<1x32x96xbf16> to vector<32x96xbf16>
    %cst_18 = arith.constant dense<0.000000e+00> : vector<12x96xf32>
    %42 = tpu.matmul %39, %41, %cst_18 {dimension_numbers = #tpu.dot_dimension_numbers<[1], [0], [0], [1], [0, 0, 1, 1], [], []>} : vector<12x32xbf16>, vector<32x96xbf16>, vector<12x96xf32> -> vector<12x96xf32>
    %c0_19 = arith.constant 0 : index
    %c0_20 = arith.constant 0 : index
    %c0_21 = arith.constant 0 : index
    %43 = vector.load %arg7[%c0_19, %c0_20, %c0_21] : memref<1x1x96xf32, #tpu.memory_space<vmem>>, vector<1x1x96xf32>
    %44 = vector.shape_cast %43 : vector<1x1x96xf32> to vector<1x96xf32>
    %45 = vector.broadcast %44 : vector<1x96xf32> to vector<12x96xf32>
    %46 = arith.addf %42, %45 : vector<12x96xf32>
    %47 = vector.extract_strided_slice %46 {offsets = [0, 0], sizes = [12, 8], strides = [1, 1]} : vector<12x96xf32> to vector<12x8xf32>
    %48 = arith.truncf %47 : vector<12x8xf32> to vector<12x8xbf16>
    %49 = vector.extract_strided_slice %46 {offsets = [0, 32], sizes = [12, 8], strides = [1, 1]} : vector<12x96xf32> to vector<12x8xf32>
    %50 = arith.truncf %49 : vector<12x8xf32> to vector<12x8xbf16>
    %51 = vector.extract_strided_slice %46 {offsets = [0, 64], sizes = [12, 8], strides = [1, 1]} : vector<12x96xf32> to vector<12x8xf32>
    %52 = arith.truncf %51 : vector<12x8xf32> to vector<12x8xbf16>
    "tpu.trace_start"() <{level = 10 : i32, message = "qd,kd->qk"}> : () -> ()
    %cst_22 = arith.constant dense<0.000000e+00> : vector<12x12xf32>
    %53 = tpu.matmul %48, %50, %cst_22 {dimension_numbers = #tpu.dot_dimension_numbers<[1], [1], [0], [0], [0, 0, 1, 0], [], []>} : vector<12x8xbf16>, vector<12x8xbf16>, vector<12x12xf32> -> vector<12x12xf32>
    "tpu.trace_stop"() : () -> ()
    %54 = vector.broadcast %12 : vector<1x12xf32> to vector<12x12xf32>
    %55 = arith.addf %53, %54 : vector<12x12xf32>
    %cst_23 = arith.constant dense<0xFF800000> : vector<12xf32>
    %56 = vector.multi_reduction <maximumf>, %55, %cst_23 [1] : vector<12x12xf32> to vector<12xf32>
    %57 = vector.shape_cast %56 : vector<12xf32> to vector<12x1xf32>
    %58 = vector.broadcast %57 : vector<12x1xf32> to vector<12x12xf32>
    %59 = arith.subf %55, %58 : vector<12x12xf32>
    %60 = math.exp %59 : vector<12x12xf32>
    %cst_24 = arith.constant dense<0.000000e+00> : vector<12xf32>
    %61 = vector.multi_reduction <add>, %60, %cst_24 [1] : vector<12x12xf32> to vector<12xf32>
    %62 = vector.shape_cast %61 : vector<12xf32> to vector<12x1xf32>
    %63 = tpu.reciprocal %62 {approx = true} : vector<12x1xf32> -> vector<12x1xf32>
    %64 = vector.broadcast %63 : vector<12x1xf32> to vector<12x12xf32>
    %65 = arith.mulf %60, %64 : vector<12x12xf32>
    %66 = arith.truncf %65 : vector<12x12xf32> to vector<12x12xbf16>
    %cst_25 = arith.constant dense<0.000000e+00> : vector<12x8xf32>
    %67 = tpu.matmul %66, %52, %cst_25 {dimension_numbers = #tpu.dot_dimension_numbers<[1], [0], [0], [1], [0, 0, 1, 1], [], []>} : vector<12x12xbf16>, vector<12x8xbf16>, vector<12x8xf32> -> vector<12x8xf32>
    %68 = vector.extract_strided_slice %46 {offsets = [0, 8], sizes = [12, 8], strides = [1, 1]} : vector<12x96xf32> to vector<12x8xf32>
    %69 = arith.truncf %68 : vector<12x8xf32> to vector<12x8xbf16>
    %70 = vector.extract_strided_slice %46 {offsets = [0, 40], sizes = [12, 8], strides = [1, 1]} : vector<12x96xf32> to vector<12x8xf32>
    %71 = arith.truncf %70 : vector<12x8xf32> to vector<12x8xbf16>
    %72 = vector.extract_strided_slice %46 {offsets = [0, 72], sizes = [12, 8], strides = [1, 1]} : vector<12x96xf32> to vector<12x8xf32>
    %73 = arith.truncf %72 : vector<12x8xf32> to vector<12x8xbf16>
    "tpu.trace_start"() <{level = 10 : i32, message = "qd,kd->qk"}> : () -> ()
    %cst_26 = arith.constant dense<0.000000e+00> : vector<12x12xf32>
    %74 = tpu.matmul %69, %71, %cst_26 {dimension_numbers = #tpu.dot_dimension_numbers<[1], [1], [0], [0], [0, 0, 1, 0], [], []>} : vector<12x8xbf16>, vector<12x8xbf16>, vector<12x12xf32> -> vector<12x12xf32>
    "tpu.trace_stop"() : () -> ()
    %75 = vector.broadcast %12 : vector<1x12xf32> to vector<12x12xf32>
    %76 = arith.addf %74, %75 : vector<12x12xf32>
    %cst_27 = arith.constant dense<0xFF800000> : vector<12xf32>
    %77 = vector.multi_reduction <maximumf>, %76, %cst_27 [1] : vector<12x12xf32> to vector<12xf32>
    %78 = vector.shape_cast %77 : vector<12xf32> to vector<12x1xf32>
    %79 = vector.broadcast %78 : vector<12x1xf32> to vector<12x12xf32>
    %80 = arith.subf %76, %79 : vector<12x12xf32>
    %81 = math.exp %80 : vector<12x12xf32>
    %cst_28 = arith.constant dense<0.000000e+00> : vector<12xf32>
    %82 = vector.multi_reduction <add>, %81, %cst_28 [1] : vector<12x12xf32> to vector<12xf32>
    %83 = vector.shape_cast %82 : vector<12xf32> to vector<12x1xf32>
    %84 = tpu.reciprocal %83 {approx = true} : vector<12x1xf32> -> vector<12x1xf32>
    %85 = vector.broadcast %84 : vector<12x1xf32> to vector<12x12xf32>
    %86 = arith.mulf %81, %85 : vector<12x12xf32>
    %87 = arith.truncf %86 : vector<12x12xf32> to vector<12x12xbf16>
    %cst_29 = arith.constant dense<0.000000e+00> : vector<12x8xf32>
    %88 = tpu.matmul %87, %73, %cst_29 {dimension_numbers = #tpu.dot_dimension_numbers<[1], [0], [0], [1], [0, 0, 1, 1], [], []>} : vector<12x12xbf16>, vector<12x8xbf16>, vector<12x8xf32> -> vector<12x8xf32>
    %89 = vector.extract_strided_slice %46 {offsets = [0, 16], sizes = [12, 8], strides = [1, 1]} : vector<12x96xf32> to vector<12x8xf32>
    %90 = arith.truncf %89 : vector<12x8xf32> to vector<12x8xbf16>
    %91 = vector.extract_strided_slice %46 {offsets = [0, 48], sizes = [12, 8], strides = [1, 1]} : vector<12x96xf32> to vector<12x8xf32>
    %92 = arith.truncf %91 : vector<12x8xf32> to vector<12x8xbf16>
    %93 = vector.extract_strided_slice %46 {offsets = [0, 80], sizes = [12, 8], strides = [1, 1]} : vector<12x96xf32> to vector<12x8xf32>
    %94 = arith.truncf %93 : vector<12x8xf32> to vector<12x8xbf16>
    "tpu.trace_start"() <{level = 10 : i32, message = "qd,kd->qk"}> : () -> ()
    %cst_30 = arith.constant dense<0.000000e+00> : vector<12x12xf32>
    %95 = tpu.matmul %90, %92, %cst_30 {dimension_numbers = #tpu.dot_dimension_numbers<[1], [1], [0], [0], [0, 0, 1, 0], [], []>} : vector<12x8xbf16>, vector<12x8xbf16>, vector<12x12xf32> -> vector<12x12xf32>
    "tpu.trace_stop"() : () -> ()
    %96 = vector.broadcast %12 : vector<1x12xf32> to vector<12x12xf32>
    %97 = arith.addf %95, %96 : vector<12x12xf32>
    %cst_31 = arith.constant dense<0xFF800000> : vector<12xf32>
    %98 = vector.multi_reduction <maximumf>, %97, %cst_31 [1] : vector<12x12xf32> to vector<12xf32>
    %99 = vector.shape_cast %98 : vector<12xf32> to vector<12x1xf32>
    %100 = vector.broadcast %99 : vector<12x1xf32> to vector<12x12xf32>
    %101 = arith.subf %97, %100 : vector<12x12xf32>
    %102 = math.exp %101 : vector<12x12xf32>
    %cst_32 = arith.constant dense<0.000000e+00> : vector<12xf32>
    %103 = vector.multi_reduction <add>, %102, %cst_32 [1] : vector<12x12xf32> to vector<12xf32>
    %104 = vector.shape_cast %103 : vector<12xf32> to vector<12x1xf32>
    %105 = tpu.reciprocal %104 {approx = true} : vector<12x1xf32> -> vector<12x1xf32>
    %106 = vector.broadcast %105 : vector<12x1xf32> to vector<12x12xf32>
    %107 = arith.mulf %102, %106 : vector<12x12xf32>
    %108 = arith.truncf %107 : vector<12x12xf32> to vector<12x12xbf16>
    %cst_33 = arith.constant dense<0.000000e+00> : vector<12x8xf32>
    %109 = tpu.matmul %108, %94, %cst_33 {dimension_numbers = #tpu.dot_dimension_numbers<[1], [0], [0], [1], [0, 0, 1, 1], [], []>} : vector<12x12xbf16>, vector<12x8xbf16>, vector<12x8xf32> -> vector<12x8xf32>
    %110 = vector.extract_strided_slice %46 {offsets = [0, 24], sizes = [12, 8], strides = [1, 1]} : vector<12x96xf32> to vector<12x8xf32>
    %111 = arith.truncf %110 : vector<12x8xf32> to vector<12x8xbf16>
    %112 = vector.extract_strided_slice %46 {offsets = [0, 56], sizes = [12, 8], strides = [1, 1]} : vector<12x96xf32> to vector<12x8xf32>
    %113 = arith.truncf %112 : vector<12x8xf32> to vector<12x8xbf16>
    %114 = vector.extract_strided_slice %46 {offsets = [0, 88], sizes = [12, 8], strides = [1, 1]} : vector<12x96xf32> to vector<12x8xf32>
    %115 = arith.truncf %114 : vector<12x8xf32> to vector<12x8xbf16>
    "tpu.trace_start"() <{level = 10 : i32, message = "qd,kd->qk"}> : () -> ()
    %cst_34 = arith.constant dense<0.000000e+00> : vector<12x12xf32>
    %116 = tpu.matmul %111, %113, %cst_34 {dimension_numbers = #tpu.dot_dimension_numbers<[1], [1], [0], [0], [0, 0, 1, 0], [], []>} : vector<12x8xbf16>, vector<12x8xbf16>, vector<12x12xf32> -> vector<12x12xf32>
    "tpu.trace_stop"() : () -> ()
    %117 = vector.broadcast %12 : vector<1x12xf32> to vector<12x12xf32>
    %118 = arith.addf %116, %117 : vector<12x12xf32>
    %cst_35 = arith.constant dense<0xFF800000> : vector<12xf32>
    %119 = vector.multi_reduction <maximumf>, %118, %cst_35 [1] : vector<12x12xf32> to vector<12xf32>
    %120 = vector.shape_cast %119 : vector<12xf32> to vector<12x1xf32>
    %121 = vector.broadcast %120 : vector<12x1xf32> to vector<12x12xf32>
    %122 = arith.subf %118, %121 : vector<12x12xf32>
    %123 = math.exp %122 : vector<12x12xf32>
    %cst_36 = arith.constant dense<0.000000e+00> : vector<12xf32>
    %124 = vector.multi_reduction <add>, %123, %cst_36 [1] : vector<12x12xf32> to vector<12xf32>
    %125 = vector.shape_cast %124 : vector<12xf32> to vector<12x1xf32>
    %126 = tpu.reciprocal %125 {approx = true} : vector<12x1xf32> -> vector<12x1xf32>
    %127 = vector.broadcast %126 : vector<12x1xf32> to vector<12x12xf32>
    %128 = arith.mulf %123, %127 : vector<12x12xf32>
    %129 = arith.truncf %128 : vector<12x12xf32> to vector<12x12xbf16>
    %cst_37 = arith.constant dense<0.000000e+00> : vector<12x8xf32>
    %130 = tpu.matmul %129, %115, %cst_37 {dimension_numbers = #tpu.dot_dimension_numbers<[1], [0], [0], [1], [0, 0, 1, 1], [], []>} : vector<12x12xbf16>, vector<12x8xbf16>, vector<12x8xf32> -> vector<12x8xf32>
    %131 = tpu.concatenate %67, %88, %109, %130 in 1 : vector<12x8xf32>, vector<12x8xf32>, vector<12x8xf32>, vector<12x8xf32> -> vector<12x32xf32>
    %132 = arith.truncf %131 : vector<12x32xf32> to vector<12x32xbf16>
    %c0_38 = arith.constant 0 : index
    %c0_39 = arith.constant 0 : index
    %c0_40 = arith.constant 0 : index
    %133 = vector.load %arg8[%c0_38, %c0_39, %c0_40] : memref<1x32x32xbf16, #tpu.memory_space<vmem>>, vector<1x32x32xbf16>
    %134 = vector.shape_cast %133 : vector<1x32x32xbf16> to vector<32x32xbf16>
    %cst_41 = arith.constant dense<0.000000e+00> : vector<12x32xf32>
    %135 = tpu.matmul %132, %134, %cst_41 {dimension_numbers = #tpu.dot_dimension_numbers<[1], [0], [0], [1], [0, 0, 1, 1], [], []>} : vector<12x32xbf16>, vector<32x32xbf16>, vector<12x32xf32> -> vector<12x32xf32>
    %c0_42 = arith.constant 0 : index
    %c0_43 = arith.constant 0 : index
    %c0_44 = arith.constant 0 : index
    %136 = vector.load %arg9[%c0_42, %c0_43, %c0_44] : memref<1x1x32xf32, #tpu.memory_space<vmem>>, vector<1x1x32xf32>
    %137 = vector.shape_cast %136 : vector<1x1x32xf32> to vector<1x32xf32>
    %138 = vector.broadcast %137 : vector<1x32xf32> to vector<12x32xf32>
    %139 = arith.addf %135, %138 : vector<12x32xf32>
    %140 = arith.addf %4, %139 : vector<12x32xf32>
    %c0_45 = arith.constant 0 : index
    %c0_46 = arith.constant 0 : index
    %c0_47 = arith.constant 0 : index
    %141 = vector.load %arg10[%c0_45, %c0_46, %c0_47] : memref<1x1x32xf32, #tpu.memory_space<vmem>>, vector<1x1x32xf32>
    %142 = vector.shape_cast %141 : vector<1x1x32xf32> to vector<1x32xf32>
    %c0_48 = arith.constant 0 : index
    %c0_49 = arith.constant 0 : index
    %c0_50 = arith.constant 0 : index
    %143 = vector.load %arg11[%c0_48, %c0_49, %c0_50] : memref<1x1x32xf32, #tpu.memory_space<vmem>>, vector<1x1x32xf32>
    %144 = vector.shape_cast %143 : vector<1x1x32xf32> to vector<1x32xf32>
    %cst_51 = arith.constant dense<0.000000e+00> : vector<12xf32>
    %145 = vector.multi_reduction <add>, %140, %cst_51 [1] : vector<12x32xf32> to vector<12xf32>
    %146 = vector.shape_cast %145 : vector<12xf32> to vector<12x1xf32>
    %cst_52 = arith.constant 3.200000e+01 : f32
    %147 = vector.broadcast %cst_52 : f32 to vector<12x1xf32>
    %148 = arith.divf %146, %147 : vector<12x1xf32>
    %149 = vector.broadcast %148 : vector<12x1xf32> to vector<12x32xf32>
    %150 = arith.subf %140, %149 : vector<12x32xf32>
    %151 = arith.mulf %150, %150 : vector<12x32xf32>
    %cst_53 = arith.constant dense<0.000000e+00> : vector<12xf32>
    %152 = vector.multi_reduction <add>, %151, %cst_53 [1] : vector<12x32xf32> to vector<12xf32>
    %153 = vector.shape_cast %152 : vector<12xf32> to vector<12x1xf32>
    %cst_54 = arith.constant 3.200000e+01 : f32
    %154 = vector.broadcast %cst_54 : f32 to vector<12x1xf32>
    %155 = arith.divf %153, %154 : vector<12x1xf32>
    %156 = vector.broadcast %148 : vector<12x1xf32> to vector<12x32xf32>
    %157 = arith.subf %140, %156 : vector<12x32xf32>
    %cst_55 = arith.constant 9.99999974E-6 : f32
    %158 = vector.broadcast %cst_55 : f32 to vector<12x1xf32>
    %159 = arith.addf %155, %158 : vector<12x1xf32>
    %160 = math.rsqrt %159 : vector<12x1xf32>
    %161 = vector.broadcast %160 : vector<12x1xf32> to vector<12x32xf32>
    %162 = arith.mulf %157, %161 : vector<12x32xf32>
    %163 = vector.broadcast %142 : vector<1x32xf32> to vector<12x32xf32>
    %164 = arith.mulf %162, %163 : vector<12x32xf32>
    %165 = vector.broadcast %144 : vector<1x32xf32> to vector<12x32xf32>
    %166 = arith.addf %164, %165 : vector<12x32xf32>
    %167 = arith.truncf %166 : vector<12x32xf32> to vector<12x32xbf16>
    %c0_56 = arith.constant 0 : index
    %c0_57 = arith.constant 0 : index
    %c0_58 = arith.constant 0 : index
    %168 = vector.load %arg12[%c0_56, %c0_57, %c0_58] : memref<1x32x64xbf16, #tpu.memory_space<vmem>>, vector<1x32x64xbf16>
    %169 = vector.shape_cast %168 : vector<1x32x64xbf16> to vector<32x64xbf16>
    %cst_59 = arith.constant dense<0.000000e+00> : vector<12x64xf32>
    %170 = tpu.matmul %167, %169, %cst_59 {dimension_numbers = #tpu.dot_dimension_numbers<[1], [0], [0], [1], [0, 0, 1, 1], [], []>} : vector<12x32xbf16>, vector<32x64xbf16>, vector<12x64xf32> -> vector<12x64xf32>
    %c0_60 = arith.constant 0 : index
    %c0_61 = arith.constant 0 : index
    %c0_62 = arith.constant 0 : index
    %171 = vector.load %arg13[%c0_60, %c0_61, %c0_62] : memref<1x1x64xf32, #tpu.memory_space<vmem>>, vector<1x1x64xf32>
    %172 = vector.shape_cast %171 : vector<1x1x64xf32> to vector<1x64xf32>
    %173 = vector.broadcast %172 : vector<1x64xf32> to vector<12x64xf32>
    %174 = arith.addf %170, %173 : vector<12x64xf32>
    %cst_63 = arith.constant 0.000000e+00 : f32
    %175 = vector.broadcast %cst_63 : f32 to vector<12x64xf32>
    %176 = arith.maximumf %174, %175 : vector<12x64xf32>
    %177 = arith.truncf %176 : vector<12x64xf32> to vector<12x64xbf16>
    %c0_64 = arith.constant 0 : index
    %c0_65 = arith.constant 0 : index
    %c0_66 = arith.constant 0 : index
    %178 = vector.load %arg14[%c0_64, %c0_65, %c0_66] : memref<1x64x32xbf16, #tpu.memory_space<vmem>>, vector<1x64x32xbf16>
    %179 = vector.shape_cast %178 : vector<1x64x32xbf16> to vector<64x32xbf16>
    %cst_67 = arith.constant dense<0.000000e+00> : vector<12x32xf32>
    %180 = tpu.matmul %177, %179, %cst_67 {dimension_numbers = #tpu.dot_dimension_numbers<[1], [0], [0], [1], [0, 0, 1, 1], [], []>} : vector<12x64xbf16>, vector<64x32xbf16>, vector<12x32xf32> -> vector<12x32xf32>
    %c0_68 = arith.constant 0 : index
    %c0_69 = arith.constant 0 : index
    %c0_70 = arith.constant 0 : index
    %181 = vector.load %arg15[%c0_68, %c0_69, %c0_70] : memref<1x1x32xf32, #tpu.memory_space<vmem>>, vector<1x1x32xf32>
    %182 = vector.shape_cast %181 : vector<1x1x32xf32> to vector<1x32xf32>
    %183 = vector.broadcast %182 : vector<1x32xf32> to vector<12x32xf32>
    %184 = arith.addf %180, %183 : vector<12x32xf32>
    %185 = arith.addf %140, %184 : vector<12x32xf32>
    %c0_71 = arith.constant 0 : index
    %c0_72 = arith.constant 0 : index
    %c0_73 = arith.constant 0 : index
    %186 = vector.load %arg16[%c0_71, %c0_72, %c0_73] : memref<1x12x32xf32, #tpu.memory_space<vmem>>, vector<1x12x32xf32>
    %187 = vector.shape_cast %186 : vector<1x12x32xf32> to vector<12x32xf32>
    %188 = vector.shape_cast %185 : vector<12x32xf32> to vector<1x12x32xf32>
    tpu.vector_store %arg16[%c0_71, %c0_72, %c0_73], %188 {strides = array<i32>} : memref<1x12x32xf32, #tpu.memory_space<vmem>>, vector<1x12x32xf32>,
    return
  }
  func.func @transform_0(%arg0: i32, %arg1: i32, %arg2: memref<2xi32, #tpu.memory_space<smem>>) -> (i32, i32, i32) {
    %c0_i32 = arith.constant 0 : i32
    %c0_i32_0 = arith.constant 0 : i32
    %c0_i32_1 = arith.constant 0 : i32
    return %arg0, %c0_i32, %c0_i32_0 : i32, i32, i32
  }
  func.func @transform_1(%arg0: i32, %arg1: i32, %arg2: memref<2xi32, #tpu.memory_space<smem>>) -> (i32, i32, i32) {
    %c0_i32 = arith.constant 0 : i32
    %c0_i32_0 = arith.constant 0 : i32
    %c0_i32_1 = arith.constant 0 : i32
    return %arg1, %c0_i32, %c0_i32_0 : i32, i32, i32
  }
  func.func @transform_2(%arg0: i32, %arg1: i32, %arg2: memref<2xi32, #tpu.memory_space<smem>>) -> (i32, i32, i32) {
    %c0_i32 = arith.constant 0 : i32
    %c0_i32_0 = arith.constant 0 : i32
    %c0_i32_1 = arith.constant 0 : i32
    return %arg1, %c0_i32, %c0_i32_0 : i32, i32, i32
  }
  func.func @transform_3(%arg0: i32, %arg1: i32, %arg2: memref<2xi32, #tpu.memory_space<smem>>) -> (i32, i32, i32) {
    %c0_i32 = arith.constant 0 : i32
    %c0_i32_0 = arith.constant 0 : i32
    %c0_i32_1 = arith.constant 0 : i32
    return %arg1, %c0_i32, %c0_i32_0 : i32, i32, i32
  }
  func.func @transform_4(%arg0: i32, %arg1: i32, %arg2: memref<2xi32, #tpu.memory_space<smem>>) -> (i32, i32, i32) {
    %c0_i32 = arith.constant 0 : i32
    %c0_i32_0 = arith.constant 0 : i32
    %c0_i32_1 = arith.constant 0 : i32
    return %arg1, %c0_i32, %c0_i32_0 : i32, i32, i32
  }
  func.func @transform_5(%arg0: i32, %arg1: i32, %arg2: memref<2xi32, #tpu.memory_space<smem>>) -> (i32, i32, i32) {
    %c0_i32 = arith.constant 0 : i32
    %c0_i32_0 = arith.constant 0 : i32
    %c0_i32_1 = arith.constant 0 : i32
    return %arg1, %c0_i32, %c0_i32_0 : i32, i32, i32
  }
  func.func @transform_6(%arg0: i32, %arg1: i32, %arg2: memref<2xi32, #tpu.memory_space<smem>>) -> (i32, i32, i32) {
    %c0_i32 = arith.constant 0 : i32
    %c0_i32_0 = arith.constant 0 : i32
    %c0_i32_1 = arith.constant 0 : i32
    return %arg1, %c0_i32, %c0_i32_0 : i32, i32, i32
  }
  func.func @transform_7(%arg0: i32, %arg1: i32, %arg2: memref<2xi32, #tpu.memory_space<smem>>) -> (i32, i32, i32) {
    %c0_i32 = arith.constant 0 : i32
    %c0_i32_0 = arith.constant 0 : i32
    %c0_i32_1 = arith.constant 0 : i32
    return %arg1, %c0_i32, %c0_i32_0 : i32, i32, i32
  }
  func.func @transform_8(%arg0: i32, %arg1: i32, %arg2: memref<2xi32, #tpu.memory_space<smem>>) -> (i32, i32, i32) {
    %c0_i32 = arith.constant 0 : i32
    %c0_i32_0 = arith.constant 0 : i32
    %c0_i32_1 = arith.constant 0 : i32
    return %arg1, %c0_i32, %c0_i32_0 : i32, i32, i32
  }
  func.func @transform_9(%arg0: i32, %arg1: i32, %arg2: memref<2xi32, #tpu.memory_space<smem>>) -> (i32, i32, i32) {
    %c0_i32 = arith.constant 0 : i32
    %c0_i32_0 = arith.constant 0 : i32
    %c0_i32_1 = arith.constant 0 : i32
    return %arg1, %c0_i32, %c0_i32_0 : i32, i32, i32
  }
  func.func @transform_10(%arg0: i32, %arg1: i32, %arg2: memref<2xi32, #tpu.memory_space<smem>>) -> (i32, i32, i32) {
    %c0_i32 = arith.constant 0 : i32
    %c0_i32_0 = arith.constant 0 : i32
    %c0_i32_1 = arith.constant 0 : i32
    return %arg1, %c0_i32, %c0_i32_0 : i32, i32, i32
  }
  func.func @transform_11(%arg0: i32, %arg1: i32, %arg2: memref<2xi32, #tpu.memory_space<smem>>) -> (i32, i32, i32) {
    %c0_i32 = arith.constant 0 : i32
    %c0_i32_0 = arith.constant 0 : i32
    %c0_i32_1 = arith.constant 0 : i32
    return %arg1, %c0_i32, %c0_i32_0 : i32, i32, i32
  }
  func.func @transform_12(%arg0: i32, %arg1: i32, %arg2: memref<2xi32, #tpu.memory_space<smem>>) -> (i32, i32, i32) {
    %c0_i32 = arith.constant 0 : i32
    %c0_i32_0 = arith.constant 0 : i32
    %c0_i32_1 = arith.constant 0 : i32
    return %arg1, %c0_i32, %c0_i32_0 : i32, i32, i32
  }
  func.func @transform_13(%arg0: i32, %arg1: i32, %arg2: memref<2xi32, #tpu.memory_space<smem>>) -> (i32, i32, i32) {
    %c0_i32 = arith.constant 0 : i32
    %c0_i32_0 = arith.constant 0 : i32
    %c0_i32_1 = arith.constant 0 : i32
    return %arg0, %c0_i32, %c0_i32_0 : i32, i32, i32
  }
}

module attributes {stable_mosaic.version = 11 : i64} {
  func.func @ctc_head_kernel(%arg0: i32, %arg1: memref<2x12x32xf32, #tpu.memory_space<vmem>>, %arg2: memref<1x32xf32, #tpu.memory_space<vmem>>, %arg3: memref<1x32xf32, #tpu.memory_space<vmem>>, %arg4: memref<32x3584xbf16, #tpu.memory_space<vmem>>, %arg5: memref<1x3584xf32, #tpu.memory_space<vmem>>, %arg6: memref<2x16x1xi32, #tpu.memory_space<vmem>>, %arg7: memref<2x12x16xf32, #tpu.memory_space<vmem>>, %arg8: memref<2x4x1xi32, #tpu.memory_space<vmem>>, %arg9: memref<2x12x32xbf16, #tpu.memory_space<vmem>>, %arg10: memref<2x12x16xf32, #tpu.memory_space<vmem>>, %arg11: memref<2x12x1xf32, #tpu.memory_space<vmem>>, %arg12: memref<2x12x1xf32, #tpu.memory_space<vmem>>, %arg13: memref<2x4x1xf32, #tpu.memory_space<vmem>>, %arg14: memref<2x4x1xf32, #tpu.memory_space<vmem>>) attributes {dimension_semantics = [#tpu.dimension_semantics<arbitrary>], iteration_bounds = array<i64: 7>, scalar_prefetch = 0 : i64, scratch_operands = 6 : i64, tpu.core_type = #tpu.core_type<tc>, window_params = [{pipeline_mode = #tpu.pipeline_mode<synchronous>, transform_indices = @transform_0, window_bounds = array<i64: 2, 12, 32>}, {pipeline_mode = #tpu.pipeline_mode<synchronous>, transform_indices = @transform_1, window_bounds = array<i64: 1, 32>}, {pipeline_mode = #tpu.pipeline_mode<synchronous>, transform_indices = @transform_2, window_bounds = array<i64: 1, 32>}, {transform_indices = @transform_3, window_bounds = array<i64: 32, 3584>}, {transform_indices = @transform_4, window_bounds = array<i64: 1, 3584>}, {pipeline_mode = #tpu.pipeline_mode<synchronous>, transform_indices = @transform_5, window_bounds = array<i64: 2, 16, 1>}, {pipeline_mode = #tpu.pipeline_mode<synchronous>, transform_indices = @transform_6, window_bounds = array<i64: 2, 12, 16>}, {pipeline_mode = #tpu.pipeline_mode<synchronous>, transform_indices = @transform_7, window_bounds = array<i64: 2, 4, 1>}]} {
    %c0_i32 = arith.constant 0 : i32
    %0 = arith.cmpi eq, %arg0, %c0_i32 : i32
    %1 = arith.extui %0 : i1 to i32
    %c0_i32_0 = arith.constant 0 : i32
    %2 = arith.cmpi ne, %1, %c0_i32_0 : i32
    scf.if %2 {
      %c0_97 = arith.constant 0 : index
      %c0_98 = arith.constant 0 : index
      %c0_99 = arith.constant 0 : index
      %154 = vector.load %arg1[%c0_97, %c0_98, %c0_99] : memref<2x12x32xf32, #tpu.memory_space<vmem>>, vector<2x12x32xf32>
      %c0_100 = arith.constant 0 : index
      %c0_101 = arith.constant 0 : index
      %155 = vector.load %arg2[%c0_100, %c0_101] : memref<1x32xf32, #tpu.memory_space<vmem>>, vector<1x32xf32>
      %c0_102 = arith.constant 0 : index
      %c0_103 = arith.constant 0 : index
      %156 = vector.load %arg3[%c0_102, %c0_103] : memref<1x32xf32, #tpu.memory_space<vmem>>, vector<1x32xf32>
      %cst_104 = arith.constant dense<0.000000e+00> : vector<2x12xf32>
      %157 = vector.multi_reduction <add>, %154, %cst_104 [2] : vector<2x12x32xf32> to vector<2x12xf32>
      %158 = vector.shape_cast %157 : vector<2x12xf32> to vector<2x12x1xf32>
      %cst_105 = arith.constant 3.200000e+01 : f32
      %159 = vector.broadcast %cst_105 : f32 to vector<2x12x1xf32>
      %160 = arith.divf %158, %159 : vector<2x12x1xf32>
      %161 = vector.broadcast %160 : vector<2x12x1xf32> to vector<2x12x32xf32>
      %162 = arith.subf %154, %161 : vector<2x12x32xf32>
      %163 = arith.mulf %162, %162 : vector<2x12x32xf32>
      %cst_106 = arith.constant dense<0.000000e+00> : vector<2x12xf32>
      %164 = vector.multi_reduction <add>, %163, %cst_106 [2] : vector<2x12x32xf32> to vector<2x12xf32>
      %165 = vector.shape_cast %164 : vector<2x12xf32> to vector<2x12x1xf32>
      %cst_107 = arith.constant 3.200000e+01 : f32
      %166 = vector.broadcast %cst_107 : f32 to vector<2x12x1xf32>
      %167 = arith.divf %165, %166 : vector<2x12x1xf32>
      %168 = vector.broadcast %160 : vector<2x12x1xf32> to vector<2x12x32xf32>
      %169 = arith.subf %154, %168 : vector<2x12x32xf32>
      %cst_108 = arith.constant 9.99999974E-6 : f32
      %170 = vector.broadcast %cst_108 : f32 to vector<2x12x1xf32>
      %171 = arith.addf %167, %170 : vector<2x12x1xf32>
      %172 = math.rsqrt %171 : vector<2x12x1xf32>
      %173 = vector.broadcast %172 : vector<2x12x1xf32> to vector<2x12x32xf32>
      %174 = arith.mulf %169, %173 : vector<2x12x32xf32>
      %175 = vector.shape_cast %155 : vector<1x32xf32> to vector<1x1x32xf32>
      %176 = vector.broadcast %175 : vector<1x1x32xf32> to vector<2x12x32xf32>
      %177 = arith.mulf %174, %176 : vector<2x12x32xf32>
      %178 = vector.shape_cast %156 : vector<1x32xf32> to vector<1x1x32xf32>
      %179 = vector.broadcast %178 : vector<1x1x32xf32> to vector<2x12x32xf32>
      %180 = arith.addf %177, %179 : vector<2x12x32xf32>
      %181 = arith.truncf %180 : vector<2x12x32xf32> to vector<2x12x32xbf16>
      %c0_109 = arith.constant 0 : index
      %c0_110 = arith.constant 0 : index
      %c0_111 = arith.constant 0 : index
      %182 = vector.load %arg9[%c0_109, %c0_110, %c0_111] : memref<2x12x32xbf16, #tpu.memory_space<vmem>>, vector<2x12x32xbf16>
      tpu.vector_store %arg9[%c0_109, %c0_110, %c0_111], %181 {strides = array<i32>} : memref<2x12x32xbf16, #tpu.memory_space<vmem>>, vector<2x12x32xbf16>,
      %cst_112 = arith.constant 0.000000e+00 : f32
      %183 = vector.broadcast %cst_112 : f32 to vector<2x12x16xf32>
      %c0_113 = arith.constant 0 : index
      %c0_114 = arith.constant 0 : index
      %c0_115 = arith.constant 0 : index
      %184 = vector.load %arg10[%c0_113, %c0_114, %c0_115] : memref<2x12x16xf32, #tpu.memory_space<vmem>>, vector<2x12x16xf32>
      tpu.vector_store %arg10[%c0_113, %c0_114, %c0_115], %183 {strides = array<i32>} : memref<2x12x16xf32, #tpu.memory_space<vmem>>, vector<2x12x16xf32>,
      %cst_116 = arith.constant -1.000000e+30 : f32
      %185 = vector.broadcast %cst_116 : f32 to vector<2x12x1xf32>
      %c0_117 = arith.constant 0 : index
      %c0_118 = arith.constant 0 : index
      %c0_119 = arith.constant 0 : index
      %186 = vector.load %arg11[%c0_117, %c0_118, %c0_119] : memref<2x12x1xf32, #tpu.memory_space<vmem>>, vector<2x12x1xf32>
      tpu.vector_store %arg11[%c0_117, %c0_118, %c0_119], %185 {strides = array<i32>} : memref<2x12x1xf32, #tpu.memory_space<vmem>>, vector<2x12x1xf32>,
      %cst_120 = arith.constant 0.000000e+00 : f32
      %187 = vector.broadcast %cst_120 : f32 to vector<2x12x1xf32>
      %c0_121 = arith.constant 0 : index
      %c0_122 = arith.constant 0 : index
      %c0_123 = arith.constant 0 : index
      %188 = vector.load %arg12[%c0_121, %c0_122, %c0_123] : memref<2x12x1xf32, #tpu.memory_space<vmem>>, vector<2x12x1xf32>
      tpu.vector_store %arg12[%c0_121, %c0_122, %c0_123], %187 {strides = array<i32>} : memref<2x12x1xf32, #tpu.memory_space<vmem>>, vector<2x12x1xf32>,
      %cst_124 = arith.constant -1.000000e+30 : f32
      %189 = vector.broadcast %cst_124 : f32 to vector<2x4x1xf32>
      %c0_125 = arith.constant 0 : index
      %c0_126 = arith.constant 0 : index
      %c0_127 = arith.constant 0 : index
      %190 = vector.load %arg13[%c0_125, %c0_126, %c0_127] : memref<2x4x1xf32, #tpu.memory_space<vmem>>, vector<2x4x1xf32>
      tpu.vector_store %arg13[%c0_125, %c0_126, %c0_127], %189 {strides = array<i32>} : memref<2x4x1xf32, #tpu.memory_space<vmem>>, vector<2x4x1xf32>,
      %cst_128 = arith.constant 0.000000e+00 : f32
      %191 = vector.broadcast %cst_128 : f32 to vector<2x4x1xf32>
      %c0_129 = arith.constant 0 : index
      %c0_130 = arith.constant 0 : index
      %c0_131 = arith.constant 0 : index
      %192 = vector.load %arg14[%c0_129, %c0_130, %c0_131] : memref<2x4x1xf32, #tpu.memory_space<vmem>>, vector<2x4x1xf32>
      tpu.vector_store %arg14[%c0_129, %c0_130, %c0_131], %191 {strides = array<i32>} : memref<2x4x1xf32, #tpu.memory_space<vmem>>, vector<2x4x1xf32>,
    } else {
    }
    %c0 = arith.constant 0 : index
    %c0_1 = arith.constant 0 : index
    %3 = vector.load %arg4[%c0, %c0_1] : memref<32x3584xbf16, #tpu.memory_space<vmem>>, vector<32x3584xbf16>
    %c0_2 = arith.constant 0 : index
    %c0_3 = arith.constant 0 : index
    %4 = vector.load %arg5[%c0_2, %c0_3] : memref<1x3584xf32, #tpu.memory_space<vmem>>, vector<1x3584xf32>
    %c3584_i32 = arith.constant 3584 : i32
    %5 = arith.muli %arg0, %c3584_i32 : i32
    %6 = arith.sitofp %5 : i32 to f32
    %c0_4 = arith.constant 0 : index
    %c0_5 = arith.constant 0 : index
    %c0_6 = arith.constant 0 : index
    %7 = vector.load %arg9[%c0_4, %c0_5, %c0_6] : memref<2x12x32xbf16, #tpu.memory_space<vmem>>, vector<1x12x32xbf16>
    %8 = vector.shape_cast %7 : vector<1x12x32xbf16> to vector<12x32xbf16>
    %cst = arith.constant dense<0.000000e+00> : vector<12x3584xf32>
    %9 = tpu.matmul %8, %3, %cst {dimension_numbers = #tpu.dot_dimension_numbers<[1], [0], [0], [1], [0, 0, 1, 1], [], []>} : vector<12x32xbf16>, vector<32x3584xbf16>, vector<12x3584xf32> -> vector<12x3584xf32>
    %10 = vector.broadcast %4 : vector<1x3584xf32> to vector<12x3584xf32>
    %11 = arith.addf %9, %10 : vector<12x3584xf32>
    %cst_7 = arith.constant dense<0xFF800000> : vector<12xf32>
    %12 = vector.multi_reduction <maximumf>, %11, %cst_7 [1] : vector<12x3584xf32> to vector<12xf32>
    %13 = vector.shape_cast %12 : vector<12xf32> to vector<12x1xf32>
    %c0_8 = arith.constant 0 : index
    %c0_9 = arith.constant 0 : index
    %c0_10 = arith.constant 0 : index
    %14 = vector.load %arg11[%c0_8, %c0_9, %c0_10] : memref<2x12x1xf32, #tpu.memory_space<vmem>>, vector<1x12x1xf32>
    %15 = vector.shape_cast %14 : vector<1x12x1xf32> to vector<12x1xf32>
    %16 = arith.maximumf %15, %13 : vector<12x1xf32>
    %c0_11 = arith.constant 0 : index
    %c0_12 = arith.constant 0 : index
    %c0_13 = arith.constant 0 : index
    %17 = vector.load %arg12[%c0_11, %c0_12, %c0_13] : memref<2x12x1xf32, #tpu.memory_space<vmem>>, vector<1x12x1xf32>
    %18 = vector.shape_cast %17 : vector<1x12x1xf32> to vector<12x1xf32>
    %19 = arith.subf %15, %16 : vector<12x1xf32>
    %20 = math.exp %19 : vector<12x1xf32>
    %21 = arith.mulf %18, %20 : vector<12x1xf32>
    %22 = vector.broadcast %16 : vector<12x1xf32> to vector<12x3584xf32>
    %23 = arith.subf %11, %22 : vector<12x3584xf32>
    %24 = math.exp %23 : vector<12x3584xf32>
    %cst_14 = arith.constant dense<0.000000e+00> : vector<12xf32>
    %25 = vector.multi_reduction <add>, %24, %cst_14 [1] : vector<12x3584xf32> to vector<12xf32>
    %26 = vector.shape_cast %25 : vector<12xf32> to vector<12x1xf32>
    %27 = arith.addf %21, %26 : vector<12x1xf32>
    %c0_15 = arith.constant 0 : index
    %c0_16 = arith.constant 0 : index
    %c0_17 = arith.constant 0 : index
    %28 = vector.load %arg12[%c0_15, %c0_16, %c0_17] : memref<2x12x1xf32, #tpu.memory_space<vmem>>, vector<1x12x1xf32>
    %29 = vector.shape_cast %28 : vector<1x12x1xf32> to vector<12x1xf32>
    %30 = vector.shape_cast %27 : vector<12x1xf32> to vector<1x12x1xf32>
    tpu.vector_store %arg12[%c0_15, %c0_16, %c0_17], %30 {strides = array<i32>} : memref<2x12x1xf32, #tpu.memory_space<vmem>>, vector<1x12x1xf32>,
    %c0_18 = arith.constant 0 : index
    %c0_19 = arith.constant 0 : index
    %c0_20 = arith.constant 0 : index
    %31 = vector.load %arg11[%c0_18, %c0_19, %c0_20] : memref<2x12x1xf32, #tpu.memory_space<vmem>>, vector<1x12x1xf32>
    %32 = vector.shape_cast %31 : vector<1x12x1xf32> to vector<12x1xf32>
    %33 = vector.shape_cast %16 : vector<12x1xf32> to vector<1x12x1xf32>
    tpu.vector_store %arg11[%c0_18, %c0_19, %c0_20], %33 {strides = array<i32>} : memref<2x12x1xf32, #tpu.memory_space<vmem>>, vector<1x12x1xf32>,
    %34 = vector.extract_strided_slice %11 {offsets = [0, 0], sizes = [4, 3584], strides = [1, 1]} : vector<12x3584xf32> to vector<4x3584xf32>
    %cst_21 = arith.constant dense<0xFF800000> : vector<4xf32>
    %35 = vector.multi_reduction <maximumf>, %34, %cst_21 [1] : vector<4x3584xf32> to vector<4xf32>
    %36 = vector.shape_cast %35 : vector<4xf32> to vector<4x1xf32>
    %37 = tpu.iota {dimensions = array<i32: 1>} : vector<4x3584xi32>
    %38 = arith.sitofp %37 : vector<4x3584xi32> to vector<4x3584xf32>
    %39 = vector.broadcast %36 : vector<4x1xf32> to vector<4x3584xf32>
    %40 = arith.cmpf oeq, %34, %39 : vector<4x3584xf32>
    %cst_22 = arith.constant 1.000000e+09 : f32
    %41 = vector.broadcast %cst_22 : f32 to vector<4x3584xf32>
    %42 = arith.select %40, %38, %41 : vector<4x3584xi1>, vector<4x3584xf32>
    %cst_23 = arith.constant dense<0x7F800000> : vector<4xf32>
    %43 = vector.multi_reduction <minimumf>, %42, %cst_23 [1] : vector<4x3584xf32> to vector<4xf32>
    %44 = vector.shape_cast %43 : vector<4xf32> to vector<4x1xf32>
    %c0_24 = arith.constant 0 : index
    %c0_25 = arith.constant 0 : index
    %c0_26 = arith.constant 0 : index
    %45 = vector.load %arg13[%c0_24, %c0_25, %c0_26] : memref<2x4x1xf32, #tpu.memory_space<vmem>>, vector<1x4x1xf32>
    %46 = vector.shape_cast %45 : vector<1x4x1xf32> to vector<4x1xf32>
    %47 = arith.cmpf ogt, %36, %46 : vector<4x1xf32>
    %48 = vector.broadcast %6 : f32 to vector<4x1xf32>
    %49 = arith.addf %44, %48 : vector<4x1xf32>
    %c0_27 = arith.constant 0 : index
    %c0_28 = arith.constant 0 : index
    %c0_29 = arith.constant 0 : index
    %50 = vector.load %arg14[%c0_27, %c0_28, %c0_29] : memref<2x4x1xf32, #tpu.memory_space<vmem>>, vector<1x4x1xf32>
    %51 = vector.shape_cast %50 : vector<1x4x1xf32> to vector<4x1xf32>
    %52 = arith.select %47, %49, %51 : vector<4x1xi1>, vector<4x1xf32>
    %c0_30 = arith.constant 0 : index
    %c0_31 = arith.constant 0 : index
    %c0_32 = arith.constant 0 : index
    %53 = vector.load %arg14[%c0_30, %c0_31, %c0_32] : memref<2x4x1xf32, #tpu.memory_space<vmem>>, vector<1x4x1xf32>
    %54 = vector.shape_cast %53 : vector<1x4x1xf32> to vector<4x1xf32>
    %55 = vector.shape_cast %52 : vector<4x1xf32> to vector<1x4x1xf32>
    tpu.vector_store %arg14[%c0_30, %c0_31, %c0_32], %55 {strides = array<i32>} : memref<2x4x1xf32, #tpu.memory_space<vmem>>, vector<1x4x1xf32>,
    %c0_33 = arith.constant 0 : index
    %c0_34 = arith.constant 0 : index
    %c0_35 = arith.constant 0 : index
    %56 = vector.load %arg13[%c0_33, %c0_34, %c0_35] : memref<2x4x1xf32, #tpu.memory_space<vmem>>, vector<1x4x1xf32>
    %57 = vector.shape_cast %56 : vector<1x4x1xf32> to vector<4x1xf32>
    %58 = arith.select %47, %36, %57 : vector<4x1xi1>, vector<4x1xf32>
    %c0_36 = arith.constant 0 : index
    %c0_37 = arith.constant 0 : index
    %c0_38 = arith.constant 0 : index
    %59 = vector.load %arg13[%c0_36, %c0_37, %c0_38] : memref<2x4x1xf32, #tpu.memory_space<vmem>>, vector<1x4x1xf32>
    %60 = vector.shape_cast %59 : vector<1x4x1xf32> to vector<4x1xf32>
    %61 = vector.shape_cast %58 : vector<4x1xf32> to vector<1x4x1xf32>
    tpu.vector_store %arg13[%c0_36, %c0_37, %c0_38], %61 {strides = array<i32>} : memref<2x4x1xf32, #tpu.memory_space<vmem>>, vector<1x4x1xf32>,
    %62 = tpu.iota {dimensions = array<i32: 1>} : vector<16x3584xi32>
    %c3584_i32_39 = arith.constant 3584 : i32
    %63 = arith.muli %arg0, %c3584_i32_39 : i32
    %64 = vector.broadcast %63 : i32 to vector<16x3584xi32>
    %65 = arith.addi %62, %64 : vector<16x3584xi32>
    %c0_40 = arith.constant 0 : index
    %c0_41 = arith.constant 0 : index
    %c0_42 = arith.constant 0 : index
    %66 = vector.load %arg6[%c0_40, %c0_41, %c0_42] : memref<2x16x1xi32, #tpu.memory_space<vmem>>, vector<1x16x1xi32>
    %67 = vector.shape_cast %66 : vector<1x16x1xi32> to vector<16x1xi32>
    %68 = vector.broadcast %67 : vector<16x1xi32> to vector<16x3584xi32>
    %69 = arith.cmpi eq, %65, %68 : vector<16x3584xi32>
    %70 = arith.extui %69 : vector<16x3584xi1> to vector<16x3584xi32>
    %71 = arith.sitofp %70 : vector<16x3584xi32> to vector<16x3584xf32>
    %c0_43 = arith.constant 0 : index
    %c0_44 = arith.constant 0 : index
    %c0_45 = arith.constant 0 : index
    %72 = vector.load %arg10[%c0_43, %c0_44, %c0_45] : memref<2x12x16xf32, #tpu.memory_space<vmem>>, vector<1x12x16xf32>
    %73 = vector.shape_cast %72 : vector<1x12x16xf32> to vector<12x16xf32>
    "tpu.trace_start"() <{level = 10 : i32, message = "sk,gk->sg"}> : () -> ()
    %cst_46 = arith.constant dense<0.000000e+00> : vector<12x16xf32>
    %74 = tpu.matmul %11, %71, %cst_46 {dimension_numbers = #tpu.dot_dimension_numbers<[1], [1], [0], [0], [0, 0, 1, 0], [], []>} : vector<12x3584xf32>, vector<16x3584xf32>, vector<12x16xf32> -> vector<12x16xf32>
    "tpu.trace_stop"() : () -> ()
    %75 = arith.addf %73, %74 : vector<12x16xf32>
    %c0_47 = arith.constant 0 : index
    %c0_48 = arith.constant 0 : index
    %c0_49 = arith.constant 0 : index
    %76 = vector.load %arg10[%c0_47, %c0_48, %c0_49] : memref<2x12x16xf32, #tpu.memory_space<vmem>>, vector<1x12x16xf32>
    %77 = vector.shape_cast %76 : vector<1x12x16xf32> to vector<12x16xf32>
    %78 = vector.shape_cast %75 : vector<12x16xf32> to vector<1x12x16xf32>
    tpu.vector_store %arg10[%c0_47, %c0_48, %c0_49], %78 {strides = array<i32>} : memref<2x12x16xf32, #tpu.memory_space<vmem>>, vector<1x12x16xf32>,
    %c1 = arith.constant 1 : index
    %c0_50 = arith.constant 0 : index
    %c0_51 = arith.constant 0 : index
    %79 = vector.load %arg9[%c1, %c0_50, %c0_51] : memref<2x12x32xbf16, #tpu.memory_space<vmem>>, vector<1x12x32xbf16>
    %80 = vector.shape_cast %79 : vector<1x12x32xbf16> to vector<12x32xbf16>
    %cst_52 = arith.constant dense<0.000000e+00> : vector<12x3584xf32>
    %81 = tpu.matmul %80, %3, %cst_52 {dimension_numbers = #tpu.dot_dimension_numbers<[1], [0], [0], [1], [0, 0, 1, 1], [], []>} : vector<12x32xbf16>, vector<32x3584xbf16>, vector<12x3584xf32> -> vector<12x3584xf32>
    %82 = vector.broadcast %4 : vector<1x3584xf32> to vector<12x3584xf32>
    %83 = arith.addf %81, %82 : vector<12x3584xf32>
    %cst_53 = arith.constant dense<0xFF800000> : vector<12xf32>
    %84 = vector.multi_reduction <maximumf>, %83, %cst_53 [1] : vector<12x3584xf32> to vector<12xf32>
    %85 = vector.shape_cast %84 : vector<12xf32> to vector<12x1xf32>
    %c1_54 = arith.constant 1 : index
    %c0_55 = arith.constant 0 : index
    %c0_56 = arith.constant 0 : index
    %86 = vector.load %arg11[%c1_54, %c0_55, %c0_56] : memref<2x12x1xf32, #tpu.memory_space<vmem>>, vector<1x12x1xf32>
    %87 = vector.shape_cast %86 : vector<1x12x1xf32> to vector<12x1xf32>
    %88 = arith.maximumf %87, %85 : vector<12x1xf32>
    %c1_57 = arith.constant 1 : index
    %c0_58 = arith.constant 0 : index
    %c0_59 = arith.constant 0 : index
    %89 = vector.load %arg12[%c1_57, %c0_58, %c0_59] : memref<2x12x1xf32, #tpu.memory_space<vmem>>, vector<1x12x1xf32>
    %90 = vector.shape_cast %89 : vector<1x12x1xf32> to vector<12x1xf32>
    %91 = arith.subf %87, %88 : vector<12x1xf32>
    %92 = math.exp %91 : vector<12x1xf32>
    %93 = arith.mulf %90, %92 : vector<12x1xf32>
    %94 = vector.broadcast %88 : vector<12x1xf32> to vector<12x3584xf32>
    %95 = arith.subf %83, %94 : vector<12x3584xf32>
    %96 = math.exp %95 : vector<12x3584xf32>
    %cst_60 = arith.constant dense<0.000000e+00> : vector<12xf32>
    %97 = vector.multi_reduction <add>, %96, %cst_60 [1] : vector<12x3584xf32> to vector<12xf32>
    %98 = vector.shape_cast %97 : vector<12xf32> to vector<12x1xf32>
    %99 = arith.addf %93, %98 : vector<12x1xf32>
    %c1_61 = arith.constant 1 : index
    %c0_62 = arith.constant 0 : index
    %c0_63 = arith.constant 0 : index
    %100 = vector.load %arg12[%c1_61, %c0_62, %c0_63] : memref<2x12x1xf32, #tpu.memory_space<vmem>>, vector<1x12x1xf32>
    %101 = vector.shape_cast %100 : vector<1x12x1xf32> to vector<12x1xf32>
    %102 = vector.shape_cast %99 : vector<12x1xf32> to vector<1x12x1xf32>
    tpu.vector_store %arg12[%c1_61, %c0_62, %c0_63], %102 {strides = array<i32>} : memref<2x12x1xf32, #tpu.memory_space<vmem>>, vector<1x12x1xf32>,
    %c1_64 = arith.constant 1 : index
    %c0_65 = arith.constant 0 : index
    %c0_66 = arith.constant 0 : index
    %103 = vector.load %arg11[%c1_64, %c0_65, %c0_66] : memref<2x12x1xf32, #tpu.memory_space<vmem>>, vector<1x12x1xf32>
    %104 = vector.shape_cast %103 : vector<1x12x1xf32> to vector<12x1xf32>
    %105 = vector.shape_cast %88 : vector<12x1xf32> to vector<1x12x1xf32>
    tpu.vector_store %arg11[%c1_64, %c0_65, %c0_66], %105 {strides = array<i32>} : memref<2x12x1xf32, #tpu.memory_space<vmem>>, vector<1x12x1xf32>,
    %106 = vector.extract_strided_slice %83 {offsets = [0, 0], sizes = [4, 3584], strides = [1, 1]} : vector<12x3584xf32> to vector<4x3584xf32>
    %cst_67 = arith.constant dense<0xFF800000> : vector<4xf32>
    %107 = vector.multi_reduction <maximumf>, %106, %cst_67 [1] : vector<4x3584xf32> to vector<4xf32>
    %108 = vector.shape_cast %107 : vector<4xf32> to vector<4x1xf32>
    %109 = tpu.iota {dimensions = array<i32: 1>} : vector<4x3584xi32>
    %110 = arith.sitofp %109 : vector<4x3584xi32> to vector<4x3584xf32>
    %111 = vector.broadcast %108 : vector<4x1xf32> to vector<4x3584xf32>
    %112 = arith.cmpf oeq, %106, %111 : vector<4x3584xf32>
    %cst_68 = arith.constant 1.000000e+09 : f32
    %113 = vector.broadcast %cst_68 : f32 to vector<4x3584xf32>
    %114 = arith.select %112, %110, %113 : vector<4x3584xi1>, vector<4x3584xf32>
    %cst_69 = arith.constant dense<0x7F800000> : vector<4xf32>
    %115 = vector.multi_reduction <minimumf>, %114, %cst_69 [1] : vector<4x3584xf32> to vector<4xf32>
    %116 = vector.shape_cast %115 : vector<4xf32> to vector<4x1xf32>
    %c1_70 = arith.constant 1 : index
    %c0_71 = arith.constant 0 : index
    %c0_72 = arith.constant 0 : index
    %117 = vector.load %arg13[%c1_70, %c0_71, %c0_72] : memref<2x4x1xf32, #tpu.memory_space<vmem>>, vector<1x4x1xf32>
    %118 = vector.shape_cast %117 : vector<1x4x1xf32> to vector<4x1xf32>
    %119 = arith.cmpf ogt, %108, %118 : vector<4x1xf32>
    %120 = vector.broadcast %6 : f32 to vector<4x1xf32>
    %121 = arith.addf %116, %120 : vector<4x1xf32>
    %c1_73 = arith.constant 1 : index
    %c0_74 = arith.constant 0 : index
    %c0_75 = arith.constant 0 : index
    %122 = vector.load %arg14[%c1_73, %c0_74, %c0_75] : memref<2x4x1xf32, #tpu.memory_space<vmem>>, vector<1x4x1xf32>
    %123 = vector.shape_cast %122 : vector<1x4x1xf32> to vector<4x1xf32>
    %124 = arith.select %119, %121, %123 : vector<4x1xi1>, vector<4x1xf32>
    %c1_76 = arith.constant 1 : index
    %c0_77 = arith.constant 0 : index
    %c0_78 = arith.constant 0 : index
    %125 = vector.load %arg14[%c1_76, %c0_77, %c0_78] : memref<2x4x1xf32, #tpu.memory_space<vmem>>, vector<1x4x1xf32>
    %126 = vector.shape_cast %125 : vector<1x4x1xf32> to vector<4x1xf32>
    %127 = vector.shape_cast %124 : vector<4x1xf32> to vector<1x4x1xf32>
    tpu.vector_store %arg14[%c1_76, %c0_77, %c0_78], %127 {strides = array<i32>} : memref<2x4x1xf32, #tpu.memory_space<vmem>>, vector<1x4x1xf32>,
    %c1_79 = arith.constant 1 : index
    %c0_80 = arith.constant 0 : index
    %c0_81 = arith.constant 0 : index
    %128 = vector.load %arg13[%c1_79, %c0_80, %c0_81] : memref<2x4x1xf32, #tpu.memory_space<vmem>>, vector<1x4x1xf32>
    %129 = vector.shape_cast %128 : vector<1x4x1xf32> to vector<4x1xf32>
    %130 = arith.select %119, %108, %129 : vector<4x1xi1>, vector<4x1xf32>
    %c1_82 = arith.constant 1 : index
    %c0_83 = arith.constant 0 : index
    %c0_84 = arith.constant 0 : index
    %131 = vector.load %arg13[%c1_82, %c0_83, %c0_84] : memref<2x4x1xf32, #tpu.memory_space<vmem>>, vector<1x4x1xf32>
    %132 = vector.shape_cast %131 : vector<1x4x1xf32> to vector<4x1xf32>
    %133 = vector.shape_cast %130 : vector<4x1xf32> to vector<1x4x1xf32>
    tpu.vector_store %arg13[%c1_82, %c0_83, %c0_84], %133 {strides = array<i32>} : memref<2x4x1xf32, #tpu.memory_space<vmem>>, vector<1x4x1xf32>,
    %134 = tpu.iota {dimensions = array<i32: 1>} : vector<16x3584xi32>
    %c3584_i32_85 = arith.constant 3584 : i32
    %135 = arith.muli %arg0, %c3584_i32_85 : i32
    %136 = vector.broadcast %135 : i32 to vector<16x3584xi32>
    %137 = arith.addi %134, %136 : vector<16x3584xi32>
    %c1_86 = arith.constant 1 : index
    %c0_87 = arith.constant 0 : index
    %c0_88 = arith.constant 0 : index
    %138 = vector.load %arg6[%c1_86, %c0_87, %c0_88] : memref<2x16x1xi32, #tpu.memory_space<vmem>>, vector<1x16x1xi32>
    %139 = vector.shape_cast %138 : vector<1x16x1xi32> to vector<16x1xi32>
    %140 = vector.broadcast %139 : vector<16x1xi32> to vector<16x3584xi32>
    %141 = arith.cmpi eq, %137, %140 : vector<16x3584xi32>
    %142 = arith.extui %141 : vector<16x3584xi1> to vector<16x3584xi32>
    %143 = arith.sitofp %142 : vector<16x3584xi32> to vector<16x3584xf32>
    %c1_89 = arith.constant 1 : index
    %c0_90 = arith.constant 0 : index
    %c0_91 = arith.constant 0 : index
    %144 = vector.load %arg10[%c1_89, %c0_90, %c0_91] : memref<2x12x16xf32, #tpu.memory_space<vmem>>, vector<1x12x16xf32>
    %145 = vector.shape_cast %144 : vector<1x12x16xf32> to vector<12x16xf32>
    "tpu.trace_start"() <{level = 10 : i32, message = "sk,gk->sg"}> : () -> ()
    %cst_92 = arith.constant dense<0.000000e+00> : vector<12x16xf32>
    %146 = tpu.matmul %83, %143, %cst_92 {dimension_numbers = #tpu.dot_dimension_numbers<[1], [1], [0], [0], [0, 0, 1, 0], [], []>} : vector<12x3584xf32>, vector<16x3584xf32>, vector<12x16xf32> -> vector<12x16xf32>
    "tpu.trace_stop"() : () -> ()
    %147 = arith.addf %145, %146 : vector<12x16xf32>
    %c1_93 = arith.constant 1 : index
    %c0_94 = arith.constant 0 : index
    %c0_95 = arith.constant 0 : index
    %148 = vector.load %arg10[%c1_93, %c0_94, %c0_95] : memref<2x12x16xf32, #tpu.memory_space<vmem>>, vector<1x12x16xf32>
    %149 = vector.shape_cast %148 : vector<1x12x16xf32> to vector<12x16xf32>
    %150 = vector.shape_cast %147 : vector<12x16xf32> to vector<1x12x16xf32>
    tpu.vector_store %arg10[%c1_93, %c0_94, %c0_95], %150 {strides = array<i32>} : memref<2x12x16xf32, #tpu.memory_space<vmem>>, vector<1x12x16xf32>,
    %c6_i32 = arith.constant 6 : i32
    %151 = arith.cmpi eq, %arg0, %c6_i32 : i32
    %152 = arith.extui %151 : i1 to i32
    %c0_i32_96 = arith.constant 0 : i32
    %153 = arith.cmpi ne, %152, %c0_i32_96 : i32
    scf.if %153 {
      %c0_97 = arith.constant 0 : index
      %c0_98 = arith.constant 0 : index
      %c0_99 = arith.constant 0 : index
      %154 = vector.load %arg11[%c0_97, %c0_98, %c0_99] : memref<2x12x1xf32, #tpu.memory_space<vmem>>, vector<2x12x1xf32>
      %c0_100 = arith.constant 0 : index
      %c0_101 = arith.constant 0 : index
      %c0_102 = arith.constant 0 : index
      %155 = vector.load %arg12[%c0_100, %c0_101, %c0_102] : memref<2x12x1xf32, #tpu.memory_space<vmem>>, vector<2x12x1xf32>
      %156 = math.log %155 : vector<2x12x1xf32>
      %157 = arith.addf %154, %156 : vector<2x12x1xf32>
      %c0_103 = arith.constant 0 : index
      %c0_104 = arith.constant 0 : index
      %c0_105 = arith.constant 0 : index
      %158 = vector.load %arg10[%c0_103, %c0_104, %c0_105] : memref<2x12x16xf32, #tpu.memory_space<vmem>>, vector<2x12x16xf32>
      %159 = vector.broadcast %157 : vector<2x12x1xf32> to vector<2x12x16xf32>
      %160 = arith.subf %158, %159 : vector<2x12x16xf32>
      %c0_106 = arith.constant 0 : index
      %c0_107 = arith.constant 0 : index
      %c0_108 = arith.constant 0 : index
      %161 = vector.load %arg7[%c0_106, %c0_107, %c0_108] : memref<2x12x16xf32, #tpu.memory_space<vmem>>, vector<2x12x16xf32>
      tpu.vector_store %arg7[%c0_106, %c0_107, %c0_108], %160 {strides = array<i32>} : memref<2x12x16xf32, #tpu.memory_space<vmem>>, vector<2x12x16xf32>,
      %c0_109 = arith.constant 0 : index
      %c0_110 = arith.constant 0 : index
      %c0_111 = arith.constant 0 : index
      %162 = vector.load %arg14[%c0_109, %c0_110, %c0_111] : memref<2x4x1xf32, #tpu.memory_space<vmem>>, vector<2x4x1xf32>
      %163 = arith.fptosi %162 : vector<2x4x1xf32> to vector<2x4x1xi32>
      %c0_112 = arith.constant 0 : index
      %c0_113 = arith.constant 0 : index
      %c0_114 = arith.constant 0 : index
      %164 = vector.load %arg8[%c0_112, %c0_113, %c0_114] : memref<2x4x1xi32, #tpu.memory_space<vmem>>, vector<2x4x1xi32>
      tpu.vector_store %arg8[%c0_112, %c0_113, %c0_114], %163 {strides = array<i32>} : memref<2x4x1xi32, #tpu.memory_space<vmem>>, vector<2x4x1xi32>,
    } else {
    }
    return
  }
  func.func @transform_0(%arg0: i32) -> (i32, i32, i32) {
    %c0_i32 = arith.constant 0 : i32
    %c0_i32_0 = arith.constant 0 : i32
    %c0_i32_1 = arith.constant 0 : i32
    %c0_i32_2 = arith.constant 0 : i32
    return %c0_i32, %c0_i32_0, %c0_i32_1 : i32, i32, i32
  }
  func.func @transform_1(%arg0: i32) -> (i32, i32) {
    %c0_i32 = arith.constant 0 : i32
    %c0_i32_0 = arith.constant 0 : i32
    %c0_i32_1 = arith.constant 0 : i32
    return %c0_i32, %c0_i32_0 : i32, i32
  }
  func.func @transform_2(%arg0: i32) -> (i32, i32) {
    %c0_i32 = arith.constant 0 : i32
    %c0_i32_0 = arith.constant 0 : i32
    %c0_i32_1 = arith.constant 0 : i32
    return %c0_i32, %c0_i32_0 : i32, i32
  }
  func.func @transform_3(%arg0: i32) -> (i32, i32) {
    %c0_i32 = arith.constant 0 : i32
    %c0_i32_0 = arith.constant 0 : i32
    return %c0_i32, %arg0 : i32, i32
  }
  func.func @transform_4(%arg0: i32) -> (i32, i32) {
    %c0_i32 = arith.constant 0 : i32
    %c0_i32_0 = arith.constant 0 : i32
    return %c0_i32, %arg0 : i32, i32
  }
  func.func @transform_5(%arg0: i32) -> (i32, i32, i32) {
    %c0_i32 = arith.constant 0 : i32
    %c0_i32_0 = arith.constant 0 : i32
    %c0_i32_1 = arith.constant 0 : i32
    %c0_i32_2 = arith.constant 0 : i32
    return %c0_i32, %c0_i32_0, %c0_i32_1 : i32, i32, i32
  }
  func.func @transform_6(%arg0: i32) -> (i32, i32, i32) {
    %c0_i32 = arith.constant 0 : i32
    %c0_i32_0 = arith.constant 0 : i32
    %c0_i32_1 = arith.constant 0 : i32
    %c0_i32_2 = arith.constant 0 : i32
    return %c0_i32, %c0_i32_0, %c0_i32_1 : i32, i32, i32
  }
  func.func @transform_7(%arg0: i32) -> (i32, i32, i32) {
    %c0_i32 = arith.constant 0 : i32
    %c0_i32_0 = arith.constant 0 : i32
    %c0_i32_1 = arith.constant 0 : i32
    %c0_i32_2 = arith.constant 0 : i32
    return %c0_i32, %c0_i32_0, %c0_i32_1 : i32, i32, i32
  }
}

</mosaic_0001>

<llo_original>
// kernel: forward.2
$region0: #{forward.2}
  #allocation0 [shape = 'u32[]', space=smem, size = 0x4, offset = 0x4, fixed_abs, tag = 'smem constant byte address 0x4 - core index']
  #allocation1 [shape = 'u32[144,128]{1,0:T(1,128)}', space=vmem, size = 0x12000, scoped, tag = 'internal scratch']
  #allocation2 [shape = 's32[1]{0}', space=sflag, size = 0x4, scoped, tag = 'scoped memory for forward.2']
  #allocation3 [shape = 'u8[512]{0}', space=smem, size = 0x200, scoped, tag = 'prefetched SMEM operand 0']
  %s0 = inlined_call_operand.vmem [shape: s32[2], index: 0, kind: input, shape index: {}]
  %s1 = inlined_call_operand.vmem [shape: f32[2,12,32], index: 1, kind: input, shape index: {}]
  %s2 = inlined_call_operand.hbm [shape: f32[2,1,32], index: 2, kind: input, shape index: {}]
  %s3 = inlined_call_operand.hbm [shape: f32[2,1,32], index: 3, kind: input, shape index: {}]
  %s4 = inlined_call_operand.hbm [shape: bf16[2,32,96], index: 4, kind: input, shape index: {}]
  %s5 = inlined_call_operand.hbm [shape: f32[2,1,96], index: 5, kind: input, shape index: {}]
  %s6 = inlined_call_operand.hbm [shape: bf16[2,32,32], index: 6, kind: input, shape index: {}]
  %s7 = inlined_call_operand.hbm [shape: f32[2,1,32], index: 7, kind: input, shape index: {}]
  %s8 = inlined_call_operand.hbm [shape: f32[2,1,32], index: 8, kind: input, shape index: {}]
  %s9 = inlined_call_operand.hbm [shape: f32[2,1,32], index: 9, kind: input, shape index: {}]
  %s10 = inlined_call_operand.hbm [shape: bf16[2,32,64], index: 10, kind: input, shape index: {}]
  %s11 = inlined_call_operand.hbm [shape: f32[2,1,64], index: 11, kind: input, shape index: {}]
  %s12 = inlined_call_operand.vmem [shape: bf16[2,64,32], index: 12, kind: input, shape index: {}]
  %s13 = inlined_call_operand.hbm [shape: f32[2,1,32], index: 13, kind: input, shape index: {}]
  %s14 = inlined_call_operand.vmem [shape: f32[2,12,32], index: 14, kind: output, shape index: {}]
  %s15 = sld [smem:[#allocation0]]
  $region133: #{forward.2} parent=0
    _
  %s17 = ssub.s32 1, %s15
  %s18 = scalar_select 0, %s17, %s15
  %s19 = sshll.u32 %s0, 4
  %s20 = int_to_ptr.vmem [resolvable:$true] %s19
  %22 = dma.vmem_to_smem %s20, 16, [#allocation3], [#allocation2]
  %23 = dma.done [#allocation2], 16
  %24 = sfence
  $region1: #{forward.2} parent=0
    #allocation4 [shape = 'u8[1024]{0}', space=vmem, size = 0x400, scoped, tag = 'input window, operand 2']
    #allocation5 [shape = 's32[2]{0}', space=sflag, size = 0x8, scoped, tag = 'scoped memory for forward.2']
    #allocation6 [shape = 'u8[1024]{0}', space=vmem, size = 0x400, scoped, tag = 'input window, operand 3']
    #allocation7 [shape = 's32[2]{0}', space=sflag, size = 0x8, scoped, tag = 'scoped memory for forward.2']
    #allocation8 [shape = 'u8[16384]{0}', space=vmem, size = 0x4000, scoped, tag = 'input window, operand 4']
    #allocation9 [shape = 'u8[1024]{0}', space=vmem, size = 0x400, scoped, tag = 'input window, operand 5']
    #allocation10 [shape = 's32[2]{0}', space=sflag, size = 0x8, scoped, tag = 'scoped memory for forward.2']
    #allocation11 [shape = 'u8[16384]{0}', space=vmem, size = 0x4000, scoped, tag = 'input window, operand 6']
    #allocation12 [shape = 'u8[1024]{0}', space=vmem, size = 0x400, scoped, tag = 'input window, operand 7']
    #allocation13 [shape = 's32[2]{0}', space=sflag, size = 0x8, scoped, tag = 'scoped memory for forward.2']
    #allocation14 [shape = 'u8[1024]{0}', space=vmem, size = 0x400, scoped, tag = 'input window, operand 8']
    #allocation15 [shape = 'u8[1024]{0}', space=vmem, size = 0x400, scoped, tag = 'input window, operand 9']
    #allocation16 [shape = 's32[2]{0}', space=sflag, size = 0x8, scoped, tag = 'scoped memory for forward.2']
    #allocation17 [shape = 'u8[16384]{0}', space=vmem, size = 0x4000, scoped, tag = 'input window, operand 10']
    #allocation18 [shape = 'u8[1024]{0}', space=vmem, size = 0x400, scoped, tag = 'input window, operand 11']
    #allocation19 [shape = 's32[2]{0}', space=sflag, size = 0x8, scoped, tag = 'scoped memory for forward.2']
    #allocation20 [shape = 'u8[1024]{0}', space=vmem, size = 0x400, scoped, tag = 'input window, operand 13']
    %25 = vsyncpa [#allocation5], 0
    %s26 = scalar_lea.sflag [#allocation5], 1
    %27 = vsyncpa %s26, 0
    %28 = vsyncpa [#allocation7], 0
    %s29 = scalar_lea.sflag [#allocation7], 1
    %30 = vsyncpa %s29, 0
    %31 = vsyncpa [#allocation10], 0
    %s32 = scalar_lea.sflag [#allocation10], 1
    %33 = vsyncpa %s32, 0
    %34 = vsyncpa [#allocation13], 0
    %s35 = scalar_lea.sflag [#allocation13], 1
    %36 = vsyncpa %s35, 0
    %37 = vsyncpa [#allocation16], 0
    %s38 = scalar_lea.sflag [#allocation16], 1
    %39 = vsyncpa %s38, 0
    %40 = vsyncpa [#allocation19], 0
    %s41 = scalar_lea.sflag [#allocation19], 1
    %42 = vsyncpa %s41, 0
    loop: start=0, step=1, limit=6
    $region2: #{forward.2} parent=1 // loop_pre_header
      _
    $region3: #{forward.2} parent=1 // loop_header
      %s44 = sphi 0, %s48
      %p45 = scmp.ge.s32.totalorder %s44, 6
      %s51 = sphi 0, %s63
      %s52 = sphi 0, %s59
      %s53 = sphi 0, %s51
      %s54 = sphi 0, %s52
      %s55 = sphi 0, %s53
      %s56 = sphi 0, %s54
      %s66 = sphi 0, %s68
      %s69 = sphi 0, %s66
      %s70 = sphi 0, %s69
      %s86 = sphi 0, %s70
      %s92 = sphi 0, %s94
      %s95 = sphi 0, %s92
      %s96 = sphi 0, %s95
      %s112 = sphi 0, %s96
      %s118 = sphi 0, %s120
      %s121 = sphi 0, %s118
      %s122 = sphi 0, %s121
      %s138 = sphi 0, %s122
      %s144 = sphi 0, %s146
      %s147 = sphi 0, %s144
      %s148 = sphi 0, %s147
      %s164 = sphi 0, %s148
      %s170 = sphi 0, %s172
      %s173 = sphi 0, %s170
      %s174 = sphi 0, %s173
      %s190 = sphi 0, %s174
      %s196 = sphi 0, %s198
      %s199 = sphi 0, %s196
      %s200 = sphi 0, %s199
      %s216 = sphi 0, %s200
      %s222 = sphi 0, %s224
      %s225 = sphi 0, %s222
      %s226 = sphi 0, %s225
      %s242 = sphi 0, %s226
      %s248 = sphi 0, %s250
      %s251 = sphi 0, %s248
      %s252 = sphi 0, %s251
      %s268 = sphi 0, %s252
      %s274 = sphi 0, %s276
      %s277 = sphi 0, %s274
      %s278 = sphi 0, %s277
      %s294 = sphi 0, %s278
      %s300 = sphi 0, %s302
      %s303 = sphi 0, %s300
      %s304 = sphi 0, %s303
      %s320 = sphi 0, %s304
      %s326 = sphi 0, %s328
      %s329 = sphi 0, %s326
      %s330 = sphi 0, %s329
      %s346 = sphi 0, %s330
      %s352 = sphi 0, %s354
      %s355 = sphi 0, %s352
      %s356 = sphi 0, %s355
      %s372 = sphi 0, %s356
      %s378 = sphi 0, %s380
      %s381 = sphi 0, %s378
      %s382 = sphi 0, %s381
      %s398 = sphi 0, %s382
      %s404 = sphi 0, %s406
      %s407 = sphi 0, %s404
      %s408 = sphi 0, %s407
      %s424 = sphi 0, %s408
    $region4: #{forward.2} parent=1 // loop_header_branch
      %47 = sbr.rel (%p45) target = $region8
    $region5: #{forward.2} parent=1 // loop_body
      %s49 = ssub.s32 %s44, 1
      %s50 = ssub.s32 %s44, 2
      %s57 = sadd.s32 1, %s52
      %p58 = scmp.ge.s32.totalorder %s57, 2
      %s59 = scalar_select %p58, 0, %s57
      %s60 = sadd.s32 1, %s51
      %s61 = scalar_select %p58, %s60, %s51
      %p62 = scmp.ge.s32.totalorder %s61, 2
      %s63 = scalar_select %p62, 0, %s61
      %s64 = ssub.s32 %s51, %s63
      %p65 = scmp.eq.s32.totalorder %s64, 0
      %s67 = sadd.s32 %s66, 1
      %s68 = scalar_select %p65, %s66, %s67
      %p71 = pneg %p65
      %p72 = scmp.eq.s32.totalorder %s44, 3
      %p73 = por %p71, %p72
      %p74 = scmp.ne.s32.totalorder %s66, %s69
      %p75 = scmp.eq.s32.totalorder %s44, 0
      %p76 = por %p74, %p75
      %p77 = scmp.ne.s32.totalorder %s66, %s69
      %p78 = scmp.eq.s32.totalorder %s49, 3
      %p79 = por %p77, %p78
      %p80 = scmp.ne.s32.totalorder %s69, %s70
      %p81 = scmp.eq.s32.totalorder %s49, 0
      %p82 = por %p80, %p81
      %p83 = scmp.ne.s32.totalorder %s69, %s70
      %p84 = scmp.eq.s32.totalorder %s50, 3
      %p85 = por %p83, %p84
      %p87 = scmp.ne.s32.totalorder %s70, %s86
      %p88 = scmp.eq.s32.totalorder %s50, 0
      %p89 = por %p87, %p88
      %s90 = ssub.s32 %s52, %s59
      %p91 = scmp.eq.s32.totalorder %s90, 0
      %s93 = sadd.s32 %s92, 1
      %s94 = scalar_select %p91, %s92, %s93
      %p97 = pneg %p91
      %p98 = scmp.eq.s32.totalorder %s44, 3
      %p99 = por %p97, %p98
      %p100 = scmp.ne.s32.totalorder %s92, %s95
      %p101 = scmp.eq.s32.totalorder %s44, 0
      %p102 = por %p100, %p101
      %p103 = scmp.ne.s32.totalorder %s92, %s95
      %p104 = scmp.eq.s32.totalorder %s49, 3
      %p105 = por %p103, %p104
      %p106 = scmp.ne.s32.totalorder %s95, %s96
      %p107 = scmp.eq.s32.totalorder %s49, 0
      %p108 = por %p106, %p107
      %p109 = scmp.ne.s32.totalorder %s95, %s96
      %p110 = scmp.eq.s32.totalorder %s50, 3
      %p111 = por %p109, %p110
      %p113 = scmp.ne.s32.totalorder %s96, %s112
      %p114 = scmp.eq.s32.totalorder %s50, 0
      %p115 = por %p113, %p114
      %s116 = ssub.s32 %s52, %s59
      %p117 = scmp.eq.s32.totalorder %s116, 0
      %s119 = sadd.s32 %s118, 1
      %s120 = scalar_select %p117, %s118, %s119
      %p123 = pneg %p117
      %p124 = scmp.eq.s32.totalorder %s44, 3
      %p125 = por %p123, %p124
      %p126 = scmp.ne.s32.totalorder %s118, %s121
      %p127 = scmp.eq.s32.totalorder %s44, 0
      %p128 = por %p126, %p127
      %p129 = scmp.ne.s32.totalorder %s118, %s121
      %p130 = scmp.eq.s32.totalorder %s49, 3
      %p131 = por %p129, %p130
      %p132 = scmp.ne.s32.totalorder %s121, %s122
      %p133 = scmp.eq.s32.totalorder %s49, 0
      %p134 = por %p132, %p133
      %p135 = scmp.ne.s32.totalorder %s121, %s122
      %p136 = scmp.eq.s32.totalorder %s50, 3
      %p137 = por %p135, %p136
      %p139 = scmp.ne.s32.totalorder %s122, %s138
      %p140 = scmp.eq.s32.totalorder %s50, 0
      %p141 = por %p139, %p140
      %s142 = ssub.s32 %s52, %s59
      %p143 = scmp.eq.s32.totalorder %s142, 0
      %s145 = sadd.s32 %s144, 1
      %s146 = scalar_select %p143, %s144, %s145
      %p149 = pneg %p143
      %p150 = scmp.eq.s32.totalorder %s44, 3
      %p151 = por %p149, %p150
      %p152 = scmp.ne.s32.totalorder %s144, %s147
      %p153 = scmp.eq.s32.totalorder %s44, 0
      %p154 = por %p152, %p153
      %p155 = scmp.ne.s32.totalorder %s144, %s147
      %p156 = scmp.eq.s32.totalorder %s49, 3
      %p157 = por %p155, %p156
      %p158 = scmp.ne.s32.totalorder %s147, %s148
      %p159 = scmp.eq.s32.totalorder %s49, 0
      %p160 = por %p158, %p159
      %p161 = scmp.ne.s32.totalorder %s147, %s148
      %p162 = scmp.eq.s32.totalorder %s50, 3
      %p163 = por %p161, %p162
      %p165 = scmp.ne.s32.totalorder %s148, %s164
      %p166 = scmp.eq.s32.totalorder %s50, 0
      %p167 = por %p165, %p166
      %s168 = ssub.s32 %s52, %s59
      %p169 = scmp.eq.s32.totalorder %s168, 0
      %s171 = sadd.s32 %s170, 1
      %s172 = scalar_select %p169, %s170, %s171
      %p175 = pneg %p169
      %p176 = scmp.eq.s32.totalorder %s44, 3
      %p177 = por %p175, %p176
      %p178 = scmp.ne.s32.totalorder %s170, %s173
      %p179 = scmp.eq.s32.totalorder %s44, 0
      %p180 = por %p178, %p179
      %p181 = scmp.ne.s32.totalorder %s170, %s173
      %p182 = scmp.eq.s32.totalorder %s49, 3
      %p183 = por %p181, %p182
      %p184 = scmp.ne.s32.totalorder %s173, %s174
      %p185 = scmp.eq.s32.totalorder %s49, 0
      %p186 = por %p184, %p185
      %p187 = scmp.ne.s32.totalorder %s173, %s174
      %p188 = scmp.eq.s32.totalorder %s50, 3
      %p189 = por %p187, %p188
      %p191 = scmp.ne.s32.totalorder %s174, %s190
      %p192 = scmp.eq.s32.totalorder %s50, 0
      %p193 = por %p191, %p192
      %s194 = ssub.s32 %s52, %s59
      %p195 = scmp.eq.s32.totalorder %s194, 0
      %s197 = sadd.s32 %s196, 1
      %s198 = scalar_select %p195, %s196, %s197
      %p201 = pneg %p195
      %p202 = scmp.eq.s32.totalorder %s44, 3
      %p203 = por %p201, %p202
      %p204 = scmp.ne.s32.totalorder %s196, %s199
      %p205 = scmp.eq.s32.totalorder %s44, 0
      %p206 = por %p204, %p205
      %p207 = scmp.ne.s32.totalorder %s196, %s199
      %p208 = scmp.eq.s32.totalorder %s49, 3
      %p209 = por %p207, %p208
      %p210 = scmp.ne.s32.totalorder %s199, %s200
      %p211 = scmp.eq.s32.totalorder %s49, 0
      %p212 = por %p210, %p211
      %p213 = scmp.ne.s32.totalorder %s199, %s200
      %p214 = scmp.eq.s32.totalorder %s50, 3
      %p215 = por %p213, %p214
      %p217 = scmp.ne.s32.totalorder %s200, %s216
      %p218 = scmp.eq.s32.totalorder %s50, 0
      %p219 = por %p217, %p218
      %s220 = ssub.s32 %s52, %s59
      %p221 = scmp.eq.s32.totalorder %s220, 0
      %s223 = sadd.s32 %s222, 1
      %s224 = scalar_select %p221, %s222, %s223
      %p227 = pneg %p221
      %p228 = scmp.eq.s32.totalorder %s44, 3
      %p229 = por %p227, %p228
      %p230 = scmp.ne.s32.totalorder %s222, %s225
      %p231 = scmp.eq.s32.totalorder %s44, 0
      %p232 = por %p230, %p231
      %p233 = scmp.ne.s32.totalorder %s222, %s225
      %p234 = scmp.eq.s32.totalorder %s49, 3
      %p235 = por %p233, %p234
      %p236 = scmp.ne.s32.totalorder %s225, %s226
      %p237 = scmp.eq.s32.totalorder %s49, 0
      %p238 = por %p236, %p237
      %p239 = scmp.ne.s32.totalorder %s225, %s226
      %p240 = scmp.eq.s32.totalorder %s50, 3
      %p241 = por %p239, %p240
      %p243 = scmp.ne.s32.totalorder %s226, %s242
      %p244 = scmp.eq.s32.totalorder %s50, 0
      %p245 = por %p243, %p244
      %s246 = ssub.s32 %s52, %s59
      %p247 = scmp.eq.s32.totalorder %s246, 0
      %s249 = sadd.s32 %s248, 1
      %s250 = scalar_select %p247, %s248, %s249
      %p253 = pneg %p247
      %p254 = scmp.eq.s32.totalorder %s44, 3
      %p255 = por %p253, %p254
      %p256 = scmp.ne.s32.totalorder %s248, %s251
      %p257 = scmp.eq.s32.totalorder %s44, 0
      %p258 = por %p256, %p257
      %p259 = scmp.ne.s32.totalorder %s248, %s251
      %p260 = scmp.eq.s32.totalorder %s49, 3
      %p261 = por %p259, %p260
      %p262 = scmp.ne.s32.totalorder %s251, %s252
      %p263 = scmp.eq.s32.totalorder %s49, 0
      %p264 = por %p262, %p263
      %p265 = scmp.ne.s32.totalorder %s251, %s252
      %p266 = scmp.eq.s32.totalorder %s50, 3
      %p267 = por %p265, %p266
      %p269 = scmp.ne.s32.totalorder %s252, %s268
      %p270 = scmp.eq.s32.totalorder %s50, 0
      %p271 = por %p269, %p270
      %s272 = ssub.s32 %s52, %s59
      %p273 = scmp.eq.s32.totalorder %s272, 0
      %s275 = sadd.s32 %s274, 1
      %s276 = scalar_select %p273, %s274, %s275
      %p279 = pneg %p273
      %p280 = scmp.eq.s32.totalorder %s44, 3
      %p281 = por %p279, %p280
      %p282 = scmp.ne.s32.totalorder %s274, %s277
      %p283 = scmp.eq.s32.totalorder %s44, 0
      %p284 = por %p282, %p283
      %p285 = scmp.ne.s32.totalorder %s274, %s277
      %p286 = scmp.eq.s32.totalorder %s49, 3
      %p287 = por %p285, %p286
      %p288 = scmp.ne.s32.totalorder %s277, %s278
      %p289 = scmp.eq.s32.totalorder %s49, 0
      %p290 = por %p288, %p289
      %p291 = scmp.ne.s32.totalorder %s277, %s278
      %p292 = scmp.eq.s32.totalorder %s50, 3
      %p293 = por %p291, %p292
      %p295 = scmp.ne.s32.totalorder %s278, %s294
      %p296 = scmp.eq.s32.totalorder %s50, 0
      %p297 = por %p295, %p296
      %s298 = ssub.s32 %s52, %s59
      %p299 = scmp.eq.s32.totalorder %s298, 0
      %s301 = sadd.s32 %s300, 1
      %s302 = scalar_select %p299, %s300, %s301
      %p305 = pneg %p299
      %p306 = scmp.eq.s32.totalorder %s44, 3
      %p307 = por %p305, %p306
      %p308 = scmp.ne.s32.totalorder %s300, %s303
      %p309 = scmp.eq.s32.totalorder %s44, 0
      %p310 = por %p308, %p309
      %p311 = scmp.ne.s32.totalorder %s300, %s303
      %p312 = scmp.eq.s32.totalorder %s49, 3
      %p313 = por %p311, %p312
      %p314 = scmp.ne.s32.totalorder %s303, %s304
      %p315 = scmp.eq.s32.totalorder %s49, 0
      %p316 = por %p314, %p315
      %p317 = scmp.ne.s32.totalorder %s303, %s304
      %p318 = scmp.eq.s32.totalorder %s50, 3
      %p319 = por %p317, %p318
      %p321 = scmp.ne.s32.totalorder %s304, %s320
      %p322 = scmp.eq.s32.totalorder %s50, 0
      %p323 = por %p321, %p322
      %s324 = ssub.s32 %s52, %s59
      %p325 = scmp.eq.s32.totalorder %s324, 0
      %s327 = sadd.s32 %s326, 1
      %s328 = scalar_select %p325, %s326, %s327
      %p331 = pneg %p325
      %p332 = scmp.eq.s32.totalorder %s44, 3
      %p333 = por %p331, %p332
      %p334 = scmp.ne.s32.totalorder %s326, %s329
      %p335 = scmp.eq.s32.totalorder %s44, 0
      %p336 = por %p334, %p335
      %p337 = scmp.ne.s32.totalorder %s326, %s329
      %p338 = scmp.eq.s32.totalorder %s49, 3
      %p339 = por %p337, %p338
      %p340 = scmp.ne.s32.totalorder %s329, %s330
      %p341 = scmp.eq.s32.totalorder %s49, 0
      %p342 = por %p340, %p341
      %p343 = scmp.ne.s32.totalorder %s329, %s330
      %p344 = scmp.eq.s32.totalorder %s50, 3
      %p345 = por %p343, %p344
      %p347 = scmp.ne.s32.totalorder %s330, %s346
      %p348 = scmp.eq.s32.totalorder %s50, 0
      %p349 = por %p347, %p348
      %s350 = ssub.s32 %s52, %s59
      %p351 = scmp.eq.s32.totalorder %s350, 0
      %s353 = sadd.s32 %s352, 1
      %s354 = scalar_select %p351, %s352, %s353
      %p357 = pneg %p351
      %p358 = scmp.eq.s32.totalorder %s44, 3
      %p359 = por %p357, %p358
      %p360 = scmp.ne.s32.totalorder %s352, %s355
      %p361 = scmp.eq.s32.totalorder %s44, 0
      %p362 = por %p360, %p361
      %p363 = scmp.ne.s32.totalorder %s352, %s355
      %p364 = scmp.eq.s32.totalorder %s49, 3
      %p365 = por %p363, %p364
      %p366 = scmp.ne.s32.totalorder %s355, %s356
      %p367 = scmp.eq.s32.totalorder %s49, 0
      %p368 = por %p366, %p367
      %p369 = scmp.ne.s32.totalorder %s355, %s356
      %p370 = scmp.eq.s32.totalorder %s50, 3
      %p371 = por %p369, %p370
      %p373 = scmp.ne.s32.totalorder %s356, %s372
      %p374 = scmp.eq.s32.totalorder %s50, 0
      %p375 = por %p373, %p374
      %s376 = ssub.s32 %s52, %s59
      %p377 = scmp.eq.s32.totalorder %s376, 0
      %s379 = sadd.s32 %s378, 1
      %s380 = scalar_select %p377, %s378, %s379
      %p383 = pneg %p377
      %p384 = scmp.eq.s32.totalorder %s44, 3
      %p385 = por %p383, %p384
      %p386 = scmp.ne.s32.totalorder %s378, %s381
      %p387 = scmp.eq.s32.totalorder %s44, 0
      %p388 = por %p386, %p387
      %p389 = scmp.ne.s32.totalorder %s378, %s381
      %p390 = scmp.eq.s32.totalorder %s49, 3
      %p391 = por %p389, %p390
      %p392 = scmp.ne.s32.totalorder %s381, %s382
      %p393 = scmp.eq.s32.totalorder %s49, 0
      %p394 = por %p392, %p393
      %p395 = scmp.ne.s32.totalorder %s381, %s382
      %p396 = scmp.eq.s32.totalorder %s50, 3
      %p397 = por %p395, %p396
      %p399 = scmp.ne.s32.totalorder %s382, %s398
      %p400 = scmp.eq.s32.totalorder %s50, 0
      %p401 = por %p399, %p400
      %s402 = ssub.s32 %s51, %s63
      %p403 = scmp.eq.s32.totalorder %s402, 0
      %s405 = sadd.s32 %s404, 1
      %s406 = scalar_select %p403, %s404, %s405
      %p409 = pneg %p403
      %p410 = scmp.eq.s32.totalorder %s44, 3
      %p411 = por %p409, %p410
      %p412 = scmp.ne.s32.totalorder %s404, %s407
      %p413 = scmp.eq.s32.totalorder %s44, 0
      %p414 = por %p412, %p413
      %p415 = scmp.ne.s32.totalorder %s404, %s407
      %p416 = scmp.eq.s32.totalorder %s49, 3
      %p417 = por %p415, %p416
      %p418 = scmp.ne.s32.totalorder %s407, %s408
      %p419 = scmp.eq.s32.totalorder %s49, 0
      %p420 = por %p418, %p419
      %p421 = scmp.ne.s32.totalorder %s407, %s408
      %p422 = scmp.eq.s32.totalorder %s50, 3
      %p423 = por %p421, %p422
      %p425 = scmp.ne.s32.totalorder %s408, %s424
      %p426 = scmp.eq.s32.totalorder %s50, 0
      %p427 = por %p425, %p426
      %p428 = scmp.le.s32.totalorder 1, %s44
      %p429 = scmp.lt.s32.totalorder %s44, 5
      %p430 = pnand %p428, %p429
      %p431 = pneg %p430
      // Predicated region
      $region9: #{forward.2} parent=5 // pred_check
        _
      $region10: #{forward.2} parent=5 // pred_check_branch
        %433 = sbr.rel (%p430) target = $region12
      $region11: #{forward.2} parent=5 // pred_region
        %s434 = ssub.s32 %s44, 1
      $region12: #{forward.2} parent=5 // pred_fallthru
        _
      %p435 = scmp.lt.s32.totalorder %s44, 4
      // Predicated region
      $region13: #{forward.2} parent=5 // pred_check
        %p436 = pneg %p435
      $region14: #{forward.2} parent=5 // pred_check_branch
        %438 = sbr.rel (%p436) target = $region16
      $region15: #{forward.2} parent=5 // pred_region
        // Predicated region
        $region17: #{forward.2} parent=15 // pred_check
          %p439 = pneg %p76
        $region18: #{forward.2} parent=15 // pred_check_branch
          %441 = sbr.rel (%p439) target = $region20
        $region19: #{forward.2} parent=15 // pred_region
          %p442 = scmp.lt.s32.totalorder %s51, 1
          %s443 = scalar_select %p442, %s51, 1
          %s444 = smul.addr %s443, 2
          %s445 = smul.addr %s444, 8
          %s446 = scalar_lea.vmem %s1, %s445
        $region20: #{forward.2} parent=15 // pred_fallthru
          _
        // Predicated region
        $region21: #{forward.2} parent=15 // pred_check
          %p447 = pneg %p102
        $region22: #{forward.2} parent=15 // pred_check_branch
          %449 = sbr.rel (%p447) target = $region24
        $region23: #{forward.2} parent=15 // pred_region
          %s450 = sand.u32 %s92, 1
          %s451 = scalar_lea.sflag [#allocation5], %s450
          %s452 = sand.u32 %s92, 1
          %s453 = scalar_lea.vmem [#allocation4], %s452
          %s455 = ssub.s32 16, 16
          %456 = vsyncadd %s451, %s455
          %s457 = smul.addr %s52, 16
          %s458 = scalar_lea.hbm %s2, %s457
          %s460 = sshll.u32 %s453, 4
          %s461 = int_to_ptr.vmem [resolvable:$true] %s460
          %463 = dma.hbm_to_vmem [thread:$0]  %s458, 16, %s461, %s451
        $region24: #{forward.2} parent=15 // pred_fallthru
          _
        // Predicated region
        $region25: #{forward.2} parent=15 // pred_check
          %p464 = pneg %p128
        $region26: #{forward.2} parent=15 // pred_check_branch
          %466 = sbr.rel (%p464) target = $region28
        $region27: #{forward.2} parent=15 // pred_region
          %s467 = sand.u32 %s44, 1
          %s468 = scalar_lea.sflag [#allocation7], %s467
          %s469 = sand.u32 %s118, 1
          %s470 = scalar_lea.vmem [#allocation6], %s469
          %s472 = ssub.s32 16, 16
          %473 = vsyncadd %s468, %s472
          %s474 = smul.addr %s52, 16
          %s475 = scalar_lea.hbm %s3, %s474
          %s477 = sshll.u32 %s470, 4
          %s478 = int_to_ptr.vmem [resolvable:$true] %s477
          %480 = dma.hbm_to_vmem [thread:$0]  %s475, 16, %s478, %s468
        $region28: #{forward.2} parent=15 // pred_fallthru
          _
        // Predicated region
        $region29: #{forward.2} parent=15 // pred_check
          %p481 = pneg %p154
        $region30: #{forward.2} parent=15 // pred_check_branch
          %483 = sbr.rel (%p481) target = $region32
        $region31: #{forward.2} parent=15 // pred_region
          %s484 = sand.u32 %s44, 1
          %s485 = scalar_lea.sflag [#allocation7], %s484
          %s486 = sand.u32 %s144, 1
          %s487 = smul.addr %s486, 16
          %s488 = scalar_lea.vmem [#allocation8], %s487
          %s490 = ssub.s32 256, 256
          %491 = vsyncadd %s485, %s490
          %s492 = smul.addr %s52, 4
          %s493 = smul.addr %s492, 64
          %s494 = scalar_lea.hbm %s4, %s493
          %s495 = sshll.u32 %s488, 4
          %s496 = int_to_ptr.vmem [resolvable:$true] %s495
          %501 = dma.hbm_to_vmem [thread:$0]  %s494, 256, %s496, %s485, 64, 64, 4
        $region32: #{forward.2} parent=15 // pred_fallthru
          _
        // Predicated region
        $region33: #{forward.2} parent=15 // pred_check
          %p502 = pneg %p180
        $region34: #{forward.2} parent=15 // pred_check_branch
          %504 = sbr.rel (%p502) target = $region36
        $region35: #{forward.2} parent=15 // pred_region
          %s505 = sand.u32 %s44, 1
          %s506 = scalar_lea.sflag [#allocation10], %s505
          %s507 = sand.u32 %s170, 1
          %s508 = scalar_lea.vmem [#allocation9], %s507
          %s510 = ssub.s32 16, 16
          %511 = vsyncadd %s506, %s510
          %s512 = smul.addr %s52, 16
          %s513 = scalar_lea.hbm %s5, %s512
          %s515 = sshll.u32 %s508, 4
          %s516 = int_to_ptr.vmem [resolvable:$true] %s515
          %518 = dma.hbm_to_vmem [thread:$0]  %s513, 16, %s516, %s506
        $region36: #{forward.2} parent=15 // pred_fallthru
          _
        // Predicated region
        $region37: #{forward.2} parent=15 // pred_check
          %p519 = pneg %p206
        $region38: #{forward.2} parent=15 // pred_check_branch
          %521 = sbr.rel (%p519) target = $region40
        $region39: #{forward.2} parent=15 // pred_region
          %s522 = sand.u32 %s44, 1
          %s523 = scalar_lea.sflag [#allocation10], %s522
          %s524 = sand.u32 %s196, 1
          %s525 = smul.addr %s524, 16
          %s526 = scalar_lea.vmem [#allocation11], %s525
          %s528 = ssub.s32 256, 256
          %529 = vsyncadd %s523, %s528
          %s530 = smul.addr %s52, 4
          %s531 = smul.addr %s530, 64
          %s532 = scalar_lea.hbm %s6, %s531
          %s533 = sshll.u32 %s526, 4
          %s534 = int_to_ptr.vmem [resolvable:$true] %s533
          %539 = dma.hbm_to_vmem [thread:$0]  %s532, 256, %s534, %s523, 64, 64, 4
        $region40: #{forward.2} parent=15 // pred_fallthru
          _
        // Predicated region
        $region41: #{forward.2} parent=15 // pred_check
          %p540 = pneg %p232
        $region42: #{forward.2} parent=15 // pred_check_branch
          %542 = sbr.rel (%p540) target = $region44
        $region43: #{forward.2} parent=15 // pred_region
          %s543 = sand.u32 %s44, 1
          %s544 = scalar_lea.sflag [#allocation13], %s543
          %s545 = sand.u32 %s222, 1
          %s546 = scalar_lea.vmem [#allocation12], %s545
          %s548 = ssub.s32 16, 16
          %549 = vsyncadd %s544, %s548
          %s550 = smul.addr %s52, 16
          %s551 = scalar_lea.hbm %s7, %s550
          %s553 = sshll.u32 %s546, 4
          %s554 = int_to_ptr.vmem [resolvable:$true] %s553
          %556 = dma.hbm_to_vmem [thread:$0]  %s551, 16, %s554, %s544
        $region44: #{forward.2} parent=15 // pred_fallthru
          _
        // Predicated region
        $region45: #{forward.2} parent=15 // pred_check
          %p557 = pneg %p258
        $region46: #{forward.2} parent=15 // pred_check_branch
          %559 = sbr.rel (%p557) target = $region48
        $region47: #{forward.2} parent=15 // pred_region
          %s560 = sand.u32 %s44, 1
          %s561 = scalar_lea.sflag [#allocation13], %s560
          %s562 = sand.u32 %s248, 1
          %s563 = scalar_lea.vmem [#allocation14], %s562
          %s565 = ssub.s32 16, 16
          %566 = vsyncadd %s561, %s565
          %s567 = smul.addr %s52, 16
          %s568 = scalar_lea.hbm %s8, %s567
          %s570 = sshll.u32 %s563, 4
          %s571 = int_to_ptr.vmem [resolvable:$true] %s570
          %573 = dma.hbm_to_vmem [thread:$0]  %s568, 16, %s571, %s561
        $region48: #{forward.2} parent=15 // pred_fallthru
          _
        // Predicated region
        $region49: #{forward.2} parent=15 // pred_check
          %p574 = pneg %p284
        $region50: #{forward.2} parent=15 // pred_check_branch
          %576 = sbr.rel (%p574) target = $region52
        $region51: #{forward.2} parent=15 // pred_region
          %s577 = sand.u32 %s44, 1
          %s578 = scalar_lea.sflag [#allocation16], %s577
          %s579 = sand.u32 %s274, 1
          %s580 = scalar_lea.vmem [#allocation15], %s579
          %s582 = ssub.s32 16, 16
          %583 = vsyncadd %s578, %s582
          %s584 = smul.addr %s52, 16
          %s585 = scalar_lea.hbm %s9, %s584
          %s587 = sshll.u32 %s580, 4
          %s588 = int_to_ptr.vmem [resolvable:$true] %s587
          %590 = dma.hbm_to_vmem [thread:$0]  %s585, 16, %s588, %s578
        $region52: #{forward.2} parent=15 // pred_fallthru
          _
        // Predicated region
        $region53: #{forward.2} parent=15 // pred_check
          %p591 = pneg %p310
        $region54: #{forward.2} parent=15 // pred_check_branch
          %593 = sbr.rel (%p591) target = $region56
        $region55: #{forward.2} parent=15 // pred_region
          %s594 = sand.u32 %s44, 1
          %s595 = scalar_lea.sflag [#allocation16], %s594
          %s596 = sand.u32 %s300, 1
          %s597 = smul.addr %s596, 16
          %s598 = scalar_lea.vmem [#allocation17], %s597
          %s600 = ssub.s32 256, 256
          %601 = vsyncadd %s595, %s600
          %s602 = smul.addr %s52, 4
          %s603 = smul.addr %s602, 64
          %s604 = scalar_lea.hbm %s10, %s603
          %s605 = sshll.u32 %s598, 4
          %s606 = int_to_ptr.vmem [resolvable:$true] %s605
          %611 = dma.hbm_to_vmem [thread:$0]  %s604, 256, %s606, %s595, 64, 64, 4
        $region56: #{forward.2} parent=15 // pred_fallthru
          _
        // Predicated region
        $region57: #{forward.2} parent=15 // pred_check
          %p612 = pneg %p336
        $region58: #{forward.2} parent=15 // pred_check_branch
          %614 = sbr.rel (%p612) target = $region60
        $region59: #{forward.2} parent=15 // pred_region
          %s615 = sand.u32 %s44, 1
          %s616 = scalar_lea.sflag [#allocation19], %s615
          %s617 = sand.u32 %s326, 1
          %s618 = scalar_lea.vmem [#allocation18], %s617
          %s620 = ssub.s32 16, 16
          %621 = vsyncadd %s616, %s620
          %s622 = smul.addr %s52, 16
          %s623 = scalar_lea.hbm %s11, %s622
          %s625 = sshll.u32 %s618, 4
          %s626 = int_to_ptr.vmem [resolvable:$true] %s625
          %628 = dma.hbm_to_vmem [thread:$0]  %s623, 16, %s626, %s616
        $region60: #{forward.2} parent=15 // pred_fallthru
          _
        // Predicated region
        $region61: #{forward.2} parent=15 // pred_check
          %p629 = pneg %p362
        $region62: #{forward.2} parent=15 // pred_check_branch
          %631 = sbr.rel (%p629) target = $region64
        $region63: #{forward.2} parent=15 // pred_region
          %p632 = scmp.lt.s32.totalorder %s52, 1
          %s633 = scalar_select %p632, %s52, 1
          %s634 = smul.addr %s633, 8
          %s635 = smul.addr %s634, 4
          %s636 = scalar_lea.vmem %s12, %s635
        $region64: #{forward.2} parent=15 // pred_fallthru
          _
        // Predicated region
        $region65: #{forward.2} parent=15 // pred_check
          %p637 = pneg %p388
        $region66: #{forward.2} parent=15 // pred_check_branch
          %639 = sbr.rel (%p637) target = $region68
        $region67: #{forward.2} parent=15 // pred_region
          %s640 = sand.u32 %s44, 1
          %s641 = scalar_lea.sflag [#allocation19], %s640
          %s642 = sand.u32 %s378, 1
          %s643 = scalar_lea.vmem [#allocation20], %s642
          %s645 = ssub.s32 16, 16
          %646 = vsyncadd %s641, %s645
          %s647 = smul.addr %s52, 16
          %s648 = scalar_lea.hbm %s13, %s647
          %s650 = sshll.u32 %s643, 4
          %s651 = int_to_ptr.vmem [resolvable:$true] %s650
          %653 = dma.hbm_to_vmem [thread:$0]  %s648, 16, %s651, %s641
        $region68: #{forward.2} parent=15 // pred_fallthru
          _
      $region16: #{forward.2} parent=5 // pred_fallthru
        _
      %p654 = scmp.le.s32.totalorder 1, %s44
      %p655 = scmp.lt.s32.totalorder %s44, 5
      %p656 = pnand %p654, %p655
      %p657 = pneg %p656
      // Predicated region
      $region69: #{forward.2} parent=5 // pred_check
        _
      $region70: #{forward.2} parent=5 // pred_check_branch
        %659 = sbr.rel (%p656) target = $region72
      $region71: #{forward.2} parent=5 // pred_region
        %s660 = ssub.s32 %s44, 1
        %s661 = sand.u32 %s95, 1
        %s662 = scalar_lea.sflag [#allocation5], %s661
        %s663 = sand.u32 %s95, 1
        %s664 = scalar_lea.vmem [#allocation4], %s663
        // Predicated region
        $region73: #{forward.2} parent=71 // pred_check
          %p665 = pneg %p108
        $region74: #{forward.2} parent=71 // pred_check_branch
          %667 = sbr.rel (%p665) target = $region76
        $region75: #{forward.2} parent=71 // pred_region
          %668 = dma.done %s662, 16
        $region76: #{forward.2} parent=71 // pred_fallthru
          _
        %s669 = sand.u32 %s49, 1
        %s670 = scalar_lea.sflag [#allocation7], %s669
        %s671 = sand.u32 %s121, 1
        %s672 = scalar_lea.vmem [#allocation6], %s671
        // Predicated region
        $region77: #{forward.2} parent=71 // pred_check
          %p673 = pneg %p134
        $region78: #{forward.2} parent=71 // pred_check_branch
          %675 = sbr.rel (%p673) target = $region80
        $region79: #{forward.2} parent=71 // pred_region
          %676 = dma.done %s670, 16
        $region80: #{forward.2} parent=71 // pred_fallthru
          _
        %s677 = sand.u32 %s49, 1
        %s678 = scalar_lea.sflag [#allocation7], %s677
        %s679 = sand.u32 %s147, 1
        %s680 = smul.addr %s679, 16
        %s681 = scalar_lea.vmem [#allocation8], %s680
        // Predicated region
        $region81: #{forward.2} parent=71 // pred_check
          %p682 = pneg %p160
        $region82: #{forward.2} parent=71 // pred_check_branch
          %684 = sbr.rel (%p682) target = $region84
        $region83: #{forward.2} parent=71 // pred_region
          %685 = dma.done %s678, 256
        $region84: #{forward.2} parent=71 // pred_fallthru
          _
        %s686 = sand.u32 %s49, 1
        %s687 = scalar_lea.sflag [#allocation10], %s686
        %s688 = sand.u32 %s173, 1
        %s689 = scalar_lea.vmem [#allocation9], %s688
        // Predicated region
        $region85: #{forward.2} parent=71 // pred_check
          %p690 = pneg %p186
        $region86: #{forward.2} parent=71 // pred_check_branch
          %692 = sbr.rel (%p690) target = $region88
        $region87: #{forward.2} parent=71 // pred_region
          %693 = dma.done %s687, 16
        $region88: #{forward.2} parent=71 // pred_fallthru
          _
        %s694 = sand.u32 %s49, 1
        %s695 = scalar_lea.sflag [#allocation10], %s694
        %s696 = sand.u32 %s199, 1
        %s697 = smul.addr %s696, 16
        %s698 = scalar_lea.vmem [#allocation11], %s697
        // Predicated region
        $region89: #{forward.2} parent=71 // pred_check
          %p699 = pneg %p212
        $region90: #{forward.2} parent=71 // pred_check_branch
          %701 = sbr.rel (%p699) target = $region92
        $region91: #{forward.2} parent=71 // pred_region
          %702 = dma.done %s695, 256
        $region92: #{forward.2} parent=71 // pred_fallthru
          _
        %s703 = sand.u32 %s49, 1
        %s704 = scalar_lea.sflag [#allocation13], %s703
        %s705 = sand.u32 %s225, 1
        %s706 = scalar_lea.vmem [#allocation12], %s705
        // Predicated region
        $region93: #{forward.2} parent=71 // pred_check
          %p707 = pneg %p238
        $region94: #{forward.2} parent=71 // pred_check_branch
          %709 = sbr.rel (%p707) target = $region96
        $region95: #{forward.2} parent=71 // pred_region
          %710 = dma.done %s704, 16
        $region96: #{forward.2} parent=71 // pred_fallthru
          _
        %s711 = sand.u32 %s49, 1
        %s712 = scalar_lea.sflag [#allocation13], %s711
        %s713 = sand.u32 %s251, 1
        %s714 = scalar_lea.vmem [#allocation14], %s713
        // Predicated region
        $region97: #{forward.2} parent=71 // pred_check
          %p715 = pneg %p264
        $region98: #{forward.2} parent=71 // pred_check_branch
          %717 = sbr.rel (%p715) target = $region100
        $region99: #{forward.2} parent=71 // pred_region
          %718 = dma.done %s712, 16
        $region100: #{forward.2} parent=71 // pred_fallthru
          _
        %s719 = sand.u32 %s49, 1
        %s720 = scalar_lea.sflag [#allocation16], %s719
        %s721 = sand.u32 %s277, 1
        %s722 = scalar_lea.vmem [#allocation15], %s721
        // Predicated region
        $region101: #{forward.2} parent=71 // pred_check
          %p723 = pneg %p290
        $region102: #{forward.2} parent=71 // pred_check_branch
          %725 = sbr.rel (%p723) target = $region104
        $region103: #{forward.2} parent=71 // pred_region
          %726 = dma.done %s720, 16
        $region104: #{forward.2} parent=71 // pred_fallthru
          _
        %s727 = sand.u32 %s49, 1
        %s728 = scalar_lea.sflag [#allocation16], %s727
        %s729 = sand.u32 %s303, 1
        %s730 = smul.addr %s729, 16
        %s731 = scalar_lea.vmem [#allocation17], %s730
        // Predicated region
        $region105: #{forward.2} parent=71 // pred_check
          %p732 = pneg %p316
        $region106: #{forward.2} parent=71 // pred_check_branch
          %734 = sbr.rel (%p732) target = $region108
        $region107: #{forward.2} parent=71 // pred_region
          %735 = dma.done %s728, 256
        $region108: #{forward.2} parent=71 // pred_fallthru
          _
        %s736 = sand.u32 %s49, 1
        %s737 = scalar_lea.sflag [#allocation19], %s736
        %s738 = sand.u32 %s329, 1
        %s739 = scalar_lea.vmem [#allocation18], %s738
        // Predicated region
        $region109: #{forward.2} parent=71 // pred_check
          %p740 = pneg %p342
        $region110: #{forward.2} parent=71 // pred_check_branch
          %742 = sbr.rel (%p740) target = $region112
        $region111: #{forward.2} parent=71 // pred_region
          %743 = dma.done %s737, 16
        $region112: #{forward.2} parent=71 // pred_fallthru
          _
        %s744 = sand.u32 %s49, 1
        %s745 = scalar_lea.sflag [#allocation19], %s744
        %s746 = sand.u32 %s381, 1
        %s747 = scalar_lea.vmem [#allocation20], %s746
        // Predicated region
        $region113: #{forward.2} parent=71 // pred_check
          %p748 = pneg %p394
        $region114: #{forward.2} parent=71 // pred_check_branch
          %750 = sbr.rel (%p748) target = $region116
        $region115: #{forward.2} parent=71 // pred_region
          %751 = dma.done %s745, 16
        $region116: #{forward.2} parent=71 // pred_fallthru
          _
        %p752 = scmp.lt.s32.totalorder %s53, 1
        %s753 = scalar_select %p752, %s53, 1
        %s754 = smul.addr %s753, 2
        %s755 = smul.addr %s754, 8
        %s756 = scalar_lea.vmem %s1, %s755
        %p757 = pneg %p82
        %p758 = pneg %p79
        %s759 = sand.u32 %s95, 1
        %s760 = scalar_lea.sflag [#allocation5], %s759
        %s761 = sand.u32 %s95, 1
        %s762 = scalar_lea.vmem [#allocation4], %s761
        %p763 = pneg %p108
        %p764 = pneg %p105
        %s765 = sand.u32 %s49, 1
        %s766 = scalar_lea.sflag [#allocation7], %s765
        %s767 = sand.u32 %s121, 1
        %s768 = scalar_lea.vmem [#allocation6], %s767
        %p769 = pneg %p134
        %p770 = pneg %p131
        %s771 = sand.u32 %s49, 1
        %s772 = scalar_lea.sflag [#allocation7], %s771
        %s773 = sand.u32 %s147, 1
        %s774 = smul.addr %s773, 16
        %s775 = scalar_lea.vmem [#allocation8], %s774
        %p776 = pneg %p160
        %p777 = pneg %p157
        %s778 = sand.u32 %s49, 1
        %s779 = scalar_lea.sflag [#allocation10], %s778
        %s780 = sand.u32 %s173, 1
        %s781 = scalar_lea.vmem [#allocation9], %s780
        %p782 = pneg %p186
        %p783 = pneg %p183
        %s784 = sand.u32 %s49, 1
        %s785 = scalar_lea.sflag [#allocation10], %s784
        %s786 = sand.u32 %s199, 1
        %s787 = smul.addr %s786, 16
        %s788 = scalar_lea.vmem [#allocation11], %s787
        %p789 = pneg %p212
        %p790 = pneg %p209
        %s791 = sand.u32 %s49, 1
        %s792 = scalar_lea.sflag [#allocation13], %s791
        %s793 = sand.u32 %s225, 1
        %s794 = scalar_lea.vmem [#allocation12], %s793
        %p795 = pneg %p238
        %p796 = pneg %p235
        %s797 = sand.u32 %s49, 1
        %s798 = scalar_lea.sflag [#allocation13], %s797
        %s799 = sand.u32 %s251, 1
        %s800 = scalar_lea.vmem [#allocation14], %s799
        %p801 = pneg %p264
        %p802 = pneg %p261
        %s803 = sand.u32 %s49, 1
        %s804 = scalar_lea.sflag [#allocation16], %s803
        %s805 = sand.u32 %s277, 1
        %s806 = scalar_lea.vmem [#allocation15], %s805
        %p807 = pneg %p290
        %p808 = pneg %p287
        %s809 = sand.u32 %s49, 1
        %s810 = scalar_lea.sflag [#allocation16], %s809
        %s811 = sand.u32 %s303, 1
        %s812 = smul.addr %s811, 16
        %s813 = scalar_lea.vmem [#allocation17], %s812
        %p814 = pneg %p316
        %p815 = pneg %p313
        %s816 = sand.u32 %s49, 1
        %s817 = scalar_lea.sflag [#allocation19], %s816
        %s818 = sand.u32 %s329, 1
        %s819 = scalar_lea.vmem [#allocation18], %s818
        %p820 = pneg %p342
        %p821 = pneg %p339
        %p822 = scmp.lt.s32.totalorder %s54, 1
        %s823 = scalar_select %p822, %s54, 1
        %s824 = smul.addr %s823, 8
        %s825 = smul.addr %s824, 4
        %s826 = scalar_lea.vmem %s12, %s825
        %p827 = pneg %p368
        %p828 = pneg %p365
        %s829 = sand.u32 %s49, 1
        %s830 = scalar_lea.sflag [#allocation19], %s829
        %s831 = sand.u32 %s381, 1
        %s832 = scalar_lea.vmem [#allocation20], %s831
        %p833 = pneg %p394
        %p834 = pneg %p391
        %p835 = pneg %p420
        %p836 = pneg %p417
        %p837 = scmp.lt.s32.totalorder %s53, 1
        %s838 = scalar_select %p837, %s53, 1
        %s839 = smul.addr %s838, 2
        %s840 = smul.addr %s839, 8
        %s841 = scalar_lea.vmem %s14, %s840
        %p842 = scmp.lt.s32.totalorder %s53, 1
        %s843 = scalar_select %p842, %s53, 1
        %s844 = smul.addr %s843, 2
        %s845 = smul.addr %s844, 8
        %s846 = scalar_lea.vmem %s1, %s845
        %p847 = scmp.lt.s32.totalorder %s54, 1
        %s848 = scalar_select %p847, %s54, 1
        %s849 = smul.addr %s848, 8
        %s850 = smul.addr %s849, 4
        %s851 = scalar_lea.vmem %s12, %s850
        %p852 = scmp.lt.s32.totalorder %s53, 1
        %s853 = scalar_select %p852, %s53, 1
        %s854 = smul.addr %s853, 2
        %s855 = smul.addr %s854, 8
        %s856 = scalar_lea.vmem %s14, %s855
        %p858 = scmp.eq.s32.totalorder %s54, 0
        // Predicated region
        $region117: #{forward.2} parent=71 // pred_check
          %p859 = pneg %p858
        $region118: #{forward.2} parent=71 // pred_check_branch
          %861 = sbr.rel (%p859) target = $region120
        $region119: #{forward.2} parent=71 // pred_region
          %v862 = vld [vmem:[%s846] sm:$0xff]
          %v863 = vld [vmem:[%s846 + $0x8] sm:$0xf]
          %vm864 = vcmask 261120
          %865 = vst.msk [vmem:[%s856] sm:$0xff] %vm864, %v862
          %vm866 = vcmask 257024
          %867 = vst.msk [vmem:[%s856 + $0x8] sm:$0xf] %vm866, %v863
        $region120: #{forward.2} parent=71 // pred_fallthru
          _
        %v868 = vld [vmem:[%s856] sm:$0xff]
        %v869 = vld [vmem:[%s856 + $0x8] sm:$0xf]
        %v870 = vlaneseq
        %v871 = vand.u32 %v870, 127
        %s872 = sld [smem:[#allocation3 + %s53]]
        %v873 = vstv %s872
        %vm874 = vcmp.lt.s32.totalorder %v871, %v873
        %v875 = vsel %vm874, 0.0, -1e+30
        %v876 = vld [vmem:[%s664] sm:$0x1]
        %v877 = vld [vmem:[%s672] sm:$0x1]
        %vm878 = vcmask 261120
        %v879 = vsel %vm878, %v868, 0.0
        %880 = vadd.xlane.f32.xlu0 %v879
        %v881 = vpop.xlane.xlu0 %880
        %vm882 = vcmask 257024
        %v883 = vsel %vm882, %v869, 0.0
        %884 = vadd.xlane.f32.xlu0 %v883
        %v885 = vpop.xlane.xlu0 %884
        %v886 = vrcp.pop 32.0
        %v887 = vmul.f32 %v881, %v886
        %v888 = vmul.f32 %v885, %v886
        %v889 = vsub.f32 %v868, %v887
        %v890 = vsub.f32 %v869, %v888
        %v891 = vmul.f32 %v889, %v889
        %v892 = vmul.f32 %v890, %v890
        %v893 = vsel %vm878, %v891, 0.0
        %894 = vadd.xlane.f32.xlu0 %v893
        %v895 = vpop.xlane.xlu0 %894
        %v896 = vsel %vm882, %v892, 0.0
        %897 = vadd.xlane.f32.xlu0 %v896
        %v898 = vpop.xlane.xlu0 %897
        %v899 = vmul.f32 %v895, %v886
        %v900 = vmul.f32 %v898, %v886
        %v901 = vadd.f32 %v899, 1e-05
        %v902 = vadd.f32 %v900, 1e-05
        %v903 = vrsqrt.pop %v901
        %v904 = vrsqrt.pop %v902
        %v905 = vmul.f32 %v889, %v903
        %v906 = vmul.f32 %v890, %v904
        %v908 = vlaneseq
        %v909 = vshrl.u32 %v908, 7
        %v910 = vsub.s32 0, %v909
        %v911 = vrot.slane %v876, %v910
        %v913 = vmul.f32 %v905, %v911
        %v914 = vmul.f32 %v906, %v911
        %v916 = vlaneseq
        %v917 = vshrl.u32 %v916, 7
        %v918 = vsub.s32 0, %v917
        %v919 = vrot.slane %v877, %v918
        %v921 = vadd.f32 %v913, %v919
        %v922 = vadd.f32 %v914, %v919
        %v923 = vpack.c.bf16 %v922, %v921
        %v924 = vld [vmem:[%s681] sm:$0xf]
        %v925 = vld [vmem:[%s681 + $0x4] sm:$0xf]
        %v926 = vld [vmem:[%s681 + $0x8] sm:$0xf]
        %v927 = vld [vmem:[%s681 + $0xc] sm:$0xf]
        %v928 = vld [vmem:[%s689] sm:$0x1]
        %v930 = vlaneseq
        %v931 = vshrl.u32 %v930, 7
        %v932 = vsub.s32 0, %v931
        %v933 = vrot.slane %v928, %v932
        %v939 = vunpack.c.l.b16 %v924
        %v940 = vunpack.c.l.b16 %v925
        %v941 = vunpack.c.l.b16 %v926
        %v942 = vunpack.c.l.b16 %v927
        %v943 = vpack.c.b16 %v940, %v939
        %v944 = vpack.c.b16 %v942, %v941
        %v948 = vsel %vm878, %v923, 0
        %950 = vmatprep.subr.bf16.mxu0 0
        %951 = vmatpush1.bf16.msra.mxu0 0
        %952 = vmatprep.subr.bf16.mxu0 0
        %953 = vmatpush1.bf16.msra.mxu0 0
        %954 = vmatprep.subr.bf16.mxu0 0
        %955 = vmatpush1.bf16.msra.mxu0 0
        %956 = vmatprep.subr.bf16.mxu0 0
        %957 = vmatpush1.bf16.msra.mxu0 0
        %958 = vmatprep.subr.bf16.mxu0 0
        %959 = vmatpush1.bf16.msra.mxu0 0
        %960 = vmatprep.subr.bf16.mxu0 0
        %961 = vmatpush1.bf16.msra.mxu0 0
        %962 = vmatprep.subr.bf16.mxu0 0
        %963 = vmatpush1.bf16.msra.mxu0 %v944
        %964 = vmatprep.subr.bf16.mxu0 0
        %965 = vmatpush1.bf16.msra.mxu0 %v943
        %966 = vmatprep.subr.bf16.mxu0 0
        %967 = vmatpush2.bf16.msra.mxu0 0
        %968 = vmatprep.subr.bf16.mxu0 0
        %969 = vmatpush2.bf16.msra.mxu0 0
        %970 = vmatprep.subr.bf16.mxu0 0
        %971 = vmatpush2.bf16.msra.mxu0 0
        %972 = vmatprep.subr.bf16.mxu0 0
        %973 = vmatpush2.bf16.msra.mxu0 0
        %974 = vmatprep.subr.bf16.mxu0 0
        %975 = vmatpush2.bf16.msra.mxu0 0
        %976 = vmatprep.subr.bf16.mxu0 0
        %977 = vmatpush2.bf16.msra.mxu0 0
        %978 = vmatprep.subr.bf16.mxu0 0
        %979 = vmatpush2.bf16.msra.mxu0 0
        %980 = vmatprep.subr.bf16.mxu0 0
        %981 = vmatpush2.bf16.msra.mxu0 0
        %982 = vmatprep.mubr.bf16.mxu0 0
        %983 = vmatmul.mubr.bf16.gmra.mxu0 %v948
        %v984 = vpop.f32.mrf.mxu0
        %v985 = vadd.f32 %v933, %v984
        %v986 = vpop.f32.mrf.mxu0
        %v987 = vpop.f32.mrf.mxu0
        %v988 = vadd.f32 %v933, %v987
        %v989 = vpop.f32.mrf.mxu0
        %990 = vdwg.mxu0
        %v991 = vpack.c.bf16 %v988, %v985
        %993 = vrot.lane.b32.xlu0 %v991, 96
        %v994 = vpop.permute.xlu0 %993
        %vm995 = vcmask 64512
        %v997 = vsel %vm995, %v991, 0
        %v1000 = vsel %vm995, %v994, 0
        %1002 = vmatprep.subr.bf16.mxu0 0
        %1003 = vmatpush1.bf16.xpose.msra.mxu0 0
        %1004 = vmatprep.subr.bf16.mxu0 0
        %1005 = vmatpush1.bf16.xpose.msra.mxu0 0
        %1006 = vmatprep.subr.bf16.mxu0 0
        %1007 = vmatpush1.bf16.xpose.msra.mxu0 0
        %1008 = vmatprep.subr.bf16.mxu0 0
        %1009 = vmatpush1.bf16.xpose.msra.mxu0 0
        %1010 = vmatprep.subr.bf16.mxu0 0
        %1011 = vmatpush1.bf16.xpose.msra.mxu0 0
        %1012 = vmatprep.subr.bf16.mxu0 0
        %1013 = vmatpush1.bf16.xpose.msra.mxu0 0
        %1014 = vmatprep.subr.bf16.mxu0 0
        %1015 = vmatpush1.bf16.xpose.msra.mxu0 0
        %1016 = vmatprep.subr.bf16.mxu0 0
        %1017 = vmatpush1.bf16.xpose.msra.mxu0 %v1000
        %1018 = vmatprep.subr.bf16.mxu0 0
        %1019 = vmatpush2.bf16.xpose.msra.mxu0 0
        %1020 = vmatprep.subr.bf16.mxu0 0
        %1021 = vmatpush2.bf16.xpose.msra.mxu0 0
        %1022 = vmatprep.subr.bf16.mxu0 0
        %1023 = vmatpush2.bf16.xpose.msra.mxu0 0
        %1024 = vmatprep.subr.bf16.mxu0 0
        %1025 = vmatpush2.bf16.xpose.msra.mxu0 0
        %1026 = vmatprep.subr.bf16.mxu0 0
        %1027 = vmatpush2.bf16.xpose.msra.mxu0 0
        %1028 = vmatprep.subr.bf16.mxu0 0
        %1029 = vmatpush2.bf16.xpose.msra.mxu0 0
        %1030 = vmatprep.subr.bf16.mxu0 0
        %1031 = vmatpush2.bf16.xpose.msra.mxu0 0
        %1032 = vmatprep.subr.bf16.mxu0 0
        %1033 = vmatpush2.bf16.xpose.msra.mxu0 0
        %1034 = vmatprep.mubr.bf16.mxu0 0
        %1035 = vmatmul.mubr.bf16.gmra.mxu0 %v997
        %v1036 = vpop.f32.mrf.mxu0
        %v1037 = vadd.f32 %v875, %v1036
        %v1038 = vpop.f32.mrf.mxu0
        %v1039 = vpop.f32.mrf.mxu0
        %v1040 = vadd.f32 %v875, %v1039
        %v1041 = vpop.f32.mrf.mxu0
        %1042 = vdwg.mxu0
        %vm1043 = vcmask 97280
        %v1044 = vsel %vm1043, %v1037, -inf
        %1045 = vmax.xlane.f32.xlu0 %v1044
        %v1046 = vpop.xlane.xlu0 %1045
        %vm1047 = vcmask 93184
        %v1048 = vsel %vm1047, %v1040, -inf
        %1049 = vmax.xlane.f32.xlu0 %v1048
        %v1050 = vpop.xlane.xlu0 %1049
        %v1051 = vsub.f32 %v1037, %v1046
        %v1052 = vsub.f32 %v1040, %v1050
        %v1053 = vmul.f32 %v1051, 1.442695
        %v1054 = vpow.pop %v1053
        %v1055 = vmul.f32 %v1052, 1.442695
        %v1056 = vpow.pop %v1055
        %v1057 = vsel %vm1043, %v1054, 0.0
        %1058 = vadd.xlane.f32.xlu0 %v1057
        %v1059 = vpop.xlane.xlu0 %1058
        %v1060 = vsel %vm1047, %v1056, 0.0
        %1061 = vadd.xlane.f32.xlu0 %v1060
        %v1062 = vpop.xlane.xlu0 %1061
        %v1063 = vrcp.pop %v1059
        %v1064 = vrcp.pop %v1062
        %v1065 = vmul.f32 %v1054, %v1063
        %v1066 = vmul.f32 %v1056, %v1064
        %v1067 = vpack.c.bf16 %v1066, %v1065
        %1068 = vrot.lane.b32.xlu0 %v991, 64
        %v1069 = vpop.permute.xlu0 %1068
        %v1071 = vsel %vm1043, %v1067, 0
        %vm1073 = vcmask 1045504
        %v1075 = vsel %vm1073, %v1069, 0
        %1077 = vmatprep.subr.bf16.mxu0 0
        %1078 = vmatpush1.bf16.msra.mxu0 0
        %1079 = vmatprep.subr.bf16.mxu0 0
        %1080 = vmatpush1.bf16.msra.mxu0 0
        %1081 = vmatprep.subr.bf16.mxu0 0
        %1082 = vmatpush1.bf16.msra.mxu0 0
        %1083 = vmatprep.subr.bf16.mxu0 0
        %1084 = vmatpush1.bf16.msra.mxu0 0
        %1085 = vmatprep.subr.bf16.mxu0 0
        %1086 = vmatpush1.bf16.msra.mxu0 0
        %1087 = vmatprep.subr.bf16.mxu0 0
        %1088 = vmatpush1.bf16.msra.mxu0 0
        %1089 = vmatprep.subr.bf16.mxu0 0
        %1090 = vmatpush1.bf16.msra.mxu0 0
        %1091 = vmatprep.subr.bf16.mxu0 0
        %1092 = vmatpush1.bf16.msra.mxu0 %v1075
        %1093 = vmatprep.subr.bf16.mxu0 0
        %1094 = vmatpush2.bf16.msra.mxu0 0
        %1095 = vmatprep.subr.bf16.mxu0 0
        %1096 = vmatpush2.bf16.msra.mxu0 0
        %1097 = vmatprep.subr.bf16.mxu0 0
        %1098 = vmatpush2.bf16.msra.mxu0 0
        %1099 = vmatprep.subr.bf16.mxu0 0
        %1100 = vmatpush2.bf16.msra.mxu0 0
        %1101 = vmatprep.subr.bf16.mxu0 0
        %1102 = vmatpush2.bf16.msra.mxu0 0
        %1103 = vmatprep.subr.bf16.mxu0 0
        %1104 = vmatpush2.bf16.msra.mxu0 0
        %1105 = vmatprep.subr.bf16.mxu0 0
        %1106 = vmatpush2.bf16.msra.mxu0 0
        %1107 = vmatprep.subr.bf16.mxu0 0
        %1108 = vmatpush2.bf16.msra.mxu0 0
        %1109 = vmatprep.mubr.bf16.mxu0 0
        %1110 = vmatmul.mubr.bf16.gmra.mxu0 %v1071
        %v1111 = vpop.f32.mrf.mxu0
        %v1112 = vadd.f32 0.0, %v1111
        %v1113 = vpop.f32.mrf.mxu0
        %v1114 = vpop.f32.mrf.mxu0
        %v1115 = vadd.f32 0.0, %v1114
        %v1116 = vpop.f32.mrf.mxu0
        %1117 = vdwg.mxu0
        %1118 = vrot.lane.b32.xlu0 %v991, 120
        %v1119 = vpop.permute.xlu0 %1118
        %1120 = vrot.lane.b32.xlu0 %v991, 88
        %v1121 = vpop.permute.xlu0 %1120
        %v1123 = vsel %vm995, %v1119, 0
        %v1126 = vsel %vm995, %v1121, 0
        %1128 = vmatprep.subr.bf16.mxu0 0
        %1129 = vmatpush1.bf16.xpose.msra.mxu0 0
        %1130 = vmatprep.subr.bf16.mxu0 0
        %1131 = vmatpush1.bf16.xpose.msra.mxu0 0
        %1132 = vmatprep.subr.bf16.mxu0 0
        %1133 = vmatpush1.bf16.xpose.msra.mxu0 0
        %1134 = vmatprep.subr.bf16.mxu0 0
        %1135 = vmatpush1.bf16.xpose.msra.mxu0 0
        %1136 = vmatprep.subr.bf16.mxu0 0
        %1137 = vmatpush1.bf16.xpose.msra.mxu0 0
        %1138 = vmatprep.subr.bf16.mxu0 0
        %1139 = vmatpush1.bf16.xpose.msra.mxu0 0
        %1140 = vmatprep.subr.bf16.mxu0 0
        %1141 = vmatpush1.bf16.xpose.msra.mxu0 0
        %1142 = vmatprep.subr.bf16.mxu0 0
        %1143 = vmatpush1.bf16.xpose.msra.mxu0 %v1126
        %1144 = vmatprep.subr.bf16.mxu0 0
        %1145 = vmatpush2.bf16.xpose.msra.mxu0 0
        %1146 = vmatprep.subr.bf16.mxu0 0
        %1147 = vmatpush2.bf16.xpose.msra.mxu0 0
        %1148 = vmatprep.subr.bf16.mxu0 0
        %1149 = vmatpush2.bf16.xpose.msra.mxu0 0
        %1150 = vmatprep.subr.bf16.mxu0 0
        %1151 = vmatpush2.bf16.xpose.msra.mxu0 0
        %1152 = vmatprep.subr.bf16.mxu0 0
        %1153 = vmatpush2.bf16.xpose.msra.mxu0 0
        %1154 = vmatprep.subr.bf16.mxu0 0
        %1155 = vmatpush2.bf16.xpose.msra.mxu0 0
        %1156 = vmatprep.subr.bf16.mxu0 0
        %1157 = vmatpush2.bf16.xpose.msra.mxu0 0
        %1158 = vmatprep.subr.bf16.mxu0 0
        %1159 = vmatpush2.bf16.xpose.msra.mxu0 0
        %1160 = vmatprep.mubr.bf16.mxu0 0
        %1161 = vmatmul.mubr.bf16.gmra.mxu0 %v1123
        %v1162 = vpop.f32.mrf.mxu0
        %v1163 = vadd.f32 %v875, %v1162
        %v1164 = vpop.f32.mrf.mxu0
        %v1165 = vpop.f32.mrf.mxu0
        %v1166 = vadd.f32 %v875, %v1165
        %v1167 = vpop.f32.mrf.mxu0
        %1168 = vdwg.mxu0
        %v1169 = vsel %vm1043, %v1163, -inf
        %1170 = vmax.xlane.f32.xlu0 %v1169
        %v1171 = vpop.xlane.xlu0 %1170
        %v1172 = vsel %vm1047, %v1166, -inf
        %1173 = vmax.xlane.f32.xlu0 %v1172
        %v1174 = vpop.xlane.xlu0 %1173
        %v1175 = vsub.f32 %v1163, %v1171
        %v1176 = vsub.f32 %v1166, %v1174
        %v1177 = vmul.f32 %v1175, 1.442695
        %v1178 = vpow.pop %v1177
        %v1179 = vmul.f32 %v1176, 1.442695
        %v1180 = vpow.pop %v1179
        %v1181 = vsel %vm1043, %v1178, 0.0
        %1182 = vadd.xlane.f32.xlu0 %v1181
        %v1183 = vpop.xlane.xlu0 %1182
        %v1184 = vsel %vm1047, %v1180, 0.0
        %1185 = vadd.xlane.f32.xlu0 %v1184
        %v1186 = vpop.xlane.xlu0 %1185
        %v1187 = vrcp.pop %v1183
        %v1188 = vrcp.pop %v1186
        %v1189 = vmul.f32 %v1178, %v1187
        %v1190 = vmul.f32 %v1180, %v1188
        %v1191 = vpack.c.bf16 %v1190, %v1189
        %1192 = vrot.lane.b32.xlu0 %v991, 56
        %v1193 = vpop.permute.xlu0 %1192
        %v1195 = vsel %vm1043, %v1191, 0
        %v1198 = vsel %vm1073, %v1193, 0
        %1200 = vmatprep.subr.bf16.mxu0 0
        %1201 = vmatpush1.bf16.msra.mxu0 0
        %1202 = vmatprep.subr.bf16.mxu0 0
        %1203 = vmatpush1.bf16.msra.mxu0 0
        %1204 = vmatprep.subr.bf16.mxu0 0
        %1205 = vmatpush1.bf16.msra.mxu0 0
        %1206 = vmatprep.subr.bf16.mxu0 0
        %1207 = vmatpush1.bf16.msra.mxu0 0
        %1208 = vmatprep.subr.bf16.mxu0 0
        %1209 = vmatpush1.bf16.msra.mxu0 0
        %1210 = vmatprep.subr.bf16.mxu0 0
        %1211 = vmatpush1.bf16.msra.mxu0 0
        %1212 = vmatprep.subr.bf16.mxu0 0
        %1213 = vmatpush1.bf16.msra.mxu0 0
        %1214 = vmatprep.subr.bf16.mxu0 0
        %1215 = vmatpush1.bf16.msra.mxu0 %v1198
        %1216 = vmatprep.subr.bf16.mxu0 0
        %1217 = vmatpush2.bf16.msra.mxu0 0
        %1218 = vmatprep.subr.bf16.mxu0 0
        %1219 = vmatpush2.bf16.msra.mxu0 0
        %1220 = vmatprep.subr.bf16.mxu0 0
        %1221 = vmatpush2.bf16.msra.mxu0 0
        %1222 = vmatprep.subr.bf16.mxu0 0
        %1223 = vmatpush2.bf16.msra.mxu0 0
        %1224 = vmatprep.subr.bf16.mxu0 0
        %1225 = vmatpush2.bf16.msra.mxu0 0
        %1226 = vmatprep.subr.bf16.mxu0 0
        %1227 = vmatpush2.bf16.msra.mxu0 0
        %1228 = vmatprep.subr.bf16.mxu0 0
        %1229 = vmatpush2.bf16.msra.mxu0 0
        %1230 = vmatprep.subr.bf16.mxu0 0
        %1231 = vmatpush2.bf16.msra.mxu0 0
        %1232 = vmatprep.mubr.bf16.mxu0 0
        %1233 = vmatmul.mubr.bf16.gmra.mxu0 %v1195
        %v1234 = vpop.f32.mrf.mxu0
        %v1235 = vadd.f32 0.0, %v1234
        %v1236 = vpop.f32.mrf.mxu0
        %v1237 = vpop.f32.mrf.mxu0
        %v1238 = vadd.f32 0.0, %v1237
        %v1239 = vpop.f32.mrf.mxu0
        %1240 = vdwg.mxu0
        %1241 = vrot.lane.b32.xlu0 %v991, 112
        %v1242 = vpop.permute.xlu0 %1241
        %1243 = vrot.lane.b32.xlu0 %v991, 80
        %v1244 = vpop.permute.xlu0 %1243
        %v1246 = vsel %vm995, %v1242, 0
        %v1249 = vsel %vm995, %v1244, 0
        %1251 = vmatprep.subr.bf16.mxu0 0
        %1252 = vmatpush1.bf16.xpose.msra.mxu0 0
        %1253 = vmatprep.subr.bf16.mxu0 0
        %1254 = vmatpush1.bf16.xpose.msra.mxu0 0
        %1255 = vmatprep.subr.bf16.mxu0 0
        %1256 = vmatpush1.bf16.xpose.msra.mxu0 0
        %1257 = vmatprep.subr.bf16.mxu0 0
        %1258 = vmatpush1.bf16.xpose.msra.mxu0 0
        %1259 = vmatprep.subr.bf16.mxu0 0
        %1260 = vmatpush1.bf16.xpose.msra.mxu0 0
        %1261 = vmatprep.subr.bf16.mxu0 0
        %1262 = vmatpush1.bf16.xpose.msra.mxu0 0
        %1263 = vmatprep.subr.bf16.mxu0 0
        %1264 = vmatpush1.bf16.xpose.msra.mxu0 0
        %1265 = vmatprep.subr.bf16.mxu0 0
        %1266 = vmatpush1.bf16.xpose.msra.mxu0 %v1249
        %1267 = vmatprep.subr.bf16.mxu0 0
        %1268 = vmatpush2.bf16.xpose.msra.mxu0 0
        %1269 = vmatprep.subr.bf16.mxu0 0
        %1270 = vmatpush2.bf16.xpose.msra.mxu0 0
        %1271 = vmatprep.subr.bf16.mxu0 0
        %1272 = vmatpush2.bf16.xpose.msra.mxu0 0
        %1273 = vmatprep.subr.bf16.mxu0 0
        %1274 = vmatpush2.bf16.xpose.msra.mxu0 0
        %1275 = vmatprep.subr.bf16.mxu0 0
        %1276 = vmatpush2.bf16.xpose.msra.mxu0 0
        %1277 = vmatprep.subr.bf16.mxu0 0
        %1278 = vmatpush2.bf16.xpose.msra.mxu0 0
        %1279 = vmatprep.subr.bf16.mxu0 0
        %1280 = vmatpush2.bf16.xpose.msra.mxu0 0
        %1281 = vmatprep.subr.bf16.mxu0 0
        %1282 = vmatpush2.bf16.xpose.msra.mxu0 0
        %1283 = vmatprep.mubr.bf16.mxu0 0
        %1284 = vmatmul.mubr.bf16.gmra.mxu0 %v1246
        %v1285 = vpop.f32.mrf.mxu0
        %v1286 = vadd.f32 %v875, %v1285
        %v1287 = vpop.f32.mrf.mxu0
        %v1288 = vpop.f32.mrf.mxu0
        %v1289 = vadd.f32 %v875, %v1288
        %v1290 = vpop.f32.mrf.mxu0
        %1291 = vdwg.mxu0
        %v1292 = vsel %vm1043, %v1286, -inf
        %1293 = vmax.xlane.f32.xlu0 %v1292
        %v1294 = vpop.xlane.xlu0 %1293
        %v1295 = vsel %vm1047, %v1289, -inf
        %1296 = vmax.xlane.f32.xlu0 %v1295
        %v1297 = vpop.xlane.xlu0 %1296
        %v1298 = vsub.f32 %v1286, %v1294
        %v1299 = vsub.f32 %v1289, %v1297
        %v1300 = vmul.f32 %v1298, 1.442695
        %v1301 = vpow.pop %v1300
        %v1302 = vmul.f32 %v1299, 1.442695
        %v1303 = vpow.pop %v1302
        %v1304 = vsel %vm1043, %v1301, 0.0
        %1305 = vadd.xlane.f32.xlu0 %v1304
        %v1306 = vpop.xlane.xlu0 %1305
        %v1307 = vsel %vm1047, %v1303, 0.0
        %1308 = vadd.xlane.f32.xlu0 %v1307
        %v1309 = vpop.xlane.xlu0 %1308
        %v1310 = vrcp.pop %v1306
        %v1311 = vrcp.pop %v1309
        %v1312 = vmul.f32 %v1301, %v1310
        %v1313 = vmul.f32 %v1303, %v1311
        %v1314 = vpack.c.bf16 %v1313, %v1312
        %1315 = vrot.lane.b32.xlu0 %v991, 48
        %v1316 = vpop.permute.xlu0 %1315
        %v1318 = vsel %vm1043, %v1314, 0
        %v1321 = vsel %vm1073, %v1316, 0
        %1323 = vmatprep.subr.bf16.mxu0 0
        %1324 = vmatpush1.bf16.msra.mxu0 0
        %1325 = vmatprep.subr.bf16.mxu0 0
        %1326 = vmatpush1.bf16.msra.mxu0 0
        %1327 = vmatprep.subr.bf16.mxu0 0
        %1328 = vmatpush1.bf16.msra.mxu0 0
        %1329 = vmatprep.subr.bf16.mxu0 0
        %1330 = vmatpush1.bf16.msra.mxu0 0
        %1331 = vmatprep.subr.bf16.mxu0 0
        %1332 = vmatpush1.bf16.msra.mxu0 0
        %1333 = vmatprep.subr.bf16.mxu0 0
        %1334 = vmatpush1.bf16.msra.mxu0 0
        %1335 = vmatprep.subr.bf16.mxu0 0
        %1336 = vmatpush1.bf16.msra.mxu0 0
        %1337 = vmatprep.subr.bf16.mxu0 0
        %1338 = vmatpush1.bf16.msra.mxu0 %v1321
        %1339 = vmatprep.subr.bf16.mxu0 0
        %1340 = vmatpush2.bf16.msra.mxu0 0
        %1341 = vmatprep.subr.bf16.mxu0 0
        %1342 = vmatpush2.bf16.msra.mxu0 0
        %1343 = vmatprep.subr.bf16.mxu0 0
        %1344 = vmatpush2.bf16.msra.mxu0 0
        %1345 = vmatprep.subr.bf16.mxu0 0
        %1346 = vmatpush2.bf16.msra.mxu0 0
        %1347 = vmatprep.subr.bf16.mxu0 0
        %1348 = vmatpush2.bf16.msra.mxu0 0
        %1349 = vmatprep.subr.bf16.mxu0 0
        %1350 = vmatpush2.bf16.msra.mxu0 0
        %1351 = vmatprep.subr.bf16.mxu0 0
        %1352 = vmatpush2.bf16.msra.mxu0 0
        %1353 = vmatprep.subr.bf16.mxu0 0
        %1354 = vmatpush2.bf16.msra.mxu0 0
        %1355 = vmatprep.mubr.bf16.mxu0 0
        %1356 = vmatmul.mubr.bf16.gmra.mxu0 %v1318
        %v1357 = vpop.f32.mrf.mxu0
        %v1358 = vadd.f32 0.0, %v1357
        %v1359 = vpop.f32.mrf.mxu0
        %v1360 = vpop.f32.mrf.mxu0
        %v1361 = vadd.f32 0.0, %v1360
        %v1362 = vpop.f32.mrf.mxu0
        %1363 = vdwg.mxu0
        %1364 = vrot.lane.b32.xlu0 %v991, 104
        %v1365 = vpop.permute.xlu0 %1364
        %1366 = vrot.lane.b32.xlu0 %v991, 72
        %v1367 = vpop.permute.xlu0 %1366
        %v1369 = vsel %vm995, %v1365, 0
        %v1372 = vsel %vm995, %v1367, 0
        %1374 = vmatprep.subr.bf16.mxu0 0
        %1375 = vmatpush1.bf16.xpose.msra.mxu0 0
        %1376 = vmatprep.subr.bf16.mxu0 0
        %1377 = vmatpush1.bf16.xpose.msra.mxu0 0
        %1378 = vmatprep.subr.bf16.mxu0 0
        %1379 = vmatpush1.bf16.xpose.msra.mxu0 0
        %1380 = vmatprep.subr.bf16.mxu0 0
        %1381 = vmatpush1.bf16.xpose.msra.mxu0 0
        %1382 = vmatprep.subr.bf16.mxu0 0
        %1383 = vmatpush1.bf16.xpose.msra.mxu0 0
        %1384 = vmatprep.subr.bf16.mxu0 0
        %1385 = vmatpush1.bf16.xpose.msra.mxu0 0
        %1386 = vmatprep.subr.bf16.mxu0 0
        %1387 = vmatpush1.bf16.xpose.msra.mxu0 0
        %1388 = vmatprep.subr.bf16.mxu0 0
        %1389 = vmatpush1.bf16.xpose.msra.mxu0 %v1372
        %1390 = vmatprep.subr.bf16.mxu0 0
        %1391 = vmatpush2.bf16.xpose.msra.mxu0 0
        %1392 = vmatprep.subr.bf16.mxu0 0
        %1393 = vmatpush2.bf16.xpose.msra.mxu0 0
        %1394 = vmatprep.subr.bf16.mxu0 0
        %1395 = vmatpush2.bf16.xpose.msra.mxu0 0
        %1396 = vmatprep.subr.bf16.mxu0 0
        %1397 = vmatpush2.bf16.xpose.msra.mxu0 0
        %1398 = vmatprep.subr.bf16.mxu0 0
        %1399 = vmatpush2.bf16.xpose.msra.mxu0 0
        %1400 = vmatprep.subr.bf16.mxu0 0
        %1401 = vmatpush2.bf16.xpose.msra.mxu0 0
        %1402 = vmatprep.subr.bf16.mxu0 0
        %1403 = vmatpush2.bf16.xpose.msra.mxu0 0
        %1404 = vmatprep.subr.bf16.mxu0 0
        %1405 = vmatpush2.bf16.xpose.msra.mxu0 0
        %1406 = vmatprep.mubr.bf16.mxu0 0
        %1407 = vmatmul.mubr.bf16.gmra.mxu0 %v1369
        %v1408 = vpop.f32.mrf.mxu0
        %v1409 = vadd.f32 %v875, %v1408
        %v1410 = vpop.f32.mrf.mxu0
        %v1411 = vpop.f32.mrf.mxu0
        %v1412 = vadd.f32 %v875, %v1411
        %v1413 = vpop.f32.mrf.mxu0
        %1414 = vdwg.mxu0
        %v1415 = vsel %vm1043, %v1409, -inf
        %1416 = vmax.xlane.f32.xlu0 %v1415
        %v1417 = vpop.xlane.xlu0 %1416
        %v1418 = vsel %vm1047, %v1412, -inf
        %1419 = vmax.xlane.f32.xlu0 %v1418
        %v1420 = vpop.xlane.xlu0 %1419
        %v1421 = vsub.f32 %v1409, %v1417
        %v1422 = vsub.f32 %v1412, %v1420
        %v1423 = vmul.f32 %v1421, 1.442695
        %v1424 = vpow.pop %v1423
        %v1425 = vmul.f32 %v1422, 1.442695
        %v1426 = vpow.pop %v1425
        %v1427 = vsel %vm1043, %v1424, 0.0
        %1428 = vadd.xlane.f32.xlu0 %v1427
        %v1429 = vpop.xlane.xlu0 %1428
        %v1430 = vsel %vm1047, %v1426, 0.0
        %1431 = vadd.xlane.f32.xlu0 %v1430
        %v1432 = vpop.xlane.xlu0 %1431
        %v1433 = vrcp.pop %v1429
        %v1434 = vrcp.pop %v1432
        %v1435 = vmul.f32 %v1424, %v1433
        %v1436 = vmul.f32 %v1426, %v1434
        %v1437 = vpack.c.bf16 %v1436, %v1435
        %1438 = vrot.lane.b32.xlu0 %v991, 40
        %v1439 = vpop.permute.xlu0 %1438
        %v1441 = vsel %vm1043, %v1437, 0
        %v1444 = vsel %vm1073, %v1439, 0
        %1446 = vmatprep.subr.bf16.mxu0 0
        %1447 = vmatpush1.bf16.msra.mxu0 0
        %1448 = vmatprep.subr.bf16.mxu0 0
        %1449 = vmatpush1.bf16.msra.mxu0 0
        %1450 = vmatprep.subr.bf16.mxu0 0
        %1451 = vmatpush1.bf16.msra.mxu0 0
        %1452 = vmatprep.subr.bf16.mxu0 0
        %1453 = vmatpush1.bf16.msra.mxu0 0
        %1454 = vmatprep.subr.bf16.mxu0 0
        %1455 = vmatpush1.bf16.msra.mxu0 0
        %1456 = vmatprep.subr.bf16.mxu0 0
        %1457 = vmatpush1.bf16.msra.mxu0 0
        %1458 = vmatprep.subr.bf16.mxu0 0
        %1459 = vmatpush1.bf16.msra.mxu0 0
        %1460 = vmatprep.subr.bf16.mxu0 0
        %1461 = vmatpush1.bf16.msra.mxu0 %v1444
        %1462 = vmatprep.subr.bf16.mxu0 0
        %1463 = vmatpush2.bf16.msra.mxu0 0
        %1464 = vmatprep.subr.bf16.mxu0 0
        %1465 = vmatpush2.bf16.msra.mxu0 0
        %1466 = vmatprep.subr.bf16.mxu0 0
        %1467 = vmatpush2.bf16.msra.mxu0 0
        %1468 = vmatprep.subr.bf16.mxu0 0
        %1469 = vmatpush2.bf16.msra.mxu0 0
        %1470 = vmatprep.subr.bf16.mxu0 0
        %1471 = vmatpush2.bf16.msra.mxu0 0
        %1472 = vmatprep.subr.bf16.mxu0 0
        %1473 = vmatpush2.bf16.msra.mxu0 0
        %1474 = vmatprep.subr.bf16.mxu0 0
        %1475 = vmatpush2.bf16.msra.mxu0 0
        %1476 = vmatprep.subr.bf16.mxu0 0
        %1477 = vmatpush2.bf16.msra.mxu0 0
        %1478 = vmatprep.mubr.bf16.mxu0 0
        %1479 = vmatmul.mubr.bf16.gmra.mxu0 %v1441
        %v1480 = vpop.f32.mrf.mxu0
        %v1481 = vadd.f32 0.0, %v1480
        %v1482 = vpop.f32.mrf.mxu0
        %v1483 = vpop.f32.mrf.mxu0
        %v1484 = vadd.f32 0.0, %v1483
        %v1485 = vpop.f32.mrf.mxu0
        %1486 = vdwg.mxu0
        %1489 = vrot.lane.b32.xlu0 %v1235, 8
        %v1490 = vpop.permute.xlu0 %1489
        %1491 = vrot.lane.b32.xlu0 %v1238, 8
        %v1492 = vpop.permute.xlu0 %1491
        %1497 = vrot.lane.b32.xlu0 %v1358, 16
        %v1498 = vpop.permute.xlu0 %1497
        %1499 = vrot.lane.b32.xlu0 %v1361, 16
        %v1500 = vpop.permute.xlu0 %1499
        %1505 = vrot.lane.b32.xlu0 %v1481, 24
        %v1506 = vpop.permute.xlu0 %1505
        %1507 = vrot.lane.b32.xlu0 %v1484, 24
        %v1508 = vpop.permute.xlu0 %1507
        %v1511 = vsel %vm995, %v1112, %v1490
        %v1512 = vsel %vm995, %v1115, %v1492
        %vm1513 = vcmask 130048
        %v1514 = vsel %vm1513, %v1511, %v1498
        %v1515 = vsel %vm1513, %v1512, %v1500
        %vm1516 = vcmask 195584
        %v1517 = vsel %vm1516, %v1514, %v1506
        %v1518 = vsel %vm1516, %v1515, %v1508
        %v1519 = vpack.c.bf16 %v1518, %v1517
        %v1520 = vld [vmem:[%s698] sm:$0xf]
        %v1521 = vld [vmem:[%s698 + $0x4] sm:$0xf]
        %v1522 = vld [vmem:[%s698 + $0x8] sm:$0xf]
        %v1523 = vld [vmem:[%s698 + $0xc] sm:$0xf]
        %v1524 = vld [vmem:[%s706] sm:$0x1]
        %v1526 = vlaneseq
        %v1527 = vshrl.u32 %v1526, 7
        %v1528 = vsub.s32 0, %v1527
        %v1529 = vrot.slane %v1524, %v1528
        %v1535 = vunpack.c.l.b16 %v1520
        %v1536 = vunpack.c.l.b16 %v1521
        %v1537 = vunpack.c.l.b16 %v1522
        %v1538 = vunpack.c.l.b16 %v1523
        %v1539 = vpack.c.b16 %v1536, %v1535
        %v1540 = vpack.c.b16 %v1538, %v1537
        %v1544 = vsel %vm878, %v1519, 0
        %1546 = vmatprep.subr.bf16.mxu0 0
        %1547 = vmatpush1.bf16.msra.mxu0 0
        %1548 = vmatprep.subr.bf16.mxu0 0
        %1549 = vmatpush1.bf16.msra.mxu0 0
        %1550 = vmatprep.subr.bf16.mxu0 0
        %1551 = vmatpush1.bf16.msra.mxu0 0
        %1552 = vmatprep.subr.bf16.mxu0 0
        %1553 = vmatpush1.bf16.msra.mxu0 0
        %1554 = vmatprep.subr.bf16.mxu0 0
        %1555 = vmatpush1.bf16.msra.mxu0 0
        %1556 = vmatprep.subr.bf16.mxu0 0
        %1557 = vmatpush1.bf16.msra.mxu0 0
        %1558 = vmatprep.subr.bf16.mxu0 0
        %1559 = vmatpush1.bf16.msra.mxu0 %v1540
        %1560 = vmatprep.subr.bf16.mxu0 0
        %1561 = vmatpush1.bf16.msra.mxu0 %v1539
        %1562 = vmatprep.subr.bf16.mxu0 0
        %1563 = vmatpush2.bf16.msra.mxu0 0
        %1564 = vmatprep.subr.bf16.mxu0 0
        %1565 = vmatpush2.bf16.msra.mxu0 0
        %1566 = vmatprep.subr.bf16.mxu0 0
        %1567 = vmatpush2.bf16.msra.mxu0 0
        %1568 = vmatprep.subr.bf16.mxu0 0
        %1569 = vmatpush2.bf16.msra.mxu0 0
        %1570 = vmatprep.subr.bf16.mxu0 0
        %1571 = vmatpush2.bf16.msra.mxu0 0
        %1572 = vmatprep.subr.bf16.mxu0 0
        %1573 = vmatpush2.bf16.msra.mxu0 0
        %1574 = vmatprep.subr.bf16.mxu0 0
        %1575 = vmatpush2.bf16.msra.mxu0 0
        %1576 = vmatprep.subr.bf16.mxu0 0
        %1577 = vmatpush2.bf16.msra.mxu0 0
        %1578 = vmatprep.mubr.bf16.mxu0 0
        %1579 = vmatmul.mubr.bf16.gmra.mxu0 %v1544
        %v1580 = vpop.f32.mrf.mxu0
        %v1581 = vadd.f32 %v1529, %v1580
        %v1582 = vpop.f32.mrf.mxu0
        %v1583 = vpop.f32.mrf.mxu0
        %v1584 = vadd.f32 %v1529, %v1583
        %v1585 = vpop.f32.mrf.mxu0
        %1586 = vdwg.mxu0
        %v1587 = vadd.f32 %v868, %v1581
        %v1588 = vadd.f32 %v869, %v1584
        %v1589 = vld [vmem:[%s714] sm:$0x1]
        %v1590 = vld [vmem:[%s722] sm:$0x1]
        %v1591 = vsel %vm878, %v1587, 0.0
        %1592 = vadd.xlane.f32.xlu0 %v1591
        %v1593 = vpop.xlane.xlu0 %1592
        %v1594 = vsel %vm882, %v1588, 0.0
        %1595 = vadd.xlane.f32.xlu0 %v1594
        %v1596 = vpop.xlane.xlu0 %1595
        %v1597 = vmul.f32 %v1593, %v886
        %v1598 = vmul.f32 %v1596, %v886
        %v1599 = vsub.f32 %v1587, %v1597
        %v1600 = vsub.f32 %v1588, %v1598
        %v1601 = vmul.f32 %v1599, %v1599
        %v1602 = vmul.f32 %v1600, %v1600
        %v1603 = vsel %vm878, %v1601, 0.0
        %1604 = vadd.xlane.f32.xlu0 %v1603
        %v1605 = vpop.xlane.xlu0 %1604
        %v1606 = vsel %vm882, %v1602, 0.0
        %1607 = vadd.xlane.f32.xlu0 %v1606
        %v1608 = vpop.xlane.xlu0 %1607
        %v1609 = vmul.f32 %v1605, %v886
        %v1610 = vmul.f32 %v1608, %v886
        %v1611 = vadd.f32 %v1609, 1e-05
        %v1612 = vadd.f32 %v1610, 1e-05
        %v1613 = vrsqrt.pop %v1611
        %v1614 = vrsqrt.pop %v1612
        %v1615 = vmul.f32 %v1599, %v1613
        %v1616 = vmul.f32 %v1600, %v1614
        %v1618 = vlaneseq
        %v1619 = vshrl.u32 %v1618, 7
        %v1620 = vsub.s32 0, %v1619
        %v1621 = vrot.slane %v1589, %v1620
        %v1623 = vmul.f32 %v1615, %v1621
        %v1624 = vmul.f32 %v1616, %v1621
        %v1626 = vlaneseq
        %v1627 = vshrl.u32 %v1626, 7
        %v1628 = vsub.s32 0, %v1627
        %v1629 = vrot.slane %v1590, %v1628
        %v1631 = vadd.f32 %v1623, %v1629
        %v1632 = vadd.f32 %v1624, %v1629
        %v1633 = vpack.c.bf16 %v1632, %v1631
        %v1634 = vld [vmem:[%s731] sm:$0xf]
        %v1635 = vld [vmem:[%s731 + $0x4] sm:$0xf]
        %v1636 = vld [vmem:[%s731 + $0x8] sm:$0xf]
        %v1637 = vld [vmem:[%s731 + $0xc] sm:$0xf]
        %v1638 = vld [vmem:[%s739] sm:$0x1]
        %v1640 = vlaneseq
        %v1641 = vshrl.u32 %v1640, 7
        %v1642 = vsub.s32 0, %v1641
        %v1643 = vrot.slane %v1638, %v1642
        %v1649 = vunpack.c.l.b16 %v1634
        %v1650 = vunpack.c.l.b16 %v1635
        %v1651 = vunpack.c.l.b16 %v1636
        %v1652 = vunpack.c.l.b16 %v1637
        %v1653 = vpack.c.b16 %v1650, %v1649
        %v1654 = vpack.c.b16 %v1652, %v1651
        %v1658 = vsel %vm878, %v1633, 0
        %1660 = vmatprep.subr.bf16.mxu0 0
        %1661 = vmatpush1.bf16.msra.mxu0 0
        %1662 = vmatprep.subr.bf16.mxu0 0
        %1663 = vmatpush1.bf16.msra.mxu0 0
        %1664 = vmatprep.subr.bf16.mxu0 0
        %1665 = vmatpush1.bf16.msra.mxu0 0
        %1666 = vmatprep.subr.bf16.mxu0 0
        %1667 = vmatpush1.bf16.msra.mxu0 0
        %1668 = vmatprep.subr.bf16.mxu0 0
        %1669 = vmatpush1.bf16.msra.mxu0 0
        %1670 = vmatprep.subr.bf16.mxu0 0
        %1671 = vmatpush1.bf16.msra.mxu0 0
        %1672 = vmatprep.subr.bf16.mxu0 0
        %1673 = vmatpush1.bf16.msra.mxu0 %v1654
        %1674 = vmatprep.subr.bf16.mxu0 0
        %1675 = vmatpush1.bf16.msra.mxu0 %v1653
        %1676 = vmatprep.subr.bf16.mxu0 0
        %1677 = vmatpush2.bf16.msra.mxu0 0
        %1678 = vmatprep.subr.bf16.mxu0 0
        %1679 = vmatpush2.bf16.msra.mxu0 0
        %1680 = vmatprep.subr.bf16.mxu0 0
        %1681 = vmatpush2.bf16.msra.mxu0 0
        %1682 = vmatprep.subr.bf16.mxu0 0
        %1683 = vmatpush2.bf16.msra.mxu0 0
        %1684 = vmatprep.subr.bf16.mxu0 0
        %1685 = vmatpush2.bf16.msra.mxu0 0
        %1686 = vmatprep.subr.bf16.mxu0 0
        %1687 = vmatpush2.bf16.msra.mxu0 0
        %1688 = vmatprep.subr.bf16.mxu0 0
        %1689 = vmatpush2.bf16.msra.mxu0 0
        %1690 = vmatprep.subr.bf16.mxu0 0
        %1691 = vmatpush2.bf16.msra.mxu0 0
        %1692 = vmatprep.mubr.bf16.mxu0 0
        %1693 = vmatmul.mubr.bf16.gmra.mxu0 %v1658
        %v1694 = vpop.f32.mrf.mxu0
        %v1695 = vadd.f32 %v1643, %v1694
        %v1696 = vpop.f32.mrf.mxu0
        %v1697 = vpop.f32.mrf.mxu0
        %v1698 = vadd.f32 %v1643, %v1697
        %v1699 = vpop.f32.mrf.mxu0
        %1700 = vdwg.mxu0
        %v1701 = vmax.f32 %v1695, 0.0
        %v1702 = vmax.f32 %v1698, 0.0
        %v1703 = vpack.c.bf16 %v1702, %v1701
        %v1704 = vld [vmem:[%s851] sm:$0xf]
        %v1705 = vld [vmem:[%s851 + $0x4] sm:$0xf]
        %v1706 = vld [vmem:[%s851 + $0x8] sm:$0xf]
        %v1707 = vld [vmem:[%s851 + $0xc] sm:$0xf]
        %v1708 = vld [vmem:[%s851 + $0x10] sm:$0xf]
        %v1709 = vld [vmem:[%s851 + $0x14] sm:$0xf]
        %v1710 = vld [vmem:[%s851 + $0x18] sm:$0xf]
        %v1711 = vld [vmem:[%s851 + $0x1c] sm:$0xf]
        %v1712 = vld [vmem:[%s747] sm:$0x1]
        %v1714 = vlaneseq
        %v1715 = vshrl.u32 %v1714, 7
        %v1716 = vsub.s32 0, %v1715
        %v1717 = vrot.slane %v1712, %v1716
        %v1727 = vunpack.c.l.b16 %v1704
        %v1728 = vunpack.c.l.b16 %v1705
        %v1729 = vunpack.c.l.b16 %v1706
        %v1730 = vunpack.c.l.b16 %v1707
        %v1731 = vunpack.c.l.b16 %v1708
        %v1732 = vunpack.c.l.b16 %v1709
        %v1733 = vunpack.c.l.b16 %v1710
        %v1734 = vunpack.c.l.b16 %v1711
        %v1735 = vpack.c.b16 %v1728, %v1727
        %v1736 = vpack.c.b16 %v1730, %v1729
        %v1737 = vpack.c.b16 %v1732, %v1731
        %v1738 = vpack.c.b16 %v1734, %v1733
        %vm1743 = vcmask 523264
        %v1745 = vsel %vm1743, %v1703, 0
        %1747 = vmatprep.subr.bf16.mxu0 0
        %1748 = vmatpush1.bf16.msra.mxu0 0
        %1749 = vmatprep.subr.bf16.mxu0 0
        %1750 = vmatpush1.bf16.msra.mxu0 0
        %1751 = vmatprep.subr.bf16.mxu0 0
        %1752 = vmatpush1.bf16.msra.mxu0 0
        %1753 = vmatprep.subr.bf16.mxu0 0
        %1754 = vmatpush1.bf16.msra.mxu0 0
        %1755 = vmatprep.subr.bf16.mxu0 0
        %1756 = vmatpush1.bf16.msra.mxu0 %v1738
        %1757 = vmatprep.subr.bf16.mxu0 0
        %1758 = vmatpush1.bf16.msra.mxu0 %v1737
        %1759 = vmatprep.subr.bf16.mxu0 0
        %1760 = vmatpush1.bf16.msra.mxu0 %v1736
        %1761 = vmatprep.subr.bf16.mxu0 0
        %1762 = vmatpush1.bf16.msra.mxu0 %v1735
        %1763 = vmatprep.subr.bf16.mxu0 0
        %1764 = vmatpush2.bf16.msra.mxu0 0
        %1765 = vmatprep.subr.bf16.mxu0 0
        %1766 = vmatpush2.bf16.msra.mxu0 0
        %1767 = vmatprep.subr.bf16.mxu0 0
        %1768 = vmatpush2.bf16.msra.mxu0 0
        %1769 = vmatprep.subr.bf16.mxu0 0
        %1770 = vmatpush2.bf16.msra.mxu0 0
        %1771 = vmatprep.subr.bf16.mxu0 0
        %1772 = vmatpush2.bf16.msra.mxu0 0
        %1773 = vmatprep.subr.bf16.mxu0 0
        %1774 = vmatpush2.bf16.msra.mxu0 0
        %1775 = vmatprep.subr.bf16.mxu0 0
        %1776 = vmatpush2.bf16.msra.mxu0 0
        %1777 = vmatprep.subr.bf16.mxu0 0
        %1778 = vmatpush2.bf16.msra.mxu0 0
        %1779 = vmatprep.mubr.bf16.mxu0 0
        %1780 = vmatmul.mubr.bf16.gmra.mxu0 %v1745
        %v1781 = vpop.f32.mrf.mxu0
        %v1782 = vadd.f32 %v1717, %v1781
        %v1783 = vpop.f32.mrf.mxu0
        %v1784 = vpop.f32.mrf.mxu0
        %v1785 = vadd.f32 %v1717, %v1784
        %v1786 = vpop.f32.mrf.mxu0
        %1787 = vdwg.mxu0
        %v1788 = vadd.f32 %v1587, %v1782
        %v1789 = vadd.f32 %v1588, %v1785
        %1790 = vst.msk [vmem:[%s856] sm:$0xff] %vm878, %v1788
        %1791 = vst.msk [vmem:[%s856 + $0x8] sm:$0xf] %vm882, %v1789
        %p1792 = scmp.lt.s32.totalorder %s53, 1
        %s1793 = scalar_select %p1792, %s53, 1
        %s1794 = smul.addr %s1793, 2
        %s1795 = smul.addr %s1794, 8
        %s1796 = scalar_lea.vmem %s14, %s1795
        // Predicated region
        $region121: #{forward.2} parent=71 // pred_check
          %p1797 = pneg %p417
        $region122: #{forward.2} parent=71 // pred_check_branch
          %1799 = sbr.rel (%p1797) target = $region124
        $region123: #{forward.2} parent=71 // pred_region
          _
        $region124: #{forward.2} parent=71 // pred_fallthru
          _
      $region72: #{forward.2} parent=5 // pred_fallthru
        _
      %p1800 = scmp.le.s32.totalorder 2, %s44
      // Predicated region
      $region125: #{forward.2} parent=5 // pred_check
        %p1801 = pneg %p1800
      $region126: #{forward.2} parent=5 // pred_check_branch
        %1803 = sbr.rel (%p1801) target = $region128
      $region127: #{forward.2} parent=5 // pred_region
        %s1804 = ssub.s32 %s44, 2
        // Predicated region
        $region129: #{forward.2} parent=127 // pred_check
          %p1805 = pneg %p423
        $region130: #{forward.2} parent=127 // pred_check_branch
          %1807 = sbr.rel (%p1805) target = $region132
        $region131: #{forward.2} parent=127 // pred_region
          %p1808 = scmp.lt.s32.totalorder %s55, 1
          %s1809 = scalar_select %p1808, %s55, 1
          %s1810 = smul.addr %s1809, 2
          %s1811 = smul.addr %s1810, 8
          %s1812 = scalar_lea.vmem %s14, %s1811
        $region132: #{forward.2} parent=127 // pred_fallthru
          _
      $region128: #{forward.2} parent=5 // pred_fallthru
        _
    $region6: #{forward.2} parent=1 // loop_footer
      %s48 = sadd.s32 1, %s44
    $region7: #{forward.2} parent=1 // loop_footer_branch
      %43 = sbr.rel target = $region3
    $region8: #{forward.2} parent=1 // loop_exit
      _
    %1813 = vsyncpa [#allocation5], 1
    %s1814 = scalar_lea.sflag [#allocation5], 1
    %1815 = vsyncpa %s1814, 1
    %1816 = vsyncpa [#allocation7], 1
    %s1817 = scalar_lea.sflag [#allocation7], 1
    %1818 = vsyncpa %s1817, 1
    %1819 = vsyncpa [#allocation10], 1
    %s1820 = scalar_lea.sflag [#allocation10], 1
    %1821 = vsyncpa %s1820, 1
    %1822 = vsyncpa [#allocation13], 1
    %s1823 = scalar_lea.sflag [#allocation13], 1
    %1824 = vsyncpa %s1823, 1
    %1825 = vsyncpa [#allocation16], 1
    %s1826 = scalar_lea.sflag [#allocation16], 1
    %1827 = vsyncpa %s1826, 1
    %1828 = vsyncpa [#allocation19], 1
    %s1829 = scalar_lea.sflag [#allocation19], 1
    %1830 = vsyncpa %s1829, 1

// kernel: forward.3
$region0: #{forward.3}
  #allocation0 [shape = 'u32[]', space=smem, size = 0x4, offset = 0x4, fixed_abs, tag = 'smem constant byte address 0x4 - core index']
  #allocation1 [shape = 'u32[144,128]{1,0:T(1,128)}', space=vmem, size = 0x12000, scoped, tag = 'internal scratch']
  #allocation2 [shape = 'bf16[2,12,32]{2,1,0:T(8,128)(2,1)}', space=vmem, size = 0x2000, scoped, tag = 'scratch operand']
  #allocation3 [shape = 'f32[2,12,16]{2,1,0:T(8,128)}', space=vmem, size = 0x4000, scoped, tag = 'scratch operand']
  #allocation4 [shape = 'f32[2,12,1]{2,1,0:T(8,128)}', space=vmem, size = 0x4000, scoped, tag = 'scratch operand']
  #allocation5 [shape = 'f32[2,12,1]{2,1,0:T(8,128)}', space=vmem, size = 0x4000, scoped, tag = 'scratch operand']
  #allocation6 [shape = 'f32[2,4,1]{2,1,0:T(4,128)}', space=vmem, size = 0x1000, scoped, tag = 'scratch operand']
  #allocation7 [shape = 'f32[2,4,1]{2,1,0:T(4,128)}', space=vmem, size = 0x1000, scoped, tag = 'scratch operand']
  %s0 = inlined_call_operand.vmem [shape: f32[2,12,32], index: 0, kind: input, shape index: {}]
  %s1 = inlined_call_operand.hbm [shape: f32[1,32], index: 1, kind: input, shape index: {}]
  %s2 = inlined_call_operand.hbm [shape: f32[1,32], index: 2, kind: input, shape index: {}]
  %s3 = inlined_call_operand.hbm [shape: bf16[32,25088], index: 3, kind: input, shape index: {}]
  %s4 = inlined_call_operand.hbm [shape: f32[1,25088], index: 4, kind: input, shape index: {}]
  %s5 = inlined_call_operand.vmem [shape: s32[2,16,1], index: 5, kind: input, shape index: {}]
  %s6 = inlined_call_operand.vmem [shape: f32[2,12,16], index: 6, kind: output, shape index: {0}]
  %s7 = inlined_call_operand.vmem [shape: s32[2,4,1], index: 7, kind: output, shape index: {1}]
  %8 = xla_tuple %s6, %s7
  %s9 = sld [smem:[#allocation0]]
  $region89: #{forward.3} parent=0
    _
  %s11 = ssub.s32 1, %s9
  %s12 = scalar_select 0, %s11, %s9
  $region1: #{forward.3} parent=0
    #allocation8 [shape = 'u8[512]{0}', space=vmem, size = 0x400, scoped, tag = 'input window, operand 1, single buffered']
    #allocation9 [shape = 's32[2]{0}', space=sflag, size = 0x8, scoped, tag = 'scoped memory for forward.3']
    #allocation10 [shape = 'u8[512]{0}', space=vmem, size = 0x400, scoped, tag = 'input window, operand 2, single buffered']
    #allocation11 [shape = 's32[1]{0}', space=sflag, size = 0x4, scoped, tag = 'scoped memory for forward.3']
    #allocation12 [shape = 'u8[458752]{0}', space=vmem, size = 0x70000, scoped, tag = 'input window, operand 3']
    #allocation13 [shape = 'u8[28672]{0}', space=vmem, size = 0x7000, scoped, tag = 'input window, operand 4']
    %13 = vsyncpa [#allocation9], 0
    %14 = vsyncpa [#allocation11], 0
    loop: start=0, step=1, limit=9
    $region2: #{forward.3} parent=1 // loop_pre_header
      _
    $region3: #{forward.3} parent=1 // loop_header
      %s16 = sphi 0, %s20
      %p17 = scmp.ge.s32.totalorder %s16, 9
      %s24 = sphi 0, %s24
      %s26 = sphi 0, %s24
      %s27 = sphi 0, %s26
      %s41 = sphi 0, %s27
      %s45 = sphi 0, %s45
      %s47 = sphi 0, %s45
      %s48 = sphi 0, %s47
      %s62 = sphi 0, %s48
      %s66 = sphi 0, %s66
      %s68 = sphi 0, %s66
      %s69 = sphi 0, %s68
      %s83 = sphi 0, %s69
      %s89 = sphi 0, %s91
      %s92 = sphi 0, %s89
      %s93 = sphi 0, %s92
      %s109 = sphi 0, %s93
      %s115 = sphi 0, %s117
      %s118 = sphi 0, %s115
      %s119 = sphi 0, %s118
      %s135 = sphi 0, %s119
      %s139 = sphi 0, %s139
      %s141 = sphi 0, %s139
      %s142 = sphi 0, %s141
      %s156 = sphi 0, %s142
      %s160 = sphi 0, %s160
      %s162 = sphi 0, %s160
      %s163 = sphi 0, %s162
      %s177 = sphi 0, %s163
      %s181 = sphi 0, %s181
      %s183 = sphi 0, %s181
      %s184 = sphi 0, %s183
      %s198 = sphi 0, %s184
    $region4: #{forward.3} parent=1 // loop_header_branch
      %19 = sbr.rel (%p17) target = $region8
    $region5: #{forward.3} parent=1 // loop_body
      %s21 = ssub.s32 %s16, 1
      %s22 = ssub.s32 %s16, 2
      %s23 = sadd.s32 %s16, 1
      %s25 = sadd.s32 %s24, 1
      %p28 = scmp.eq.s32.totalorder %s16, 6
      %p29 = scmp.ne.s32.totalorder %s24, %s26
      %p30 = scmp.eq.s32.totalorder %s16, 0
      %p31 = por %p29, %p30
      %p32 = scmp.ne.s32.totalorder %s24, %s26
      %p33 = scmp.eq.s32.totalorder %s21, 6
      %p34 = por %p32, %p33
      %p35 = scmp.ne.s32.totalorder %s26, %s27
      %p36 = scmp.eq.s32.totalorder %s21, 0
      %p37 = por %p35, %p36
      %p38 = scmp.ne.s32.totalorder %s26, %s27
      %p39 = scmp.eq.s32.totalorder %s22, 6
      %p40 = por %p38, %p39
      %p42 = scmp.ne.s32.totalorder %s27, %s41
      %p43 = scmp.eq.s32.totalorder %s22, 0
      %p44 = por %p42, %p43
      %s46 = sadd.s32 %s45, 1
      %p49 = scmp.eq.s32.totalorder %s16, 6
      %p50 = scmp.ne.s32.totalorder %s45, %s47
      %p51 = scmp.eq.s32.totalorder %s16, 0
      %p52 = por %p50, %p51
      %p53 = scmp.ne.s32.totalorder %s45, %s47
      %p54 = scmp.eq.s32.totalorder %s21, 6
      %p55 = por %p53, %p54
      %p56 = scmp.ne.s32.totalorder %s47, %s48
      %p57 = scmp.eq.s32.totalorder %s21, 0
      %p58 = por %p56, %p57
      %p59 = scmp.ne.s32.totalorder %s47, %s48
      %p60 = scmp.eq.s32.totalorder %s22, 6
      %p61 = por %p59, %p60
      %p63 = scmp.ne.s32.totalorder %s48, %s62
      %p64 = scmp.eq.s32.totalorder %s22, 0
      %p65 = por %p63, %p64
      %s67 = sadd.s32 %s66, 1
      %p70 = scmp.eq.s32.totalorder %s16, 6
      %p71 = scmp.ne.s32.totalorder %s66, %s68
      %p72 = scmp.eq.s32.totalorder %s16, 0
      %p73 = por %p71, %p72
      %p74 = scmp.ne.s32.totalorder %s66, %s68
      %p75 = scmp.eq.s32.totalorder %s21, 6
      %p76 = por %p74, %p75
      %p77 = scmp.ne.s32.totalorder %s68, %s69
      %p78 = scmp.eq.s32.totalorder %s21, 0
      %p79 = por %p77, %p78
      %p80 = scmp.ne.s32.totalorder %s68, %s69
      %p81 = scmp.eq.s32.totalorder %s22, 6
      %p82 = por %p80, %p81
      %p84 = scmp.ne.s32.totalorder %s69, %s83
      %p85 = scmp.eq.s32.totalorder %s22, 0
      %p86 = por %p84, %p85
      %s87 = ssub.s32 %s16, %s23
      %p88 = scmp.eq.s32.totalorder %s87, 0
      %s90 = sadd.s32 %s89, 1
      %s91 = scalar_select %p88, %s89, %s90
      %p94 = pneg %p88
      %p95 = scmp.eq.s32.totalorder %s16, 6
      %p96 = por %p94, %p95
      %p97 = scmp.ne.s32.totalorder %s89, %s92
      %p98 = scmp.eq.s32.totalorder %s16, 0
      %p99 = por %p97, %p98
      %p100 = scmp.ne.s32.totalorder %s89, %s92
      %p101 = scmp.eq.s32.totalorder %s21, 6
      %p102 = por %p100, %p101
      %p103 = scmp.ne.s32.totalorder %s92, %s93
      %p104 = scmp.eq.s32.totalorder %s21, 0
      %p105 = por %p103, %p104
      %p106 = scmp.ne.s32.totalorder %s92, %s93
      %p107 = scmp.eq.s32.totalorder %s22, 6
      %p108 = por %p106, %p107
      %p110 = scmp.ne.s32.totalorder %s93, %s109
      %p111 = scmp.eq.s32.totalorder %s22, 0
      %p112 = por %p110, %p111
      %s113 = ssub.s32 %s16, %s23
      %p114 = scmp.eq.s32.totalorder %s113, 0
      %s116 = sadd.s32 %s115, 1
      %s117 = scalar_select %p114, %s115, %s116
      %p120 = pneg %p114
      %p121 = scmp.eq.s32.totalorder %s16, 6
      %p122 = por %p120, %p121
      %p123 = scmp.ne.s32.totalorder %s115, %s118
      %p124 = scmp.eq.s32.totalorder %s16, 0
      %p125 = por %p123, %p124
      %p126 = scmp.ne.s32.totalorder %s115, %s118
      %p127 = scmp.eq.s32.totalorder %s21, 6
      %p128 = por %p126, %p127
      %p129 = scmp.ne.s32.totalorder %s118, %s119
      %p130 = scmp.eq.s32.totalorder %s21, 0
      %p131 = por %p129, %p130
      %p132 = scmp.ne.s32.totalorder %s118, %s119
      %p133 = scmp.eq.s32.totalorder %s22, 6
      %p134 = por %p132, %p133
      %p136 = scmp.ne.s32.totalorder %s119, %s135
      %p137 = scmp.eq.s32.totalorder %s22, 0
      %p138 = por %p136, %p137
      %s140 = sadd.s32 %s139, 1
      %p143 = scmp.eq.s32.totalorder %s16, 6
      %p144 = scmp.ne.s32.totalorder %s139, %s141
      %p145 = scmp.eq.s32.totalorder %s16, 0
      %p146 = por %p144, %p145
      %p147 = scmp.ne.s32.totalorder %s139, %s141
      %p148 = scmp.eq.s32.totalorder %s21, 6
      %p149 = por %p147, %p148
      %p150 = scmp.ne.s32.totalorder %s141, %s142
      %p151 = scmp.eq.s32.totalorder %s21, 0
      %p152 = por %p150, %p151
      %p153 = scmp.ne.s32.totalorder %s141, %s142
      %p154 = scmp.eq.s32.totalorder %s22, 6
      %p155 = por %p153, %p154
      %p157 = scmp.ne.s32.totalorder %s142, %s156
      %p158 = scmp.eq.s32.totalorder %s22, 0
      %p159 = por %p157, %p158
      %s161 = sadd.s32 %s160, 1
      %p164 = scmp.eq.s32.totalorder %s16, 6
      %p165 = scmp.ne.s32.totalorder %s160, %s162
      %p166 = scmp.eq.s32.totalorder %s16, 0
      %p167 = por %p165, %p166
      %p168 = scmp.ne.s32.totalorder %s160, %s162
      %p169 = scmp.eq.s32.totalorder %s21, 6
      %p170 = por %p168, %p169
      %p171 = scmp.ne.s32.totalorder %s162, %s163
      %p172 = scmp.eq.s32.totalorder %s21, 0
      %p173 = por %p171, %p172
      %p174 = scmp.ne.s32.totalorder %s162, %s163
      %p175 = scmp.eq.s32.totalorder %s22, 6
      %p176 = por %p174, %p175
      %p178 = scmp.ne.s32.totalorder %s163, %s177
      %p179 = scmp.eq.s32.totalorder %s22, 0
      %p180 = por %p178, %p179
      %s182 = sadd.s32 %s181, 1
      %p185 = scmp.eq.s32.totalorder %s16, 6
      %p186 = scmp.ne.s32.totalorder %s181, %s183
      %p187 = scmp.eq.s32.totalorder %s16, 0
      %p188 = por %p186, %p187
      %p189 = scmp.ne.s32.totalorder %s181, %s183
      %p190 = scmp.eq.s32.totalorder %s21, 6
      %p191 = por %p189, %p190
      %p192 = scmp.ne.s32.totalorder %s183, %s184
      %p193 = scmp.eq.s32.totalorder %s21, 0
      %p194 = por %p192, %p193
      %p195 = scmp.ne.s32.totalorder %s183, %s184
      %p196 = scmp.eq.s32.totalorder %s22, 6
      %p197 = por %p195, %p196
      %p199 = scmp.ne.s32.totalorder %s184, %s198
      %p200 = scmp.eq.s32.totalorder %s22, 0
      %p201 = por %p199, %p200
      %p202 = scmp.le.s32.totalorder 1, %s16
      %p203 = scmp.lt.s32.totalorder %s16, 8
      %p204 = pnand %p202, %p203
      %p205 = pneg %p204
      // Predicated region
      $region9: #{forward.3} parent=5 // pred_check
        _
      $region10: #{forward.3} parent=5 // pred_check_branch
        %207 = sbr.rel (%p204) target = $region12
      $region11: #{forward.3} parent=5 // pred_region
        %s208 = ssub.s32 %s16, 1
        // Predicated region
        $region13: #{forward.3} parent=11 // pred_check
          %p209 = pneg %p37
        $region14: #{forward.3} parent=11 // pred_check_branch
          %211 = sbr.rel (%p209) target = $region16
        $region15: #{forward.3} parent=11 // pred_region
          _
        $region16: #{forward.3} parent=11 // pred_fallthru
          _
        // Predicated region
        $region17: #{forward.3} parent=11 // pred_check
          %p212 = pneg %p58
        $region18: #{forward.3} parent=11 // pred_check_branch
          %214 = sbr.rel (%p212) target = $region20
        $region19: #{forward.3} parent=11 // pred_region
          %s216 = ssub.s32 16, 16
          %217 = vsyncadd [#allocation9], %s216
          %s219 = sshll.u32 [#allocation8], 4
          %s220 = int_to_ptr.vmem [resolvable:$true] %s219
          %222 = dma.hbm_to_vmem [thread:$0]  %s1, 16, %s220, [#allocation9]
        $region20: #{forward.3} parent=11 // pred_fallthru
          _
        // Predicated region
        $region21: #{forward.3} parent=11 // pred_check
          %p223 = pneg %p79
        $region22: #{forward.3} parent=11 // pred_check_branch
          %225 = sbr.rel (%p223) target = $region24
        $region23: #{forward.3} parent=11 // pred_region
          %s227 = ssub.s32 16, 16
          %228 = vsyncadd [#allocation11], %s227
          %s230 = sshll.u32 [#allocation10], 4
          %s231 = int_to_ptr.vmem [resolvable:$true] %s230
          %233 = dma.hbm_to_vmem [thread:$0]  %s2, 16, %s231, [#allocation11]
        $region24: #{forward.3} parent=11 // pred_fallthru
          _
        // Predicated region
        $region25: #{forward.3} parent=11 // pred_check
          %p234 = pneg %p152
        $region26: #{forward.3} parent=11 // pred_check_branch
          %236 = sbr.rel (%p234) target = $region28
        $region27: #{forward.3} parent=11 // pred_region
          _
        $region28: #{forward.3} parent=11 // pred_fallthru
          _
      $region12: #{forward.3} parent=5 // pred_fallthru
        _
      %p237 = scmp.lt.s32.totalorder %s16, 7
      // Predicated region
      $region29: #{forward.3} parent=5 // pred_check
        %p238 = pneg %p237
      $region30: #{forward.3} parent=5 // pred_check_branch
        %240 = sbr.rel (%p238) target = $region32
      $region31: #{forward.3} parent=5 // pred_region
        // Predicated region
        $region33: #{forward.3} parent=31 // pred_check
          %p241 = pneg %p99
        $region34: #{forward.3} parent=31 // pred_check_branch
          %243 = sbr.rel (%p241) target = $region36
        $region35: #{forward.3} parent=31 // pred_region
          %s244 = sand.u32 %s16, 1
          %s245 = scalar_lea.sflag [#allocation9], %s244
          %s246 = sand.u32 %s89, 1
          %s247 = smul.addr %s246, 448
          %s248 = scalar_lea.vmem [#allocation12], %s247
          %s249 = smul.u32 28, %s16
          %s251 = ssub.s32 7168, 7168
          %252 = vsyncadd %s245, %s251
          %s253 = smul.addr %s249, 64
          %s254 = scalar_lea.hbm %s3, %s253
          %s255 = sshll.u32 %s248, 4
          %s256 = int_to_ptr.vmem [resolvable:$true] %s255
          %261 = dma.hbm_to_vmem [thread:$0]  %s254, 7168, %s256, %s245, 12544, 1792, 112
        $region36: #{forward.3} parent=31 // pred_fallthru
          _
        // Predicated region
        $region37: #{forward.3} parent=31 // pred_check
          %p262 = pneg %p125
        $region38: #{forward.3} parent=31 // pred_check_branch
          %264 = sbr.rel (%p262) target = $region40
        $region39: #{forward.3} parent=31 // pred_region
          %s265 = sand.u32 %s16, 1
          %s266 = scalar_lea.sflag [#allocation9], %s265
          %s267 = sand.u32 %s115, 1
          %s268 = smul.addr %s267, 28
          %s269 = scalar_lea.vmem [#allocation13], %s268
          %s270 = smul.u32 28, %s16
          %s272 = ssub.s32 448, 448
          %273 = vsyncadd %s266, %s272
          %s274 = smul.addr %s270, 16
          %s275 = scalar_lea.hbm %s4, %s274
          %s277 = sshll.u32 %s269, 4
          %s278 = int_to_ptr.vmem [resolvable:$true] %s277
          %280 = dma.hbm_to_vmem [thread:$0]  %s275, 448, %s278, %s266
        $region40: #{forward.3} parent=31 // pred_fallthru
          _
      $region32: #{forward.3} parent=5 // pred_fallthru
        _
      %p281 = scmp.le.s32.totalorder 1, %s16
      %p282 = scmp.lt.s32.totalorder %s16, 8
      %p283 = pnand %p281, %p282
      %p284 = pneg %p283
      // Predicated region
      $region41: #{forward.3} parent=5 // pred_check
        _
      $region42: #{forward.3} parent=5 // pred_check_branch
        %286 = sbr.rel (%p283) target = $region44
      $region43: #{forward.3} parent=5 // pred_region
        %s287 = ssub.s32 %s16, 1
        // Predicated region
        $region45: #{forward.3} parent=43 // pred_check
          %p288 = pneg %p58
        $region46: #{forward.3} parent=43 // pred_check_branch
          %290 = sbr.rel (%p288) target = $region48
        $region47: #{forward.3} parent=43 // pred_region
          %291 = dma.done [#allocation9], 16
        $region48: #{forward.3} parent=43 // pred_fallthru
          _
        // Predicated region
        $region49: #{forward.3} parent=43 // pred_check
          %p292 = pneg %p79
        $region50: #{forward.3} parent=43 // pred_check_branch
          %294 = sbr.rel (%p292) target = $region52
        $region51: #{forward.3} parent=43 // pred_region
          %295 = dma.done [#allocation11], 16
        $region52: #{forward.3} parent=43 // pred_fallthru
          _
        %s296 = sand.u32 %s21, 1
        %s297 = scalar_lea.sflag [#allocation9], %s296
        %s298 = sand.u32 %s92, 1
        %s299 = smul.addr %s298, 448
        %s300 = scalar_lea.vmem [#allocation12], %s299
        // Predicated region
        $region53: #{forward.3} parent=43 // pred_check
          %p301 = pneg %p105
        $region54: #{forward.3} parent=43 // pred_check_branch
          %303 = sbr.rel (%p301) target = $region56
        $region55: #{forward.3} parent=43 // pred_region
          %304 = dma.done %s297, 7168
        $region56: #{forward.3} parent=43 // pred_fallthru
          _
        %s305 = sand.u32 %s21, 1
        %s306 = scalar_lea.sflag [#allocation9], %s305
        %s307 = sand.u32 %s118, 1
        %s308 = smul.addr %s307, 28
        %s309 = scalar_lea.vmem [#allocation13], %s308
        // Predicated region
        $region57: #{forward.3} parent=43 // pred_check
          %p310 = pneg %p131
        $region58: #{forward.3} parent=43 // pred_check_branch
          %312 = sbr.rel (%p310) target = $region60
        $region59: #{forward.3} parent=43 // pred_region
          %313 = dma.done %s306, 448
        $region60: #{forward.3} parent=43 // pred_fallthru
          _
        %p314 = pneg %p37
        %p315 = pneg %p34
        %p316 = pneg %p58
        %p317 = pneg %p55
        %p318 = pneg %p79
        %p319 = pneg %p76
        %s320 = sand.u32 %s21, 1
        %s321 = scalar_lea.sflag [#allocation9], %s320
        %s322 = sand.u32 %s92, 1
        %s323 = smul.addr %s322, 448
        %s324 = scalar_lea.vmem [#allocation12], %s323
        %p325 = pneg %p105
        %p326 = pneg %p102
        %s327 = sand.u32 %s21, 1
        %s328 = scalar_lea.sflag [#allocation9], %s327
        %s329 = sand.u32 %s118, 1
        %s330 = smul.addr %s329, 28
        %s331 = scalar_lea.vmem [#allocation13], %s330
        %p332 = pneg %p131
        %p333 = pneg %p128
        %p334 = pneg %p152
        %p335 = pneg %p149
        %p336 = pneg %p173
        %p337 = pneg %p170
        %p338 = pneg %p194
        %p339 = pneg %p191
        %s340 = smul.u32 28, %s21
        %s341 = smul.u32 28, %s21
        %p343 = scmp.eq.s32.totalorder %s21, 0
        // Predicated region
        $region61: #{forward.3} parent=43 // pred_check
          %p344 = pneg %p343
        $region62: #{forward.3} parent=43 // pred_check_branch
          %346 = sbr.rel (%p344) target = $region64
        $region63: #{forward.3} parent=43 // pred_region
          %v347 = vld [vmem:[%s0] sm:$0xff]
          %v348 = vld [vmem:[%s0 + $0x8] sm:$0xf]
          %v349 = vld [vmem:[%s0 + $0x10] sm:$0xff]
          %v350 = vld [vmem:[%s0 + $0x18] sm:$0xf]
          %v351 = vld [vmem:[#allocation8] sm:$0x1]
          %v352 = vld [vmem:[#allocation10] sm:$0x1]
          %vm353 = vcmask 261120
          %v354 = vsel %vm353, %v347, 0.0
          %355 = vadd.xlane.f32.xlu0 %v354
          %v356 = vpop.xlane.xlu0 %355
          %vm357 = vcmask 257024
          %v358 = vsel %vm357, %v348, 0.0
          %359 = vadd.xlane.f32.xlu0 %v358
          %v360 = vpop.xlane.xlu0 %359
          %v361 = vsel %vm353, %v349, 0.0
          %362 = vadd.xlane.f32.xlu0 %v361
          %v363 = vpop.xlane.xlu0 %362
          %v364 = vsel %vm357, %v350, 0.0
          %365 = vadd.xlane.f32.xlu0 %v364
          %v366 = vpop.xlane.xlu0 %365
          %v367 = vrcp.pop 32.0
          %v368 = vmul.f32 %v356, %v367
          %v369 = vmul.f32 %v360, %v367
          %v370 = vmul.f32 %v363, %v367
          %v371 = vmul.f32 %v366, %v367
          %v372 = vsub.f32 %v347, %v368
          %v373 = vsub.f32 %v348, %v369
          %v374 = vsub.f32 %v349, %v370
          %v375 = vsub.f32 %v350, %v371
          %v376 = vmul.f32 %v372, %v372
          %v377 = vmul.f32 %v373, %v373
          %v378 = vmul.f32 %v374, %v374
          %v379 = vmul.f32 %v375, %v375
          %v380 = vsel %vm353, %v376, 0.0
          %381 = vadd.xlane.f32.xlu0 %v380
          %v382 = vpop.xlane.xlu0 %381
          %v383 = vsel %vm357, %v377, 0.0
          %384 = vadd.xlane.f32.xlu0 %v383
          %v385 = vpop.xlane.xlu0 %384
          %v386 = vsel %vm353, %v378, 0.0
          %387 = vadd.xlane.f32.xlu0 %v386
          %v388 = vpop.xlane.xlu0 %387
          %v389 = vsel %vm357, %v379, 0.0
          %390 = vadd.xlane.f32.xlu0 %v389
          %v391 = vpop.xlane.xlu0 %390
          %v392 = vmul.f32 %v382, %v367
          %v393 = vmul.f32 %v385, %v367
          %v394 = vmul.f32 %v388, %v367
          %v395 = vmul.f32 %v391, %v367
          %v396 = vadd.f32 %v392, 1e-05
          %v397 = vadd.f32 %v393, 1e-05
          %v398 = vadd.f32 %v394, 1e-05
          %v399 = vadd.f32 %v395, 1e-05
          %v400 = vrsqrt.pop %v396
          %v401 = vrsqrt.pop %v397
          %v402 = vrsqrt.pop %v398
          %v403 = vrsqrt.pop %v399
          %v404 = vmul.f32 %v372, %v400
          %v405 = vmul.f32 %v373, %v401
          %v406 = vmul.f32 %v374, %v402
          %v407 = vmul.f32 %v375, %v403
          %v409 = vlaneseq
          %v410 = vshrl.u32 %v409, 7
          %v411 = vsub.s32 0, %v410
          %v412 = vrot.slane %v351, %v411
          %v414 = vmul.f32 %v404, %v412
          %v415 = vmul.f32 %v405, %v412
          %v416 = vmul.f32 %v406, %v412
          %v417 = vmul.f32 %v407, %v412
          %v419 = vlaneseq
          %v420 = vshrl.u32 %v419, 7
          %v421 = vsub.s32 0, %v420
          %v422 = vrot.slane %v352, %v421
          %v424 = vadd.f32 %v414, %v422
          %v425 = vadd.f32 %v415, %v422
          %v426 = vadd.f32 %v416, %v422
          %v427 = vadd.f32 %v417, %v422
          %v428 = vpack.c.bf16 %v425, %v424
          %v429 = vpack.c.bf16 %v427, %v426
          %v432 = vunpack.c.l.b16 %v428
          %v433 = vunpack.c.h.b16 %v428
          %v434 = vunpack.c.l.b16 %v429
          %v435 = vunpack.c.h.b16 %v429
          %v436 = vpack.c.b16 %v432, %v432
          %v437 = vpack.c.b16 %v433, %v433
          %v438 = vpack.c.b16 %v434, %v434
          %v439 = vpack.c.b16 %v435, %v435
          %444 = vst.msk [vmem:[#allocation2] sm:$0xf] %vm357, %v436
          %vm445 = vcmask 254976
          %446 = vst.msk [vmem:[#allocation2 + $0x4] sm:$0x3] %vm445, %v437
          %447 = vst.msk [vmem:[#allocation2 + $0x8] sm:$0xf] %vm357, %v438
          %448 = vst.msk [vmem:[#allocation2 + $0xc] sm:$0x3] %vm445, %v439
          %vm449 = vcmask 130048
          %450 = vst.msk [vmem:[#allocation3] sm:$0xff] %vm449, 0.0
          %vm451 = vcmask 125952
          %452 = vst.msk [vmem:[#allocation3 + $0x8] sm:$0xf] %vm451, 0.0
          %453 = vst.msk [vmem:[#allocation3 + $0x10] sm:$0xff] %vm449, 0.0
          %454 = vst.msk [vmem:[#allocation3 + $0x18] sm:$0xf] %vm451, 0.0
          %vm455 = vcmask 7168
          %456 = vst.msk [vmem:[#allocation4] sm:$0xff] %vm455, -1e+30
          %vm457 = vcmask 3072
          %458 = vst.msk [vmem:[#allocation4 + $0x8] sm:$0xf] %vm457, -1e+30
          %459 = vst.msk [vmem:[#allocation4 + $0x10] sm:$0xff] %vm455, -1e+30
          %460 = vst.msk [vmem:[#allocation4 + $0x18] sm:$0xf] %vm457, -1e+30
          %461 = vst.msk [vmem:[#allocation5] sm:$0xff] %vm455, 0.0
          %462 = vst.msk [vmem:[#allocation5 + $0x8] sm:$0xf] %vm457, 0.0
          %463 = vst.msk [vmem:[#allocation5 + $0x10] sm:$0xff] %vm455, 0.0
          %464 = vst.msk [vmem:[#allocation5 + $0x18] sm:$0xf] %vm457, 0.0
          %465 = vst.msk [vmem:[#allocation6] sm:$0xf] %vm457, -1e+30
          %466 = vst.msk [vmem:[#allocation6 + $0x4] sm:$0xf] %vm457, -1e+30
          %467 = vst.msk [vmem:[#allocation7] sm:$0xf] %vm457, 0.0
          %468 = vst.msk [vmem:[#allocation7 + $0x4] sm:$0xf] %vm457, 0.0
        $region64: #{forward.3} parent=43 // pred_fallthru
          _
        %v469 = vld [vmem:[%s300] sm:$0xff]
        %v470 = vld [vmem:[%s300 + $0x8] sm:$0xff]
        %v471 = vld [vmem:[%s300 + $0x10] sm:$0xff]
        %v472 = vld [vmem:[%s300 + $0x18] sm:$0xff]
        %v473 = vld [vmem:[%s300 + $0x20] sm:$0xff]
        %v474 = vld [vmem:[%s300 + $0x28] sm:$0xff]
        %v475 = vld [vmem:[%s300 + $0x30] sm:$0xff]
        %v476 = vld [vmem:[%s300 + $0x38] sm:$0xff]
        %v477 = vld [vmem:[%s300 + $0x40] sm:$0xff]
        %v478 = vld [vmem:[%s300 + $0x48] sm:$0xff]
        %v479 = vld [vmem:[%s300 + $0x50] sm:$0xff]
        %v480 = vld [vmem:[%s300 + $0x58] sm:$0xff]
        %v481 = vld [vmem:[%s300 + $0x60] sm:$0xff]
        %v482 = vld [vmem:[%s300 + $0x68] sm:$0xff]
        %v483 = vld [vmem:[%s300 + $0x70] sm:$0xff]
        %v484 = vld [vmem:[%s300 + $0x78] sm:$0xff]
        %v485 = vld [vmem:[%s300 + $0x80] sm:$0xff]
        %v486 = vld [vmem:[%s300 + $0x88] sm:$0xff]
        %v487 = vld [vmem:[%s300 + $0x90] sm:$0xff]
        %v488 = vld [vmem:[%s300 + $0x98] sm:$0xff]
        %v489 = vld [vmem:[%s300 + $0xa0] sm:$0xff]
        %v490 = vld [vmem:[%s300 + $0xa8] sm:$0xff]
        %v491 = vld [vmem:[%s300 + $0xb0] sm:$0xff]
        %v492 = vld [vmem:[%s300 + $0xb8] sm:$0xff]
        %v493 = vld [vmem:[%s300 + $0xc0] sm:$0xff]
        %v494 = vld [vmem:[%s300 + $0xc8] sm:$0xff]
        %v495 = vld [vmem:[%s300 + $0xd0] sm:$0xff]
        %v496 = vld [vmem:[%s300 + $0xd8] sm:$0xff]
        %v497 = vld [vmem:[%s300 + $0xe0] sm:$0xff]
        %v498 = vld [vmem:[%s300 + $0xe8] sm:$0xff]
        %v499 = vld [vmem:[%s300 + $0xf0] sm:$0xff]
        %v500 = vld [vmem:[%s300 + $0xf8] sm:$0xff]
        %v501 = vld [vmem:[%s300 + $0x100] sm:$0xff]
        %v502 = vld [vmem:[%s300 + $0x108] sm:$0xff]
        %v503 = vld [vmem:[%s300 + $0x110] sm:$0xff]
        %v504 = vld [vmem:[%s300 + $0x118] sm:$0xff]
        %v505 = vld [vmem:[%s300 + $0x120] sm:$0xff]
        %v506 = vld [vmem:[%s300 + $0x128] sm:$0xff]
        %v507 = vld [vmem:[%s300 + $0x130] sm:$0xff]
        %v508 = vld [vmem:[%s300 + $0x138] sm:$0xff]
        %v509 = vld [vmem:[%s300 + $0x140] sm:$0xff]
        %v510 = vld [vmem:[%s300 + $0x148] sm:$0xff]
        %v511 = vld [vmem:[%s300 + $0x150] sm:$0xff]
        %v512 = vld [vmem:[%s300 + $0x158] sm:$0xff]
        %v513 = vld [vmem:[%s300 + $0x160] sm:$0xff]
        %v514 = vld [vmem:[%s300 + $0x168] sm:$0xff]
        %v515 = vld [vmem:[%s300 + $0x170] sm:$0xff]
        %v516 = vld [vmem:[%s300 + $0x178] sm:$0xff]
        %v517 = vld [vmem:[%s300 + $0x180] sm:$0xff]
        %v518 = vld [vmem:[%s300 + $0x188] sm:$0xff]
        %v519 = vld [vmem:[%s300 + $0x190] sm:$0xff]
        %v520 = vld [vmem:[%s300 + $0x198] sm:$0xff]
        %v521 = vld [vmem:[%s300 + $0x1a0] sm:$0xff]
        %v522 = vld [vmem:[%s300 + $0x1a8] sm:$0xff]
        %v523 = vld [vmem:[%s300 + $0x1b0] sm:$0xff]
        %v524 = vld [vmem:[%s300 + $0x1b8] sm:$0xff]
        %v525 = vld [vmem:[%s309] sm:$0xff]
        %v526 = vld [vmem:[%s309 + $0x8] sm:$0xff]
        %v527 = vld [vmem:[%s309 + $0x10] sm:$0xff]
        %v528 = vld [vmem:[%s309 + $0x18] sm:$0xf]
        %s529 = smul.u32 %s21, 3584
        %s530 = scvt.s32.f32 %s529
        %v531 = vld [vmem:[#allocation2] sm:$0xf]
        %v532 = vld [vmem:[#allocation2 + $0x4] sm:$0x3]
        %v537 = vlaneseq
        %v538 = vshrl.u32 %v537, 7
        %v539 = vsub.s32 0, %v538
        %v540 = vrot.slane %v525, %v539
        %v541 = vlaneseq
        %v542 = vshrl.u32 %v541, 7
        %v543 = vsub.s32 1, %v542
        %v544 = vrot.slane %v525, %v543
        %v545 = vlaneseq
        %v546 = vshrl.u32 %v545, 7
        %v547 = vsub.s32 2, %v546
        %v548 = vrot.slane %v525, %v547
        %v549 = vlaneseq
        %v550 = vshrl.u32 %v549, 7
        %v551 = vsub.s32 3, %v550
        %v552 = vrot.slane %v525, %v551
        %v553 = vlaneseq
        %v554 = vshrl.u32 %v553, 7
        %v555 = vsub.s32 4, %v554
        %v556 = vrot.slane %v525, %v555
        %v557 = vlaneseq
        %v558 = vshrl.u32 %v557, 7
        %v559 = vsub.s32 5, %v558
        %v560 = vrot.slane %v525, %v559
        %v561 = vlaneseq
        %v562 = vshrl.u32 %v561, 7
        %v563 = vsub.s32 6, %v562
        %v564 = vrot.slane %v525, %v563
        %v565 = vlaneseq
        %v566 = vshrl.u32 %v565, 7
        %v567 = vsub.s32 7, %v566
        %v568 = vrot.slane %v525, %v567
        %v569 = vlaneseq
        %v570 = vshrl.u32 %v569, 7
        %v571 = vsub.s32 0, %v570
        %v572 = vrot.slane %v526, %v571
        %v573 = vlaneseq
        %v574 = vshrl.u32 %v573, 7
        %v575 = vsub.s32 1, %v574
        %v576 = vrot.slane %v526, %v575
        %v577 = vlaneseq
        %v578 = vshrl.u32 %v577, 7
        %v579 = vsub.s32 2, %v578
        %v580 = vrot.slane %v526, %v579
        %v581 = vlaneseq
        %v582 = vshrl.u32 %v581, 7
        %v583 = vsub.s32 3, %v582
        %v584 = vrot.slane %v526, %v583
        %v585 = vlaneseq
        %v586 = vshrl.u32 %v585, 7
        %v587 = vsub.s32 4, %v586
        %v588 = vrot.slane %v526, %v587
        %v589 = vlaneseq
        %v590 = vshrl.u32 %v589, 7
        %v591 = vsub.s32 5, %v590
        %v592 = vrot.slane %v526, %v591
        %v593 = vlaneseq
        %v594 = vshrl.u32 %v593, 7
        %v595 = vsub.s32 6, %v594
        %v596 = vrot.slane %v526, %v595
        %v597 = vlaneseq
        %v598 = vshrl.u32 %v597, 7
        %v599 = vsub.s32 7, %v598
        %v600 = vrot.slane %v526, %v599
        %v601 = vlaneseq
        %v602 = vshrl.u32 %v601, 7
        %v603 = vsub.s32 0, %v602
        %v604 = vrot.slane %v527, %v603
        %v605 = vlaneseq
        %v606 = vshrl.u32 %v605, 7
        %v607 = vsub.s32 1, %v606
        %v608 = vrot.slane %v527, %v607
        %v609 = vlaneseq
        %v610 = vshrl.u32 %v609, 7
        %v611 = vsub.s32 2, %v610
        %v612 = vrot.slane %v527, %v611
        %v613 = vlaneseq
        %v614 = vshrl.u32 %v613, 7
        %v615 = vsub.s32 3, %v614
        %v616 = vrot.slane %v527, %v615
        %v617 = vlaneseq
        %v618 = vshrl.u32 %v617, 7
        %v619 = vsub.s32 4, %v618
        %v620 = vrot.slane %v527, %v619
        %v621 = vlaneseq
        %v622 = vshrl.u32 %v621, 7
        %v623 = vsub.s32 5, %v622
        %v624 = vrot.slane %v527, %v623
        %v625 = vlaneseq
        %v626 = vshrl.u32 %v625, 7
        %v627 = vsub.s32 6, %v626
        %v628 = vrot.slane %v527, %v627
        %v629 = vlaneseq
        %v630 = vshrl.u32 %v629, 7
        %v631 = vsub.s32 7, %v630
        %v632 = vrot.slane %v527, %v631
        %v633 = vlaneseq
        %v634 = vshrl.u32 %v633, 7
        %v635 = vsub.s32 0, %v634
        %v636 = vrot.slane %v528, %v635
        %v637 = vlaneseq
        %v638 = vshrl.u32 %v637, 7
        %v639 = vsub.s32 1, %v638
        %v640 = vrot.slane %v528, %v639
        %v641 = vlaneseq
        %v642 = vshrl.u32 %v641, 7
        %v643 = vsub.s32 2, %v642
        %v644 = vrot.slane %v528, %v643
        %v645 = vlaneseq
        %v646 = vshrl.u32 %v645, 7
        %v647 = vsub.s32 3, %v646
        %v648 = vrot.slane %v528, %v647
        %v679 = vunpack.c.l.b16 %v531
        %v680 = vunpack.c.l.b16 %v532
        %v681 = vpack.c.b16 %v680, %v679
        %v738 = vunpack.c.l.b16 %v469
        %v739 = vunpack.c.h.b16 %v469
        %v740 = vunpack.c.l.b16 %v470
        %v741 = vunpack.c.h.b16 %v470
        %v742 = vunpack.c.l.b16 %v471
        %v743 = vunpack.c.h.b16 %v471
        %v744 = vunpack.c.l.b16 %v472
        %v745 = vunpack.c.h.b16 %v472
        %v746 = vunpack.c.l.b16 %v473
        %v747 = vunpack.c.h.b16 %v473
        %v748 = vunpack.c.l.b16 %v474
        %v749 = vunpack.c.h.b16 %v474
        %v750 = vunpack.c.l.b16 %v475
        %v751 = vunpack.c.h.b16 %v475
        %v752 = vunpack.c.l.b16 %v476
        %v753 = vunpack.c.h.b16 %v476
        %v754 = vunpack.c.l.b16 %v477
        %v755 = vunpack.c.h.b16 %v477
        %v756 = vunpack.c.l.b16 %v478
        %v757 = vunpack.c.h.b16 %v478
        %v758 = vunpack.c.l.b16 %v479
        %v759 = vunpack.c.h.b16 %v479
        %v760 = vunpack.c.l.b16 %v480
        %v761 = vunpack.c.h.b16 %v480
        %v762 = vunpack.c.l.b16 %v481
        %v763 = vunpack.c.h.b16 %v481
        %v764 = vunpack.c.l.b16 %v482
        %v765 = vunpack.c.h.b16 %v482
        %v766 = vunpack.c.l.b16 %v483
        %v767 = vunpack.c.h.b16 %v483
        %v768 = vunpack.c.l.b16 %v484
        %v769 = vunpack.c.h.b16 %v484
        %v770 = vunpack.c.l.b16 %v485
        %v771 = vunpack.c.h.b16 %v485
        %v772 = vunpack.c.l.b16 %v486
        %v773 = vunpack.c.h.b16 %v486
        %v774 = vunpack.c.l.b16 %v487
        %v775 = vunpack.c.h.b16 %v487
        %v776 = vunpack.c.l.b16 %v488
        %v777 = vunpack.c.h.b16 %v488
        %v778 = vunpack.c.l.b16 %v489
        %v779 = vunpack.c.h.b16 %v489
        %v780 = vunpack.c.l.b16 %v490
        %v781 = vunpack.c.h.b16 %v490
        %v782 = vunpack.c.l.b16 %v491
        %v783 = vunpack.c.h.b16 %v491
        %v784 = vunpack.c.l.b16 %v492
        %v785 = vunpack.c.h.b16 %v492
        %v786 = vunpack.c.l.b16 %v493
        %v787 = vunpack.c.h.b16 %v493
        %v788 = vunpack.c.l.b16 %v494
        %v789 = vunpack.c.h.b16 %v494
        %v790 = vunpack.c.l.b16 %v495
        %v791 = vunpack.c.h.b16 %v495
        %v792 = vunpack.c.l.b16 %v496
        %v793 = vunpack.c.h.b16 %v496
        %v794 = vunpack.c.l.b16 %v497
        %v795 = vunpack.c.h.b16 %v497
        %v796 = vunpack.c.l.b16 %v498
        %v797 = vunpack.c.h.b16 %v498
        %v798 = vunpack.c.l.b16 %v499
        %v799 = vunpack.c.h.b16 %v499
        %v800 = vunpack.c.l.b16 %v500
        %v801 = vunpack.c.h.b16 %v500
        %v802 = vunpack.c.l.b16 %v501
        %v803 = vunpack.c.h.b16 %v501
        %v804 = vunpack.c.l.b16 %v502
        %v805 = vunpack.c.h.b16 %v502
        %v806 = vunpack.c.l.b16 %v503
        %v807 = vunpack.c.h.b16 %v503
        %v808 = vunpack.c.l.b16 %v504
        %v809 = vunpack.c.h.b16 %v504
        %v810 = vunpack.c.l.b16 %v505
        %v811 = vunpack.c.h.b16 %v505
        %v812 = vunpack.c.l.b16 %v506
        %v813 = vunpack.c.h.b16 %v506
        %v814 = vunpack.c.l.b16 %v507
        %v815 = vunpack.c.h.b16 %v507
        %v816 = vunpack.c.l.b16 %v508
        %v817 = vunpack.c.h.b16 %v508
        %v818 = vunpack.c.l.b16 %v509
        %v819 = vunpack.c.h.b16 %v509
        %v820 = vunpack.c.l.b16 %v510
        %v821 = vunpack.c.h.b16 %v510
        %v822 = vunpack.c.l.b16 %v511
        %v823 = vunpack.c.h.b16 %v511
        %v824 = vunpack.c.l.b16 %v512
        %v825 = vunpack.c.h.b16 %v512
        %v826 = vunpack.c.l.b16 %v513
        %v827 = vunpack.c.h.b16 %v513
        %v828 = vunpack.c.l.b16 %v514
        %v829 = vunpack.c.h.b16 %v514
        %v830 = vunpack.c.l.b16 %v515
        %v831 = vunpack.c.h.b16 %v515
        %v832 = vunpack.c.l.b16 %v516
        %v833 = vunpack.c.h.b16 %v516
        %v834 = vunpack.c.l.b16 %v517
        %v835 = vunpack.c.h.b16 %v517
        %v836 = vunpack.c.l.b16 %v518
        %v837 = vunpack.c.h.b16 %v518
        %v838 = vunpack.c.l.b16 %v519
        %v839 = vunpack.c.h.b16 %v519
        %v840 = vunpack.c.l.b16 %v520
        %v841 = vunpack.c.h.b16 %v520
        %v842 = vunpack.c.l.b16 %v521
        %v843 = vunpack.c.h.b16 %v521
        %v844 = vunpack.c.l.b16 %v522
        %v845 = vunpack.c.h.b16 %v522
        %v846 = vunpack.c.l.b16 %v523
        %v847 = vunpack.c.h.b16 %v523
        %v848 = vunpack.c.l.b16 %v524
        %v849 = vunpack.c.h.b16 %v524
        %v850 = vpack.c.b16 %v766, %v738
        %v851 = vpack.c.b16 %v767, %v739
        %v852 = vpack.c.b16 %v768, %v740
        %v853 = vpack.c.b16 %v769, %v741
        %v854 = vpack.c.b16 %v770, %v742
        %v855 = vpack.c.b16 %v771, %v743
        %v856 = vpack.c.b16 %v772, %v744
        %v857 = vpack.c.b16 %v773, %v745
        %v858 = vpack.c.b16 %v774, %v746
        %v859 = vpack.c.b16 %v775, %v747
        %v860 = vpack.c.b16 %v776, %v748
        %v861 = vpack.c.b16 %v777, %v749
        %v862 = vpack.c.b16 %v778, %v750
        %v863 = vpack.c.b16 %v779, %v751
        %v864 = vpack.c.b16 %v780, %v752
        %v865 = vpack.c.b16 %v781, %v753
        %v866 = vpack.c.b16 %v782, %v754
        %v867 = vpack.c.b16 %v783, %v755
        %v868 = vpack.c.b16 %v784, %v756
        %v869 = vpack.c.b16 %v785, %v757
        %v870 = vpack.c.b16 %v786, %v758
        %v871 = vpack.c.b16 %v787, %v759
        %v872 = vpack.c.b16 %v788, %v760
        %v873 = vpack.c.b16 %v789, %v761
        %v874 = vpack.c.b16 %v790, %v762
        %v875 = vpack.c.b16 %v791, %v763
        %v876 = vpack.c.b16 %v792, %v764
        %v877 = vpack.c.b16 %v793, %v765
        %v878 = vpack.c.b16 %v822, %v794
        %v879 = vpack.c.b16 %v823, %v795
        %v880 = vpack.c.b16 %v824, %v796
        %v881 = vpack.c.b16 %v825, %v797
        %v882 = vpack.c.b16 %v826, %v798
        %v883 = vpack.c.b16 %v827, %v799
        %v884 = vpack.c.b16 %v828, %v800
        %v885 = vpack.c.b16 %v829, %v801
        %v886 = vpack.c.b16 %v830, %v802
        %v887 = vpack.c.b16 %v831, %v803
        %v888 = vpack.c.b16 %v832, %v804
        %v889 = vpack.c.b16 %v833, %v805
        %v890 = vpack.c.b16 %v834, %v806
        %v891 = vpack.c.b16 %v835, %v807
        %v892 = vpack.c.b16 %v836, %v808
        %v893 = vpack.c.b16 %v837, %v809
        %v894 = vpack.c.b16 %v838, %v810
        %v895 = vpack.c.b16 %v839, %v811
        %v896 = vpack.c.b16 %v840, %v812
        %v897 = vpack.c.b16 %v841, %v813
        %v898 = vpack.c.b16 %v842, %v814
        %v899 = vpack.c.b16 %v843, %v815
        %v900 = vpack.c.b16 %v844, %v816
        %v901 = vpack.c.b16 %v845, %v817
        %v902 = vpack.c.b16 %v846, %v818
        %v903 = vpack.c.b16 %v847, %v819
        %v904 = vpack.c.b16 %v848, %v820
        %v905 = vpack.c.b16 %v849, %v821
        %vm962 = vcmask 261120
        %v964 = vsel %vm962, %v681, 0
        %966 = vmatprep.subr.bf16.mxu0 0
        %967 = vmatpush1.bf16.msra.mxu0 0
        %968 = vmatprep.subr.bf16.mxu0 0
        %969 = vmatpush1.bf16.msra.mxu0 0
        %970 = vmatprep.subr.bf16.mxu0 0
        %971 = vmatpush1.bf16.msra.mxu0 0
        %972 = vmatprep.subr.bf16.mxu0 0
        %973 = vmatpush1.bf16.msra.mxu0 0
        %974 = vmatprep.subr.bf16.mxu0 0
        %975 = vmatpush1.bf16.msra.mxu0 0
        %976 = vmatprep.subr.bf16.mxu0 0
        %977 = vmatpush1.bf16.msra.mxu0 0
        %978 = vmatprep.subr.bf16.mxu0 %v879
        %979 = vmatpush1.bf16.msra.mxu0 %v878
        %980 = vmatprep.subr.bf16.mxu0 %v851
        %981 = vmatpush1.bf16.msra.mxu0 %v850
        %982 = vmatprep.subr.bf16.mxu0 0
        %983 = vmatpush2.bf16.msra.mxu0 0
        %984 = vmatprep.subr.bf16.mxu0 0
        %985 = vmatpush2.bf16.msra.mxu0 0
        %986 = vmatprep.subr.bf16.mxu0 0
        %987 = vmatpush2.bf16.msra.mxu0 0
        %988 = vmatprep.subr.bf16.mxu0 0
        %989 = vmatpush2.bf16.msra.mxu0 0
        %990 = vmatprep.subr.bf16.mxu0 0
        %991 = vmatpush2.bf16.msra.mxu0 0
        %992 = vmatprep.subr.bf16.mxu0 0
        %993 = vmatpush2.bf16.msra.mxu0 0
        %994 = vmatprep.subr.bf16.mxu0 0
        %995 = vmatpush2.bf16.msra.mxu0 0
        %996 = vmatprep.subr.bf16.mxu0 0
        %997 = vmatpush2.bf16.msra.mxu0 0
        %998 = vmatprep.mubr.bf16.mxu0 0
        %999 = vmatmul.mubr.bf16.gmra.mxu0 %v964
        %v1000 = vpop.f32.mrf.mxu0
        %v1001 = vadd.f32 %v540, %v1000
        %v1002 = vpop.f32.mrf.mxu0
        %v1003 = vadd.f32 %v544, %v1002
        %v1004 = vpop.f32.mrf.mxu0
        %v1005 = vadd.f32 %v540, %v1004
        %v1006 = vpop.f32.mrf.mxu0
        %v1007 = vadd.f32 %v544, %v1006
        %1008 = vdwg.mxu0
        %1009 = vmatprep.subr.bf16.mxu0 0
        %1010 = vmatpush1.bf16.msra.mxu0 0
        %1011 = vmatprep.subr.bf16.mxu0 0
        %1012 = vmatpush1.bf16.msra.mxu0 0
        %1013 = vmatprep.subr.bf16.mxu0 0
        %1014 = vmatpush1.bf16.msra.mxu0 0
        %1015 = vmatprep.subr.bf16.mxu0 0
        %1016 = vmatpush1.bf16.msra.mxu0 0
        %1017 = vmatprep.subr.bf16.mxu0 0
        %1018 = vmatpush1.bf16.msra.mxu0 0
        %1019 = vmatprep.subr.bf16.mxu0 0
        %1020 = vmatpush1.bf16.msra.mxu0 0
        %1021 = vmatprep.subr.bf16.mxu0 %v881
        %1022 = vmatpush1.bf16.msra.mxu0 %v880
        %1023 = vmatprep.subr.bf16.mxu0 %v853
        %1024 = vmatpush1.bf16.msra.mxu0 %v852
        %1025 = vmatprep.subr.bf16.mxu0 0
        %1026 = vmatpush2.bf16.msra.mxu0 0
        %1027 = vmatprep.subr.bf16.mxu0 0
        %1028 = vmatpush2.bf16.msra.mxu0 0
        %1029 = vmatprep.subr.bf16.mxu0 0
        %1030 = vmatpush2.bf16.msra.mxu0 0
        %1031 = vmatprep.subr.bf16.mxu0 0
        %1032 = vmatpush2.bf16.msra.mxu0 0
        %1033 = vmatprep.subr.bf16.mxu0 0
        %1034 = vmatpush2.bf16.msra.mxu0 0
        %1035 = vmatprep.subr.bf16.mxu0 0
        %1036 = vmatpush2.bf16.msra.mxu0 0
        %1037 = vmatprep.subr.bf16.mxu0 0
        %1038 = vmatpush2.bf16.msra.mxu0 0
        %1039 = vmatprep.subr.bf16.mxu0 0
        %1040 = vmatpush2.bf16.msra.mxu0 0
        %1041 = vmatprep.mubr.bf16.mxu0 0
        %1042 = vmatmul.mubr.bf16.gmra.mxu0 %v964
        %v1043 = vpop.f32.mrf.mxu0
        %v1044 = vadd.f32 %v548, %v1043
        %v1045 = vpop.f32.mrf.mxu0
        %v1046 = vadd.f32 %v552, %v1045
        %v1047 = vpop.f32.mrf.mxu0
        %v1048 = vadd.f32 %v548, %v1047
        %v1049 = vpop.f32.mrf.mxu0
        %v1050 = vadd.f32 %v552, %v1049
        %1051 = vdwg.mxu0
        %1052 = vmatprep.subr.bf16.mxu0 0
        %1053 = vmatpush1.bf16.msra.mxu0 0
        %1054 = vmatprep.subr.bf16.mxu0 0
        %1055 = vmatpush1.bf16.msra.mxu0 0
        %1056 = vmatprep.subr.bf16.mxu0 0
        %1057 = vmatpush1.bf16.msra.mxu0 0
        %1058 = vmatprep.subr.bf16.mxu0 0
        %1059 = vmatpush1.bf16.msra.mxu0 0
        %1060 = vmatprep.subr.bf16.mxu0 0
        %1061 = vmatpush1.bf16.msra.mxu0 0
        %1062 = vmatprep.subr.bf16.mxu0 0
        %1063 = vmatpush1.bf16.msra.mxu0 0
        %1064 = vmatprep.subr.bf16.mxu0 %v883
        %1065 = vmatpush1.bf16.msra.mxu0 %v882
        %1066 = vmatprep.subr.bf16.mxu0 %v855
        %1067 = vmatpush1.bf16.msra.mxu0 %v854
        %1068 = vmatprep.subr.bf16.mxu0 0
        %1069 = vmatpush2.bf16.msra.mxu0 0
        %1070 = vmatprep.subr.bf16.mxu0 0
        %1071 = vmatpush2.bf16.msra.mxu0 0
        %1072 = vmatprep.subr.bf16.mxu0 0
        %1073 = vmatpush2.bf16.msra.mxu0 0
        %1074 = vmatprep.subr.bf16.mxu0 0
        %1075 = vmatpush2.bf16.msra.mxu0 0
        %1076 = vmatprep.subr.bf16.mxu0 0
        %1077 = vmatpush2.bf16.msra.mxu0 0
        %1078 = vmatprep.subr.bf16.mxu0 0
        %1079 = vmatpush2.bf16.msra.mxu0 0
        %1080 = vmatprep.subr.bf16.mxu0 0
        %1081 = vmatpush2.bf16.msra.mxu0 0
        %1082 = vmatprep.subr.bf16.mxu0 0
        %1083 = vmatpush2.bf16.msra.mxu0 0
        %1084 = vmatprep.mubr.bf16.mxu0 0
        %1085 = vmatmul.mubr.bf16.gmra.mxu0 %v964
        %v1086 = vpop.f32.mrf.mxu0
        %v1087 = vadd.f32 %v556, %v1086
        %v1088 = vpop.f32.mrf.mxu0
        %v1089 = vadd.f32 %v560, %v1088
        %v1090 = vpop.f32.mrf.mxu0
        %v1091 = vadd.f32 %v556, %v1090
        %v1092 = vpop.f32.mrf.mxu0
        %v1093 = vadd.f32 %v560, %v1092
        %1094 = vdwg.mxu0
        %1095 = vmatprep.subr.bf16.mxu0 0
        %1096 = vmatpush1.bf16.msra.mxu0 0
        %1097 = vmatprep.subr.bf16.mxu0 0
        %1098 = vmatpush1.bf16.msra.mxu0 0
        %1099 = vmatprep.subr.bf16.mxu0 0
        %1100 = vmatpush1.bf16.msra.mxu0 0
        %1101 = vmatprep.subr.bf16.mxu0 0
        %1102 = vmatpush1.bf16.msra.mxu0 0
        %1103 = vmatprep.subr.bf16.mxu0 0
        %1104 = vmatpush1.bf16.msra.mxu0 0
        %1105 = vmatprep.subr.bf16.mxu0 0
        %1106 = vmatpush1.bf16.msra.mxu0 0
        %1107 = vmatprep.subr.bf16.mxu0 %v885
        %1108 = vmatpush1.bf16.msra.mxu0 %v884
        %1109 = vmatprep.subr.bf16.mxu0 %v857
        %1110 = vmatpush1.bf16.msra.mxu0 %v856
        %1111 = vmatprep.subr.bf16.mxu0 0
        %1112 = vmatpush2.bf16.msra.mxu0 0
        %1113 = vmatprep.subr.bf16.mxu0 0
        %1114 = vmatpush2.bf16.msra.mxu0 0
        %1115 = vmatprep.subr.bf16.mxu0 0
        %1116 = vmatpush2.bf16.msra.mxu0 0
        %1117 = vmatprep.subr.bf16.mxu0 0
        %1118 = vmatpush2.bf16.msra.mxu0 0
        %1119 = vmatprep.subr.bf16.mxu0 0
        %1120 = vmatpush2.bf16.msra.mxu0 0
        %1121 = vmatprep.subr.bf16.mxu0 0
        %1122 = vmatpush2.bf16.msra.mxu0 0
        %1123 = vmatprep.subr.bf16.mxu0 0
        %1124 = vmatpush2.bf16.msra.mxu0 0
        %1125 = vmatprep.subr.bf16.mxu0 0
        %1126 = vmatpush2.bf16.msra.mxu0 0
        %1127 = vmatprep.mubr.bf16.mxu0 0
        %1128 = vmatmul.mubr.bf16.gmra.mxu0 %v964
        %v1129 = vpop.f32.mrf.mxu0
        %v1130 = vadd.f32 %v564, %v1129
        %v1131 = vpop.f32.mrf.mxu0
        %v1132 = vadd.f32 %v568, %v1131
        %v1133 = vpop.f32.mrf.mxu0
        %v1134 = vadd.f32 %v564, %v1133
        %v1135 = vpop.f32.mrf.mxu0
        %v1136 = vadd.f32 %v568, %v1135
        %1137 = vdwg.mxu0
        %1138 = vmatprep.subr.bf16.mxu0 0
        %1139 = vmatpush1.bf16.msra.mxu0 0
        %1140 = vmatprep.subr.bf16.mxu0 0
        %1141 = vmatpush1.bf16.msra.mxu0 0
        %1142 = vmatprep.subr.bf16.mxu0 0
        %1143 = vmatpush1.bf16.msra.mxu0 0
        %1144 = vmatprep.subr.bf16.mxu0 0
        %1145 = vmatpush1.bf16.msra.mxu0 0
        %1146 = vmatprep.subr.bf16.mxu0 0
        %1147 = vmatpush1.bf16.msra.mxu0 0
        %1148 = vmatprep.subr.bf16.mxu0 0
        %1149 = vmatpush1.bf16.msra.mxu0 0
        %1150 = vmatprep.subr.bf16.mxu0 %v887
        %1151 = vmatpush1.bf16.msra.mxu0 %v886
        %1152 = vmatprep.subr.bf16.mxu0 %v859
        %1153 = vmatpush1.bf16.msra.mxu0 %v858
        %1154 = vmatprep.subr.bf16.mxu0 0
        %1155 = vmatpush2.bf16.msra.mxu0 0
        %1156 = vmatprep.subr.bf16.mxu0 0
        %1157 = vmatpush2.bf16.msra.mxu0 0
        %1158 = vmatprep.subr.bf16.mxu0 0
        %1159 = vmatpush2.bf16.msra.mxu0 0
        %1160 = vmatprep.subr.bf16.mxu0 0
        %1161 = vmatpush2.bf16.msra.mxu0 0
        %1162 = vmatprep.subr.bf16.mxu0 0
        %1163 = vmatpush2.bf16.msra.mxu0 0
        %1164 = vmatprep.subr.bf16.mxu0 0
        %1165 = vmatpush2.bf16.msra.mxu0 0
        %1166 = vmatprep.subr.bf16.mxu0 0
        %1167 = vmatpush2.bf16.msra.mxu0 0
        %1168 = vmatprep.subr.bf16.mxu0 0
        %1169 = vmatpush2.bf16.msra.mxu0 0
        %1170 = vmatprep.mubr.bf16.mxu0 0
        %1171 = vmatmul.mubr.bf16.gmra.mxu0 %v964
        %v1172 = vpop.f32.mrf.mxu0
        %v1173 = vadd.f32 %v572, %v1172
        %v1174 = vpop.f32.mrf.mxu0
        %v1175 = vadd.f32 %v576, %v1174
        %v1176 = vpop.f32.mrf.mxu0
        %v1177 = vadd.f32 %v572, %v1176
        %v1178 = vpop.f32.mrf.mxu0
        %v1179 = vadd.f32 %v576, %v1178
        %1180 = vdwg.mxu0
        %1181 = vmatprep.subr.bf16.mxu0 0
        %1182 = vmatpush1.bf16.msra.mxu0 0
        %1183 = vmatprep.subr.bf16.mxu0 0
        %1184 = vmatpush1.bf16.msra.mxu0 0
        %1185 = vmatprep.subr.bf16.mxu0 0
        %1186 = vmatpush1.bf16.msra.mxu0 0
        %1187 = vmatprep.subr.bf16.mxu0 0
        %1188 = vmatpush1.bf16.msra.mxu0 0
        %1189 = vmatprep.subr.bf16.mxu0 0
        %1190 = vmatpush1.bf16.msra.mxu0 0
        %1191 = vmatprep.subr.bf16.mxu0 0
        %1192 = vmatpush1.bf16.msra.mxu0 0
        %1193 = vmatprep.subr.bf16.mxu0 %v889
        %1194 = vmatpush1.bf16.msra.mxu0 %v888
        %1195 = vmatprep.subr.bf16.mxu0 %v861
        %1196 = vmatpush1.bf16.msra.mxu0 %v860
        %1197 = vmatprep.subr.bf16.mxu0 0
        %1198 = vmatpush2.bf16.msra.mxu0 0
        %1199 = vmatprep.subr.bf16.mxu0 0
        %1200 = vmatpush2.bf16.msra.mxu0 0
        %1201 = vmatprep.subr.bf16.mxu0 0
        %1202 = vmatpush2.bf16.msra.mxu0 0
        %1203 = vmatprep.subr.bf16.mxu0 0
        %1204 = vmatpush2.bf16.msra.mxu0 0
        %1205 = vmatprep.subr.bf16.mxu0 0
        %1206 = vmatpush2.bf16.msra.mxu0 0
        %1207 = vmatprep.subr.bf16.mxu0 0
        %1208 = vmatpush2.bf16.msra.mxu0 0
        %1209 = vmatprep.subr.bf16.mxu0 0
        %1210 = vmatpush2.bf16.msra.mxu0 0
        %1211 = vmatprep.subr.bf16.mxu0 0
        %1212 = vmatpush2.bf16.msra.mxu0 0
        %1213 = vmatprep.mubr.bf16.mxu0 0
        %1214 = vmatmul.mubr.bf16.gmra.mxu0 %v964
        %v1215 = vpop.f32.mrf.mxu0
        %v1216 = vadd.f32 %v580, %v1215
        %v1217 = vpop.f32.mrf.mxu0
        %v1218 = vadd.f32 %v584, %v1217
        %v1219 = vpop.f32.mrf.mxu0
        %v1220 = vadd.f32 %v580, %v1219
        %v1221 = vpop.f32.mrf.mxu0
        %v1222 = vadd.f32 %v584, %v1221
        %1223 = vdwg.mxu0
        %1224 = vmatprep.subr.bf16.mxu0 0
        %1225 = vmatpush1.bf16.msra.mxu0 0
        %1226 = vmatprep.subr.bf16.mxu0 0
        %1227 = vmatpush1.bf16.msra.mxu0 0
        %1228 = vmatprep.subr.bf16.mxu0 0
        %1229 = vmatpush1.bf16.msra.mxu0 0
        %1230 = vmatprep.subr.bf16.mxu0 0
        %1231 = vmatpush1.bf16.msra.mxu0 0
        %1232 = vmatprep.subr.bf16.mxu0 0
        %1233 = vmatpush1.bf16.msra.mxu0 0
        %1234 = vmatprep.subr.bf16.mxu0 0
        %1235 = vmatpush1.bf16.msra.mxu0 0
        %1236 = vmatprep.subr.bf16.mxu0 %v891
        %1237 = vmatpush1.bf16.msra.mxu0 %v890
        %1238 = vmatprep.subr.bf16.mxu0 %v863
        %1239 = vmatpush1.bf16.msra.mxu0 %v862
        %1240 = vmatprep.subr.bf16.mxu0 0
        %1241 = vmatpush2.bf16.msra.mxu0 0
        %1242 = vmatprep.subr.bf16.mxu0 0
        %1243 = vmatpush2.bf16.msra.mxu0 0
        %1244 = vmatprep.subr.bf16.mxu0 0
        %1245 = vmatpush2.bf16.msra.mxu0 0
        %1246 = vmatprep.subr.bf16.mxu0 0
        %1247 = vmatpush2.bf16.msra.mxu0 0
        %1248 = vmatprep.subr.bf16.mxu0 0
        %1249 = vmatpush2.bf16.msra.mxu0 0
        %1250 = vmatprep.subr.bf16.mxu0 0
        %1251 = vmatpush2.bf16.msra.mxu0 0
        %1252 = vmatprep.subr.bf16.mxu0 0
        %1253 = vmatpush2.bf16.msra.mxu0 0
        %1254 = vmatprep.subr.bf16.mxu0 0
        %1255 = vmatpush2.bf16.msra.mxu0 0
        %1256 = vmatprep.mubr.bf16.mxu0 0
        %1257 = vmatmul.mubr.bf16.gmra.mxu0 %v964
        %v1258 = vpop.f32.mrf.mxu0
        %v1259 = vadd.f32 %v588, %v1258
        %v1260 = vpop.f32.mrf.mxu0
        %v1261 = vadd.f32 %v592, %v1260
        %v1262 = vpop.f32.mrf.mxu0
        %v1263 = vadd.f32 %v588, %v1262
        %v1264 = vpop.f32.mrf.mxu0
        %v1265 = vadd.f32 %v592, %v1264
        %1266 = vdwg.mxu0
        %1267 = vmatprep.subr.bf16.mxu0 0
        %1268 = vmatpush1.bf16.msra.mxu0 0
        %1269 = vmatprep.subr.bf16.mxu0 0
        %1270 = vmatpush1.bf16.msra.mxu0 0
        %1271 = vmatprep.subr.bf16.mxu0 0
        %1272 = vmatpush1.bf16.msra.mxu0 0
        %1273 = vmatprep.subr.bf16.mxu0 0
        %1274 = vmatpush1.bf16.msra.mxu0 0
        %1275 = vmatprep.subr.bf16.mxu0 0
        %1276 = vmatpush1.bf16.msra.mxu0 0
        %1277 = vmatprep.subr.bf16.mxu0 0
        %1278 = vmatpush1.bf16.msra.mxu0 0
        %1279 = vmatprep.subr.bf16.mxu0 %v893
        %1280 = vmatpush1.bf16.msra.mxu0 %v892
        %1281 = vmatprep.subr.bf16.mxu0 %v865
        %1282 = vmatpush1.bf16.msra.mxu0 %v864
        %1283 = vmatprep.subr.bf16.mxu0 0
        %1284 = vmatpush2.bf16.msra.mxu0 0
        %1285 = vmatprep.subr.bf16.mxu0 0
        %1286 = vmatpush2.bf16.msra.mxu0 0
        %1287 = vmatprep.subr.bf16.mxu0 0
        %1288 = vmatpush2.bf16.msra.mxu0 0
        %1289 = vmatprep.subr.bf16.mxu0 0
        %1290 = vmatpush2.bf16.msra.mxu0 0
        %1291 = vmatprep.subr.bf16.mxu0 0
        %1292 = vmatpush2.bf16.msra.mxu0 0
        %1293 = vmatprep.subr.bf16.mxu0 0
        %1294 = vmatpush2.bf16.msra.mxu0 0
        %1295 = vmatprep.subr.bf16.mxu0 0
        %1296 = vmatpush2.bf16.msra.mxu0 0
        %1297 = vmatprep.subr.bf16.mxu0 0
        %1298 = vmatpush2.bf16.msra.mxu0 0
        %1299 = vmatprep.mubr.bf16.mxu0 0
        %1300 = vmatmul.mubr.bf16.gmra.mxu0 %v964
        %v1301 = vpop.f32.mrf.mxu0
        %v1302 = vadd.f32 %v596, %v1301
        %v1303 = vpop.f32.mrf.mxu0
        %v1304 = vadd.f32 %v600, %v1303
        %v1305 = vpop.f32.mrf.mxu0
        %v1306 = vadd.f32 %v596, %v1305
        %v1307 = vpop.f32.mrf.mxu0
        %v1308 = vadd.f32 %v600, %v1307
        %1309 = vdwg.mxu0
        %1310 = vmatprep.subr.bf16.mxu0 0
        %1311 = vmatpush1.bf16.msra.mxu0 0
        %1312 = vmatprep.subr.bf16.mxu0 0
        %1313 = vmatpush1.bf16.msra.mxu0 0
        %1314 = vmatprep.subr.bf16.mxu0 0
        %1315 = vmatpush1.bf16.msra.mxu0 0
        %1316 = vmatprep.subr.bf16.mxu0 0
        %1317 = vmatpush1.bf16.msra.mxu0 0
        %1318 = vmatprep.subr.bf16.mxu0 0
        %1319 = vmatpush1.bf16.msra.mxu0 0
        %1320 = vmatprep.subr.bf16.mxu0 0
        %1321 = vmatpush1.bf16.msra.mxu0 0
        %1322 = vmatprep.subr.bf16.mxu0 %v895
        %1323 = vmatpush1.bf16.msra.mxu0 %v894
        %1324 = vmatprep.subr.bf16.mxu0 %v867
        %1325 = vmatpush1.bf16.msra.mxu0 %v866
        %1326 = vmatprep.subr.bf16.mxu0 0
        %1327 = vmatpush2.bf16.msra.mxu0 0
        %1328 = vmatprep.subr.bf16.mxu0 0
        %1329 = vmatpush2.bf16.msra.mxu0 0
        %1330 = vmatprep.subr.bf16.mxu0 0
        %1331 = vmatpush2.bf16.msra.mxu0 0
        %1332 = vmatprep.subr.bf16.mxu0 0
        %1333 = vmatpush2.bf16.msra.mxu0 0
        %1334 = vmatprep.subr.bf16.mxu0 0
        %1335 = vmatpush2.bf16.msra.mxu0 0
        %1336 = vmatprep.subr.bf16.mxu0 0
        %1337 = vmatpush2.bf16.msra.mxu0 0
        %1338 = vmatprep.subr.bf16.mxu0 0
        %1339 = vmatpush2.bf16.msra.mxu0 0
        %1340 = vmatprep.subr.bf16.mxu0 0
        %1341 = vmatpush2.bf16.msra.mxu0 0
        %1342 = vmatprep.mubr.bf16.mxu0 0
        %1343 = vmatmul.mubr.bf16.gmra.mxu0 %v964
        %v1344 = vpop.f32.mrf.mxu0
        %v1345 = vadd.f32 %v604, %v1344
        %v1346 = vpop.f32.mrf.mxu0
        %v1347 = vadd.f32 %v608, %v1346
        %v1348 = vpop.f32.mrf.mxu0
        %v1349 = vadd.f32 %v604, %v1348
        %v1350 = vpop.f32.mrf.mxu0
        %v1351 = vadd.f32 %v608, %v1350
        %1352 = vdwg.mxu0
        %1353 = vmatprep.subr.bf16.mxu0 0
        %1354 = vmatpush1.bf16.msra.mxu0 0
        %1355 = vmatprep.subr.bf16.mxu0 0
        %1356 = vmatpush1.bf16.msra.mxu0 0
        %1357 = vmatprep.subr.bf16.mxu0 0
        %1358 = vmatpush1.bf16.msra.mxu0 0
        %1359 = vmatprep.subr.bf16.mxu0 0
        %1360 = vmatpush1.bf16.msra.mxu0 0
        %1361 = vmatprep.subr.bf16.mxu0 0
        %1362 = vmatpush1.bf16.msra.mxu0 0
        %1363 = vmatprep.subr.bf16.mxu0 0
        %1364 = vmatpush1.bf16.msra.mxu0 0
        %1365 = vmatprep.subr.bf16.mxu0 %v897
        %1366 = vmatpush1.bf16.msra.mxu0 %v896
        %1367 = vmatprep.subr.bf16.mxu0 %v869
        %1368 = vmatpush1.bf16.msra.mxu0 %v868
        %1369 = vmatprep.subr.bf16.mxu0 0
        %1370 = vmatpush2.bf16.msra.mxu0 0
        %1371 = vmatprep.subr.bf16.mxu0 0
        %1372 = vmatpush2.bf16.msra.mxu0 0
        %1373 = vmatprep.subr.bf16.mxu0 0
        %1374 = vmatpush2.bf16.msra.mxu0 0
        %1375 = vmatprep.subr.bf16.mxu0 0
        %1376 = vmatpush2.bf16.msra.mxu0 0
        %1377 = vmatprep.subr.bf16.mxu0 0
        %1378 = vmatpush2.bf16.msra.mxu0 0
        %1379 = vmatprep.subr.bf16.mxu0 0
        %1380 = vmatpush2.bf16.msra.mxu0 0
        %1381 = vmatprep.subr.bf16.mxu0 0
        %1382 = vmatpush2.bf16.msra.mxu0 0
        %1383 = vmatprep.subr.bf16.mxu0 0
        %1384 = vmatpush2.bf16.msra.mxu0 0
        %1385 = vmatprep.mubr.bf16.mxu0 0
        %1386 = vmatmul.mubr.bf16.gmra.mxu0 %v964
        %v1387 = vpop.f32.mrf.mxu0
        %v1388 = vadd.f32 %v612, %v1387
        %v1389 = vpop.f32.mrf.mxu0
        %v1390 = vadd.f32 %v616, %v1389
        %v1391 = vpop.f32.mrf.mxu0
        %v1392 = vadd.f32 %v612, %v1391
        %v1393 = vpop.f32.mrf.mxu0
        %v1394 = vadd.f32 %v616, %v1393
        %1395 = vdwg.mxu0
        %1396 = vmatprep.subr.bf16.mxu0 0
        %1397 = vmatpush1.bf16.msra.mxu0 0
        %1398 = vmatprep.subr.bf16.mxu0 0
        %1399 = vmatpush1.bf16.msra.mxu0 0
        %1400 = vmatprep.subr.bf16.mxu0 0
        %1401 = vmatpush1.bf16.msra.mxu0 0
        %1402 = vmatprep.subr.bf16.mxu0 0
        %1403 = vmatpush1.bf16.msra.mxu0 0
        %1404 = vmatprep.subr.bf16.mxu0 0
        %1405 = vmatpush1.bf16.msra.mxu0 0
        %1406 = vmatprep.subr.bf16.mxu0 0
        %1407 = vmatpush1.bf16.msra.mxu0 0
        %1408 = vmatprep.subr.bf16.mxu0 %v899
        %1409 = vmatpush1.bf16.msra.mxu0 %v898
        %1410 = vmatprep.subr.bf16.mxu0 %v871
        %1411 = vmatpush1.bf16.msra.mxu0 %v870
        %1412 = vmatprep.subr.bf16.mxu0 0
        %1413 = vmatpush2.bf16.msra.mxu0 0
        %1414 = vmatprep.subr.bf16.mxu0 0
        %1415 = vmatpush2.bf16.msra.mxu0 0
        %1416 = vmatprep.subr.bf16.mxu0 0
        %1417 = vmatpush2.bf16.msra.mxu0 0
        %1418 = vmatprep.subr.bf16.mxu0 0
        %1419 = vmatpush2.bf16.msra.mxu0 0
        %1420 = vmatprep.subr.bf16.mxu0 0
        %1421 = vmatpush2.bf16.msra.mxu0 0
        %1422 = vmatprep.subr.bf16.mxu0 0
        %1423 = vmatpush2.bf16.msra.mxu0 0
        %1424 = vmatprep.subr.bf16.mxu0 0
        %1425 = vmatpush2.bf16.msra.mxu0 0
        %1426 = vmatprep.subr.bf16.mxu0 0
        %1427 = vmatpush2.bf16.msra.mxu0 0
        %1428 = vmatprep.mubr.bf16.mxu0 0
        %1429 = vmatmul.mubr.bf16.gmra.mxu0 %v964
        %v1430 = vpop.f32.mrf.mxu0
        %v1431 = vadd.f32 %v620, %v1430
        %v1432 = vpop.f32.mrf.mxu0
        %v1433 = vadd.f32 %v624, %v1432
        %v1434 = vpop.f32.mrf.mxu0
        %v1435 = vadd.f32 %v620, %v1434
        %v1436 = vpop.f32.mrf.mxu0
        %v1437 = vadd.f32 %v624, %v1436
        %1438 = vdwg.mxu0
        %1439 = vmatprep.subr.bf16.mxu0 0
        %1440 = vmatpush1.bf16.msra.mxu0 0
        %1441 = vmatprep.subr.bf16.mxu0 0
        %1442 = vmatpush1.bf16.msra.mxu0 0
        %1443 = vmatprep.subr.bf16.mxu0 0
        %1444 = vmatpush1.bf16.msra.mxu0 0
        %1445 = vmatprep.subr.bf16.mxu0 0
        %1446 = vmatpush1.bf16.msra.mxu0 0
        %1447 = vmatprep.subr.bf16.mxu0 0
        %1448 = vmatpush1.bf16.msra.mxu0 0
        %1449 = vmatprep.subr.bf16.mxu0 0
        %1450 = vmatpush1.bf16.msra.mxu0 0
        %1451 = vmatprep.subr.bf16.mxu0 %v901
        %1452 = vmatpush1.bf16.msra.mxu0 %v900
        %1453 = vmatprep.subr.bf16.mxu0 %v873
        %1454 = vmatpush1.bf16.msra.mxu0 %v872
        %1455 = vmatprep.subr.bf16.mxu0 0
        %1456 = vmatpush2.bf16.msra.mxu0 0
        %1457 = vmatprep.subr.bf16.mxu0 0
        %1458 = vmatpush2.bf16.msra.mxu0 0
        %1459 = vmatprep.subr.bf16.mxu0 0
        %1460 = vmatpush2.bf16.msra.mxu0 0
        %1461 = vmatprep.subr.bf16.mxu0 0
        %1462 = vmatpush2.bf16.msra.mxu0 0
        %1463 = vmatprep.subr.bf16.mxu0 0
        %1464 = vmatpush2.bf16.msra.mxu0 0
        %1465 = vmatprep.subr.bf16.mxu0 0
        %1466 = vmatpush2.bf16.msra.mxu0 0
        %1467 = vmatprep.subr.bf16.mxu0 0
        %1468 = vmatpush2.bf16.msra.mxu0 0
        %1469 = vmatprep.subr.bf16.mxu0 0
        %1470 = vmatpush2.bf16.msra.mxu0 0
        %1471 = vmatprep.mubr.bf16.mxu0 0
        %1472 = vmatmul.mubr.bf16.gmra.mxu0 %v964
        %v1473 = vpop.f32.mrf.mxu0
        %v1474 = vadd.f32 %v628, %v1473
        %v1475 = vpop.f32.mrf.mxu0
        %v1476 = vadd.f32 %v632, %v1475
        %v1477 = vpop.f32.mrf.mxu0
        %v1478 = vadd.f32 %v628, %v1477
        %v1479 = vpop.f32.mrf.mxu0
        %v1480 = vadd.f32 %v632, %v1479
        %1481 = vdwg.mxu0
        %1482 = vmatprep.subr.bf16.mxu0 0
        %1483 = vmatpush1.bf16.msra.mxu0 0
        %1484 = vmatprep.subr.bf16.mxu0 0
        %1485 = vmatpush1.bf16.msra.mxu0 0
        %1486 = vmatprep.subr.bf16.mxu0 0
        %1487 = vmatpush1.bf16.msra.mxu0 0
        %1488 = vmatprep.subr.bf16.mxu0 0
        %1489 = vmatpush1.bf16.msra.mxu0 0
        %1490 = vmatprep.subr.bf16.mxu0 0
        %1491 = vmatpush1.bf16.msra.mxu0 0
        %1492 = vmatprep.subr.bf16.mxu0 0
        %1493 = vmatpush1.bf16.msra.mxu0 0
        %1494 = vmatprep.subr.bf16.mxu0 %v903
        %1495 = vmatpush1.bf16.msra.mxu0 %v902
        %1496 = vmatprep.subr.bf16.mxu0 %v875
        %1497 = vmatpush1.bf16.msra.mxu0 %v874
        %1498 = vmatprep.subr.bf16.mxu0 0
        %1499 = vmatpush2.bf16.msra.mxu0 0
        %1500 = vmatprep.subr.bf16.mxu0 0
        %1501 = vmatpush2.bf16.msra.mxu0 0
        %1502 = vmatprep.subr.bf16.mxu0 0
        %1503 = vmatpush2.bf16.msra.mxu0 0
        %1504 = vmatprep.subr.bf16.mxu0 0
        %1505 = vmatpush2.bf16.msra.mxu0 0
        %1506 = vmatprep.subr.bf16.mxu0 0
        %1507 = vmatpush2.bf16.msra.mxu0 0
        %1508 = vmatprep.subr.bf16.mxu0 0
        %1509 = vmatpush2.bf16.msra.mxu0 0
        %1510 = vmatprep.subr.bf16.mxu0 0
        %1511 = vmatpush2.bf16.msra.mxu0 0
        %1512 = vmatprep.subr.bf16.mxu0 0
        %1513 = vmatpush2.bf16.msra.mxu0 0
        %1514 = vmatprep.mubr.bf16.mxu0 0
        %1515 = vmatmul.mubr.bf16.gmra.mxu0 %v964
        %v1516 = vpop.f32.mrf.mxu0
        %v1517 = vadd.f32 %v636, %v1516
        %v1518 = vpop.f32.mrf.mxu0
        %v1519 = vadd.f32 %v640, %v1518
        %v1520 = vpop.f32.mrf.mxu0
        %v1521 = vadd.f32 %v636, %v1520
        %v1522 = vpop.f32.mrf.mxu0
        %v1523 = vadd.f32 %v640, %v1522
        %1524 = vdwg.mxu0
        %1525 = vmatprep.subr.bf16.mxu0 0
        %1526 = vmatpush1.bf16.msra.mxu0 0
        %1527 = vmatprep.subr.bf16.mxu0 0
        %1528 = vmatpush1.bf16.msra.mxu0 0
        %1529 = vmatprep.subr.bf16.mxu0 0
        %1530 = vmatpush1.bf16.msra.mxu0 0
        %1531 = vmatprep.subr.bf16.mxu0 0
        %1532 = vmatpush1.bf16.msra.mxu0 0
        %1533 = vmatprep.subr.bf16.mxu0 0
        %1534 = vmatpush1.bf16.msra.mxu0 0
        %1535 = vmatprep.subr.bf16.mxu0 0
        %1536 = vmatpush1.bf16.msra.mxu0 0
        %1537 = vmatprep.subr.bf16.mxu0 %v905
        %1538 = vmatpush1.bf16.msra.mxu0 %v904
        %1539 = vmatprep.subr.bf16.mxu0 %v877
        %1540 = vmatpush1.bf16.msra.mxu0 %v876
        %1541 = vmatprep.subr.bf16.mxu0 0
        %1542 = vmatpush2.bf16.msra.mxu0 0
        %1543 = vmatprep.subr.bf16.mxu0 0
        %1544 = vmatpush2.bf16.msra.mxu0 0
        %1545 = vmatprep.subr.bf16.mxu0 0
        %1546 = vmatpush2.bf16.msra.mxu0 0
        %1547 = vmatprep.subr.bf16.mxu0 0
        %1548 = vmatpush2.bf16.msra.mxu0 0
        %1549 = vmatprep.subr.bf16.mxu0 0
        %1550 = vmatpush2.bf16.msra.mxu0 0
        %1551 = vmatprep.subr.bf16.mxu0 0
        %1552 = vmatpush2.bf16.msra.mxu0 0
        %1553 = vmatprep.subr.bf16.mxu0 0
        %1554 = vmatpush2.bf16.msra.mxu0 0
        %1555 = vmatprep.subr.bf16.mxu0 0
        %1556 = vmatpush2.bf16.msra.mxu0 0
        %1557 = vmatprep.mubr.bf16.mxu0 0
        %1558 = vmatmul.mubr.bf16.gmra.mxu0 %v964
        %v1559 = vpop.f32.mrf.mxu0
        %v1560 = vadd.f32 %v644, %v1559
        %v1561 = vpop.f32.mrf.mxu0
        %v1562 = vadd.f32 %v648, %v1561
        %v1563 = vpop.f32.mrf.mxu0
        %v1564 = vadd.f32 %v644, %v1563
        %v1565 = vpop.f32.mrf.mxu0
        %v1566 = vadd.f32 %v648, %v1565
        %1567 = vdwg.mxu0
        %v1568 = vmax.f32 %v1001, %v1044
        %v1569 = vmax.f32 %v1003, %v1046
        %v1570 = vmax.f32 %v1568, %v1087
        %v1571 = vmax.f32 %v1569, %v1089
        %v1572 = vmax.f32 %v1570, %v1130
        %v1573 = vmax.f32 %v1571, %v1132
        %v1574 = vmax.f32 %v1572, %v1173
        %v1575 = vmax.f32 %v1573, %v1175
        %v1576 = vmax.f32 %v1574, %v1216
        %v1577 = vmax.f32 %v1575, %v1218
        %v1578 = vmax.f32 %v1576, %v1259
        %v1579 = vmax.f32 %v1577, %v1261
        %v1580 = vmax.f32 %v1578, %v1302
        %v1581 = vmax.f32 %v1579, %v1304
        %v1582 = vmax.f32 %v1580, %v1345
        %v1583 = vmax.f32 %v1581, %v1347
        %v1584 = vmax.f32 %v1582, %v1388
        %v1585 = vmax.f32 %v1583, %v1390
        %v1586 = vmax.f32 %v1584, %v1431
        %v1587 = vmax.f32 %v1585, %v1433
        %v1588 = vmax.f32 %v1586, %v1474
        %v1589 = vmax.f32 %v1587, %v1476
        %v1590 = vmax.f32 %v1588, %v1517
        %v1591 = vmax.f32 %v1589, %v1519
        %v1592 = vmax.f32 %v1590, %v1560
        %v1593 = vmax.f32 %v1591, %v1562
        %v1594 = vmax.f32 %v1592, %v1593
        %1595 = vmax.xlane.f32.xlu0 %v1594
        %v1596 = vpop.xlane.xlu0 %1595
        %vm1597 = vcmask 1043456
        %v1598 = vsel %vm1597, %v1005, -inf
        %v1599 = vsel %vm1597, %v1007, -inf
        %v1600 = vsel %vm1597, %v1048, -inf
        %v1601 = vmax.f32 %v1598, %v1600
        %v1602 = vsel %vm1597, %v1050, -inf
        %v1603 = vmax.f32 %v1599, %v1602
        %v1604 = vsel %vm1597, %v1091, -inf
        %v1605 = vmax.f32 %v1601, %v1604
        %v1606 = vsel %vm1597, %v1093, -inf
        %v1607 = vmax.f32 %v1603, %v1606
        %v1608 = vsel %vm1597, %v1134, -inf
        %v1609 = vmax.f32 %v1605, %v1608
        %v1610 = vsel %vm1597, %v1136, -inf
        %v1611 = vmax.f32 %v1607, %v1610
        %v1612 = vsel %vm1597, %v1177, -inf
        %v1613 = vmax.f32 %v1609, %v1612
        %v1614 = vsel %vm1597, %v1179, -inf
        %v1615 = vmax.f32 %v1611, %v1614
        %v1616 = vsel %vm1597, %v1220, -inf
        %v1617 = vmax.f32 %v1613, %v1616
        %v1618 = vsel %vm1597, %v1222, -inf
        %v1619 = vmax.f32 %v1615, %v1618
        %v1620 = vsel %vm1597, %v1263, -inf
        %v1621 = vmax.f32 %v1617, %v1620
        %v1622 = vsel %vm1597, %v1265, -inf
        %v1623 = vmax.f32 %v1619, %v1622
        %v1624 = vsel %vm1597, %v1306, -inf
        %v1625 = vmax.f32 %v1621, %v1624
        %v1626 = vsel %vm1597, %v1308, -inf
        %v1627 = vmax.f32 %v1623, %v1626
        %v1628 = vsel %vm1597, %v1349, -inf
        %v1629 = vmax.f32 %v1625, %v1628
        %v1630 = vsel %vm1597, %v1351, -inf
        %v1631 = vmax.f32 %v1627, %v1630
        %v1632 = vsel %vm1597, %v1392, -inf
        %v1633 = vmax.f32 %v1629, %v1632
        %v1634 = vsel %vm1597, %v1394, -inf
        %v1635 = vmax.f32 %v1631, %v1634
        %v1636 = vsel %vm1597, %v1435, -inf
        %v1637 = vmax.f32 %v1633, %v1636
        %v1638 = vsel %vm1597, %v1437, -inf
        %v1639 = vmax.f32 %v1635, %v1638
        %v1640 = vsel %vm1597, %v1478, -inf
        %v1641 = vmax.f32 %v1637, %v1640
        %v1642 = vsel %vm1597, %v1480, -inf
        %v1643 = vmax.f32 %v1639, %v1642
        %v1644 = vsel %vm1597, %v1521, -inf
        %v1645 = vmax.f32 %v1641, %v1644
        %v1646 = vsel %vm1597, %v1523, -inf
        %v1647 = vmax.f32 %v1643, %v1646
        %v1648 = vsel %vm1597, %v1564, -inf
        %v1649 = vmax.f32 %v1645, %v1648
        %v1650 = vsel %vm1597, %v1566, -inf
        %v1651 = vmax.f32 %v1647, %v1650
        %v1652 = vmax.f32 %v1649, %v1651
        %1653 = vmax.xlane.f32.xlu0 %v1652
        %v1654 = vpop.xlane.xlu0 %1653
        %v1655 = vld [vmem:[#allocation4] sm:$0xff]
        %v1656 = vld [vmem:[#allocation4 + $0x8] sm:$0xf]
        %v1657 = vmax.f32 %v1655, %v1596
        %v1658 = vmax.f32 %v1656, %v1654
        %v1659 = vld [vmem:[#allocation5] sm:$0xff]
        %v1660 = vld [vmem:[#allocation5 + $0x8] sm:$0xf]
        %v1661 = vsub.f32 %v1655, %v1657
        %v1662 = vsub.f32 %v1656, %v1658
        %v1663 = vmul.f32 %v1661, 1.442695
        %v1664 = vpow.pop %v1663
        %v1665 = vmul.f32 %v1662, 1.442695
        %v1666 = vpow.pop %v1665
        %v1667 = vmul.f32 %v1659, %v1664
        %v1668 = vmul.f32 %v1660, %v1666
        %1670 = vset.pattern.permute.xlu0 0
        %1671 = vperm.xlu0 %1670, %v1657
        %v1672 = vpop.permute.xlu0 %1671
        %1675 = vset.pattern.permute.xlu0 0
        %1676 = vperm.xlu0 %1675, %v1658
        %v1677 = vpop.permute.xlu0 %1676
        %v1679 = vsub.f32 %v1001, %v1672
        %v1680 = vsub.f32 %v1003, %v1672
        %v1681 = vsub.f32 %v1044, %v1672
        %v1682 = vsub.f32 %v1046, %v1672
        %v1683 = vsub.f32 %v1087, %v1672
        %v1684 = vsub.f32 %v1089, %v1672
        %v1685 = vsub.f32 %v1130, %v1672
        %v1686 = vsub.f32 %v1132, %v1672
        %v1687 = vsub.f32 %v1173, %v1672
        %v1688 = vsub.f32 %v1175, %v1672
        %v1689 = vsub.f32 %v1216, %v1672
        %v1690 = vsub.f32 %v1218, %v1672
        %v1691 = vsub.f32 %v1259, %v1672
        %v1692 = vsub.f32 %v1261, %v1672
        %v1693 = vsub.f32 %v1302, %v1672
        %v1694 = vsub.f32 %v1304, %v1672
        %v1695 = vsub.f32 %v1345, %v1672
        %v1696 = vsub.f32 %v1347, %v1672
        %v1697 = vsub.f32 %v1388, %v1672
        %v1698 = vsub.f32 %v1390, %v1672
        %v1699 = vsub.f32 %v1431, %v1672
        %v1700 = vsub.f32 %v1433, %v1672
        %v1701 = vsub.f32 %v1474, %v1672
        %v1702 = vsub.f32 %v1476, %v1672
        %v1703 = vsub.f32 %v1517, %v1672
        %v1704 = vsub.f32 %v1519, %v1672
        %v1705 = vsub.f32 %v1560, %v1672
        %v1706 = vsub.f32 %v1562, %v1672
        %v1707 = vsub.f32 %v1005, %v1677
        %v1708 = vsub.f32 %v1007, %v1677
        %v1709 = vsub.f32 %v1048, %v1677
        %v1710 = vsub.f32 %v1050, %v1677
        %v1711 = vsub.f32 %v1091, %v1677
        %v1712 = vsub.f32 %v1093, %v1677
        %v1713 = vsub.f32 %v1134, %v1677
        %v1714 = vsub.f32 %v1136, %v1677
        %v1715 = vsub.f32 %v1177, %v1677
        %v1716 = vsub.f32 %v1179, %v1677
        %v1717 = vsub.f32 %v1220, %v1677
        %v1718 = vsub.f32 %v1222, %v1677
        %v1719 = vsub.f32 %v1263, %v1677
        %v1720 = vsub.f32 %v1265, %v1677
        %v1721 = vsub.f32 %v1306, %v1677
        %v1722 = vsub.f32 %v1308, %v1677
        %v1723 = vsub.f32 %v1349, %v1677
        %v1724 = vsub.f32 %v1351, %v1677
        %v1725 = vsub.f32 %v1392, %v1677
        %v1726 = vsub.f32 %v1394, %v1677
        %v1727 = vsub.f32 %v1435, %v1677
        %v1728 = vsub.f32 %v1437, %v1677
        %v1729 = vsub.f32 %v1478, %v1677
        %v1730 = vsub.f32 %v1480, %v1677
        %v1731 = vsub.f32 %v1521, %v1677
        %v1732 = vsub.f32 %v1523, %v1677
        %v1733 = vsub.f32 %v1564, %v1677
        %v1734 = vsub.f32 %v1566, %v1677
        %v1735 = vmul.f32 %v1679, 1.442695
        %v1736 = vpow.pop %v1735
        %v1737 = vmul.f32 %v1680, 1.442695
        %v1738 = vpow.pop %v1737
        %v1739 = vmul.f32 %v1681, 1.442695
        %v1740 = vpow.pop %v1739
        %v1741 = vmul.f32 %v1682, 1.442695
        %v1742 = vpow.pop %v1741
        %v1743 = vmul.f32 %v1683, 1.442695
        %v1744 = vpow.pop %v1743
        %v1745 = vmul.f32 %v1684, 1.442695
        %v1746 = vpow.pop %v1745
        %v1747 = vmul.f32 %v1685, 1.442695
        %v1748 = vpow.pop %v1747
        %v1749 = vmul.f32 %v1686, 1.442695
        %v1750 = vpow.pop %v1749
        %v1751 = vmul.f32 %v1687, 1.442695
        %v1752 = vpow.pop %v1751
        %v1753 = vmul.f32 %v1688, 1.442695
        %v1754 = vpow.pop %v1753
        %v1755 = vmul.f32 %v1689, 1.442695
        %v1756 = vpow.pop %v1755
        %v1757 = vmul.f32 %v1690, 1.442695
        %v1758 = vpow.pop %v1757
        %v1759 = vmul.f32 %v1691, 1.442695
        %v1760 = vpow.pop %v1759
        %v1761 = vmul.f32 %v1692, 1.442695
        %v1762 = vpow.pop %v1761
        %v1763 = vmul.f32 %v1693, 1.442695
        %v1764 = vpow.pop %v1763
        %v1765 = vmul.f32 %v1694, 1.442695
        %v1766 = vpow.pop %v1765
        %v1767 = vmul.f32 %v1695, 1.442695
        %v1768 = vpow.pop %v1767
        %v1769 = vmul.f32 %v1696, 1.442695
        %v1770 = vpow.pop %v1769
        %v1771 = vmul.f32 %v1697, 1.442695
        %v1772 = vpow.pop %v1771
        %v1773 = vmul.f32 %v1698, 1.442695
        %v1774 = vpow.pop %v1773
        %v1775 = vmul.f32 %v1699, 1.442695
        %v1776 = vpow.pop %v1775
        %v1777 = vmul.f32 %v1700, 1.442695
        %v1778 = vpow.pop %v1777
        %v1779 = vmul.f32 %v1701, 1.442695
        %v1780 = vpow.pop %v1779
        %v1781 = vmul.f32 %v1702, 1.442695
        %v1782 = vpow.pop %v1781
        %v1783 = vmul.f32 %v1703, 1.442695
        %v1784 = vpow.pop %v1783
        %v1785 = vmul.f32 %v1704, 1.442695
        %v1786 = vpow.pop %v1785
        %v1787 = vmul.f32 %v1705, 1.442695
        %v1788 = vpow.pop %v1787
        %v1789 = vmul.f32 %v1706, 1.442695
        %v1790 = vpow.pop %v1789
        %v1791 = vmul.f32 %v1707, 1.442695
        %v1792 = vpow.pop %v1791
        %v1793 = vmul.f32 %v1708, 1.442695
        %v1794 = vpow.pop %v1793
        %v1795 = vmul.f32 %v1709, 1.442695
        %v1796 = vpow.pop %v1795
        %v1797 = vmul.f32 %v1710, 1.442695
        %v1798 = vpow.pop %v1797
        %v1799 = vmul.f32 %v1711, 1.442695
        %v1800 = vpow.pop %v1799
        %v1801 = vmul.f32 %v1712, 1.442695
        %v1802 = vpow.pop %v1801
        %v1803 = vmul.f32 %v1713, 1.442695
        %v1804 = vpow.pop %v1803
        %v1805 = vmul.f32 %v1714, 1.442695
        %v1806 = vpow.pop %v1805
        %v1807 = vmul.f32 %v1715, 1.442695
        %v1808 = vpow.pop %v1807
        %v1809 = vmul.f32 %v1716, 1.442695
        %v1810 = vpow.pop %v1809
        %v1811 = vmul.f32 %v1717, 1.442695
        %v1812 = vpow.pop %v1811
        %v1813 = vmul.f32 %v1718, 1.442695
        %v1814 = vpow.pop %v1813
        %v1815 = vmul.f32 %v1719, 1.442695
        %v1816 = vpow.pop %v1815
        %v1817 = vmul.f32 %v1720, 1.442695
        %v1818 = vpow.pop %v1817
        %v1819 = vmul.f32 %v1721, 1.442695
        %v1820 = vpow.pop %v1819
        %v1821 = vmul.f32 %v1722, 1.442695
        %v1822 = vpow.pop %v1821
        %v1823 = vmul.f32 %v1723, 1.442695
        %v1824 = vpow.pop %v1823
        %v1825 = vmul.f32 %v1724, 1.442695
        %v1826 = vpow.pop %v1825
        %v1827 = vmul.f32 %v1725, 1.442695
        %v1828 = vpow.pop %v1827
        %v1829 = vmul.f32 %v1726, 1.442695
        %v1830 = vpow.pop %v1829
        %v1831 = vmul.f32 %v1727, 1.442695
        %v1832 = vpow.pop %v1831
        %v1833 = vmul.f32 %v1728, 1.442695
        %v1834 = vpow.pop %v1833
        %v1835 = vmul.f32 %v1729, 1.442695
        %v1836 = vpow.pop %v1835
        %v1837 = vmul.f32 %v1730, 1.442695
        %v1838 = vpow.pop %v1837
        %v1839 = vmul.f32 %v1731, 1.442695
        %v1840 = vpow.pop %v1839
        %v1841 = vmul.f32 %v1732, 1.442695
        %v1842 = vpow.pop %v1841
        %v1843 = vmul.f32 %v1733, 1.442695
        %v1844 = vpow.pop %v1843
        %v1845 = vmul.f32 %v1734, 1.442695
        %v1846 = vpow.pop %v1845
        %v1847 = vadd.f32 %v1736, %v1738
        %v1848 = vadd.f32 %v1847, %v1740
        %v1849 = vadd.f32 %v1848, %v1742
        %v1850 = vadd.f32 %v1849, %v1744
        %v1851 = vadd.f32 %v1850, %v1746
        %v1852 = vadd.f32 %v1851, %v1748
        %v1853 = vadd.f32 %v1852, %v1750
        %v1854 = vadd.f32 %v1853, %v1752
        %v1855 = vadd.f32 %v1854, %v1754
        %v1856 = vadd.f32 %v1855, %v1756
        %v1857 = vadd.f32 %v1856, %v1758
        %v1858 = vadd.f32 %v1857, %v1760
        %v1859 = vadd.f32 %v1858, %v1762
        %v1860 = vadd.f32 %v1859, %v1764
        %v1861 = vadd.f32 %v1860, %v1766
        %v1862 = vadd.f32 %v1861, %v1768
        %v1863 = vadd.f32 %v1862, %v1770
        %v1864 = vadd.f32 %v1863, %v1772
        %v1865 = vadd.f32 %v1864, %v1774
        %v1866 = vadd.f32 %v1865, %v1776
        %v1867 = vadd.f32 %v1866, %v1778
        %v1868 = vadd.f32 %v1867, %v1780
        %v1869 = vadd.f32 %v1868, %v1782
        %v1870 = vadd.f32 %v1869, %v1784
        %v1871 = vadd.f32 %v1870, %v1786
        %v1872 = vadd.f32 %v1871, %v1788
        %v1873 = vadd.f32 %v1872, %v1790
        %1874 = vadd.xlane.f32.xlu0 %v1873
        %v1875 = vpop.xlane.xlu0 %1874
        %v1876 = vsel %vm1597, %v1792, 0.0
        %v1877 = vsel %vm1597, %v1794, 0.0
        %v1878 = vadd.f32 %v1876, %v1877
        %v1879 = vsel %vm1597, %v1796, 0.0
        %v1880 = vadd.f32 %v1878, %v1879
        %v1881 = vsel %vm1597, %v1798, 0.0
        %v1882 = vadd.f32 %v1880, %v1881
        %v1883 = vsel %vm1597, %v1800, 0.0
        %v1884 = vadd.f32 %v1882, %v1883
        %v1885 = vsel %vm1597, %v1802, 0.0
        %v1886 = vadd.f32 %v1884, %v1885
        %v1887 = vsel %vm1597, %v1804, 0.0
        %v1888 = vadd.f32 %v1886, %v1887
        %v1889 = vsel %vm1597, %v1806, 0.0
        %v1890 = vadd.f32 %v1888, %v1889
        %v1891 = vsel %vm1597, %v1808, 0.0
        %v1892 = vadd.f32 %v1890, %v1891
        %v1893 = vsel %vm1597, %v1810, 0.0
        %v1894 = vadd.f32 %v1892, %v1893
        %v1895 = vsel %vm1597, %v1812, 0.0
        %v1896 = vadd.f32 %v1894, %v1895
        %v1897 = vsel %vm1597, %v1814, 0.0
        %v1898 = vadd.f32 %v1896, %v1897
        %v1899 = vsel %vm1597, %v1816, 0.0
        %v1900 = vadd.f32 %v1898, %v1899
        %v1901 = vsel %vm1597, %v1818, 0.0
        %v1902 = vadd.f32 %v1900, %v1901
        %v1903 = vsel %vm1597, %v1820, 0.0
        %v1904 = vadd.f32 %v1902, %v1903
        %v1905 = vsel %vm1597, %v1822, 0.0
        %v1906 = vadd.f32 %v1904, %v1905
        %v1907 = vsel %vm1597, %v1824, 0.0
        %v1908 = vadd.f32 %v1906, %v1907
        %v1909 = vsel %vm1597, %v1826, 0.0
        %v1910 = vadd.f32 %v1908, %v1909
        %v1911 = vsel %vm1597, %v1828, 0.0
        %v1912 = vadd.f32 %v1910, %v1911
        %v1913 = vsel %vm1597, %v1830, 0.0
        %v1914 = vadd.f32 %v1912, %v1913
        %v1915 = vsel %vm1597, %v1832, 0.0
        %v1916 = vadd.f32 %v1914, %v1915
        %v1917 = vsel %vm1597, %v1834, 0.0
        %v1918 = vadd.f32 %v1916, %v1917
        %v1919 = vsel %vm1597, %v1836, 0.0
        %v1920 = vadd.f32 %v1918, %v1919
        %v1921 = vsel %vm1597, %v1838, 0.0
        %v1922 = vadd.f32 %v1920, %v1921
        %v1923 = vsel %vm1597, %v1840, 0.0
        %v1924 = vadd.f32 %v1922, %v1923
        %v1925 = vsel %vm1597, %v1842, 0.0
        %v1926 = vadd.f32 %v1924, %v1925
        %v1927 = vsel %vm1597, %v1844, 0.0
        %v1928 = vadd.f32 %v1926, %v1927
        %v1929 = vsel %vm1597, %v1846, 0.0
        %v1930 = vadd.f32 %v1928, %v1929
        %1931 = vadd.xlane.f32.xlu0 %v1930
        %v1932 = vpop.xlane.xlu0 %1931
        %v1933 = vadd.f32 %v1667, %v1875
        %v1934 = vadd.f32 %v1668, %v1932
        %vm1935 = vcmask 7168
        %1936 = vst.msk [vmem:[#allocation5] sm:$0xff] %vm1935, %v1933
        %vm1937 = vcmask 3072
        %1938 = vst.msk [vmem:[#allocation5 + $0x8] sm:$0xf] %vm1937, %v1934
        %1939 = vst.msk [vmem:[#allocation4] sm:$0xff] %vm1935, %v1657
        %1940 = vst.msk [vmem:[#allocation4 + $0x8] sm:$0xf] %vm1937, %v1658
        %v1941 = vsel %vm1597, %v1001, -inf
        %v1942 = vsel %vm1597, %v1003, -inf
        %v1943 = vsel %vm1597, %v1044, -inf
        %v1944 = vsel %vm1597, %v1046, -inf
        %v1945 = vsel %vm1597, %v1087, -inf
        %v1946 = vmax.f32 %v1941, %v1945
        %v1947 = vsel %vm1597, %v1089, -inf
        %v1948 = vmax.f32 %v1942, %v1947
        %v1949 = vsel %vm1597, %v1130, -inf
        %v1950 = vmax.f32 %v1943, %v1949
        %v1951 = vsel %vm1597, %v1132, -inf
        %v1952 = vmax.f32 %v1944, %v1951
        %v1953 = vsel %vm1597, %v1173, -inf
        %v1954 = vmax.f32 %v1946, %v1953
        %v1955 = vsel %vm1597, %v1175, -inf
        %v1956 = vmax.f32 %v1948, %v1955
        %v1957 = vsel %vm1597, %v1216, -inf
        %v1958 = vmax.f32 %v1950, %v1957
        %v1959 = vsel %vm1597, %v1218, -inf
        %v1960 = vmax.f32 %v1952, %v1959
        %v1961 = vsel %vm1597, %v1259, -inf
        %v1962 = vmax.f32 %v1954, %v1961
        %v1963 = vsel %vm1597, %v1261, -inf
        %v1964 = vmax.f32 %v1956, %v1963
        %v1965 = vsel %vm1597, %v1302, -inf
        %v1966 = vmax.f32 %v1958, %v1965
        %v1967 = vsel %vm1597, %v1304, -inf
        %v1968 = vmax.f32 %v1960, %v1967
        %v1969 = vsel %vm1597, %v1345, -inf
        %v1970 = vmax.f32 %v1962, %v1969
        %v1971 = vsel %vm1597, %v1347, -inf
        %v1972 = vmax.f32 %v1964, %v1971
        %v1973 = vsel %vm1597, %v1388, -inf
        %v1974 = vmax.f32 %v1966, %v1973
        %v1975 = vsel %vm1597, %v1390, -inf
        %v1976 = vmax.f32 %v1968, %v1975
        %v1977 = vsel %vm1597, %v1431, -inf
        %v1978 = vmax.f32 %v1970, %v1977
        %v1979 = vsel %vm1597, %v1433, -inf
        %v1980 = vmax.f32 %v1972, %v1979
        %v1981 = vsel %vm1597, %v1474, -inf
        %v1982 = vmax.f32 %v1974, %v1981
        %v1983 = vsel %vm1597, %v1476, -inf
        %v1984 = vmax.f32 %v1976, %v1983
        %v1985 = vsel %vm1597, %v1517, -inf
        %v1986 = vmax.f32 %v1978, %v1985
        %v1987 = vsel %vm1597, %v1519, -inf
        %v1988 = vmax.f32 %v1980, %v1987
        %v1989 = vsel %vm1597, %v1560, -inf
        %v1990 = vmax.f32 %v1982, %v1989
        %v1991 = vsel %vm1597, %v1562, -inf
        %v1992 = vmax.f32 %v1984, %v1991
        %v1993 = vmax.f32 %v1986, %v1988
        %v1994 = vmax.f32 %v1990, %v1992
        %v1995 = vmax.f32 %v1993, %v1994
        %1996 = vmax.xlane.f32.xlu0 %v1995
        %v1997 = vpop.xlane.xlu0 %1996
        %v1998 = vlaneseq
        %v1999 = vand.u32 %v1998, 127
        %v2000 = vadd.s32 %v1999, 128
        %v2001 = vadd.s32 %v1999, 256
        %v2002 = vadd.s32 %v1999, 384
        %v2003 = vadd.s32 %v1999, 512
        %v2004 = vadd.s32 %v1999, 640
        %v2005 = vadd.s32 %v1999, 768
        %v2006 = vadd.s32 %v1999, 896
        %v2007 = vadd.s32 %v1999, 1024
        %v2008 = vadd.s32 %v1999, 1152
        %v2009 = vadd.s32 %v1999, 1280
        %v2010 = vadd.s32 %v1999, 1408
        %v2011 = vadd.s32 %v1999, 1536
        %v2012 = vadd.s32 %v1999, 1664
        %v2013 = vadd.s32 %v1999, 1792
        %v2014 = vadd.s32 %v1999, 1920
        %v2015 = vadd.s32 %v1999, 2048
        %v2016 = vadd.s32 %v1999, 2176
        %v2017 = vadd.s32 %v1999, 2304
        %v2018 = vadd.s32 %v1999, 2432
        %v2019 = vadd.s32 %v1999, 2560
        %v2020 = vadd.s32 %v1999, 2688
        %v2021 = vadd.s32 %v1999, 2816
        %v2022 = vadd.s32 %v1999, 2944
        %v2023 = vadd.s32 %v1999, 3072
        %v2024 = vadd.s32 %v1999, 3200
        %v2025 = vadd.s32 %v1999, 3328
        %v2026 = vadd.s32 %v1999, 3456
        %v2027 = vcvt.s32.f32 %v1999
        %v2028 = vcvt.s32.f32 %v2000
        %v2029 = vcvt.s32.f32 %v2001
        %v2030 = vcvt.s32.f32 %v2002
        %v2031 = vcvt.s32.f32 %v2003
        %v2032 = vcvt.s32.f32 %v2004
        %v2033 = vcvt.s32.f32 %v2005
        %v2034 = vcvt.s32.f32 %v2006
        %v2035 = vcvt.s32.f32 %v2007
        %v2036 = vcvt.s32.f32 %v2008
        %v2037 = vcvt.s32.f32 %v2009
        %v2038 = vcvt.s32.f32 %v2010
        %v2039 = vcvt.s32.f32 %v2011
        %v2040 = vcvt.s32.f32 %v2012
        %v2041 = vcvt.s32.f32 %v2013
        %v2042 = vcvt.s32.f32 %v2014
        %v2043 = vcvt.s32.f32 %v2015
        %v2044 = vcvt.s32.f32 %v2016
        %v2045 = vcvt.s32.f32 %v2017
        %v2046 = vcvt.s32.f32 %v2018
        %v2047 = vcvt.s32.f32 %v2019
        %v2048 = vcvt.s32.f32 %v2020
        %v2049 = vcvt.s32.f32 %v2021
        %v2050 = vcvt.s32.f32 %v2022
        %v2051 = vcvt.s32.f32 %v2023
        %v2052 = vcvt.s32.f32 %v2024
        %v2053 = vcvt.s32.f32 %v2025
        %v2054 = vcvt.s32.f32 %v2026
        %vm2055 = vcmp.eq.f32.partialorder %v1001, %v1997
        %vm2056 = vcmp.eq.f32.partialorder %v1003, %v1997
        %vm2057 = vcmp.eq.f32.partialorder %v1044, %v1997
        %vm2058 = vcmp.eq.f32.partialorder %v1046, %v1997
        %vm2059 = vcmp.eq.f32.partialorder %v1087, %v1997
        %vm2060 = vcmp.eq.f32.partialorder %v1089, %v1997
        %vm2061 = vcmp.eq.f32.partialorder %v1130, %v1997
        %vm2062 = vcmp.eq.f32.partialorder %v1132, %v1997
        %vm2063 = vcmp.eq.f32.partialorder %v1173, %v1997
        %vm2064 = vcmp.eq.f32.partialorder %v1175, %v1997
        %vm2065 = vcmp.eq.f32.partialorder %v1216, %v1997
        %vm2066 = vcmp.eq.f32.partialorder %v1218, %v1997
        %vm2067 = vcmp.eq.f32.partialorder %v1259, %v1997
        %vm2068 = vcmp.eq.f32.partialorder %v1261, %v1997
        %vm2069 = vcmp.eq.f32.partialorder %v1302, %v1997
        %vm2070 = vcmp.eq.f32.partialorder %v1304, %v1997
        %vm2071 = vcmp.eq.f32.partialorder %v1345, %v1997
        %vm2072 = vcmp.eq.f32.partialorder %v1347, %v1997
        %vm2073 = vcmp.eq.f32.partialorder %v1388, %v1997
        %vm2074 = vcmp.eq.f32.partialorder %v1390, %v1997
        %vm2075 = vcmp.eq.f32.partialorder %v1431, %v1997
        %vm2076 = vcmp.eq.f32.partialorder %v1433, %v1997
        %vm2077 = vcmp.eq.f32.partialorder %v1474, %v1997
        %vm2078 = vcmp.eq.f32.partialorder %v1476, %v1997
        %vm2079 = vcmp.eq.f32.partialorder %v1517, %v1997
        %vm2080 = vcmp.eq.f32.partialorder %v1519, %v1997
        %vm2081 = vcmp.eq.f32.partialorder %v1560, %v1997
        %vm2082 = vcmp.eq.f32.partialorder %v1562, %v1997
        %v2083 = vsel %vm2055, %v2027, 1e+09
        %v2084 = vsel %vm2056, %v2028, 1e+09
        %v2085 = vsel %vm2057, %v2029, 1e+09
        %v2086 = vsel %vm2058, %v2030, 1e+09
        %v2087 = vsel %vm2059, %v2031, 1e+09
        %v2088 = vsel %vm2060, %v2032, 1e+09
        %v2089 = vsel %vm2061, %v2033, 1e+09
        %v2090 = vsel %vm2062, %v2034, 1e+09
        %v2091 = vsel %vm2063, %v2035, 1e+09
        %v2092 = vsel %vm2064, %v2036, 1e+09
        %v2093 = vsel %vm2065, %v2037, 1e+09
        %v2094 = vsel %vm2066, %v2038, 1e+09
        %v2095 = vsel %vm2067, %v2039, 1e+09
        %v2096 = vsel %vm2068, %v2040, 1e+09
        %v2097 = vsel %vm2069, %v2041, 1e+09
        %v2098 = vsel %vm2070, %v2042, 1e+09
        %v2099 = vsel %vm2071, %v2043, 1e+09
        %v2100 = vsel %vm2072, %v2044, 1e+09
        %v2101 = vsel %vm2073, %v2045, 1e+09
        %v2102 = vsel %vm2074, %v2046, 1e+09
        %v2103 = vsel %vm2075, %v2047, 1e+09
        %v2104 = vsel %vm2076, %v2048, 1e+09
        %v2105 = vsel %vm2077, %v2049, 1e+09
        %v2106 = vsel %vm2078, %v2050, 1e+09
        %v2107 = vsel %vm2079, %v2051, 1e+09
        %v2108 = vsel %vm2080, %v2052, 1e+09
        %v2109 = vsel %vm2081, %v2053, 1e+09
        %v2110 = vsel %vm2082, %v2054, 1e+09
        %v2111 = vsel %vm1597, %v2083, inf
        %v2112 = vsel %vm1597, %v2084, inf
        %v2113 = vsel %vm1597, %v2085, inf
        %v2114 = vsel %vm1597, %v2086, inf
        %v2115 = vsel %vm1597, %v2087, inf
        %v2116 = vmin.f32 %v2111, %v2115
        %v2117 = vsel %vm1597, %v2088, inf
        %v2118 = vmin.f32 %v2112, %v2117
        %v2119 = vsel %vm1597, %v2089, inf
        %v2120 = vmin.f32 %v2113, %v2119
        %v2121 = vsel %vm1597, %v2090, inf
        %v2122 = vmin.f32 %v2114, %v2121
        %v2123 = vsel %vm1597, %v2091, inf
        %v2124 = vmin.f32 %v2116, %v2123
        %v2125 = vsel %vm1597, %v2092, inf
        %v2126 = vmin.f32 %v2118, %v2125
        %v2127 = vsel %vm1597, %v2093, inf
        %v2128 = vmin.f32 %v2120, %v2127
        %v2129 = vsel %vm1597, %v2094, inf
        %v2130 = vmin.f32 %v2122, %v2129
        %v2131 = vsel %vm1597, %v2095, inf
        %v2132 = vmin.f32 %v2124, %v2131
        %v2133 = vsel %vm1597, %v2096, inf
        %v2134 = vmin.f32 %v2126, %v2133
        %v2135 = vsel %vm1597, %v2097, inf
        %v2136 = vmin.f32 %v2128, %v2135
        %v2137 = vsel %vm1597, %v2098, inf
        %v2138 = vmin.f32 %v2130, %v2137
        %v2139 = vsel %vm1597, %v2099, inf
        %v2140 = vmin.f32 %v2132, %v2139
        %v2141 = vsel %vm1597, %v2100, inf
        %v2142 = vmin.f32 %v2134, %v2141
        %v2143 = vsel %vm1597, %v2101, inf
        %v2144 = vmin.f32 %v2136, %v2143
        %v2145 = vsel %vm1597, %v2102, inf
        %v2146 = vmin.f32 %v2138, %v2145
        %v2147 = vsel %vm1597, %v2103, inf
        %v2148 = vmin.f32 %v2140, %v2147
        %v2149 = vsel %vm1597, %v2104, inf
        %v2150 = vmin.f32 %v2142, %v2149
        %v2151 = vsel %vm1597, %v2105, inf
        %v2152 = vmin.f32 %v2144, %v2151
        %v2153 = vsel %vm1597, %v2106, inf
        %v2154 = vmin.f32 %v2146, %v2153
        %v2155 = vsel %vm1597, %v2107, inf
        %v2156 = vmin.f32 %v2148, %v2155
        %v2157 = vsel %vm1597, %v2108, inf
        %v2158 = vmin.f32 %v2150, %v2157
        %v2159 = vsel %vm1597, %v2109, inf
        %v2160 = vmin.f32 %v2152, %v2159
        %v2161 = vsel %vm1597, %v2110, inf
        %v2162 = vmin.f32 %v2154, %v2161
        %v2163 = vmin.f32 %v2156, %v2158
        %v2164 = vmin.f32 %v2160, %v2162
        %v2165 = vmin.f32 %v2163, %v2164
        %2166 = vmin.xlane.f32.xlu0 %v2165
        %v2167 = vpop.xlane.xlu0 %2166
        %v2168 = vld [vmem:[#allocation6] sm:$0xf]
        %vm2169 = vcmp.gt.f32.partialorder %v1997, %v2168
        %v2170 = vstv %s530
        %v2171 = vadd.f32 %v2167, %v2170
        %v2172 = vld [vmem:[#allocation7] sm:$0xf]
        %v2173 = vsel %vm2169, %v2171, %v2172
        %2174 = vst.msk [vmem:[#allocation7] sm:$0xf] %vm1937, %v2173
        %v2175 = vld [vmem:[#allocation6] sm:$0xf]
        %v2176 = vsel %vm2169, %v1997, %v2175
        %2177 = vst.msk [vmem:[#allocation6] sm:$0xf] %vm1937, %v2176
        %v2178 = vstv %s529
        %v2179 = vadd.s32 %v1999, %v2178
        %v2180 = vadd.s32 %v2000, %v2178
        %v2181 = vadd.s32 %v2001, %v2178
        %v2182 = vadd.s32 %v2002, %v2178
        %v2183 = vadd.s32 %v2003, %v2178
        %v2184 = vadd.s32 %v2004, %v2178
        %v2185 = vadd.s32 %v2005, %v2178
        %v2186 = vadd.s32 %v2006, %v2178
        %v2187 = vadd.s32 %v2007, %v2178
        %v2188 = vadd.s32 %v2008, %v2178
        %v2189 = vadd.s32 %v2009, %v2178
        %v2190 = vadd.s32 %v2010, %v2178
        %v2191 = vadd.s32 %v2011, %v2178
        %v2192 = vadd.s32 %v2012, %v2178
        %v2193 = vadd.s32 %v2013, %v2178
        %v2194 = vadd.s32 %v2014, %v2178
        %v2195 = vadd.s32 %v2015, %v2178
        %v2196 = vadd.s32 %v2016, %v2178
        %v2197 = vadd.s32 %v2017, %v2178
        %v2198 = vadd.s32 %v2018, %v2178
        %v2199 = vadd.s32 %v2019, %v2178
        %v2200 = vadd.s32 %v2020, %v2178
        %v2201 = vadd.s32 %v2021, %v2178
        %v2202 = vadd.s32 %v2022, %v2178
        %v2203 = vadd.s32 %v2023, %v2178
        %v2204 = vadd.s32 %v2024, %v2178
        %v2205 = vadd.s32 %v2025, %v2178
        %v2206 = vadd.s32 %v2026, %v2178
        %v2207 = vld [vmem:[%s5] sm:$0xff]
        %v2208 = vld [vmem:[%s5 + $0x8] sm:$0xff]
        %2209 = vset.pattern.permute.xlu0 0
        %2210 = vperm.xlu0 %2209, %v2207
        %v2211 = vpop.permute.xlu0 %2210
        %2212 = vset.pattern.permute.xlu0 0
        %2213 = vperm.xlu0 %2212, %v2208
        %v2214 = vpop.permute.xlu0 %2213
        %vm2215 = vcmp.eq.s32.totalorder %v2179, %v2211
        %vm2216 = vcmp.eq.s32.totalorder %v2180, %v2211
        %vm2217 = vcmp.eq.s32.totalorder %v2181, %v2211
        %vm2218 = vcmp.eq.s32.totalorder %v2182, %v2211
        %vm2219 = vcmp.eq.s32.totalorder %v2183, %v2211
        %vm2220 = vcmp.eq.s32.totalorder %v2184, %v2211
        %vm2221 = vcmp.eq.s32.totalorder %v2185, %v2211
        %vm2222 = vcmp.eq.s32.totalorder %v2186, %v2211
        %vm2223 = vcmp.eq.s32.totalorder %v2187, %v2211
        %vm2224 = vcmp.eq.s32.totalorder %v2188, %v2211
        %vm2225 = vcmp.eq.s32.totalorder %v2189, %v2211
        %vm2226 = vcmp.eq.s32.totalorder %v2190, %v2211
        %vm2227 = vcmp.eq.s32.totalorder %v2191, %v2211
        %vm2228 = vcmp.eq.s32.totalorder %v2192, %v2211
        %vm2229 = vcmp.eq.s32.totalorder %v2193, %v2211
        %vm2230 = vcmp.eq.s32.totalorder %v2194, %v2211
        %vm2231 = vcmp.eq.s32.totalorder %v2195, %v2211
        %vm2232 = vcmp.eq.s32.totalorder %v2196, %v2211
        %vm2233 = vcmp.eq.s32.totalorder %v2197, %v2211
        %vm2234 = vcmp.eq.s32.totalorder %v2198, %v2211
        %vm2235 = vcmp.eq.s32.totalorder %v2199, %v2211
        %vm2236 = vcmp.eq.s32.totalorder %v2200, %v2211
        %vm2237 = vcmp.eq.s32.totalorder %v2201, %v2211
        %vm2238 = vcmp.eq.s32.totalorder %v2202, %v2211
        %vm2239 = vcmp.eq.s32.totalorder %v2203, %v2211
        %vm2240 = vcmp.eq.s32.totalorder %v2204, %v2211
        %vm2241 = vcmp.eq.s32.totalorder %v2205, %v2211
        %vm2242 = vcmp.eq.s32.totalorder %v2206, %v2211
        %vm2243 = vcmp.eq.s32.totalorder %v2179, %v2214
        %vm2244 = vcmp.eq.s32.totalorder %v2180, %v2214
        %vm2245 = vcmp.eq.s32.totalorder %v2181, %v2214
        %vm2246 = vcmp.eq.s32.totalorder %v2182, %v2214
        %vm2247 = vcmp.eq.s32.totalorder %v2183, %v2214
        %vm2248 = vcmp.eq.s32.totalorder %v2184, %v2214
        %vm2249 = vcmp.eq.s32.totalorder %v2185, %v2214
        %vm2250 = vcmp.eq.s32.totalorder %v2186, %v2214
        %vm2251 = vcmp.eq.s32.totalorder %v2187, %v2214
        %vm2252 = vcmp.eq.s32.totalorder %v2188, %v2214
        %vm2253 = vcmp.eq.s32.totalorder %v2189, %v2214
        %vm2254 = vcmp.eq.s32.totalorder %v2190, %v2214
        %vm2255 = vcmp.eq.s32.totalorder %v2191, %v2214
        %vm2256 = vcmp.eq.s32.totalorder %v2192, %v2214
        %vm2257 = vcmp.eq.s32.totalorder %v2193, %v2214
        %vm2258 = vcmp.eq.s32.totalorder %v2194, %v2214
        %vm2259 = vcmp.eq.s32.totalorder %v2195, %v2214
        %vm2260 = vcmp.eq.s32.totalorder %v2196, %v2214
        %vm2261 = vcmp.eq.s32.totalorder %v2197, %v2214
        %vm2262 = vcmp.eq.s32.totalorder %v2198, %v2214
        %vm2263 = vcmp.eq.s32.totalorder %v2199, %v2214
        %vm2264 = vcmp.eq.s32.totalorder %v2200, %v2214
        %vm2265 = vcmp.eq.s32.totalorder %v2201, %v2214
        %vm2266 = vcmp.eq.s32.totalorder %v2202, %v2214
        %vm2267 = vcmp.eq.s32.totalorder %v2203, %v2214
        %vm2268 = vcmp.eq.s32.totalorder %v2204, %v2214
        %vm2269 = vcmp.eq.s32.totalorder %v2205, %v2214
        %vm2270 = vcmp.eq.s32.totalorder %v2206, %v2214
        %v2271 = vsel %vm2215, 1, 0
        %v2272 = vsel %vm2216, 1, 0
        %v2273 = vsel %vm2217, 1, 0
        %v2274 = vsel %vm2218, 1, 0
        %v2275 = vsel %vm2219, 1, 0
        %v2276 = vsel %vm2220, 1, 0
        %v2277 = vsel %vm2221, 1, 0
        %v2278 = vsel %vm2222, 1, 0
        %v2279 = vsel %vm2223, 1, 0
        %v2280 = vsel %vm2224, 1, 0
        %v2281 = vsel %vm2225, 1, 0
        %v2282 = vsel %vm2226, 1, 0
        %v2283 = vsel %vm2227, 1, 0
        %v2284 = vsel %vm2228, 1, 0
        %v2285 = vsel %vm2229, 1, 0
        %v2286 = vsel %vm2230, 1, 0
        %v2287 = vsel %vm2231, 1, 0
        %v2288 = vsel %vm2232, 1, 0
        %v2289 = vsel %vm2233, 1, 0
        %v2290 = vsel %vm2234, 1, 0
        %v2291 = vsel %vm2235, 1, 0
        %v2292 = vsel %vm2236, 1, 0
        %v2293 = vsel %vm2237, 1, 0
        %v2294 = vsel %vm2238, 1, 0
        %v2295 = vsel %vm2239, 1, 0
        %v2296 = vsel %vm2240, 1, 0
        %v2297 = vsel %vm2241, 1, 0
        %v2298 = vsel %vm2242, 1, 0
        %v2299 = vsel %vm2243, 1, 0
        %v2300 = vsel %vm2244, 1, 0
        %v2301 = vsel %vm2245, 1, 0
        %v2302 = vsel %vm2246, 1, 0
        %v2303 = vsel %vm2247, 1, 0
        %v2304 = vsel %vm2248, 1, 0
        %v2305 = vsel %vm2249, 1, 0
        %v2306 = vsel %vm2250, 1, 0
        %v2307 = vsel %vm2251, 1, 0
        %v2308 = vsel %vm2252, 1, 0
        %v2309 = vsel %vm2253, 1, 0
        %v2310 = vsel %vm2254, 1, 0
        %v2311 = vsel %vm2255, 1, 0
        %v2312 = vsel %vm2256, 1, 0
        %v2313 = vsel %vm2257, 1, 0
        %v2314 = vsel %vm2258, 1, 0
        %v2315 = vsel %vm2259, 1, 0
        %v2316 = vsel %vm2260, 1, 0
        %v2317 = vsel %vm2261, 1, 0
        %v2318 = vsel %vm2262, 1, 0
        %v2319 = vsel %vm2263, 1, 0
        %v2320 = vsel %vm2264, 1, 0
        %v2321 = vsel %vm2265, 1, 0
        %v2322 = vsel %vm2266, 1, 0
        %v2323 = vsel %vm2267, 1, 0
        %v2324 = vsel %vm2268, 1, 0
        %v2325 = vsel %vm2269, 1, 0
        %v2326 = vsel %vm2270, 1, 0
        %v2327 = vcvt.s32.f32 %v2271
        %v2328 = vcvt.s32.f32 %v2272
        %v2329 = vcvt.s32.f32 %v2273
        %v2330 = vcvt.s32.f32 %v2274
        %v2331 = vcvt.s32.f32 %v2275
        %v2332 = vcvt.s32.f32 %v2276
        %v2333 = vcvt.s32.f32 %v2277
        %v2334 = vcvt.s32.f32 %v2278
        %v2335 = vcvt.s32.f32 %v2279
        %v2336 = vcvt.s32.f32 %v2280
        %v2337 = vcvt.s32.f32 %v2281
        %v2338 = vcvt.s32.f32 %v2282
        %v2339 = vcvt.s32.f32 %v2283
        %v2340 = vcvt.s32.f32 %v2284
        %v2341 = vcvt.s32.f32 %v2285
        %v2342 = vcvt.s32.f32 %v2286
        %v2343 = vcvt.s32.f32 %v2287
        %v2344 = vcvt.s32.f32 %v2288
        %v2345 = vcvt.s32.f32 %v2289
        %v2346 = vcvt.s32.f32 %v2290
        %v2347 = vcvt.s32.f32 %v2291
        %v2348 = vcvt.s32.f32 %v2292
        %v2349 = vcvt.s32.f32 %v2293
        %v2350 = vcvt.s32.f32 %v2294
        %v2351 = vcvt.s32.f32 %v2295
        %v2352 = vcvt.s32.f32 %v2296
        %v2353 = vcvt.s32.f32 %v2297
        %v2354 = vcvt.s32.f32 %v2298
        %v2355 = vcvt.s32.f32 %v2299
        %v2356 = vcvt.s32.f32 %v2300
        %v2357 = vcvt.s32.f32 %v2301
        %v2358 = vcvt.s32.f32 %v2302
        %v2359 = vcvt.s32.f32 %v2303
        %v2360 = vcvt.s32.f32 %v2304
        %v2361 = vcvt.s32.f32 %v2305
        %v2362 = vcvt.s32.f32 %v2306
        %v2363 = vcvt.s32.f32 %v2307
        %v2364 = vcvt.s32.f32 %v2308
        %v2365 = vcvt.s32.f32 %v2309
        %v2366 = vcvt.s32.f32 %v2310
        %v2367 = vcvt.s32.f32 %v2311
        %v2368 = vcvt.s32.f32 %v2312
        %v2369 = vcvt.s32.f32 %v2313
        %v2370 = vcvt.s32.f32 %v2314
        %v2371 = vcvt.s32.f32 %v2315
        %v2372 = vcvt.s32.f32 %v2316
        %v2373 = vcvt.s32.f32 %v2317
        %v2374 = vcvt.s32.f32 %v2318
        %v2375 = vcvt.s32.f32 %v2319
        %v2376 = vcvt.s32.f32 %v2320
        %v2377 = vcvt.s32.f32 %v2321
        %v2378 = vcvt.s32.f32 %v2322
        %v2379 = vcvt.s32.f32 %v2323
        %v2380 = vcvt.s32.f32 %v2324
        %v2381 = vcvt.s32.f32 %v2325
        %v2382 = vcvt.s32.f32 %v2326
        %v2383 = vld [vmem:[#allocation3] sm:$0xff]
        %v2384 = vld [vmem:[#allocation3 + $0x8] sm:$0xf]
        %2385 = vmatprep.subr.mxu0 0.0
        %2386 = vmatpush1.xpose.msra.mxu0 0.0
        %2387 = vmatprep.subr.mxu0 0.0
        %2388 = vmatpush1.xpose.msra.mxu0 0.0
        %2389 = vmatprep.subr.mxu0 0.0
        %2390 = vmatpush1.xpose.msra.mxu0 0.0
        %2391 = vmatprep.subr.mxu0 0.0
        %2392 = vmatpush1.xpose.msra.mxu0 0.0
        %2393 = vmatprep.subr.mxu0 0.0
        %2394 = vmatpush1.xpose.msra.mxu0 0.0
        %2395 = vmatprep.subr.mxu0 0.0
        %2396 = vmatpush1.xpose.msra.mxu0 0.0
        %2397 = vmatprep.subr.mxu0 0.0
        %2398 = vmatpush1.xpose.msra.mxu0 0.0
        %2399 = vmatprep.subr.mxu0 0.0
        %2400 = vmatpush1.xpose.msra.mxu0 0.0
        %2401 = vmatprep.subr.mxu0 0.0
        %2402 = vmatpush1.xpose.msra.mxu0 0.0
        %2403 = vmatprep.subr.mxu0 0.0
        %2404 = vmatpush1.xpose.msra.mxu0 0.0
        %2405 = vmatprep.subr.mxu0 0.0
        %2406 = vmatpush1.xpose.msra.mxu0 0.0
        %2407 = vmatprep.subr.mxu0 0.0
        %2408 = vmatpush1.xpose.msra.mxu0 0.0
        %2409 = vmatprep.subr.mxu0 0.0
        %2410 = vmatpush1.xpose.msra.mxu0 0.0
        %2411 = vmatprep.subr.mxu0 0.0
        %2412 = vmatpush1.xpose.msra.mxu0 0.0
        %2413 = vmatprep.subr.mxu0 %v2356
        %2414 = vmatpush1.xpose.msra.mxu0 %v2355
        %2415 = vmatprep.subr.mxu0 %v2328
        %2416 = vmatpush1.xpose.msra.mxu0 %v2327
        %2417 = vmatprep.subr.mxu0 0.0
        %2418 = vmatpush2.xpose.msra.mxu0 0.0
        %2419 = vmatprep.subr.mxu0 0.0
        %2420 = vmatpush2.xpose.msra.mxu0 0.0
        %2421 = vmatprep.subr.mxu0 0.0
        %2422 = vmatpush2.xpose.msra.mxu0 0.0
        %2423 = vmatprep.subr.mxu0 0.0
        %2424 = vmatpush2.xpose.msra.mxu0 0.0
        %2425 = vmatprep.subr.mxu0 0.0
        %2426 = vmatpush2.xpose.msra.mxu0 0.0
        %2427 = vmatprep.subr.mxu0 0.0
        %2428 = vmatpush2.xpose.msra.mxu0 0.0
        %2429 = vmatprep.subr.mxu0 0.0
        %2430 = vmatpush2.xpose.msra.mxu0 0.0
        %2431 = vmatprep.subr.mxu0 0.0
        %2432 = vmatpush2.xpose.msra.mxu0 0.0
        %2433 = vmatprep.subr.mxu0 0.0
        %2434 = vmatpush2.xpose.msra.mxu0 0.0
        %2435 = vmatprep.subr.mxu0 0.0
        %2436 = vmatpush2.xpose.msra.mxu0 0.0
        %2437 = vmatprep.subr.mxu0 0.0
        %2438 = vmatpush2.xpose.msra.mxu0 0.0
        %2439 = vmatprep.subr.mxu0 0.0
        %2440 = vmatpush2.xpose.msra.mxu0 0.0
        %2441 = vmatprep.subr.mxu0 0.0
        %2442 = vmatpush2.xpose.msra.mxu0 0.0
        %2443 = vmatprep.subr.mxu0 0.0
        %2444 = vmatpush2.xpose.msra.mxu0 0.0
        %2445 = vmatprep.subr.mxu0 0.0
        %2446 = vmatpush2.xpose.msra.mxu0 0.0
        %2447 = vmatprep.subr.mxu0 0.0
        %2448 = vmatpush2.xpose.msra.mxu0 0.0
        %2449 = vmatprep.mubr.f32.mxu0 %v1003
        %2450 = vmatmul.mubr.f32.gmra.mxu0 %v1001
        %v2451 = vpop.f32.mrf.mxu0
        %v2452 = vadd.f32 0.0, %v2451
        %v2453 = vpop.f32.mrf.mxu0
        %2454 = vmatprep.mubr.f32.mxu0 %v1007
        %2455 = vmatmul.mubr.f32.gmra.mxu0 %v1005
        %v2456 = vpop.f32.mrf.mxu0
        %v2457 = vadd.f32 0.0, %v2456
        %v2458 = vpop.f32.mrf.mxu0
        %2459 = vdwg.mxu0
        %2460 = vmatprep.subr.mxu0 0.0
        %2461 = vmatpush1.xpose.msra.mxu0 0.0
        %2462 = vmatprep.subr.mxu0 0.0
        %2463 = vmatpush1.xpose.msra.mxu0 0.0
        %2464 = vmatprep.subr.mxu0 0.0
        %2465 = vmatpush1.xpose.msra.mxu0 0.0
        %2466 = vmatprep.subr.mxu0 0.0
        %2467 = vmatpush1.xpose.msra.mxu0 0.0
        %2468 = vmatprep.subr.mxu0 0.0
        %2469 = vmatpush1.xpose.msra.mxu0 0.0
        %2470 = vmatprep.subr.mxu0 0.0
        %2471 = vmatpush1.xpose.msra.mxu0 0.0
        %2472 = vmatprep.subr.mxu0 0.0
        %2473 = vmatpush1.xpose.msra.mxu0 0.0
        %2474 = vmatprep.subr.mxu0 0.0
        %2475 = vmatpush1.xpose.msra.mxu0 0.0
        %2476 = vmatprep.subr.mxu0 0.0
        %2477 = vmatpush1.xpose.msra.mxu0 0.0
        %2478 = vmatprep.subr.mxu0 0.0
        %2479 = vmatpush1.xpose.msra.mxu0 0.0
        %2480 = vmatprep.subr.mxu0 0.0
        %2481 = vmatpush1.xpose.msra.mxu0 0.0
        %2482 = vmatprep.subr.mxu0 0.0
        %2483 = vmatpush1.xpose.msra.mxu0 0.0
        %2484 = vmatprep.subr.mxu0 0.0
        %2485 = vmatpush1.xpose.msra.mxu0 0.0
        %2486 = vmatprep.subr.mxu0 0.0
        %2487 = vmatpush1.xpose.msra.mxu0 0.0
        %2488 = vmatprep.subr.mxu0 %v2358
        %2489 = vmatpush1.xpose.msra.mxu0 %v2357
        %2490 = vmatprep.subr.mxu0 %v2330
        %2491 = vmatpush1.xpose.msra.mxu0 %v2329
        %2492 = vmatprep.subr.mxu0 0.0
        %2493 = vmatpush2.xpose.msra.mxu0 0.0
        %2494 = vmatprep.subr.mxu0 0.0
        %2495 = vmatpush2.xpose.msra.mxu0 0.0
        %2496 = vmatprep.subr.mxu0 0.0
        %2497 = vmatpush2.xpose.msra.mxu0 0.0
        %2498 = vmatprep.subr.mxu0 0.0
        %2499 = vmatpush2.xpose.msra.mxu0 0.0
        %2500 = vmatprep.subr.mxu0 0.0
        %2501 = vmatpush2.xpose.msra.mxu0 0.0
        %2502 = vmatprep.subr.mxu0 0.0
        %2503 = vmatpush2.xpose.msra.mxu0 0.0
        %2504 = vmatprep.subr.mxu0 0.0
        %2505 = vmatpush2.xpose.msra.mxu0 0.0
        %2506 = vmatprep.subr.mxu0 0.0
        %2507 = vmatpush2.xpose.msra.mxu0 0.0
        %2508 = vmatprep.subr.mxu0 0.0
        %2509 = vmatpush2.xpose.msra.mxu0 0.0
        %2510 = vmatprep.subr.mxu0 0.0
        %2511 = vmatpush2.xpose.msra.mxu0 0.0
        %2512 = vmatprep.subr.mxu0 0.0
        %2513 = vmatpush2.xpose.msra.mxu0 0.0
        %2514 = vmatprep.subr.mxu0 0.0
        %2515 = vmatpush2.xpose.msra.mxu0 0.0
        %2516 = vmatprep.subr.mxu0 0.0
        %2517 = vmatpush2.xpose.msra.mxu0 0.0
        %2518 = vmatprep.subr.mxu0 0.0
        %2519 = vmatpush2.xpose.msra.mxu0 0.0
        %2520 = vmatprep.subr.mxu0 0.0
        %2521 = vmatpush2.xpose.msra.mxu0 0.0
        %2522 = vmatprep.subr.mxu0 0.0
        %2523 = vmatpush2.xpose.msra.mxu0 0.0
        %2524 = vmatprep.mubr.f32.mxu0 %v1046
        %2525 = vmatmul.mubr.f32.gmra.mxu0 %v1044
        %v2526 = vpop.f32.mrf.mxu0
        %v2527 = vadd.f32 %v2452, %v2526
        %v2528 = vpop.f32.mrf.mxu0
        %2529 = vmatprep.mubr.f32.mxu0 %v1050
        %2530 = vmatmul.mubr.f32.gmra.mxu0 %v1048
        %v2531 = vpop.f32.mrf.mxu0
        %v2532 = vadd.f32 %v2457, %v2531
        %v2533 = vpop.f32.mrf.mxu0
        %2534 = vdwg.mxu0
        %2535 = vmatprep.subr.mxu0 0.0
        %2536 = vmatpush1.xpose.msra.mxu0 0.0
        %2537 = vmatprep.subr.mxu0 0.0
        %2538 = vmatpush1.xpose.msra.mxu0 0.0
        %2539 = vmatprep.subr.mxu0 0.0
        %2540 = vmatpush1.xpose.msra.mxu0 0.0
        %2541 = vmatprep.subr.mxu0 0.0
        %2542 = vmatpush1.xpose.msra.mxu0 0.0
        %2543 = vmatprep.subr.mxu0 0.0
        %2544 = vmatpush1.xpose.msra.mxu0 0.0
        %2545 = vmatprep.subr.mxu0 0.0
        %2546 = vmatpush1.xpose.msra.mxu0 0.0
        %2547 = vmatprep.subr.mxu0 0.0
        %2548 = vmatpush1.xpose.msra.mxu0 0.0
        %2549 = vmatprep.subr.mxu0 0.0
        %2550 = vmatpush1.xpose.msra.mxu0 0.0
        %2551 = vmatprep.subr.mxu0 0.0
        %2552 = vmatpush1.xpose.msra.mxu0 0.0
        %2553 = vmatprep.subr.mxu0 0.0
        %2554 = vmatpush1.xpose.msra.mxu0 0.0
        %2555 = vmatprep.subr.mxu0 0.0
        %2556 = vmatpush1.xpose.msra.mxu0 0.0
        %2557 = vmatprep.subr.mxu0 0.0
        %2558 = vmatpush1.xpose.msra.mxu0 0.0
        %2559 = vmatprep.subr.mxu0 0.0
        %2560 = vmatpush1.xpose.msra.mxu0 0.0
        %2561 = vmatprep.subr.mxu0 0.0
        %2562 = vmatpush1.xpose.msra.mxu0 0.0
        %2563 = vmatprep.subr.mxu0 %v2360
        %2564 = vmatpush1.xpose.msra.mxu0 %v2359
        %2565 = vmatprep.subr.mxu0 %v2332
        %2566 = vmatpush1.xpose.msra.mxu0 %v2331
        %2567 = vmatprep.subr.mxu0 0.0
        %2568 = vmatpush2.xpose.msra.mxu0 0.0
        %2569 = vmatprep.subr.mxu0 0.0
        %2570 = vmatpush2.xpose.msra.mxu0 0.0
        %2571 = vmatprep.subr.mxu0 0.0
        %2572 = vmatpush2.xpose.msra.mxu0 0.0
        %2573 = vmatprep.subr.mxu0 0.0
        %2574 = vmatpush2.xpose.msra.mxu0 0.0
        %2575 = vmatprep.subr.mxu0 0.0
        %2576 = vmatpush2.xpose.msra.mxu0 0.0
        %2577 = vmatprep.subr.mxu0 0.0
        %2578 = vmatpush2.xpose.msra.mxu0 0.0
        %2579 = vmatprep.subr.mxu0 0.0
        %2580 = vmatpush2.xpose.msra.mxu0 0.0
        %2581 = vmatprep.subr.mxu0 0.0
        %2582 = vmatpush2.xpose.msra.mxu0 0.0
        %2583 = vmatprep.subr.mxu0 0.0
        %2584 = vmatpush2.xpose.msra.mxu0 0.0
        %2585 = vmatprep.subr.mxu0 0.0
        %2586 = vmatpush2.xpose.msra.mxu0 0.0
        %2587 = vmatprep.subr.mxu0 0.0
        %2588 = vmatpush2.xpose.msra.mxu0 0.0
        %2589 = vmatprep.subr.mxu0 0.0
        %2590 = vmatpush2.xpose.msra.mxu0 0.0
        %2591 = vmatprep.subr.mxu0 0.0
        %2592 = vmatpush2.xpose.msra.mxu0 0.0
        %2593 = vmatprep.subr.mxu0 0.0
        %2594 = vmatpush2.xpose.msra.mxu0 0.0
        %2595 = vmatprep.subr.mxu0 0.0
        %2596 = vmatpush2.xpose.msra.mxu0 0.0
        %2597 = vmatprep.subr.mxu0 0.0
        %2598 = vmatpush2.xpose.msra.mxu0 0.0
        %2599 = vmatprep.mubr.f32.mxu0 %v1089
        %2600 = vmatmul.mubr.f32.gmra.mxu0 %v1087
        %v2601 = vpop.f32.mrf.mxu0
        %v2602 = vadd.f32 %v2527, %v2601
        %v2603 = vpop.f32.mrf.mxu0
        %2604 = vmatprep.mubr.f32.mxu0 %v1093
        %2605 = vmatmul.mubr.f32.gmra.mxu0 %v1091
        %v2606 = vpop.f32.mrf.mxu0
        %v2607 = vadd.f32 %v2532, %v2606
        %v2608 = vpop.f32.mrf.mxu0
        %2609 = vdwg.mxu0
        %2610 = vmatprep.subr.mxu0 0.0
        %2611 = vmatpush1.xpose.msra.mxu0 0.0
        %2612 = vmatprep.subr.mxu0 0.0
        %2613 = vmatpush1.xpose.msra.mxu0 0.0
        %2614 = vmatprep.subr.mxu0 0.0
        %2615 = vmatpush1.xpose.msra.mxu0 0.0
        %2616 = vmatprep.subr.mxu0 0.0
        %2617 = vmatpush1.xpose.msra.mxu0 0.0
        %2618 = vmatprep.subr.mxu0 0.0
        %2619 = vmatpush1.xpose.msra.mxu0 0.0
        %2620 = vmatprep.subr.mxu0 0.0
        %2621 = vmatpush1.xpose.msra.mxu0 0.0
        %2622 = vmatprep.subr.mxu0 0.0
        %2623 = vmatpush1.xpose.msra.mxu0 0.0
        %2624 = vmatprep.subr.mxu0 0.0
        %2625 = vmatpush1.xpose.msra.mxu0 0.0
        %2626 = vmatprep.subr.mxu0 0.0
        %2627 = vmatpush1.xpose.msra.mxu0 0.0
        %2628 = vmatprep.subr.mxu0 0.0
        %2629 = vmatpush1.xpose.msra.mxu0 0.0
        %2630 = vmatprep.subr.mxu0 0.0
        %2631 = vmatpush1.xpose.msra.mxu0 0.0
        %2632 = vmatprep.subr.mxu0 0.0
        %2633 = vmatpush1.xpose.msra.mxu0 0.0
        %2634 = vmatprep.subr.mxu0 0.0
        %2635 = vmatpush1.xpose.msra.mxu0 0.0
        %2636 = vmatprep.subr.mxu0 0.0
        %2637 = vmatpush1.xpose.msra.mxu0 0.0
        %2638 = vmatprep.subr.mxu0 %v2362
        %2639 = vmatpush1.xpose.msra.mxu0 %v2361
        %2640 = vmatprep.subr.mxu0 %v2334
        %2641 = vmatpush1.xpose.msra.mxu0 %v2333
        %2642 = vmatprep.subr.mxu0 0.0
        %2643 = vmatpush2.xpose.msra.mxu0 0.0
        %2644 = vmatprep.subr.mxu0 0.0
        %2645 = vmatpush2.xpose.msra.mxu0 0.0
        %2646 = vmatprep.subr.mxu0 0.0
        %2647 = vmatpush2.xpose.msra.mxu0 0.0
        %2648 = vmatprep.subr.mxu0 0.0
        %2649 = vmatpush2.xpose.msra.mxu0 0.0
        %2650 = vmatprep.subr.mxu0 0.0
        %2651 = vmatpush2.xpose.msra.mxu0 0.0
        %2652 = vmatprep.subr.mxu0 0.0
        %2653 = vmatpush2.xpose.msra.mxu0 0.0
        %2654 = vmatprep.subr.mxu0 0.0
        %2655 = vmatpush2.xpose.msra.mxu0 0.0
        %2656 = vmatprep.subr.mxu0 0.0
        %2657 = vmatpush2.xpose.msra.mxu0 0.0
        %2658 = vmatprep.subr.mxu0 0.0
        %2659 = vmatpush2.xpose.msra.mxu0 0.0
        %2660 = vmatprep.subr.mxu0 0.0
        %2661 = vmatpush2.xpose.msra.mxu0 0.0
        %2662 = vmatprep.subr.mxu0 0.0
        %2663 = vmatpush2.xpose.msra.mxu0 0.0
        %2664 = vmatprep.subr.mxu0 0.0
        %2665 = vmatpush2.xpose.msra.mxu0 0.0
        %2666 = vmatprep.subr.mxu0 0.0
        %2667 = vmatpush2.xpose.msra.mxu0 0.0
        %2668 = vmatprep.subr.mxu0 0.0
        %2669 = vmatpush2.xpose.msra.mxu0 0.0
        %2670 = vmatprep.subr.mxu0 0.0
        %2671 = vmatpush2.xpose.msra.mxu0 0.0
        %2672 = vmatprep.subr.mxu0 0.0
        %2673 = vmatpush2.xpose.msra.mxu0 0.0
        %2674 = vmatprep.mubr.f32.mxu0 %v1132
        %2675 = vmatmul.mubr.f32.gmra.mxu0 %v1130
        %v2676 = vpop.f32.mrf.mxu0
        %v2677 = vadd.f32 %v2602, %v2676
        %v2678 = vpop.f32.mrf.mxu0
        %2679 = vmatprep.mubr.f32.mxu0 %v1136
        %2680 = vmatmul.mubr.f32.gmra.mxu0 %v1134
        %v2681 = vpop.f32.mrf.mxu0
        %v2682 = vadd.f32 %v2607, %v2681
        %v2683 = vpop.f32.mrf.mxu0
        %2684 = vdwg.mxu0
        %2685 = vmatprep.subr.mxu0 0.0
        %2686 = vmatpush1.xpose.msra.mxu0 0.0
        %2687 = vmatprep.subr.mxu0 0.0
        %2688 = vmatpush1.xpose.msra.mxu0 0.0
        %2689 = vmatprep.subr.mxu0 0.0
        %2690 = vmatpush1.xpose.msra.mxu0 0.0
        %2691 = vmatprep.subr.mxu0 0.0
        %2692 = vmatpush1.xpose.msra.mxu0 0.0
        %2693 = vmatprep.subr.mxu0 0.0
        %2694 = vmatpush1.xpose.msra.mxu0 0.0
        %2695 = vmatprep.subr.mxu0 0.0
        %2696 = vmatpush1.xpose.msra.mxu0 0.0
        %2697 = vmatprep.subr.mxu0 0.0
        %2698 = vmatpush1.xpose.msra.mxu0 0.0
        %2699 = vmatprep.subr.mxu0 0.0
        %2700 = vmatpush1.xpose.msra.mxu0 0.0
        %2701 = vmatprep.subr.mxu0 0.0
        %2702 = vmatpush1.xpose.msra.mxu0 0.0
        %2703 = vmatprep.subr.mxu0 0.0
        %2704 = vmatpush1.xpose.msra.mxu0 0.0
        %2705 = vmatprep.subr.mxu0 0.0
        %2706 = vmatpush1.xpose.msra.mxu0 0.0
        %2707 = vmatprep.subr.mxu0 0.0
        %2708 = vmatpush1.xpose.msra.mxu0 0.0
        %2709 = vmatprep.subr.mxu0 0.0
        %2710 = vmatpush1.xpose.msra.mxu0 0.0
        %2711 = vmatprep.subr.mxu0 0.0
        %2712 = vmatpush1.xpose.msra.mxu0 0.0
        %2713 = vmatprep.subr.mxu0 %v2364
        %2714 = vmatpush1.xpose.msra.mxu0 %v2363
        %2715 = vmatprep.subr.mxu0 %v2336
        %2716 = vmatpush1.xpose.msra.mxu0 %v2335
        %2717 = vmatprep.subr.mxu0 0.0
        %2718 = vmatpush2.xpose.msra.mxu0 0.0
        %2719 = vmatprep.subr.mxu0 0.0
        %2720 = vmatpush2.xpose.msra.mxu0 0.0
        %2721 = vmatprep.subr.mxu0 0.0
        %2722 = vmatpush2.xpose.msra.mxu0 0.0
        %2723 = vmatprep.subr.mxu0 0.0
        %2724 = vmatpush2.xpose.msra.mxu0 0.0
        %2725 = vmatprep.subr.mxu0 0.0
        %2726 = vmatpush2.xpose.msra.mxu0 0.0
        %2727 = vmatprep.subr.mxu0 0.0
        %2728 = vmatpush2.xpose.msra.mxu0 0.0
        %2729 = vmatprep.subr.mxu0 0.0
        %2730 = vmatpush2.xpose.msra.mxu0 0.0
        %2731 = vmatprep.subr.mxu0 0.0
        %2732 = vmatpush2.xpose.msra.mxu0 0.0
        %2733 = vmatprep.subr.mxu0 0.0
        %2734 = vmatpush2.xpose.msra.mxu0 0.0
        %2735 = vmatprep.subr.mxu0 0.0
        %2736 = vmatpush2.xpose.msra.mxu0 0.0
        %2737 = vmatprep.subr.mxu0 0.0
        %2738 = vmatpush2.xpose.msra.mxu0 0.0
        %2739 = vmatprep.subr.mxu0 0.0
        %2740 = vmatpush2.xpose.msra.mxu0 0.0
        %2741 = vmatprep.subr.mxu0 0.0
        %2742 = vmatpush2.xpose.msra.mxu0 0.0
        %2743 = vmatprep.subr.mxu0 0.0
        %2744 = vmatpush2.xpose.msra.mxu0 0.0
        %2745 = vmatprep.subr.mxu0 0.0
        %2746 = vmatpush2.xpose.msra.mxu0 0.0
        %2747 = vmatprep.subr.mxu0 0.0
        %2748 = vmatpush2.xpose.msra.mxu0 0.0
        %2749 = vmatprep.mubr.f32.mxu0 %v1175
        %2750 = vmatmul.mubr.f32.gmra.mxu0 %v1173
        %v2751 = vpop.f32.mrf.mxu0
        %v2752 = vadd.f32 %v2677, %v2751
        %v2753 = vpop.f32.mrf.mxu0
        %2754 = vmatprep.mubr.f32.mxu0 %v1179
        %2755 = vmatmul.mubr.f32.gmra.mxu0 %v1177
        %v2756 = vpop.f32.mrf.mxu0
        %v2757 = vadd.f32 %v2682, %v2756
        %v2758 = vpop.f32.mrf.mxu0
        %2759 = vdwg.mxu0
        %2760 = vmatprep.subr.mxu0 0.0
        %2761 = vmatpush1.xpose.msra.mxu0 0.0
        %2762 = vmatprep.subr.mxu0 0.0
        %2763 = vmatpush1.xpose.msra.mxu0 0.0
        %2764 = vmatprep.subr.mxu0 0.0
        %2765 = vmatpush1.xpose.msra.mxu0 0.0
        %2766 = vmatprep.subr.mxu0 0.0
        %2767 = vmatpush1.xpose.msra.mxu0 0.0
        %2768 = vmatprep.subr.mxu0 0.0
        %2769 = vmatpush1.xpose.msra.mxu0 0.0
        %2770 = vmatprep.subr.mxu0 0.0
        %2771 = vmatpush1.xpose.msra.mxu0 0.0
        %2772 = vmatprep.subr.mxu0 0.0
        %2773 = vmatpush1.xpose.msra.mxu0 0.0
        %2774 = vmatprep.subr.mxu0 0.0
        %2775 = vmatpush1.xpose.msra.mxu0 0.0
        %2776 = vmatprep.subr.mxu0 0.0
        %2777 = vmatpush1.xpose.msra.mxu0 0.0
        %2778 = vmatprep.subr.mxu0 0.0
        %2779 = vmatpush1.xpose.msra.mxu0 0.0
        %2780 = vmatprep.subr.mxu0 0.0
        %2781 = vmatpush1.xpose.msra.mxu0 0.0
        %2782 = vmatprep.subr.mxu0 0.0
        %2783 = vmatpush1.xpose.msra.mxu0 0.0
        %2784 = vmatprep.subr.mxu0 0.0
        %2785 = vmatpush1.xpose.msra.mxu0 0.0
        %2786 = vmatprep.subr.mxu0 0.0
        %2787 = vmatpush1.xpose.msra.mxu0 0.0
        %2788 = vmatprep.subr.mxu0 %v2366
        %2789 = vmatpush1.xpose.msra.mxu0 %v2365
        %2790 = vmatprep.subr.mxu0 %v2338
        %2791 = vmatpush1.xpose.msra.mxu0 %v2337
        %2792 = vmatprep.subr.mxu0 0.0
        %2793 = vmatpush2.xpose.msra.mxu0 0.0
        %2794 = vmatprep.subr.mxu0 0.0
        %2795 = vmatpush2.xpose.msra.mxu0 0.0
        %2796 = vmatprep.subr.mxu0 0.0
        %2797 = vmatpush2.xpose.msra.mxu0 0.0
        %2798 = vmatprep.subr.mxu0 0.0
        %2799 = vmatpush2.xpose.msra.mxu0 0.0
        %2800 = vmatprep.subr.mxu0 0.0
        %2801 = vmatpush2.xpose.msra.mxu0 0.0
        %2802 = vmatprep.subr.mxu0 0.0
        %2803 = vmatpush2.xpose.msra.mxu0 0.0
        %2804 = vmatprep.subr.mxu0 0.0
        %2805 = vmatpush2.xpose.msra.mxu0 0.0
        %2806 = vmatprep.subr.mxu0 0.0
        %2807 = vmatpush2.xpose.msra.mxu0 0.0
        %2808 = vmatprep.subr.mxu0 0.0
        %2809 = vmatpush2.xpose.msra.mxu0 0.0
        %2810 = vmatprep.subr.mxu0 0.0
        %2811 = vmatpush2.xpose.msra.mxu0 0.0
        %2812 = vmatprep.subr.mxu0 0.0
        %2813 = vmatpush2.xpose.msra.mxu0 0.0
        %2814 = vmatprep.subr.mxu0 0.0
        %2815 = vmatpush2.xpose.msra.mxu0 0.0
        %2816 = vmatprep.subr.mxu0 0.0
        %2817 = vmatpush2.xpose.msra.mxu0 0.0
        %2818 = vmatprep.subr.mxu0 0.0
        %2819 = vmatpush2.xpose.msra.mxu0 0.0
        %2820 = vmatprep.subr.mxu0 0.0
        %2821 = vmatpush2.xpose.msra.mxu0 0.0
        %2822 = vmatprep.subr.mxu0 0.0
        %2823 = vmatpush2.xpose.msra.mxu0 0.0
        %2824 = vmatprep.mubr.f32.mxu0 %v1218
        %2825 = vmatmul.mubr.f32.gmra.mxu0 %v1216
        %v2826 = vpop.f32.mrf.mxu0
        %v2827 = vadd.f32 %v2752, %v2826
        %v2828 = vpop.f32.mrf.mxu0
        %2829 = vmatprep.mubr.f32.mxu0 %v1222
        %2830 = vmatmul.mubr.f32.gmra.mxu0 %v1220
        %v2831 = vpop.f32.mrf.mxu0
        %v2832 = vadd.f32 %v2757, %v2831
        %v2833 = vpop.f32.mrf.mxu0
        %2834 = vdwg.mxu0
        %2835 = vmatprep.subr.mxu0 0.0
        %2836 = vmatpush1.xpose.msra.mxu0 0.0
        %2837 = vmatprep.subr.mxu0 0.0
        %2838 = vmatpush1.xpose.msra.mxu0 0.0
        %2839 = vmatprep.subr.mxu0 0.0
        %2840 = vmatpush1.xpose.msra.mxu0 0.0
        %2841 = vmatprep.subr.mxu0 0.0
        %2842 = vmatpush1.xpose.msra.mxu0 0.0
        %2843 = vmatprep.subr.mxu0 0.0
        %2844 = vmatpush1.xpose.msra.mxu0 0.0
        %2845 = vmatprep.subr.mxu0 0.0
        %2846 = vmatpush1.xpose.msra.mxu0 0.0
        %2847 = vmatprep.subr.mxu0 0.0
        %2848 = vmatpush1.xpose.msra.mxu0 0.0
        %2849 = vmatprep.subr.mxu0 0.0
        %2850 = vmatpush1.xpose.msra.mxu0 0.0
        %2851 = vmatprep.subr.mxu0 0.0
        %2852 = vmatpush1.xpose.msra.mxu0 0.0
        %2853 = vmatprep.subr.mxu0 0.0
        %2854 = vmatpush1.xpose.msra.mxu0 0.0
        %2855 = vmatprep.subr.mxu0 0.0
        %2856 = vmatpush1.xpose.msra.mxu0 0.0
        %2857 = vmatprep.subr.mxu0 0.0
        %2858 = vmatpush1.xpose.msra.mxu0 0.0
        %2859 = vmatprep.subr.mxu0 0.0
        %2860 = vmatpush1.xpose.msra.mxu0 0.0
        %2861 = vmatprep.subr.mxu0 0.0
        %2862 = vmatpush1.xpose.msra.mxu0 0.0
        %2863 = vmatprep.subr.mxu0 %v2368
        %2864 = vmatpush1.xpose.msra.mxu0 %v2367
        %2865 = vmatprep.subr.mxu0 %v2340
        %2866 = vmatpush1.xpose.msra.mxu0 %v2339
        %2867 = vmatprep.subr.mxu0 0.0
        %2868 = vmatpush2.xpose.msra.mxu0 0.0
        %2869 = vmatprep.subr.mxu0 0.0
        %2870 = vmatpush2.xpose.msra.mxu0 0.0
        %2871 = vmatprep.subr.mxu0 0.0
        %2872 = vmatpush2.xpose.msra.mxu0 0.0
        %2873 = vmatprep.subr.mxu0 0.0
        %2874 = vmatpush2.xpose.msra.mxu0 0.0
        %2875 = vmatprep.subr.mxu0 0.0
        %2876 = vmatpush2.xpose.msra.mxu0 0.0
        %2877 = vmatprep.subr.mxu0 0.0
        %2878 = vmatpush2.xpose.msra.mxu0 0.0
        %2879 = vmatprep.subr.mxu0 0.0
        %2880 = vmatpush2.xpose.msra.mxu0 0.0
        %2881 = vmatprep.subr.mxu0 0.0
        %2882 = vmatpush2.xpose.msra.mxu0 0.0
        %2883 = vmatprep.subr.mxu0 0.0
        %2884 = vmatpush2.xpose.msra.mxu0 0.0
        %2885 = vmatprep.subr.mxu0 0.0
        %2886 = vmatpush2.xpose.msra.mxu0 0.0
        %2887 = vmatprep.subr.mxu0 0.0
        %2888 = vmatpush2.xpose.msra.mxu0 0.0
        %2889 = vmatprep.subr.mxu0 0.0
        %2890 = vmatpush2.xpose.msra.mxu0 0.0
        %2891 = vmatprep.subr.mxu0 0.0
        %2892 = vmatpush2.xpose.msra.mxu0 0.0
        %2893 = vmatprep.subr.mxu0 0.0
        %2894 = vmatpush2.xpose.msra.mxu0 0.0
        %2895 = vmatprep.subr.mxu0 0.0
        %2896 = vmatpush2.xpose.msra.mxu0 0.0
        %2897 = vmatprep.subr.mxu0 0.0
        %2898 = vmatpush2.xpose.msra.mxu0 0.0
        %2899 = vmatprep.mubr.f32.mxu0 %v1261
        %2900 = vmatmul.mubr.f32.gmra.mxu0 %v1259
        %v2901 = vpop.f32.mrf.mxu0
        %v2902 = vadd.f32 %v2827, %v2901
        %v2903 = vpop.f32.mrf.mxu0
        %2904 = vmatprep.mubr.f32.mxu0 %v1265
        %2905 = vmatmul.mubr.f32.gmra.mxu0 %v1263
        %v2906 = vpop.f32.mrf.mxu0
        %v2907 = vadd.f32 %v2832, %v2906
        %v2908 = vpop.f32.mrf.mxu0
        %2909 = vdwg.mxu0
        %2910 = vmatprep.subr.mxu0 0.0
        %2911 = vmatpush1.xpose.msra.mxu0 0.0
        %2912 = vmatprep.subr.mxu0 0.0
        %2913 = vmatpush1.xpose.msra.mxu0 0.0
        %2914 = vmatprep.subr.mxu0 0.0
        %2915 = vmatpush1.xpose.msra.mxu0 0.0
        %2916 = vmatprep.subr.mxu0 0.0
        %2917 = vmatpush1.xpose.msra.mxu0 0.0
        %2918 = vmatprep.subr.mxu0 0.0
        %2919 = vmatpush1.xpose.msra.mxu0 0.0
        %2920 = vmatprep.subr.mxu0 0.0
        %2921 = vmatpush1.xpose.msra.mxu0 0.0
        %2922 = vmatprep.subr.mxu0 0.0
        %2923 = vmatpush1.xpose.msra.mxu0 0.0
        %2924 = vmatprep.subr.mxu0 0.0
        %2925 = vmatpush1.xpose.msra.mxu0 0.0
        %2926 = vmatprep.subr.mxu0 0.0
        %2927 = vmatpush1.xpose.msra.mxu0 0.0
        %2928 = vmatprep.subr.mxu0 0.0
        %2929 = vmatpush1.xpose.msra.mxu0 0.0
        %2930 = vmatprep.subr.mxu0 0.0
        %2931 = vmatpush1.xpose.msra.mxu0 0.0
        %2932 = vmatprep.subr.mxu0 0.0
        %2933 = vmatpush1.xpose.msra.mxu0 0.0
        %2934 = vmatprep.subr.mxu0 0.0
        %2935 = vmatpush1.xpose.msra.mxu0 0.0
        %2936 = vmatprep.subr.mxu0 0.0
        %2937 = vmatpush1.xpose.msra.mxu0 0.0
        %2938 = vmatprep.subr.mxu0 %v2370
        %2939 = vmatpush1.xpose.msra.mxu0 %v2369
        %2940 = vmatprep.subr.mxu0 %v2342
        %2941 = vmatpush1.xpose.msra.mxu0 %v2341
        %2942 = vmatprep.subr.mxu0 0.0
        %2943 = vmatpush2.xpose.msra.mxu0 0.0
        %2944 = vmatprep.subr.mxu0 0.0
        %2945 = vmatpush2.xpose.msra.mxu0 0.0
        %2946 = vmatprep.subr.mxu0 0.0
        %2947 = vmatpush2.xpose.msra.mxu0 0.0
        %2948 = vmatprep.subr.mxu0 0.0
        %2949 = vmatpush2.xpose.msra.mxu0 0.0
        %2950 = vmatprep.subr.mxu0 0.0
        %2951 = vmatpush2.xpose.msra.mxu0 0.0
        %2952 = vmatprep.subr.mxu0 0.0
        %2953 = vmatpush2.xpose.msra.mxu0 0.0
        %2954 = vmatprep.subr.mxu0 0.0
        %2955 = vmatpush2.xpose.msra.mxu0 0.0
        %2956 = vmatprep.subr.mxu0 0.0
        %2957 = vmatpush2.xpose.msra.mxu0 0.0
        %2958 = vmatprep.subr.mxu0 0.0
        %2959 = vmatpush2.xpose.msra.mxu0 0.0
        %2960 = vmatprep.subr.mxu0 0.0
        %2961 = vmatpush2.xpose.msra.mxu0 0.0
        %2962 = vmatprep.subr.mxu0 0.0
        %2963 = vmatpush2.xpose.msra.mxu0 0.0
        %2964 = vmatprep.subr.mxu0 0.0
        %2965 = vmatpush2.xpose.msra.mxu0 0.0
        %2966 = vmatprep.subr.mxu0 0.0
        %2967 = vmatpush2.xpose.msra.mxu0 0.0
        %2968 = vmatprep.subr.mxu0 0.0
        %2969 = vmatpush2.xpose.msra.mxu0 0.0
        %2970 = vmatprep.subr.mxu0 0.0
        %2971 = vmatpush2.xpose.msra.mxu0 0.0
        %2972 = vmatprep.subr.mxu0 0.0
        %2973 = vmatpush2.xpose.msra.mxu0 0.0
        %2974 = vmatprep.mubr.f32.mxu0 %v1304
        %2975 = vmatmul.mubr.f32.gmra.mxu0 %v1302
        %v2976 = vpop.f32.mrf.mxu0
        %v2977 = vadd.f32 %v2902, %v2976
        %v2978 = vpop.f32.mrf.mxu0
        %2979 = vmatprep.mubr.f32.mxu0 %v1308
        %2980 = vmatmul.mubr.f32.gmra.mxu0 %v1306
        %v2981 = vpop.f32.mrf.mxu0
        %v2982 = vadd.f32 %v2907, %v2981
        %v2983 = vpop.f32.mrf.mxu0
        %2984 = vdwg.mxu0
        %2985 = vmatprep.subr.mxu0 0.0
        %2986 = vmatpush1.xpose.msra.mxu0 0.0
        %2987 = vmatprep.subr.mxu0 0.0
        %2988 = vmatpush1.xpose.msra.mxu0 0.0
        %2989 = vmatprep.subr.mxu0 0.0
        %2990 = vmatpush1.xpose.msra.mxu0 0.0
        %2991 = vmatprep.subr.mxu0 0.0
        %2992 = vmatpush1.xpose.msra.mxu0 0.0
        %2993 = vmatprep.subr.mxu0 0.0
        %2994 = vmatpush1.xpose.msra.mxu0 0.0
        %2995 = vmatprep.subr.mxu0 0.0
        %2996 = vmatpush1.xpose.msra.mxu0 0.0
        %2997 = vmatprep.subr.mxu0 0.0
        %2998 = vmatpush1.xpose.msra.mxu0 0.0
        %2999 = vmatprep.subr.mxu0 0.0
        %3000 = vmatpush1.xpose.msra.mxu0 0.0
        %3001 = vmatprep.subr.mxu0 0.0
        %3002 = vmatpush1.xpose.msra.mxu0 0.0
        %3003 = vmatprep.subr.mxu0 0.0
        %3004 = vmatpush1.xpose.msra.mxu0 0.0
        %3005 = vmatprep.subr.mxu0 0.0
        %3006 = vmatpush1.xpose.msra.mxu0 0.0
        %3007 = vmatprep.subr.mxu0 0.0
        %3008 = vmatpush1.xpose.msra.mxu0 0.0
        %3009 = vmatprep.subr.mxu0 0.0
        %3010 = vmatpush1.xpose.msra.mxu0 0.0
        %3011 = vmatprep.subr.mxu0 0.0
        %3012 = vmatpush1.xpose.msra.mxu0 0.0
        %3013 = vmatprep.subr.mxu0 %v2372
        %3014 = vmatpush1.xpose.msra.mxu0 %v2371
        %3015 = vmatprep.subr.mxu0 %v2344
        %3016 = vmatpush1.xpose.msra.mxu0 %v2343
        %3017 = vmatprep.subr.mxu0 0.0
        %3018 = vmatpush2.xpose.msra.mxu0 0.0
        %3019 = vmatprep.subr.mxu0 0.0
        %3020 = vmatpush2.xpose.msra.mxu0 0.0
        %3021 = vmatprep.subr.mxu0 0.0
        %3022 = vmatpush2.xpose.msra.mxu0 0.0
        %3023 = vmatprep.subr.mxu0 0.0
        %3024 = vmatpush2.xpose.msra.mxu0 0.0
        %3025 = vmatprep.subr.mxu0 0.0
        %3026 = vmatpush2.xpose.msra.mxu0 0.0
        %3027 = vmatprep.subr.mxu0 0.0
        %3028 = vmatpush2.xpose.msra.mxu0 0.0
        %3029 = vmatprep.subr.mxu0 0.0
        %3030 = vmatpush2.xpose.msra.mxu0 0.0
        %3031 = vmatprep.subr.mxu0 0.0
        %3032 = vmatpush2.xpose.msra.mxu0 0.0
        %3033 = vmatprep.subr.mxu0 0.0
        %3034 = vmatpush2.xpose.msra.mxu0 0.0
        %3035 = vmatprep.subr.mxu0 0.0
        %3036 = vmatpush2.xpose.msra.mxu0 0.0
        %3037 = vmatprep.subr.mxu0 0.0
        %3038 = vmatpush2.xpose.msra.mxu0 0.0
        %3039 = vmatprep.subr.mxu0 0.0
        %3040 = vmatpush2.xpose.msra.mxu0 0.0
        %3041 = vmatprep.subr.mxu0 0.0
        %3042 = vmatpush2.xpose.msra.mxu0 0.0
        %3043 = vmatprep.subr.mxu0 0.0
        %3044 = vmatpush2.xpose.msra.mxu0 0.0
        %3045 = vmatprep.subr.mxu0 0.0
        %3046 = vmatpush2.xpose.msra.mxu0 0.0
        %3047 = vmatprep.subr.mxu0 0.0
        %3048 = vmatpush2.xpose.msra.mxu0 0.0
        %3049 = vmatprep.mubr.f32.mxu0 %v1347
        %3050 = vmatmul.mubr.f32.gmra.mxu0 %v1345
        %v3051 = vpop.f32.mrf.mxu0
        %v3052 = vadd.f32 %v2977, %v3051
        %v3053 = vpop.f32.mrf.mxu0
        %3054 = vmatprep.mubr.f32.mxu0 %v1351
        %3055 = vmatmul.mubr.f32.gmra.mxu0 %v1349
        %v3056 = vpop.f32.mrf.mxu0
        %v3057 = vadd.f32 %v2982, %v3056
        %v3058 = vpop.f32.mrf.mxu0
        %3059 = vdwg.mxu0
        %3060 = vmatprep.subr.mxu0 0.0
        %3061 = vmatpush1.xpose.msra.mxu0 0.0
        %3062 = vmatprep.subr.mxu0 0.0
        %3063 = vmatpush1.xpose.msra.mxu0 0.0
        %3064 = vmatprep.subr.mxu0 0.0
        %3065 = vmatpush1.xpose.msra.mxu0 0.0
        %3066 = vmatprep.subr.mxu0 0.0
        %3067 = vmatpush1.xpose.msra.mxu0 0.0
        %3068 = vmatprep.subr.mxu0 0.0
        %3069 = vmatpush1.xpose.msra.mxu0 0.0
        %3070 = vmatprep.subr.mxu0 0.0
        %3071 = vmatpush1.xpose.msra.mxu0 0.0
        %3072 = vmatprep.subr.mxu0 0.0
        %3073 = vmatpush1.xpose.msra.mxu0 0.0
        %3074 = vmatprep.subr.mxu0 0.0
        %3075 = vmatpush1.xpose.msra.mxu0 0.0
        %3076 = vmatprep.subr.mxu0 0.0
        %3077 = vmatpush1.xpose.msra.mxu0 0.0
        %3078 = vmatprep.subr.mxu0 0.0
        %3079 = vmatpush1.xpose.msra.mxu0 0.0
        %3080 = vmatprep.subr.mxu0 0.0
        %3081 = vmatpush1.xpose.msra.mxu0 0.0
        %3082 = vmatprep.subr.mxu0 0.0
        %3083 = vmatpush1.xpose.msra.mxu0 0.0
        %3084 = vmatprep.subr.mxu0 0.0
        %3085 = vmatpush1.xpose.msra.mxu0 0.0
        %3086 = vmatprep.subr.mxu0 0.0
        %3087 = vmatpush1.xpose.msra.mxu0 0.0
        %3088 = vmatprep.subr.mxu0 %v2374
        %3089 = vmatpush1.xpose.msra.mxu0 %v2373
        %3090 = vmatprep.subr.mxu0 %v2346
        %3091 = vmatpush1.xpose.msra.mxu0 %v2345
        %3092 = vmatprep.subr.mxu0 0.0
        %3093 = vmatpush2.xpose.msra.mxu0 0.0
        %3094 = vmatprep.subr.mxu0 0.0
        %3095 = vmatpush2.xpose.msra.mxu0 0.0
        %3096 = vmatprep.subr.mxu0 0.0
        %3097 = vmatpush2.xpose.msra.mxu0 0.0
        %3098 = vmatprep.subr.mxu0 0.0
        %3099 = vmatpush2.xpose.msra.mxu0 0.0
        %3100 = vmatprep.subr.mxu0 0.0
        %3101 = vmatpush2.xpose.msra.mxu0 0.0
        %3102 = vmatprep.subr.mxu0 0.0
        %3103 = vmatpush2.xpose.msra.mxu0 0.0
        %3104 = vmatprep.subr.mxu0 0.0
        %3105 = vmatpush2.xpose.msra.mxu0 0.0
        %3106 = vmatprep.subr.mxu0 0.0
        %3107 = vmatpush2.xpose.msra.mxu0 0.0
        %3108 = vmatprep.subr.mxu0 0.0
        %3109 = vmatpush2.xpose.msra.mxu0 0.0
        %3110 = vmatprep.subr.mxu0 0.0
        %3111 = vmatpush2.xpose.msra.mxu0 0.0
        %3112 = vmatprep.subr.mxu0 0.0
        %3113 = vmatpush2.xpose.msra.mxu0 0.0
        %3114 = vmatprep.subr.mxu0 0.0
        %3115 = vmatpush2.xpose.msra.mxu0 0.0
        %3116 = vmatprep.subr.mxu0 0.0
        %3117 = vmatpush2.xpose.msra.mxu0 0.0
        %3118 = vmatprep.subr.mxu0 0.0
        %3119 = vmatpush2.xpose.msra.mxu0 0.0
        %3120 = vmatprep.subr.mxu0 0.0
        %3121 = vmatpush2.xpose.msra.mxu0 0.0
        %3122 = vmatprep.subr.mxu0 0.0
        %3123 = vmatpush2.xpose.msra.mxu0 0.0
        %3124 = vmatprep.mubr.f32.mxu0 %v1390
        %3125 = vmatmul.mubr.f32.gmra.mxu0 %v1388
        %v3126 = vpop.f32.mrf.mxu0
        %v3127 = vadd.f32 %v3052, %v3126
        %v3128 = vpop.f32.mrf.mxu0
        %3129 = vmatprep.mubr.f32.mxu0 %v1394
        %3130 = vmatmul.mubr.f32.gmra.mxu0 %v1392
        %v3131 = vpop.f32.mrf.mxu0
        %v3132 = vadd.f32 %v3057, %v3131
        %v3133 = vpop.f32.mrf.mxu0
        %3134 = vdwg.mxu0
        %3135 = vmatprep.subr.mxu0 0.0
        %3136 = vmatpush1.xpose.msra.mxu0 0.0
        %3137 = vmatprep.subr.mxu0 0.0
        %3138 = vmatpush1.xpose.msra.mxu0 0.0
        %3139 = vmatprep.subr.mxu0 0.0
        %3140 = vmatpush1.xpose.msra.mxu0 0.0
        %3141 = vmatprep.subr.mxu0 0.0
        %3142 = vmatpush1.xpose.msra.mxu0 0.0
        %3143 = vmatprep.subr.mxu0 0.0
        %3144 = vmatpush1.xpose.msra.mxu0 0.0
        %3145 = vmatprep.subr.mxu0 0.0
        %3146 = vmatpush1.xpose.msra.mxu0 0.0
        %3147 = vmatprep.subr.mxu0 0.0
        %3148 = vmatpush1.xpose.msra.mxu0 0.0
        %3149 = vmatprep.subr.mxu0 0.0
        %3150 = vmatpush1.xpose.msra.mxu0 0.0
        %3151 = vmatprep.subr.mxu0 0.0
        %3152 = vmatpush1.xpose.msra.mxu0 0.0
        %3153 = vmatprep.subr.mxu0 0.0
        %3154 = vmatpush1.xpose.msra.mxu0 0.0
        %3155 = vmatprep.subr.mxu0 0.0
        %3156 = vmatpush1.xpose.msra.mxu0 0.0
        %3157 = vmatprep.subr.mxu0 0.0
        %3158 = vmatpush1.xpose.msra.mxu0 0.0
        %3159 = vmatprep.subr.mxu0 0.0
        %3160 = vmatpush1.xpose.msra.mxu0 0.0
        %3161 = vmatprep.subr.mxu0 0.0
        %3162 = vmatpush1.xpose.msra.mxu0 0.0
        %3163 = vmatprep.subr.mxu0 %v2376
        %3164 = vmatpush1.xpose.msra.mxu0 %v2375
        %3165 = vmatprep.subr.mxu0 %v2348
        %3166 = vmatpush1.xpose.msra.mxu0 %v2347
        %3167 = vmatprep.subr.mxu0 0.0
        %3168 = vmatpush2.xpose.msra.mxu0 0.0
        %3169 = vmatprep.subr.mxu0 0.0
        %3170 = vmatpush2.xpose.msra.mxu0 0.0
        %3171 = vmatprep.subr.mxu0 0.0
        %3172 = vmatpush2.xpose.msra.mxu0 0.0
        %3173 = vmatprep.subr.mxu0 0.0
        %3174 = vmatpush2.xpose.msra.mxu0 0.0
        %3175 = vmatprep.subr.mxu0 0.0
        %3176 = vmatpush2.xpose.msra.mxu0 0.0
        %3177 = vmatprep.subr.mxu0 0.0
        %3178 = vmatpush2.xpose.msra.mxu0 0.0
        %3179 = vmatprep.subr.mxu0 0.0
        %3180 = vmatpush2.xpose.msra.mxu0 0.0
        %3181 = vmatprep.subr.mxu0 0.0
        %3182 = vmatpush2.xpose.msra.mxu0 0.0
        %3183 = vmatprep.subr.mxu0 0.0
        %3184 = vmatpush2.xpose.msra.mxu0 0.0
        %3185 = vmatprep.subr.mxu0 0.0
        %3186 = vmatpush2.xpose.msra.mxu0 0.0
        %3187 = vmatprep.subr.mxu0 0.0
        %3188 = vmatpush2.xpose.msra.mxu0 0.0
        %3189 = vmatprep.subr.mxu0 0.0
        %3190 = vmatpush2.xpose.msra.mxu0 0.0
        %3191 = vmatprep.subr.mxu0 0.0
        %3192 = vmatpush2.xpose.msra.mxu0 0.0
        %3193 = vmatprep.subr.mxu0 0.0
        %3194 = vmatpush2.xpose.msra.mxu0 0.0
        %3195 = vmatprep.subr.mxu0 0.0
        %3196 = vmatpush2.xpose.msra.mxu0 0.0
        %3197 = vmatprep.subr.mxu0 0.0
        %3198 = vmatpush2.xpose.msra.mxu0 0.0
        %3199 = vmatprep.mubr.f32.mxu0 %v1433
        %3200 = vmatmul.mubr.f32.gmra.mxu0 %v1431
        %v3201 = vpop.f32.mrf.mxu0
        %v3202 = vadd.f32 %v3127, %v3201
        %v3203 = vpop.f32.mrf.mxu0
        %3204 = vmatprep.mubr.f32.mxu0 %v1437
        %3205 = vmatmul.mubr.f32.gmra.mxu0 %v1435
        %v3206 = vpop.f32.mrf.mxu0
        %v3207 = vadd.f32 %v3132, %v3206
        %v3208 = vpop.f32.mrf.mxu0
        %3209 = vdwg.mxu0
        %3210 = vmatprep.subr.mxu0 0.0
        %3211 = vmatpush1.xpose.msra.mxu0 0.0
        %3212 = vmatprep.subr.mxu0 0.0
        %3213 = vmatpush1.xpose.msra.mxu0 0.0
        %3214 = vmatprep.subr.mxu0 0.0
        %3215 = vmatpush1.xpose.msra.mxu0 0.0
        %3216 = vmatprep.subr.mxu0 0.0
        %3217 = vmatpush1.xpose.msra.mxu0 0.0
        %3218 = vmatprep.subr.mxu0 0.0
        %3219 = vmatpush1.xpose.msra.mxu0 0.0
        %3220 = vmatprep.subr.mxu0 0.0
        %3221 = vmatpush1.xpose.msra.mxu0 0.0
        %3222 = vmatprep.subr.mxu0 0.0
        %3223 = vmatpush1.xpose.msra.mxu0 0.0
        %3224 = vmatprep.subr.mxu0 0.0
        %3225 = vmatpush1.xpose.msra.mxu0 0.0
        %3226 = vmatprep.subr.mxu0 0.0
        %3227 = vmatpush1.xpose.msra.mxu0 0.0
        %3228 = vmatprep.subr.mxu0 0.0
        %3229 = vmatpush1.xpose.msra.mxu0 0.0
        %3230 = vmatprep.subr.mxu0 0.0
        %3231 = vmatpush1.xpose.msra.mxu0 0.0
        %3232 = vmatprep.subr.mxu0 0.0
        %3233 = vmatpush1.xpose.msra.mxu0 0.0
        %3234 = vmatprep.subr.mxu0 0.0
        %3235 = vmatpush1.xpose.msra.mxu0 0.0
        %3236 = vmatprep.subr.mxu0 0.0
        %3237 = vmatpush1.xpose.msra.mxu0 0.0
        %3238 = vmatprep.subr.mxu0 %v2378
        %3239 = vmatpush1.xpose.msra.mxu0 %v2377
        %3240 = vmatprep.subr.mxu0 %v2350
        %3241 = vmatpush1.xpose.msra.mxu0 %v2349
        %3242 = vmatprep.subr.mxu0 0.0
        %3243 = vmatpush2.xpose.msra.mxu0 0.0
        %3244 = vmatprep.subr.mxu0 0.0
        %3245 = vmatpush2.xpose.msra.mxu0 0.0
        %3246 = vmatprep.subr.mxu0 0.0
        %3247 = vmatpush2.xpose.msra.mxu0 0.0
        %3248 = vmatprep.subr.mxu0 0.0
        %3249 = vmatpush2.xpose.msra.mxu0 0.0
        %3250 = vmatprep.subr.mxu0 0.0
        %3251 = vmatpush2.xpose.msra.mxu0 0.0
        %3252 = vmatprep.subr.mxu0 0.0
        %3253 = vmatpush2.xpose.msra.mxu0 0.0
        %3254 = vmatprep.subr.mxu0 0.0
        %3255 = vmatpush2.xpose.msra.mxu0 0.0
        %3256 = vmatprep.subr.mxu0 0.0
        %3257 = vmatpush2.xpose.msra.mxu0 0.0
        %3258 = vmatprep.subr.mxu0 0.0
        %3259 = vmatpush2.xpose.msra.mxu0 0.0
        %3260 = vmatprep.subr.mxu0 0.0
        %3261 = vmatpush2.xpose.msra.mxu0 0.0
        %3262 = vmatprep.subr.mxu0 0.0
        %3263 = vmatpush2.xpose.msra.mxu0 0.0
        %3264 = vmatprep.subr.mxu0 0.0
        %3265 = vmatpush2.xpose.msra.mxu0 0.0
        %3266 = vmatprep.subr.mxu0 0.0
        %3267 = vmatpush2.xpose.msra.mxu0 0.0
        %3268 = vmatprep.subr.mxu0 0.0
        %3269 = vmatpush2.xpose.msra.mxu0 0.0
        %3270 = vmatprep.subr.mxu0 0.0
        %3271 = vmatpush2.xpose.msra.mxu0 0.0
        %3272 = vmatprep.subr.mxu0 0.0
        %3273 = vmatpush2.xpose.msra.mxu0 0.0
        %3274 = vmatprep.mubr.f32.mxu0 %v1476
        %3275 = vmatmul.mubr.f32.gmra.mxu0 %v1474
        %v3276 = vpop.f32.mrf.mxu0
        %v3277 = vadd.f32 %v3202, %v3276
        %v3278 = vpop.f32.mrf.mxu0
        %3279 = vmatprep.mubr.f32.mxu0 %v1480
        %3280 = vmatmul.mubr.f32.gmra.mxu0 %v1478
        %v3281 = vpop.f32.mrf.mxu0
        %v3282 = vadd.f32 %v3207, %v3281
        %v3283 = vpop.f32.mrf.mxu0
        %3284 = vdwg.mxu0
        %3285 = vmatprep.subr.mxu0 0.0
        %3286 = vmatpush1.xpose.msra.mxu0 0.0
        %3287 = vmatprep.subr.mxu0 0.0
        %3288 = vmatpush1.xpose.msra.mxu0 0.0
        %3289 = vmatprep.subr.mxu0 0.0
        %3290 = vmatpush1.xpose.msra.mxu0 0.0
        %3291 = vmatprep.subr.mxu0 0.0
        %3292 = vmatpush1.xpose.msra.mxu0 0.0
        %3293 = vmatprep.subr.mxu0 0.0
        %3294 = vmatpush1.xpose.msra.mxu0 0.0
        %3295 = vmatprep.subr.mxu0 0.0
        %3296 = vmatpush1.xpose.msra.mxu0 0.0
        %3297 = vmatprep.subr.mxu0 0.0
        %3298 = vmatpush1.xpose.msra.mxu0 0.0
        %3299 = vmatprep.subr.mxu0 0.0
        %3300 = vmatpush1.xpose.msra.mxu0 0.0
        %3301 = vmatprep.subr.mxu0 0.0
        %3302 = vmatpush1.xpose.msra.mxu0 0.0
        %3303 = vmatprep.subr.mxu0 0.0
        %3304 = vmatpush1.xpose.msra.mxu0 0.0
        %3305 = vmatprep.subr.mxu0 0.0
        %3306 = vmatpush1.xpose.msra.mxu0 0.0
        %3307 = vmatprep.subr.mxu0 0.0
        %3308 = vmatpush1.xpose.msra.mxu0 0.0
        %3309 = vmatprep.subr.mxu0 0.0
        %3310 = vmatpush1.xpose.msra.mxu0 0.0
        %3311 = vmatprep.subr.mxu0 0.0
        %3312 = vmatpush1.xpose.msra.mxu0 0.0
        %3313 = vmatprep.subr.mxu0 %v2380
        %3314 = vmatpush1.xpose.msra.mxu0 %v2379
        %3315 = vmatprep.subr.mxu0 %v2352
        %3316 = vmatpush1.xpose.msra.mxu0 %v2351
        %3317 = vmatprep.subr.mxu0 0.0
        %3318 = vmatpush2.xpose.msra.mxu0 0.0
        %3319 = vmatprep.subr.mxu0 0.0
        %3320 = vmatpush2.xpose.msra.mxu0 0.0
        %3321 = vmatprep.subr.mxu0 0.0
        %3322 = vmatpush2.xpose.msra.mxu0 0.0
        %3323 = vmatprep.subr.mxu0 0.0
        %3324 = vmatpush2.xpose.msra.mxu0 0.0
        %3325 = vmatprep.subr.mxu0 0.0
        %3326 = vmatpush2.xpose.msra.mxu0 0.0
        %3327 = vmatprep.subr.mxu0 0.0
        %3328 = vmatpush2.xpose.msra.mxu0 0.0
        %3329 = vmatprep.subr.mxu0 0.0
        %3330 = vmatpush2.xpose.msra.mxu0 0.0
        %3331 = vmatprep.subr.mxu0 0.0
        %3332 = vmatpush2.xpose.msra.mxu0 0.0
        %3333 = vmatprep.subr.mxu0 0.0
        %3334 = vmatpush2.xpose.msra.mxu0 0.0
        %3335 = vmatprep.subr.mxu0 0.0
        %3336 = vmatpush2.xpose.msra.mxu0 0.0
        %3337 = vmatprep.subr.mxu0 0.0
        %3338 = vmatpush2.xpose.msra.mxu0 0.0
        %3339 = vmatprep.subr.mxu0 0.0
        %3340 = vmatpush2.xpose.msra.mxu0 0.0
        %3341 = vmatprep.subr.mxu0 0.0
        %3342 = vmatpush2.xpose.msra.mxu0 0.0
        %3343 = vmatprep.subr.mxu0 0.0
        %3344 = vmatpush2.xpose.msra.mxu0 0.0
        %3345 = vmatprep.subr.mxu0 0.0
        %3346 = vmatpush2.xpose.msra.mxu0 0.0
        %3347 = vmatprep.subr.mxu0 0.0
        %3348 = vmatpush2.xpose.msra.mxu0 0.0
        %3349 = vmatprep.mubr.f32.mxu0 %v1519
        %3350 = vmatmul.mubr.f32.gmra.mxu0 %v1517
        %v3351 = vpop.f32.mrf.mxu0
        %v3352 = vadd.f32 %v3277, %v3351
        %v3353 = vpop.f32.mrf.mxu0
        %3354 = vmatprep.mubr.f32.mxu0 %v1523
        %3355 = vmatmul.mubr.f32.gmra.mxu0 %v1521
        %v3356 = vpop.f32.mrf.mxu0
        %v3357 = vadd.f32 %v3282, %v3356
        %v3358 = vpop.f32.mrf.mxu0
        %3359 = vdwg.mxu0
        %3360 = vmatprep.subr.mxu0 0.0
        %3361 = vmatpush1.xpose.msra.mxu0 0.0
        %3362 = vmatprep.subr.mxu0 0.0
        %3363 = vmatpush1.xpose.msra.mxu0 0.0
        %3364 = vmatprep.subr.mxu0 0.0
        %3365 = vmatpush1.xpose.msra.mxu0 0.0
        %3366 = vmatprep.subr.mxu0 0.0
        %3367 = vmatpush1.xpose.msra.mxu0 0.0
        %3368 = vmatprep.subr.mxu0 0.0
        %3369 = vmatpush1.xpose.msra.mxu0 0.0
        %3370 = vmatprep.subr.mxu0 0.0
        %3371 = vmatpush1.xpose.msra.mxu0 0.0
        %3372 = vmatprep.subr.mxu0 0.0
        %3373 = vmatpush1.xpose.msra.mxu0 0.0
        %3374 = vmatprep.subr.mxu0 0.0
        %3375 = vmatpush1.xpose.msra.mxu0 0.0
        %3376 = vmatprep.subr.mxu0 0.0
        %3377 = vmatpush1.xpose.msra.mxu0 0.0
        %3378 = vmatprep.subr.mxu0 0.0
        %3379 = vmatpush1.xpose.msra.mxu0 0.0
        %3380 = vmatprep.subr.mxu0 0.0
        %3381 = vmatpush1.xpose.msra.mxu0 0.0
        %3382 = vmatprep.subr.mxu0 0.0
        %3383 = vmatpush1.xpose.msra.mxu0 0.0
        %3384 = vmatprep.subr.mxu0 0.0
        %3385 = vmatpush1.xpose.msra.mxu0 0.0
        %3386 = vmatprep.subr.mxu0 0.0
        %3387 = vmatpush1.xpose.msra.mxu0 0.0
        %3388 = vmatprep.subr.mxu0 %v2382
        %3389 = vmatpush1.xpose.msra.mxu0 %v2381
        %3390 = vmatprep.subr.mxu0 %v2354
        %3391 = vmatpush1.xpose.msra.mxu0 %v2353
        %3392 = vmatprep.subr.mxu0 0.0
        %3393 = vmatpush2.xpose.msra.mxu0 0.0
        %3394 = vmatprep.subr.mxu0 0.0
        %3395 = vmatpush2.xpose.msra.mxu0 0.0
        %3396 = vmatprep.subr.mxu0 0.0
        %3397 = vmatpush2.xpose.msra.mxu0 0.0
        %3398 = vmatprep.subr.mxu0 0.0
        %3399 = vmatpush2.xpose.msra.mxu0 0.0
        %3400 = vmatprep.subr.mxu0 0.0
        %3401 = vmatpush2.xpose.msra.mxu0 0.0
        %3402 = vmatprep.subr.mxu0 0.0
        %3403 = vmatpush2.xpose.msra.mxu0 0.0
        %3404 = vmatprep.subr.mxu0 0.0
        %3405 = vmatpush2.xpose.msra.mxu0 0.0
        %3406 = vmatprep.subr.mxu0 0.0
        %3407 = vmatpush2.xpose.msra.mxu0 0.0
        %3408 = vmatprep.subr.mxu0 0.0
        %3409 = vmatpush2.xpose.msra.mxu0 0.0
        %3410 = vmatprep.subr.mxu0 0.0
        %3411 = vmatpush2.xpose.msra.mxu0 0.0
        %3412 = vmatprep.subr.mxu0 0.0
        %3413 = vmatpush2.xpose.msra.mxu0 0.0
        %3414 = vmatprep.subr.mxu0 0.0
        %3415 = vmatpush2.xpose.msra.mxu0 0.0
        %3416 = vmatprep.subr.mxu0 0.0
        %3417 = vmatpush2.xpose.msra.mxu0 0.0
        %3418 = vmatprep.subr.mxu0 0.0
        %3419 = vmatpush2.xpose.msra.mxu0 0.0
        %3420 = vmatprep.subr.mxu0 0.0
        %3421 = vmatpush2.xpose.msra.mxu0 0.0
        %3422 = vmatprep.subr.mxu0 0.0
        %3423 = vmatpush2.xpose.msra.mxu0 0.0
        %3424 = vmatprep.mubr.f32.mxu0 %v1562
        %3425 = vmatmul.mubr.f32.gmra.mxu0 %v1560
        %v3426 = vpop.f32.mrf.mxu0
        %v3427 = vadd.f32 %v3352, %v3426
        %v3428 = vpop.f32.mrf.mxu0
        %3429 = vmatprep.mubr.f32.mxu0 %v1566
        %3430 = vmatmul.mubr.f32.gmra.mxu0 %v1564
        %v3431 = vpop.f32.mrf.mxu0
        %v3432 = vadd.f32 %v3357, %v3431
        %v3433 = vpop.f32.mrf.mxu0
        %3434 = vdwg.mxu0
        %v3435 = vadd.f32 %v2383, %v3427
        %v3436 = vadd.f32 %v2384, %v3432
        %vm3437 = vcmask 130048
        %3438 = vst.msk [vmem:[#allocation3] sm:$0xff] %vm3437, %v3435
        %vm3439 = vcmask 125952
        %3440 = vst.msk [vmem:[#allocation3 + $0x8] sm:$0xf] %vm3439, %v3436
        %s3441 = scalar_lea.vmem [#allocation2], 8
        %v3442 = vld [vmem:[%s3441] sm:$0xf]
        %v3443 = vld [vmem:[%s3441 + $0x4] sm:$0x3]
        %v3446 = vunpack.c.l.b16 %v3442
        %v3447 = vunpack.c.l.b16 %v3443
        %v3448 = vpack.c.b16 %v3447, %v3446
        %v3450 = vsel %vm962, %v3448, 0
        %3452 = vmatprep.subr.bf16.mxu0 0
        %3453 = vmatpush1.bf16.msra.mxu0 0
        %3454 = vmatprep.subr.bf16.mxu0 0
        %3455 = vmatpush1.bf16.msra.mxu0 0
        %3456 = vmatprep.subr.bf16.mxu0 0
        %3457 = vmatpush1.bf16.msra.mxu0 0
        %3458 = vmatprep.subr.bf16.mxu0 0
        %3459 = vmatpush1.bf16.msra.mxu0 0
        %3460 = vmatprep.subr.bf16.mxu0 0
        %3461 = vmatpush1.bf16.msra.mxu0 0
        %3462 = vmatprep.subr.bf16.mxu0 0
        %3463 = vmatpush1.bf16.msra.mxu0 0
        %3464 = vmatprep.subr.bf16.mxu0 %v879
        %3465 = vmatpush1.bf16.msra.mxu0 %v878
        %3466 = vmatprep.subr.bf16.mxu0 %v851
        %3467 = vmatpush1.bf16.msra.mxu0 %v850
        %3468 = vmatprep.subr.bf16.mxu0 0
        %3469 = vmatpush2.bf16.msra.mxu0 0
        %3470 = vmatprep.subr.bf16.mxu0 0
        %3471 = vmatpush2.bf16.msra.mxu0 0
        %3472 = vmatprep.subr.bf16.mxu0 0
        %3473 = vmatpush2.bf16.msra.mxu0 0
        %3474 = vmatprep.subr.bf16.mxu0 0
        %3475 = vmatpush2.bf16.msra.mxu0 0
        %3476 = vmatprep.subr.bf16.mxu0 0
        %3477 = vmatpush2.bf16.msra.mxu0 0
        %3478 = vmatprep.subr.bf16.mxu0 0
        %3479 = vmatpush2.bf16.msra.mxu0 0
        %3480 = vmatprep.subr.bf16.mxu0 0
        %3481 = vmatpush2.bf16.msra.mxu0 0
        %3482 = vmatprep.subr.bf16.mxu0 0
        %3483 = vmatpush2.bf16.msra.mxu0 0
        %3484 = vmatprep.mubr.bf16.mxu0 0
        %3485 = vmatmul.mubr.bf16.gmra.mxu0 %v3450
        %v3486 = vpop.f32.mrf.mxu0
        %v3487 = vadd.f32 %v540, %v3486
        %v3488 = vpop.f32.mrf.mxu0
        %v3489 = vadd.f32 %v544, %v3488
        %v3490 = vpop.f32.mrf.mxu0
        %v3491 = vadd.f32 %v540, %v3490
        %v3492 = vpop.f32.mrf.mxu0
        %v3493 = vadd.f32 %v544, %v3492
        %3494 = vdwg.mxu0
        %3495 = vmatprep.subr.bf16.mxu0 0
        %3496 = vmatpush1.bf16.msra.mxu0 0
        %3497 = vmatprep.subr.bf16.mxu0 0
        %3498 = vmatpush1.bf16.msra.mxu0 0
        %3499 = vmatprep.subr.bf16.mxu0 0
        %3500 = vmatpush1.bf16.msra.mxu0 0
        %3501 = vmatprep.subr.bf16.mxu0 0
        %3502 = vmatpush1.bf16.msra.mxu0 0
        %3503 = vmatprep.subr.bf16.mxu0 0
        %3504 = vmatpush1.bf16.msra.mxu0 0
        %3505 = vmatprep.subr.bf16.mxu0 0
        %3506 = vmatpush1.bf16.msra.mxu0 0
        %3507 = vmatprep.subr.bf16.mxu0 %v881
        %3508 = vmatpush1.bf16.msra.mxu0 %v880
        %3509 = vmatprep.subr.bf16.mxu0 %v853
        %3510 = vmatpush1.bf16.msra.mxu0 %v852
        %3511 = vmatprep.subr.bf16.mxu0 0
        %3512 = vmatpush2.bf16.msra.mxu0 0
        %3513 = vmatprep.subr.bf16.mxu0 0
        %3514 = vmatpush2.bf16.msra.mxu0 0
        %3515 = vmatprep.subr.bf16.mxu0 0
        %3516 = vmatpush2.bf16.msra.mxu0 0
        %3517 = vmatprep.subr.bf16.mxu0 0
        %3518 = vmatpush2.bf16.msra.mxu0 0
        %3519 = vmatprep.subr.bf16.mxu0 0
        %3520 = vmatpush2.bf16.msra.mxu0 0
        %3521 = vmatprep.subr.bf16.mxu0 0
        %3522 = vmatpush2.bf16.msra.mxu0 0
        %3523 = vmatprep.subr.bf16.mxu0 0
        %3524 = vmatpush2.bf16.msra.mxu0 0
        %3525 = vmatprep.subr.bf16.mxu0 0
        %3526 = vmatpush2.bf16.msra.mxu0 0
        %3527 = vmatprep.mubr.bf16.mxu0 0
        %3528 = vmatmul.mubr.bf16.gmra.mxu0 %v3450
        %v3529 = vpop.f32.mrf.mxu0
        %v3530 = vadd.f32 %v548, %v3529
        %v3531 = vpop.f32.mrf.mxu0
        %v3532 = vadd.f32 %v552, %v3531
        %v3533 = vpop.f32.mrf.mxu0
        %v3534 = vadd.f32 %v548, %v3533
        %v3535 = vpop.f32.mrf.mxu0
        %v3536 = vadd.f32 %v552, %v3535
        %3537 = vdwg.mxu0
        %3538 = vmatprep.subr.bf16.mxu0 0
        %3539 = vmatpush1.bf16.msra.mxu0 0
        %3540 = vmatprep.subr.bf16.mxu0 0
        %3541 = vmatpush1.bf16.msra.mxu0 0
        %3542 = vmatprep.subr.bf16.mxu0 0
        %3543 = vmatpush1.bf16.msra.mxu0 0
        %3544 = vmatprep.subr.bf16.mxu0 0
        %3545 = vmatpush1.bf16.msra.mxu0 0
        %3546 = vmatprep.subr.bf16.mxu0 0
        %3547 = vmatpush1.bf16.msra.mxu0 0
        %3548 = vmatprep.subr.bf16.mxu0 0
        %3549 = vmatpush1.bf16.msra.mxu0 0
        %3550 = vmatprep.subr.bf16.mxu0 %v883
        %3551 = vmatpush1.bf16.msra.mxu0 %v882
        %3552 = vmatprep.subr.bf16.mxu0 %v855
        %3553 = vmatpush1.bf16.msra.mxu0 %v854
        %3554 = vmatprep.subr.bf16.mxu0 0
        %3555 = vmatpush2.bf16.msra.mxu0 0
        %3556 = vmatprep.subr.bf16.mxu0 0
        %3557 = vmatpush2.bf16.msra.mxu0 0
        %3558 = vmatprep.subr.bf16.mxu0 0
        %3559 = vmatpush2.bf16.msra.mxu0 0
        %3560 = vmatprep.subr.bf16.mxu0 0
        %3561 = vmatpush2.bf16.msra.mxu0 0
        %3562 = vmatprep.subr.bf16.mxu0 0
        %3563 = vmatpush2.bf16.msra.mxu0 0
        %3564 = vmatprep.subr.bf16.mxu0 0
        %3565 = vmatpush2.bf16.msra.mxu0 0
        %3566 = vmatprep.subr.bf16.mxu0 0
        %3567 = vmatpush2.bf16.msra.mxu0 0
        %3568 = vmatprep.subr.bf16.mxu0 0
        %3569 = vmatpush2.bf16.msra.mxu0 0
        %3570 = vmatprep.mubr.bf16.mxu0 0
        %3571 = vmatmul.mubr.bf16.gmra.mxu0 %v3450
        %v3572 = vpop.f32.mrf.mxu0
        %v3573 = vadd.f32 %v556, %v3572
        %v3574 = vpop.f32.mrf.mxu0
        %v3575 = vadd.f32 %v560, %v3574
        %v3576 = vpop.f32.mrf.mxu0
        %v3577 = vadd.f32 %v556, %v3576
        %v3578 = vpop.f32.mrf.mxu0
        %v3579 = vadd.f32 %v560, %v3578
        %3580 = vdwg.mxu0
        %3581 = vmatprep.subr.bf16.mxu0 0
        %3582 = vmatpush1.bf16.msra.mxu0 0
        %3583 = vmatprep.subr.bf16.mxu0 0
        %3584 = vmatpush1.bf16.msra.mxu0 0
        %3585 = vmatprep.subr.bf16.mxu0 0
        %3586 = vmatpush1.bf16.msra.mxu0 0
        %3587 = vmatprep.subr.bf16.mxu0 0
        %3588 = vmatpush1.bf16.msra.mxu0 0
        %3589 = vmatprep.subr.bf16.mxu0 0
        %3590 = vmatpush1.bf16.msra.mxu0 0
        %3591 = vmatprep.subr.bf16.mxu0 0
        %3592 = vmatpush1.bf16.msra.mxu0 0
        %3593 = vmatprep.subr.bf16.mxu0 %v885
        %3594 = vmatpush1.bf16.msra.mxu0 %v884
        %3595 = vmatprep.subr.bf16.mxu0 %v857
        %3596 = vmatpush1.bf16.msra.mxu0 %v856
        %3597 = vmatprep.subr.bf16.mxu0 0
        %3598 = vmatpush2.bf16.msra.mxu0 0
        %3599 = vmatprep.subr.bf16.mxu0 0
        %3600 = vmatpush2.bf16.msra.mxu0 0
        %3601 = vmatprep.subr.bf16.mxu0 0
        %3602 = vmatpush2.bf16.msra.mxu0 0
        %3603 = vmatprep.subr.bf16.mxu0 0
        %3604 = vmatpush2.bf16.msra.mxu0 0
        %3605 = vmatprep.subr.bf16.mxu0 0
        %3606 = vmatpush2.bf16.msra.mxu0 0
        %3607 = vmatprep.subr.bf16.mxu0 0
        %3608 = vmatpush2.bf16.msra.mxu0 0
        %3609 = vmatprep.subr.bf16.mxu0 0
        %3610 = vmatpush2.bf16.msra.mxu0 0
        %3611 = vmatprep.subr.bf16.mxu0 0
        %3612 = vmatpush2.bf16.msra.mxu0 0
        %3613 = vmatprep.mubr.bf16.mxu0 0
        %3614 = vmatmul.mubr.bf16.gmra.mxu0 %v3450
        %v3615 = vpop.f32.mrf.mxu0
        %v3616 = vadd.f32 %v564, %v3615
        %v3617 = vpop.f32.mrf.mxu0
        %v3618 = vadd.f32 %v568, %v3617
        %v3619 = vpop.f32.mrf.mxu0
        %v3620 = vadd.f32 %v564, %v3619
        %v3621 = vpop.f32.mrf.mxu0
        %v3622 = vadd.f32 %v568, %v3621
        %3623 = vdwg.mxu0
        %3624 = vmatprep.subr.bf16.mxu0 0
        %3625 = vmatpush1.bf16.msra.mxu0 0
        %3626 = vmatprep.subr.bf16.mxu0 0
        %3627 = vmatpush1.bf16.msra.mxu0 0
        %3628 = vmatprep.subr.bf16.mxu0 0
        %3629 = vmatpush1.bf16.msra.mxu0 0
        %3630 = vmatprep.subr.bf16.mxu0 0
        %3631 = vmatpush1.bf16.msra.mxu0 0
        %3632 = vmatprep.subr.bf16.mxu0 0
        %3633 = vmatpush1.bf16.msra.mxu0 0
        %3634 = vmatprep.subr.bf16.mxu0 0
        %3635 = vmatpush1.bf16.msra.mxu0 0
        %3636 = vmatprep.subr.bf16.mxu0 %v887
        %3637 = vmatpush1.bf16.msra.mxu0 %v886
        %3638 = vmatprep.subr.bf16.mxu0 %v859
        %3639 = vmatpush1.bf16.msra.mxu0 %v858
        %3640 = vmatprep.subr.bf16.mxu0 0
        %3641 = vmatpush2.bf16.msra.mxu0 0
        %3642 = vmatprep.subr.bf16.mxu0 0
        %3643 = vmatpush2.bf16.msra.mxu0 0
        %3644 = vmatprep.subr.bf16.mxu0 0
        %3645 = vmatpush2.bf16.msra.mxu0 0
        %3646 = vmatprep.subr.bf16.mxu0 0
        %3647 = vmatpush2.bf16.msra.mxu0 0
        %3648 = vmatprep.subr.bf16.mxu0 0
        %3649 = vmatpush2.bf16.msra.mxu0 0
        %3650 = vmatprep.subr.bf16.mxu0 0
        %3651 = vmatpush2.bf16.msra.mxu0 0
        %3652 = vmatprep.subr.bf16.mxu0 0
        %3653 = vmatpush2.bf16.msra.mxu0 0
        %3654 = vmatprep.subr.bf16.mxu0 0
        %3655 = vmatpush2.bf16.msra.mxu0 0
        %3656 = vmatprep.mubr.bf16.mxu0 0
        %3657 = vmatmul.mubr.bf16.gmra.mxu0 %v3450
        %v3658 = vpop.f32.mrf.mxu0
        %v3659 = vadd.f32 %v572, %v3658
        %v3660 = vpop.f32.mrf.mxu0
        %v3661 = vadd.f32 %v576, %v3660
        %v3662 = vpop.f32.mrf.mxu0
        %v3663 = vadd.f32 %v572, %v3662
        %v3664 = vpop.f32.mrf.mxu0
        %v3665 = vadd.f32 %v576, %v3664
        %3666 = vdwg.mxu0
        %3667 = vmatprep.subr.bf16.mxu0 0
        %3668 = vmatpush1.bf16.msra.mxu0 0
        %3669 = vmatprep.subr.bf16.mxu0 0
        %3670 = vmatpush1.bf16.msra.mxu0 0
        %3671 = vmatprep.subr.bf16.mxu0 0
        %3672 = vmatpush1.bf16.msra.mxu0 0
        %3673 = vmatprep.subr.bf16.mxu0 0
        %3674 = vmatpush1.bf16.msra.mxu0 0
        %3675 = vmatprep.subr.bf16.mxu0 0
        %3676 = vmatpush1.bf16.msra.mxu0 0
        %3677 = vmatprep.subr.bf16.mxu0 0
        %3678 = vmatpush1.bf16.msra.mxu0 0
        %3679 = vmatprep.subr.bf16.mxu0 %v889
        %3680 = vmatpush1.bf16.msra.mxu0 %v888
        %3681 = vmatprep.subr.bf16.mxu0 %v861
        %3682 = vmatpush1.bf16.msra.mxu0 %v860
        %3683 = vmatprep.subr.bf16.mxu0 0
        %3684 = vmatpush2.bf16.msra.mxu0 0
        %3685 = vmatprep.subr.bf16.mxu0 0
        %3686 = vmatpush2.bf16.msra.mxu0 0
        %3687 = vmatprep.subr.bf16.mxu0 0
        %3688 = vmatpush2.bf16.msra.mxu0 0
        %3689 = vmatprep.subr.bf16.mxu0 0
        %3690 = vmatpush2.bf16.msra.mxu0 0
        %3691 = vmatprep.subr.bf16.mxu0 0
        %3692 = vmatpush2.bf16.msra.mxu0 0
        %3693 = vmatprep.subr.bf16.mxu0 0
        %3694 = vmatpush2.bf16.msra.mxu0 0
        %3695 = vmatprep.subr.bf16.mxu0 0
        %3696 = vmatpush2.bf16.msra.mxu0 0
        %3697 = vmatprep.subr.bf16.mxu0 0
        %3698 = vmatpush2.bf16.msra.mxu0 0
        %3699 = vmatprep.mubr.bf16.mxu0 0
        %3700 = vmatmul.mubr.bf16.gmra.mxu0 %v3450
        %v3701 = vpop.f32.mrf.mxu0
        %v3702 = vadd.f32 %v580, %v3701
        %v3703 = vpop.f32.mrf.mxu0
        %v3704 = vadd.f32 %v584, %v3703
        %v3705 = vpop.f32.mrf.mxu0
        %v3706 = vadd.f32 %v580, %v3705
        %v3707 = vpop.f32.mrf.mxu0
        %v3708 = vadd.f32 %v584, %v3707
        %3709 = vdwg.mxu0
        %3710 = vmatprep.subr.bf16.mxu0 0
        %3711 = vmatpush1.bf16.msra.mxu0 0
        %3712 = vmatprep.subr.bf16.mxu0 0
        %3713 = vmatpush1.bf16.msra.mxu0 0
        %3714 = vmatprep.subr.bf16.mxu0 0
        %3715 = vmatpush1.bf16.msra.mxu0 0
        %3716 = vmatprep.subr.bf16.mxu0 0
        %3717 = vmatpush1.bf16.msra.mxu0 0
        %3718 = vmatprep.subr.bf16.mxu0 0
        %3719 = vmatpush1.bf16.msra.mxu0 0
        %3720 = vmatprep.subr.bf16.mxu0 0
        %3721 = vmatpush1.bf16.msra.mxu0 0
        %3722 = vmatprep.subr.bf16.mxu0 %v891
        %3723 = vmatpush1.bf16.msra.mxu0 %v890
        %3724 = vmatprep.subr.bf16.mxu0 %v863
        %3725 = vmatpush1.bf16.msra.mxu0 %v862
        %3726 = vmatprep.subr.bf16.mxu0 0
        %3727 = vmatpush2.bf16.msra.mxu0 0
        %3728 = vmatprep.subr.bf16.mxu0 0
        %3729 = vmatpush2.bf16.msra.mxu0 0
        %3730 = vmatprep.subr.bf16.mxu0 0
        %3731 = vmatpush2.bf16.msra.mxu0 0
        %3732 = vmatprep.subr.bf16.mxu0 0
        %3733 = vmatpush2.bf16.msra.mxu0 0
        %3734 = vmatprep.subr.bf16.mxu0 0
        %3735 = vmatpush2.bf16.msra.mxu0 0
        %3736 = vmatprep.subr.bf16.mxu0 0
        %3737 = vmatpush2.bf16.msra.mxu0 0
        %3738 = vmatprep.subr.bf16.mxu0 0
        %3739 = vmatpush2.bf16.msra.mxu0 0
        %3740 = vmatprep.subr.bf16.mxu0 0
        %3741 = vmatpush2.bf16.msra.mxu0 0
        %3742 = vmatprep.mubr.bf16.mxu0 0
        %3743 = vmatmul.mubr.bf16.gmra.mxu0 %v3450
        %v3744 = vpop.f32.mrf.mxu0
        %v3745 = vadd.f32 %v588, %v3744
        %v3746 = vpop.f32.mrf.mxu0
        %v3747 = vadd.f32 %v592, %v3746
        %v3748 = vpop.f32.mrf.mxu0
        %v3749 = vadd.f32 %v588, %v3748
        %v3750 = vpop.f32.mrf.mxu0
        %v3751 = vadd.f32 %v592, %v3750
        %3752 = vdwg.mxu0
        %3753 = vmatprep.subr.bf16.mxu0 0
        %3754 = vmatpush1.bf16.msra.mxu0 0
        %3755 = vmatprep.subr.bf16.mxu0 0
        %3756 = vmatpush1.bf16.msra.mxu0 0
        %3757 = vmatprep.subr.bf16.mxu0 0
        %3758 = vmatpush1.bf16.msra.mxu0 0
        %3759 = vmatprep.subr.bf16.mxu0 0
        %3760 = vmatpush1.bf16.msra.mxu0 0
        %3761 = vmatprep.subr.bf16.mxu0 0
        %3762 = vmatpush1.bf16.msra.mxu0 0
        %3763 = vmatprep.subr.bf16.mxu0 0
        %3764 = vmatpush1.bf16.msra.mxu0 0
        %3765 = vmatprep.subr.bf16.mxu0 %v893
        %3766 = vmatpush1.bf16.msra.mxu0 %v892
        %3767 = vmatprep.subr.bf16.mxu0 %v865
        %3768 = vmatpush1.bf16.msra.mxu0 %v864
        %3769 = vmatprep.subr.bf16.mxu0 0
        %3770 = vmatpush2.bf16.msra.mxu0 0
        %3771 = vmatprep.subr.bf16.mxu0 0
        %3772 = vmatpush2.bf16.msra.mxu0 0
        %3773 = vmatprep.subr.bf16.mxu0 0
        %3774 = vmatpush2.bf16.msra.mxu0 0
        %3775 = vmatprep.subr.bf16.mxu0 0
        %3776 = vmatpush2.bf16.msra.mxu0 0
        %3777 = vmatprep.subr.bf16.mxu0 0
        %3778 = vmatpush2.bf16.msra.mxu0 0
        %3779 = vmatprep.subr.bf16.mxu0 0
        %3780 = vmatpush2.bf16.msra.mxu0 0
        %3781 = vmatprep.subr.bf16.mxu0 0
        %3782 = vmatpush2.bf16.msra.mxu0 0
        %3783 = vmatprep.subr.bf16.mxu0 0
        %3784 = vmatpush2.bf16.msra.mxu0 0
        %3785 = vmatprep.mubr.bf16.mxu0 0
        %3786 = vmatmul.mubr.bf16.gmra.mxu0 %v3450
        %v3787 = vpop.f32.mrf.mxu0
        %v3788 = vadd.f32 %v596, %v3787
        %v3789 = vpop.f32.mrf.mxu0
        %v3790 = vadd.f32 %v600, %v3789
        %v3791 = vpop.f32.mrf.mxu0
        %v3792 = vadd.f32 %v596, %v3791
        %v3793 = vpop.f32.mrf.mxu0
        %v3794 = vadd.f32 %v600, %v3793
        %3795 = vdwg.mxu0
        %3796 = vmatprep.subr.bf16.mxu0 0
        %3797 = vmatpush1.bf16.msra.mxu0 0
        %3798 = vmatprep.subr.bf16.mxu0 0
        %3799 = vmatpush1.bf16.msra.mxu0 0
        %3800 = vmatprep.subr.bf16.mxu0 0
        %3801 = vmatpush1.bf16.msra.mxu0 0
        %3802 = vmatprep.subr.bf16.mxu0 0
        %3803 = vmatpush1.bf16.msra.mxu0 0
        %3804 = vmatprep.subr.bf16.mxu0 0
        %3805 = vmatpush1.bf16.msra.mxu0 0
        %3806 = vmatprep.subr.bf16.mxu0 0
        %3807 = vmatpush1.bf16.msra.mxu0 0
        %3808 = vmatprep.subr.bf16.mxu0 %v895
        %3809 = vmatpush1.bf16.msra.mxu0 %v894
        %3810 = vmatprep.subr.bf16.mxu0 %v867
        %3811 = vmatpush1.bf16.msra.mxu0 %v866
        %3812 = vmatprep.subr.bf16.mxu0 0
        %3813 = vmatpush2.bf16.msra.mxu0 0
        %3814 = vmatprep.subr.bf16.mxu0 0
        %3815 = vmatpush2.bf16.msra.mxu0 0
        %3816 = vmatprep.subr.bf16.mxu0 0
        %3817 = vmatpush2.bf16.msra.mxu0 0
        %3818 = vmatprep.subr.bf16.mxu0 0
        %3819 = vmatpush2.bf16.msra.mxu0 0
        %3820 = vmatprep.subr.bf16.mxu0 0
        %3821 = vmatpush2.bf16.msra.mxu0 0
        %3822 = vmatprep.subr.bf16.mxu0 0
        %3823 = vmatpush2.bf16.msra.mxu0 0
        %3824 = vmatprep.subr.bf16.mxu0 0
        %3825 = vmatpush2.bf16.msra.mxu0 0
        %3826 = vmatprep.subr.bf16.mxu0 0
        %3827 = vmatpush2.bf16.msra.mxu0 0
        %3828 = vmatprep.mubr.bf16.mxu0 0
        %3829 = vmatmul.mubr.bf16.gmra.mxu0 %v3450
        %v3830 = vpop.f32.mrf.mxu0
        %v3831 = vadd.f32 %v604, %v3830
        %v3832 = vpop.f32.mrf.mxu0
        %v3833 = vadd.f32 %v608, %v3832
        %v3834 = vpop.f32.mrf.mxu0
        %v3835 = vadd.f32 %v604, %v3834
        %v3836 = vpop.f32.mrf.mxu0
        %v3837 = vadd.f32 %v608, %v3836
        %3838 = vdwg.mxu0
        %3839 = vmatprep.subr.bf16.mxu0 0
        %3840 = vmatpush1.bf16.msra.mxu0 0
        %3841 = vmatprep.subr.bf16.mxu0 0
        %3842 = vmatpush1.bf16.msra.mxu0 0
        %3843 = vmatprep.subr.bf16.mxu0 0
        %3844 = vmatpush1.bf16.msra.mxu0 0
        %3845 = vmatprep.subr.bf16.mxu0 0
        %3846 = vmatpush1.bf16.msra.mxu0 0
        %3847 = vmatprep.subr.bf16.mxu0 0
        %3848 = vmatpush1.bf16.msra.mxu0 0
        %3849 = vmatprep.subr.bf16.mxu0 0
        %3850 = vmatpush1.bf16.msra.mxu0 0
        %3851 = vmatprep.subr.bf16.mxu0 %v897
        %3852 = vmatpush1.bf16.msra.mxu0 %v896
        %3853 = vmatprep.subr.bf16.mxu0 %v869
        %3854 = vmatpush1.bf16.msra.mxu0 %v868
        %3855 = vmatprep.subr.bf16.mxu0 0
        %3856 = vmatpush2.bf16.msra.mxu0 0
        %3857 = vmatprep.subr.bf16.mxu0 0
        %3858 = vmatpush2.bf16.msra.mxu0 0
        %3859 = vmatprep.subr.bf16.mxu0 0
        %3860 = vmatpush2.bf16.msra.mxu0 0
        %3861 = vmatprep.subr.bf16.mxu0 0
        %3862 = vmatpush2.bf16.msra.mxu0 0
        %3863 = vmatprep.subr.bf16.mxu0 0
        %3864 = vmatpush2.bf16.msra.mxu0 0
        %3865 = vmatprep.subr.bf16.mxu0 0
        %3866 = vmatpush2.bf16.msra.mxu0 0
        %3867 = vmatprep.subr.bf16.mxu0 0
        %3868 = vmatpush2.bf16.msra.mxu0 0
        %3869 = vmatprep.subr.bf16.mxu0 0
        %3870 = vmatpush2.bf16.msra.mxu0 0
        %3871 = vmatprep.mubr.bf16.mxu0 0
        %3872 = vmatmul.mubr.bf16.gmra.mxu0 %v3450
        %v3873 = vpop.f32.mrf.mxu0
        %v3874 = vadd.f32 %v612, %v3873
        %v3875 = vpop.f32.mrf.mxu0
        %v3876 = vadd.f32 %v616, %v3875
        %v3877 = vpop.f32.mrf.mxu0
        %v3878 = vadd.f32 %v612, %v3877
        %v3879 = vpop.f32.mrf.mxu0
        %v3880 = vadd.f32 %v616, %v3879
        %3881 = vdwg.mxu0
        %3882 = vmatprep.subr.bf16.mxu0 0
        %3883 = vmatpush1.bf16.msra.mxu0 0
        %3884 = vmatprep.subr.bf16.mxu0 0
        %3885 = vmatpush1.bf16.msra.mxu0 0
        %3886 = vmatprep.subr.bf16.mxu0 0
        %3887 = vmatpush1.bf16.msra.mxu0 0
        %3888 = vmatprep.subr.bf16.mxu0 0
        %3889 = vmatpush1.bf16.msra.mxu0 0
        %3890 = vmatprep.subr.bf16.mxu0 0
        %3891 = vmatpush1.bf16.msra.mxu0 0
        %3892 = vmatprep.subr.bf16.mxu0 0
        %3893 = vmatpush1.bf16.msra.mxu0 0
        %3894 = vmatprep.subr.bf16.mxu0 %v899
        %3895 = vmatpush1.bf16.msra.mxu0 %v898
        %3896 = vmatprep.subr.bf16.mxu0 %v871
        %3897 = vmatpush1.bf16.msra.mxu0 %v870
        %3898 = vmatprep.subr.bf16.mxu0 0
        %3899 = vmatpush2.bf16.msra.mxu0 0
        %3900 = vmatprep.subr.bf16.mxu0 0
        %3901 = vmatpush2.bf16.msra.mxu0 0
        %3902 = vmatprep.subr.bf16.mxu0 0
        %3903 = vmatpush2.bf16.msra.mxu0 0
        %3904 = vmatprep.subr.bf16.mxu0 0
        %3905 = vmatpush2.bf16.msra.mxu0 0
        %3906 = vmatprep.subr.bf16.mxu0 0
        %3907 = vmatpush2.bf16.msra.mxu0 0
        %3908 = vmatprep.subr.bf16.mxu0 0
        %3909 = vmatpush2.bf16.msra.mxu0 0
        %3910 = vmatprep.subr.bf16.mxu0 0
        %3911 = vmatpush2.bf16.msra.mxu0 0
        %3912 = vmatprep.subr.bf16.mxu0 0
        %3913 = vmatpush2.bf16.msra.mxu0 0
        %3914 = vmatprep.mubr.bf16.mxu0 0
        %3915 = vmatmul.mubr.bf16.gmra.mxu0 %v3450
        %v3916 = vpop.f32.mrf.mxu0
        %v3917 = vadd.f32 %v620, %v3916
        %v3918 = vpop.f32.mrf.mxu0
        %v3919 = vadd.f32 %v624, %v3918
        %v3920 = vpop.f32.mrf.mxu0
        %v3921 = vadd.f32 %v620, %v3920
        %v3922 = vpop.f32.mrf.mxu0
        %v3923 = vadd.f32 %v624, %v3922
        %3924 = vdwg.mxu0
        %3925 = vmatprep.subr.bf16.mxu0 0
        %3926 = vmatpush1.bf16.msra.mxu0 0
        %3927 = vmatprep.subr.bf16.mxu0 0
        %3928 = vmatpush1.bf16.msra.mxu0 0
        %3929 = vmatprep.subr.bf16.mxu0 0
        %3930 = vmatpush1.bf16.msra.mxu0 0
        %3931 = vmatprep.subr.bf16.mxu0 0
        %3932 = vmatpush1.bf16.msra.mxu0 0
        %3933 = vmatprep.subr.bf16.mxu0 0
        %3934 = vmatpush1.bf16.msra.mxu0 0
        %3935 = vmatprep.subr.bf16.mxu0 0
        %3936 = vmatpush1.bf16.msra.mxu0 0
        %3937 = vmatprep.subr.bf16.mxu0 %v901
        %3938 = vmatpush1.bf16.msra.mxu0 %v900
        %3939 = vmatprep.subr.bf16.mxu0 %v873
        %3940 = vmatpush1.bf16.msra.mxu0 %v872
        %3941 = vmatprep.subr.bf16.mxu0 0
        %3942 = vmatpush2.bf16.msra.mxu0 0
        %3943 = vmatprep.subr.bf16.mxu0 0
        %3944 = vmatpush2.bf16.msra.mxu0 0
        %3945 = vmatprep.subr.bf16.mxu0 0
        %3946 = vmatpush2.bf16.msra.mxu0 0
        %3947 = vmatprep.subr.bf16.mxu0 0
        %3948 = vmatpush2.bf16.msra.mxu0 0
        %3949 = vmatprep.subr.bf16.mxu0 0
        %3950 = vmatpush2.bf16.msra.mxu0 0
        %3951 = vmatprep.subr.bf16.mxu0 0
        %3952 = vmatpush2.bf16.msra.mxu0 0
        %3953 = vmatprep.subr.bf16.mxu0 0
        %3954 = vmatpush2.bf16.msra.mxu0 0
        %3955 = vmatprep.subr.bf16.mxu0 0
        %3956 = vmatpush2.bf16.msra.mxu0 0
        %3957 = vmatprep.mubr.bf16.mxu0 0
        %3958 = vmatmul.mubr.bf16.gmra.mxu0 %v3450
        %v3959 = vpop.f32.mrf.mxu0
        %v3960 = vadd.f32 %v628, %v3959
        %v3961 = vpop.f32.mrf.mxu0
        %v3962 = vadd.f32 %v632, %v3961
        %v3963 = vpop.f32.mrf.mxu0
        %v3964 = vadd.f32 %v628, %v3963
        %v3965 = vpop.f32.mrf.mxu0
        %v3966 = vadd.f32 %v632, %v3965
        %3967 = vdwg.mxu0
        %3968 = vmatprep.subr.bf16.mxu0 0
        %3969 = vmatpush1.bf16.msra.mxu0 0
        %3970 = vmatprep.subr.bf16.mxu0 0
        %3971 = vmatpush1.bf16.msra.mxu0 0
        %3972 = vmatprep.subr.bf16.mxu0 0
        %3973 = vmatpush1.bf16.msra.mxu0 0
        %3974 = vmatprep.subr.bf16.mxu0 0
        %3975 = vmatpush1.bf16.msra.mxu0 0
        %3976 = vmatprep.subr.bf16.mxu0 0
        %3977 = vmatpush1.bf16.msra.mxu0 0
        %3978 = vmatprep.subr.bf16.mxu0 0
        %3979 = vmatpush1.bf16.msra.mxu0 0
        %3980 = vmatprep.subr.bf16.mxu0 %v903
        %3981 = vmatpush1.bf16.msra.mxu0 %v902
        %3982 = vmatprep.subr.bf16.mxu0 %v875
        %3983 = vmatpush1.bf16.msra.mxu0 %v874
        %3984 = vmatprep.subr.bf16.mxu0 0
        %3985 = vmatpush2.bf16.msra.mxu0 0
        %3986 = vmatprep.subr.bf16.mxu0 0
        %3987 = vmatpush2.bf16.msra.mxu0 0
        %3988 = vmatprep.subr.bf16.mxu0 0
        %3989 = vmatpush2.bf16.msra.mxu0 0
        %3990 = vmatprep.subr.bf16.mxu0 0
        %3991 = vmatpush2.bf16.msra.mxu0 0
        %3992 = vmatprep.subr.bf16.mxu0 0
        %3993 = vmatpush2.bf16.msra.mxu0 0
        %3994 = vmatprep.subr.bf16.mxu0 0
        %3995 = vmatpush2.bf16.msra.mxu0 0
        %3996 = vmatprep.subr.bf16.mxu0 0
        %3997 = vmatpush2.bf16.msra.mxu0 0
        %3998 = vmatprep.subr.bf16.mxu0 0
        %3999 = vmatpush2.bf16.msra.mxu0 0
        %4000 = vmatprep.mubr.bf16.mxu0 0
        %4001 = vmatmul.mubr.bf16.gmra.mxu0 %v3450
        %v4002 = vpop.f32.mrf.mxu0
        %v4003 = vadd.f32 %v636, %v4002
        %v4004 = vpop.f32.mrf.mxu0
        %v4005 = vadd.f32 %v640, %v4004
        %v4006 = vpop.f32.mrf.mxu0
        %v4007 = vadd.f32 %v636, %v4006
        %v4008 = vpop.f32.mrf.mxu0
        %v4009 = vadd.f32 %v640, %v4008
        %4010 = vdwg.mxu0
        %4011 = vmatprep.subr.bf16.mxu0 0
        %4012 = vmatpush1.bf16.msra.mxu0 0
        %4013 = vmatprep.subr.bf16.mxu0 0
        %4014 = vmatpush1.bf16.msra.mxu0 0
        %4015 = vmatprep.subr.bf16.mxu0 0
        %4016 = vmatpush1.bf16.msra.mxu0 0
        %4017 = vmatprep.subr.bf16.mxu0 0
        %4018 = vmatpush1.bf16.msra.mxu0 0
        %4019 = vmatprep.subr.bf16.mxu0 0
        %4020 = vmatpush1.bf16.msra.mxu0 0
        %4021 = vmatprep.subr.bf16.mxu0 0
        %4022 = vmatpush1.bf16.msra.mxu0 0
        %4023 = vmatprep.subr.bf16.mxu0 %v905
        %4024 = vmatpush1.bf16.msra.mxu0 %v904
        %4025 = vmatprep.subr.bf16.mxu0 %v877
        %4026 = vmatpush1.bf16.msra.mxu0 %v876
        %4027 = vmatprep.subr.bf16.mxu0 0
        %4028 = vmatpush2.bf16.msra.mxu0 0
        %4029 = vmatprep.subr.bf16.mxu0 0
        %4030 = vmatpush2.bf16.msra.mxu0 0
        %4031 = vmatprep.subr.bf16.mxu0 0
        %4032 = vmatpush2.bf16.msra.mxu0 0
        %4033 = vmatprep.subr.bf16.mxu0 0
        %4034 = vmatpush2.bf16.msra.mxu0 0
        %4035 = vmatprep.subr.bf16.mxu0 0
        %4036 = vmatpush2.bf16.msra.mxu0 0
        %4037 = vmatprep.subr.bf16.mxu0 0
        %4038 = vmatpush2.bf16.msra.mxu0 0
        %4039 = vmatprep.subr.bf16.mxu0 0
        %4040 = vmatpush2.bf16.msra.mxu0 0
        %4041 = vmatprep.subr.bf16.mxu0 0
        %4042 = vmatpush2.bf16.msra.mxu0 0
        %4043 = vmatprep.mubr.bf16.mxu0 0
        %4044 = vmatmul.mubr.bf16.gmra.mxu0 %v3450
        %v4045 = vpop.f32.mrf.mxu0
        %v4046 = vadd.f32 %v644, %v4045
        %v4047 = vpop.f32.mrf.mxu0
        %v4048 = vadd.f32 %v648, %v4047
        %v4049 = vpop.f32.mrf.mxu0
        %v4050 = vadd.f32 %v644, %v4049
        %v4051 = vpop.f32.mrf.mxu0
        %v4052 = vadd.f32 %v648, %v4051
        %4053 = vdwg.mxu0
        %v4054 = vmax.f32 %v3487, %v3530
        %v4055 = vmax.f32 %v3489, %v3532
        %v4056 = vmax.f32 %v4054, %v3573
        %v4057 = vmax.f32 %v4055, %v3575
        %v4058 = vmax.f32 %v4056, %v3616
        %v4059 = vmax.f32 %v4057, %v3618
        %v4060 = vmax.f32 %v4058, %v3659
        %v4061 = vmax.f32 %v4059, %v3661
        %v4062 = vmax.f32 %v4060, %v3702
        %v4063 = vmax.f32 %v4061, %v3704
        %v4064 = vmax.f32 %v4062, %v3745
        %v4065 = vmax.f32 %v4063, %v3747
        %v4066 = vmax.f32 %v4064, %v3788
        %v4067 = vmax.f32 %v4065, %v3790
        %v4068 = vmax.f32 %v4066, %v3831
        %v4069 = vmax.f32 %v4067, %v3833
        %v4070 = vmax.f32 %v4068, %v3874
        %v4071 = vmax.f32 %v4069, %v3876
        %v4072 = vmax.f32 %v4070, %v3917
        %v4073 = vmax.f32 %v4071, %v3919
        %v4074 = vmax.f32 %v4072, %v3960
        %v4075 = vmax.f32 %v4073, %v3962
        %v4076 = vmax.f32 %v4074, %v4003
        %v4077 = vmax.f32 %v4075, %v4005
        %v4078 = vmax.f32 %v4076, %v4046
        %v4079 = vmax.f32 %v4077, %v4048
        %v4080 = vmax.f32 %v4078, %v4079
        %4081 = vmax.xlane.f32.xlu0 %v4080
        %v4082 = vpop.xlane.xlu0 %4081
        %v4083 = vsel %vm1597, %v3491, -inf
        %v4084 = vsel %vm1597, %v3493, -inf
        %v4085 = vsel %vm1597, %v3534, -inf
        %v4086 = vmax.f32 %v4083, %v4085
        %v4087 = vsel %vm1597, %v3536, -inf
        %v4088 = vmax.f32 %v4084, %v4087
        %v4089 = vsel %vm1597, %v3577, -inf
        %v4090 = vmax.f32 %v4086, %v4089
        %v4091 = vsel %vm1597, %v3579, -inf
        %v4092 = vmax.f32 %v4088, %v4091
        %v4093 = vsel %vm1597, %v3620, -inf
        %v4094 = vmax.f32 %v4090, %v4093
        %v4095 = vsel %vm1597, %v3622, -inf
        %v4096 = vmax.f32 %v4092, %v4095
        %v4097 = vsel %vm1597, %v3663, -inf
        %v4098 = vmax.f32 %v4094, %v4097
        %v4099 = vsel %vm1597, %v3665, -inf
        %v4100 = vmax.f32 %v4096, %v4099
        %v4101 = vsel %vm1597, %v3706, -inf
        %v4102 = vmax.f32 %v4098, %v4101
        %v4103 = vsel %vm1597, %v3708, -inf
        %v4104 = vmax.f32 %v4100, %v4103
        %v4105 = vsel %vm1597, %v3749, -inf
        %v4106 = vmax.f32 %v4102, %v4105
        %v4107 = vsel %vm1597, %v3751, -inf
        %v4108 = vmax.f32 %v4104, %v4107
        %v4109 = vsel %vm1597, %v3792, -inf
        %v4110 = vmax.f32 %v4106, %v4109
        %v4111 = vsel %vm1597, %v3794, -inf
        %v4112 = vmax.f32 %v4108, %v4111
        %v4113 = vsel %vm1597, %v3835, -inf
        %v4114 = vmax.f32 %v4110, %v4113
        %v4115 = vsel %vm1597, %v3837, -inf
        %v4116 = vmax.f32 %v4112, %v4115
        %v4117 = vsel %vm1597, %v3878, -inf
        %v4118 = vmax.f32 %v4114, %v4117
        %v4119 = vsel %vm1597, %v3880, -inf
        %v4120 = vmax.f32 %v4116, %v4119
        %v4121 = vsel %vm1597, %v3921, -inf
        %v4122 = vmax.f32 %v4118, %v4121
        %v4123 = vsel %vm1597, %v3923, -inf
        %v4124 = vmax.f32 %v4120, %v4123
        %v4125 = vsel %vm1597, %v3964, -inf
        %v4126 = vmax.f32 %v4122, %v4125
        %v4127 = vsel %vm1597, %v3966, -inf
        %v4128 = vmax.f32 %v4124, %v4127
        %v4129 = vsel %vm1597, %v4007, -inf
        %v4130 = vmax.f32 %v4126, %v4129
        %v4131 = vsel %vm1597, %v4009, -inf
        %v4132 = vmax.f32 %v4128, %v4131
        %v4133 = vsel %vm1597, %v4050, -inf
        %v4134 = vmax.f32 %v4130, %v4133
        %v4135 = vsel %vm1597, %v4052, -inf
        %v4136 = vmax.f32 %v4132, %v4135
        %v4137 = vmax.f32 %v4134, %v4136
        %4138 = vmax.xlane.f32.xlu0 %v4137
        %v4139 = vpop.xlane.xlu0 %4138
        %s4140 = scalar_lea.vmem [#allocation4], 16
        %v4141 = vld [vmem:[%s4140] sm:$0xff]
        %v4142 = vld [vmem:[%s4140 + $0x8] sm:$0xf]
        %v4143 = vmax.f32 %v4141, %v4082
        %v4144 = vmax.f32 %v4142, %v4139
        %s4145 = scalar_lea.vmem [#allocation5], 16
        %v4146 = vld [vmem:[%s4145] sm:$0xff]
        %v4147 = vld [vmem:[%s4145 + $0x8] sm:$0xf]
        %v4148 = vsub.f32 %v4141, %v4143
        %v4149 = vsub.f32 %v4142, %v4144
        %v4150 = vmul.f32 %v4148, 1.442695
        %v4151 = vpow.pop %v4150
        %v4152 = vmul.f32 %v4149, 1.442695
        %v4153 = vpow.pop %v4152
        %v4154 = vmul.f32 %v4146, %v4151
        %v4155 = vmul.f32 %v4147, %v4153
        %4157 = vset.pattern.permute.xlu0 0
        %4158 = vperm.xlu0 %4157, %v4143
        %v4159 = vpop.permute.xlu0 %4158
        %4162 = vset.pattern.permute.xlu0 0
        %4163 = vperm.xlu0 %4162, %v4144
        %v4164 = vpop.permute.xlu0 %4163
        %v4166 = vsub.f32 %v3487, %v4159
        %v4167 = vsub.f32 %v3489, %v4159
        %v4168 = vsub.f32 %v3530, %v4159
        %v4169 = vsub.f32 %v3532, %v4159
        %v4170 = vsub.f32 %v3573, %v4159
        %v4171 = vsub.f32 %v3575, %v4159
        %v4172 = vsub.f32 %v3616, %v4159
        %v4173 = vsub.f32 %v3618, %v4159
        %v4174 = vsub.f32 %v3659, %v4159
        %v4175 = vsub.f32 %v3661, %v4159
        %v4176 = vsub.f32 %v3702, %v4159
        %v4177 = vsub.f32 %v3704, %v4159
        %v4178 = vsub.f32 %v3745, %v4159
        %v4179 = vsub.f32 %v3747, %v4159
        %v4180 = vsub.f32 %v3788, %v4159
        %v4181 = vsub.f32 %v3790, %v4159
        %v4182 = vsub.f32 %v3831, %v4159
        %v4183 = vsub.f32 %v3833, %v4159
        %v4184 = vsub.f32 %v3874, %v4159
        %v4185 = vsub.f32 %v3876, %v4159
        %v4186 = vsub.f32 %v3917, %v4159
        %v4187 = vsub.f32 %v3919, %v4159
        %v4188 = vsub.f32 %v3960, %v4159
        %v4189 = vsub.f32 %v3962, %v4159
        %v4190 = vsub.f32 %v4003, %v4159
        %v4191 = vsub.f32 %v4005, %v4159
        %v4192 = vsub.f32 %v4046, %v4159
        %v4193 = vsub.f32 %v4048, %v4159
        %v4194 = vsub.f32 %v3491, %v4164
        %v4195 = vsub.f32 %v3493, %v4164
        %v4196 = vsub.f32 %v3534, %v4164
        %v4197 = vsub.f32 %v3536, %v4164
        %v4198 = vsub.f32 %v3577, %v4164
        %v4199 = vsub.f32 %v3579, %v4164
        %v4200 = vsub.f32 %v3620, %v4164
        %v4201 = vsub.f32 %v3622, %v4164
        %v4202 = vsub.f32 %v3663, %v4164
        %v4203 = vsub.f32 %v3665, %v4164
        %v4204 = vsub.f32 %v3706, %v4164
        %v4205 = vsub.f32 %v3708, %v4164
        %v4206 = vsub.f32 %v3749, %v4164
        %v4207 = vsub.f32 %v3751, %v4164
        %v4208 = vsub.f32 %v3792, %v4164
        %v4209 = vsub.f32 %v3794, %v4164
        %v4210 = vsub.f32 %v3835, %v4164
        %v4211 = vsub.f32 %v3837, %v4164
        %v4212 = vsub.f32 %v3878, %v4164
        %v4213 = vsub.f32 %v3880, %v4164
        %v4214 = vsub.f32 %v3921, %v4164
        %v4215 = vsub.f32 %v3923, %v4164
        %v4216 = vsub.f32 %v3964, %v4164
        %v4217 = vsub.f32 %v3966, %v4164
        %v4218 = vsub.f32 %v4007, %v4164
        %v4219 = vsub.f32 %v4009, %v4164
        %v4220 = vsub.f32 %v4050, %v4164
        %v4221 = vsub.f32 %v4052, %v4164
        %v4222 = vmul.f32 %v4166, 1.442695
        %v4223 = vpow.pop %v4222
        %v4224 = vmul.f32 %v4167, 1.442695
        %v4225 = vpow.pop %v4224
        %v4226 = vmul.f32 %v4168, 1.442695
        %v4227 = vpow.pop %v4226
        %v4228 = vmul.f32 %v4169, 1.442695
        %v4229 = vpow.pop %v4228
        %v4230 = vmul.f32 %v4170, 1.442695
        %v4231 = vpow.pop %v4230
        %v4232 = vmul.f32 %v4171, 1.442695
        %v4233 = vpow.pop %v4232
        %v4234 = vmul.f32 %v4172, 1.442695
        %v4235 = vpow.pop %v4234
        %v4236 = vmul.f32 %v4173, 1.442695
        %v4237 = vpow.pop %v4236
        %v4238 = vmul.f32 %v4174, 1.442695
        %v4239 = vpow.pop %v4238
        %v4240 = vmul.f32 %v4175, 1.442695
        %v4241 = vpow.pop %v4240
        %v4242 = vmul.f32 %v4176, 1.442695
        %v4243 = vpow.pop %v4242
        %v4244 = vmul.f32 %v4177, 1.442695
        %v4245 = vpow.pop %v4244
        %v4246 = vmul.f32 %v4178, 1.442695
        %v4247 = vpow.pop %v4246
        %v4248 = vmul.f32 %v4179, 1.442695
        %v4249 = vpow.pop %v4248
        %v4250 = vmul.f32 %v4180, 1.442695
        %v4251 = vpow.pop %v4250
        %v4252 = vmul.f32 %v4181, 1.442695
        %v4253 = vpow.pop %v4252
        %v4254 = vmul.f32 %v4182, 1.442695
        %v4255 = vpow.pop %v4254
        %v4256 = vmul.f32 %v4183, 1.442695
        %v4257 = vpow.pop %v4256
        %v4258 = vmul.f32 %v4184, 1.442695
        %v4259 = vpow.pop %v4258
        %v4260 = vmul.f32 %v4185, 1.442695
        %v4261 = vpow.pop %v4260
        %v4262 = vmul.f32 %v4186, 1.442695
        %v4263 = vpow.pop %v4262
        %v4264 = vmul.f32 %v4187, 1.442695
        %v4265 = vpow.pop %v4264
        %v4266 = vmul.f32 %v4188, 1.442695
        %v4267 = vpow.pop %v4266
        %v4268 = vmul.f32 %v4189, 1.442695
        %v4269 = vpow.pop %v4268
        %v4270 = vmul.f32 %v4190, 1.442695
        %v4271 = vpow.pop %v4270
        %v4272 = vmul.f32 %v4191, 1.442695
        %v4273 = vpow.pop %v4272
        %v4274 = vmul.f32 %v4192, 1.442695
        %v4275 = vpow.pop %v4274
        %v4276 = vmul.f32 %v4193, 1.442695
        %v4277 = vpow.pop %v4276
        %v4278 = vmul.f32 %v4194, 1.442695
        %v4279 = vpow.pop %v4278
        %v4280 = vmul.f32 %v4195, 1.442695
        %v4281 = vpow.pop %v4280
        %v4282 = vmul.f32 %v4196, 1.442695
        %v4283 = vpow.pop %v4282
        %v4284 = vmul.f32 %v4197, 1.442695
        %v4285 = vpow.pop %v4284
        %v4286 = vmul.f32 %v4198, 1.442695
        %v4287 = vpow.pop %v4286
        %v4288 = vmul.f32 %v4199, 1.442695
        %v4289 = vpow.pop %v4288
        %v4290 = vmul.f32 %v4200, 1.442695
        %v4291 = vpow.pop %v4290
        %v4292 = vmul.f32 %v4201, 1.442695
        %v4293 = vpow.pop %v4292
        %v4294 = vmul.f32 %v4202, 1.442695
        %v4295 = vpow.pop %v4294
        %v4296 = vmul.f32 %v4203, 1.442695
        %v4297 = vpow.pop %v4296
        %v4298 = vmul.f32 %v4204, 1.442695
        %v4299 = vpow.pop %v4298
        %v4300 = vmul.f32 %v4205, 1.442695
        %v4301 = vpow.pop %v4300
        %v4302 = vmul.f32 %v4206, 1.442695
        %v4303 = vpow.pop %v4302
        %v4304 = vmul.f32 %v4207, 1.442695
        %v4305 = vpow.pop %v4304
        %v4306 = vmul.f32 %v4208, 1.442695
        %v4307 = vpow.pop %v4306
        %v4308 = vmul.f32 %v4209, 1.442695
        %v4309 = vpow.pop %v4308
        %v4310 = vmul.f32 %v4210, 1.442695
        %v4311 = vpow.pop %v4310
        %v4312 = vmul.f32 %v4211, 1.442695
        %v4313 = vpow.pop %v4312
        %v4314 = vmul.f32 %v4212, 1.442695
        %v4315 = vpow.pop %v4314
        %v4316 = vmul.f32 %v4213, 1.442695
        %v4317 = vpow.pop %v4316
        %v4318 = vmul.f32 %v4214, 1.442695
        %v4319 = vpow.pop %v4318
        %v4320 = vmul.f32 %v4215, 1.442695
        %v4321 = vpow.pop %v4320
        %v4322 = vmul.f32 %v4216, 1.442695
        %v4323 = vpow.pop %v4322
        %v4324 = vmul.f32 %v4217, 1.442695
        %v4325 = vpow.pop %v4324
        %v4326 = vmul.f32 %v4218, 1.442695
        %v4327 = vpow.pop %v4326
        %v4328 = vmul.f32 %v4219, 1.442695
        %v4329 = vpow.pop %v4328
        %v4330 = vmul.f32 %v4220, 1.442695
        %v4331 = vpow.pop %v4330
        %v4332 = vmul.f32 %v4221, 1.442695
        %v4333 = vpow.pop %v4332
        %v4334 = vadd.f32 %v4223, %v4225
        %v4335 = vadd.f32 %v4334, %v4227
        %v4336 = vadd.f32 %v4335, %v4229
        %v4337 = vadd.f32 %v4336, %v4231
        %v4338 = vadd.f32 %v4337, %v4233
        %v4339 = vadd.f32 %v4338, %v4235
        %v4340 = vadd.f32 %v4339, %v4237
        %v4341 = vadd.f32 %v4340, %v4239
        %v4342 = vadd.f32 %v4341, %v4241
        %v4343 = vadd.f32 %v4342, %v4243
        %v4344 = vadd.f32 %v4343, %v4245
        %v4345 = vadd.f32 %v4344, %v4247
        %v4346 = vadd.f32 %v4345, %v4249
        %v4347 = vadd.f32 %v4346, %v4251
        %v4348 = vadd.f32 %v4347, %v4253
        %v4349 = vadd.f32 %v4348, %v4255
        %v4350 = vadd.f32 %v4349, %v4257
        %v4351 = vadd.f32 %v4350, %v4259
        %v4352 = vadd.f32 %v4351, %v4261
        %v4353 = vadd.f32 %v4352, %v4263
        %v4354 = vadd.f32 %v4353, %v4265
        %v4355 = vadd.f32 %v4354, %v4267
        %v4356 = vadd.f32 %v4355, %v4269
        %v4357 = vadd.f32 %v4356, %v4271
        %v4358 = vadd.f32 %v4357, %v4273
        %v4359 = vadd.f32 %v4358, %v4275
        %v4360 = vadd.f32 %v4359, %v4277
        %4361 = vadd.xlane.f32.xlu0 %v4360
        %v4362 = vpop.xlane.xlu0 %4361
        %v4363 = vsel %vm1597, %v4279, 0.0
        %v4364 = vsel %vm1597, %v4281, 0.0
        %v4365 = vadd.f32 %v4363, %v4364
        %v4366 = vsel %vm1597, %v4283, 0.0
        %v4367 = vadd.f32 %v4365, %v4366
        %v4368 = vsel %vm1597, %v4285, 0.0
        %v4369 = vadd.f32 %v4367, %v4368
        %v4370 = vsel %vm1597, %v4287, 0.0
        %v4371 = vadd.f32 %v4369, %v4370
        %v4372 = vsel %vm1597, %v4289, 0.0
        %v4373 = vadd.f32 %v4371, %v4372
        %v4374 = vsel %vm1597, %v4291, 0.0
        %v4375 = vadd.f32 %v4373, %v4374
        %v4376 = vsel %vm1597, %v4293, 0.0
        %v4377 = vadd.f32 %v4375, %v4376
        %v4378 = vsel %vm1597, %v4295, 0.0
        %v4379 = vadd.f32 %v4377, %v4378
        %v4380 = vsel %vm1597, %v4297, 0.0
        %v4381 = vadd.f32 %v4379, %v4380
        %v4382 = vsel %vm1597, %v4299, 0.0
        %v4383 = vadd.f32 %v4381, %v4382
        %v4384 = vsel %vm1597, %v4301, 0.0
        %v4385 = vadd.f32 %v4383, %v4384
        %v4386 = vsel %vm1597, %v4303, 0.0
        %v4387 = vadd.f32 %v4385, %v4386
        %v4388 = vsel %vm1597, %v4305, 0.0
        %v4389 = vadd.f32 %v4387, %v4388
        %v4390 = vsel %vm1597, %v4307, 0.0
        %v4391 = vadd.f32 %v4389, %v4390
        %v4392 = vsel %vm1597, %v4309, 0.0
        %v4393 = vadd.f32 %v4391, %v4392
        %v4394 = vsel %vm1597, %v4311, 0.0
        %v4395 = vadd.f32 %v4393, %v4394
        %v4396 = vsel %vm1597, %v4313, 0.0
        %v4397 = vadd.f32 %v4395, %v4396
        %v4398 = vsel %vm1597, %v4315, 0.0
        %v4399 = vadd.f32 %v4397, %v4398
        %v4400 = vsel %vm1597, %v4317, 0.0
        %v4401 = vadd.f32 %v4399, %v4400
        %v4402 = vsel %vm1597, %v4319, 0.0
        %v4403 = vadd.f32 %v4401, %v4402
        %v4404 = vsel %vm1597, %v4321, 0.0
        %v4405 = vadd.f32 %v4403, %v4404
        %v4406 = vsel %vm1597, %v4323, 0.0
        %v4407 = vadd.f32 %v4405, %v4406
        %v4408 = vsel %vm1597, %v4325, 0.0
        %v4409 = vadd.f32 %v4407, %v4408
        %v4410 = vsel %vm1597, %v4327, 0.0
        %v4411 = vadd.f32 %v4409, %v4410
        %v4412 = vsel %vm1597, %v4329, 0.0
        %v4413 = vadd.f32 %v4411, %v4412
        %v4414 = vsel %vm1597, %v4331, 0.0
        %v4415 = vadd.f32 %v4413, %v4414
        %v4416 = vsel %vm1597, %v4333, 0.0
        %v4417 = vadd.f32 %v4415, %v4416
        %4418 = vadd.xlane.f32.xlu0 %v4417
        %v4419 = vpop.xlane.xlu0 %4418
        %v4420 = vadd.f32 %v4154, %v4362
        %v4421 = vadd.f32 %v4155, %v4419
        %4422 = vst.msk [vmem:[%s4145] sm:$0xff] %vm1935, %v4420
        %4423 = vst.msk [vmem:[%s4145 + $0x8] sm:$0xf] %vm1937, %v4421
        %4424 = vst.msk [vmem:[%s4140] sm:$0xff] %vm1935, %v4143
        %4425 = vst.msk [vmem:[%s4140 + $0x8] sm:$0xf] %vm1937, %v4144
        %v4426 = vsel %vm1597, %v3487, -inf
        %v4427 = vsel %vm1597, %v3489, -inf
        %v4428 = vsel %vm1597, %v3530, -inf
        %v4429 = vsel %vm1597, %v3532, -inf
        %v4430 = vsel %vm1597, %v3573, -inf
        %v4431 = vmax.f32 %v4426, %v4430
        %v4432 = vsel %vm1597, %v3575, -inf
        %v4433 = vmax.f32 %v4427, %v4432
        %v4434 = vsel %vm1597, %v3616, -inf
        %v4435 = vmax.f32 %v4428, %v4434
        %v4436 = vsel %vm1597, %v3618, -inf
        %v4437 = vmax.f32 %v4429, %v4436
        %v4438 = vsel %vm1597, %v3659, -inf
        %v4439 = vmax.f32 %v4431, %v4438
        %v4440 = vsel %vm1597, %v3661, -inf
        %v4441 = vmax.f32 %v4433, %v4440
        %v4442 = vsel %vm1597, %v3702, -inf
        %v4443 = vmax.f32 %v4435, %v4442
        %v4444 = vsel %vm1597, %v3704, -inf
        %v4445 = vmax.f32 %v4437, %v4444
        %v4446 = vsel %vm1597, %v3745, -inf
        %v4447 = vmax.f32 %v4439, %v4446
        %v4448 = vsel %vm1597, %v3747, -inf
        %v4449 = vmax.f32 %v4441, %v4448
        %v4450 = vsel %vm1597, %v3788, -inf
        %v4451 = vmax.f32 %v4443, %v4450
        %v4452 = vsel %vm1597, %v3790, -inf
        %v4453 = vmax.f32 %v4445, %v4452
        %v4454 = vsel %vm1597, %v3831, -inf
        %v4455 = vmax.f32 %v4447, %v4454
        %v4456 = vsel %vm1597, %v3833, -inf
        %v4457 = vmax.f32 %v4449, %v4456
        %v4458 = vsel %vm1597, %v3874, -inf
        %v4459 = vmax.f32 %v4451, %v4458
        %v4460 = vsel %vm1597, %v3876, -inf
        %v4461 = vmax.f32 %v4453, %v4460
        %v4462 = vsel %vm1597, %v3917, -inf
        %v4463 = vmax.f32 %v4455, %v4462
        %v4464 = vsel %vm1597, %v3919, -inf
        %v4465 = vmax.f32 %v4457, %v4464
        %v4466 = vsel %vm1597, %v3960, -inf
        %v4467 = vmax.f32 %v4459, %v4466
        %v4468 = vsel %vm1597, %v3962, -inf
        %v4469 = vmax.f32 %v4461, %v4468
        %v4470 = vsel %vm1597, %v4003, -inf
        %v4471 = vmax.f32 %v4463, %v4470
        %v4472 = vsel %vm1597, %v4005, -inf
        %v4473 = vmax.f32 %v4465, %v4472
        %v4474 = vsel %vm1597, %v4046, -inf
        %v4475 = vmax.f32 %v4467, %v4474
        %v4476 = vsel %vm1597, %v4048, -inf
        %v4477 = vmax.f32 %v4469, %v4476
        %v4478 = vmax.f32 %v4471, %v4473
        %v4479 = vmax.f32 %v4475, %v4477
        %v4480 = vmax.f32 %v4478, %v4479
        %4481 = vmax.xlane.f32.xlu0 %v4480
        %v4482 = vpop.xlane.xlu0 %4481
        %vm4483 = vcmp.eq.f32.partialorder %v3487, %v4482
        %vm4484 = vcmp.eq.f32.partialorder %v3489, %v4482
        %vm4485 = vcmp.eq.f32.partialorder %v3530, %v4482
        %vm4486 = vcmp.eq.f32.partialorder %v3532, %v4482
        %vm4487 = vcmp.eq.f32.partialorder %v3573, %v4482
        %vm4488 = vcmp.eq.f32.partialorder %v3575, %v4482
        %vm4489 = vcmp.eq.f32.partialorder %v3616, %v4482
        %vm4490 = vcmp.eq.f32.partialorder %v3618, %v4482
        %vm4491 = vcmp.eq.f32.partialorder %v3659, %v4482
        %vm4492 = vcmp.eq.f32.partialorder %v3661, %v4482
        %vm4493 = vcmp.eq.f32.partialorder %v3702, %v4482
        %vm4494 = vcmp.eq.f32.partialorder %v3704, %v4482
        %vm4495 = vcmp.eq.f32.partialorder %v3745, %v4482
        %vm4496 = vcmp.eq.f32.partialorder %v3747, %v4482
        %vm4497 = vcmp.eq.f32.partialorder %v3788, %v4482
        %vm4498 = vcmp.eq.f32.partialorder %v3790, %v4482
        %vm4499 = vcmp.eq.f32.partialorder %v3831, %v4482
        %vm4500 = vcmp.eq.f32.partialorder %v3833, %v4482
        %vm4501 = vcmp.eq.f32.partialorder %v3874, %v4482
        %vm4502 = vcmp.eq.f32.partialorder %v3876, %v4482
        %vm4503 = vcmp.eq.f32.partialorder %v3917, %v4482
        %vm4504 = vcmp.eq.f32.partialorder %v3919, %v4482
        %vm4505 = vcmp.eq.f32.partialorder %v3960, %v4482
        %vm4506 = vcmp.eq.f32.partialorder %v3962, %v4482
        %vm4507 = vcmp.eq.f32.partialorder %v4003, %v4482
        %vm4508 = vcmp.eq.f32.partialorder %v4005, %v4482
        %vm4509 = vcmp.eq.f32.partialorder %v4046, %v4482
        %vm4510 = vcmp.eq.f32.partialorder %v4048, %v4482
        %v4511 = vsel %vm4483, %v2027, 1e+09
        %v4512 = vsel %vm4484, %v2028, 1e+09
        %v4513 = vsel %vm4485, %v2029, 1e+09
        %v4514 = vsel %vm4486, %v2030, 1e+09
        %v4515 = vsel %vm4487, %v2031, 1e+09
        %v4516 = vsel %vm4488, %v2032, 1e+09
        %v4517 = vsel %vm4489, %v2033, 1e+09
        %v4518 = vsel %vm4490, %v2034, 1e+09
        %v4519 = vsel %vm4491, %v2035, 1e+09
        %v4520 = vsel %vm4492, %v2036, 1e+09
        %v4521 = vsel %vm4493, %v2037, 1e+09
        %v4522 = vsel %vm4494, %v2038, 1e+09
        %v4523 = vsel %vm4495, %v2039, 1e+09
        %v4524 = vsel %vm4496, %v2040, 1e+09
        %v4525 = vsel %vm4497, %v2041, 1e+09
        %v4526 = vsel %vm4498, %v2042, 1e+09
        %v4527 = vsel %vm4499, %v2043, 1e+09
        %v4528 = vsel %vm4500, %v2044, 1e+09
        %v4529 = vsel %vm4501, %v2045, 1e+09
        %v4530 = vsel %vm4502, %v2046, 1e+09
        %v4531 = vsel %vm4503, %v2047, 1e+09
        %v4532 = vsel %vm4504, %v2048, 1e+09
        %v4533 = vsel %vm4505, %v2049, 1e+09
        %v4534 = vsel %vm4506, %v2050, 1e+09
        %v4535 = vsel %vm4507, %v2051, 1e+09
        %v4536 = vsel %vm4508, %v2052, 1e+09
        %v4537 = vsel %vm4509, %v2053, 1e+09
        %v4538 = vsel %vm4510, %v2054, 1e+09
        %v4539 = vsel %vm1597, %v4511, inf
        %v4540 = vsel %vm1597, %v4512, inf
        %v4541 = vsel %vm1597, %v4513, inf
        %v4542 = vsel %vm1597, %v4514, inf
        %v4543 = vsel %vm1597, %v4515, inf
        %v4544 = vmin.f32 %v4539, %v4543
        %v4545 = vsel %vm1597, %v4516, inf
        %v4546 = vmin.f32 %v4540, %v4545
        %v4547 = vsel %vm1597, %v4517, inf
        %v4548 = vmin.f32 %v4541, %v4547
        %v4549 = vsel %vm1597, %v4518, inf
        %v4550 = vmin.f32 %v4542, %v4549
        %v4551 = vsel %vm1597, %v4519, inf
        %v4552 = vmin.f32 %v4544, %v4551
        %v4553 = vsel %vm1597, %v4520, inf
        %v4554 = vmin.f32 %v4546, %v4553
        %v4555 = vsel %vm1597, %v4521, inf
        %v4556 = vmin.f32 %v4548, %v4555
        %v4557 = vsel %vm1597, %v4522, inf
        %v4558 = vmin.f32 %v4550, %v4557
        %v4559 = vsel %vm1597, %v4523, inf
        %v4560 = vmin.f32 %v4552, %v4559
        %v4561 = vsel %vm1597, %v4524, inf
        %v4562 = vmin.f32 %v4554, %v4561
        %v4563 = vsel %vm1597, %v4525, inf
        %v4564 = vmin.f32 %v4556, %v4563
        %v4565 = vsel %vm1597, %v4526, inf
        %v4566 = vmin.f32 %v4558, %v4565
        %v4567 = vsel %vm1597, %v4527, inf
        %v4568 = vmin.f32 %v4560, %v4567
        %v4569 = vsel %vm1597, %v4528, inf
        %v4570 = vmin.f32 %v4562, %v4569
        %v4571 = vsel %vm1597, %v4529, inf
        %v4572 = vmin.f32 %v4564, %v4571
        %v4573 = vsel %vm1597, %v4530, inf
        %v4574 = vmin.f32 %v4566, %v4573
        %v4575 = vsel %vm1597, %v4531, inf
        %v4576 = vmin.f32 %v4568, %v4575
        %v4577 = vsel %vm1597, %v4532, inf
        %v4578 = vmin.f32 %v4570, %v4577
        %v4579 = vsel %vm1597, %v4533, inf
        %v4580 = vmin.f32 %v4572, %v4579
        %v4581 = vsel %vm1597, %v4534, inf
        %v4582 = vmin.f32 %v4574, %v4581
        %v4583 = vsel %vm1597, %v4535, inf
        %v4584 = vmin.f32 %v4576, %v4583
        %v4585 = vsel %vm1597, %v4536, inf
        %v4586 = vmin.f32 %v4578, %v4585
        %v4587 = vsel %vm1597, %v4537, inf
        %v4588 = vmin.f32 %v4580, %v4587
        %v4589 = vsel %vm1597, %v4538, inf
        %v4590 = vmin.f32 %v4582, %v4589
        %v4591 = vmin.f32 %v4584, %v4586
        %v4592 = vmin.f32 %v4588, %v4590
        %v4593 = vmin.f32 %v4591, %v4592
        %4594 = vmin.xlane.f32.xlu0 %v4593
        %v4595 = vpop.xlane.xlu0 %4594
        %s4596 = scalar_lea.vmem [#allocation6], 4
        %v4597 = vld [vmem:[%s4596] sm:$0xf]
        %vm4598 = vcmp.gt.f32.partialorder %v4482, %v4597
        %v4599 = vadd.f32 %v4595, %v2170
        %s4600 = scalar_lea.vmem [#allocation7], 4
        %v4601 = vld [vmem:[%s4600] sm:$0xf]
        %v4602 = vsel %vm4598, %v4599, %v4601
        %4603 = vst.msk [vmem:[%s4600] sm:$0xf] %vm1937, %v4602
        %v4604 = vld [vmem:[%s4596] sm:$0xf]
        %v4605 = vsel %vm4598, %v4482, %v4604
        %4606 = vst.msk [vmem:[%s4596] sm:$0xf] %vm1937, %v4605
        %s4607 = scalar_lea.vmem %s5, 16
        %v4608 = vld [vmem:[%s4607] sm:$0xff]
        %v4609 = vld [vmem:[%s4607 + $0x8] sm:$0xff]
        %4610 = vset.pattern.permute.xlu0 0
        %4611 = vperm.xlu0 %4610, %v4608
        %v4612 = vpop.permute.xlu0 %4611
        %4613 = vset.pattern.permute.xlu0 0
        %4614 = vperm.xlu0 %4613, %v4609
        %v4615 = vpop.permute.xlu0 %4614
        %vm4616 = vcmp.eq.s32.totalorder %v2179, %v4612
        %vm4617 = vcmp.eq.s32.totalorder %v2180, %v4612
        %vm4618 = vcmp.eq.s32.totalorder %v2181, %v4612
        %vm4619 = vcmp.eq.s32.totalorder %v2182, %v4612
        %vm4620 = vcmp.eq.s32.totalorder %v2183, %v4612
        %vm4621 = vcmp.eq.s32.totalorder %v2184, %v4612
        %vm4622 = vcmp.eq.s32.totalorder %v2185, %v4612
        %vm4623 = vcmp.eq.s32.totalorder %v2186, %v4612
        %vm4624 = vcmp.eq.s32.totalorder %v2187, %v4612
        %vm4625 = vcmp.eq.s32.totalorder %v2188, %v4612
        %vm4626 = vcmp.eq.s32.totalorder %v2189, %v4612
        %vm4627 = vcmp.eq.s32.totalorder %v2190, %v4612
        %vm4628 = vcmp.eq.s32.totalorder %v2191, %v4612
        %vm4629 = vcmp.eq.s32.totalorder %v2192, %v4612
        %vm4630 = vcmp.eq.s32.totalorder %v2193, %v4612
        %vm4631 = vcmp.eq.s32.totalorder %v2194, %v4612
        %vm4632 = vcmp.eq.s32.totalorder %v2195, %v4612
        %vm4633 = vcmp.eq.s32.totalorder %v2196, %v4612
        %vm4634 = vcmp.eq.s32.totalorder %v2197, %v4612
        %vm4635 = vcmp.eq.s32.totalorder %v2198, %v4612
        %vm4636 = vcmp.eq.s32.totalorder %v2199, %v4612
        %vm4637 = vcmp.eq.s32.totalorder %v2200, %v4612
        %vm4638 = vcmp.eq.s32.totalorder %v2201, %v4612
        %vm4639 = vcmp.eq.s32.totalorder %v2202, %v4612
        %vm4640 = vcmp.eq.s32.totalorder %v2203, %v4612
        %vm4641 = vcmp.eq.s32.totalorder %v2204, %v4612
        %vm4642 = vcmp.eq.s32.totalorder %v2205, %v4612
        %vm4643 = vcmp.eq.s32.totalorder %v2206, %v4612
        %vm4644 = vcmp.eq.s32.totalorder %v2179, %v4615
        %vm4645 = vcmp.eq.s32.totalorder %v2180, %v4615
        %vm4646 = vcmp.eq.s32.totalorder %v2181, %v4615
        %vm4647 = vcmp.eq.s32.totalorder %v2182, %v4615
        %vm4648 = vcmp.eq.s32.totalorder %v2183, %v4615
        %vm4649 = vcmp.eq.s32.totalorder %v2184, %v4615
        %vm4650 = vcmp.eq.s32.totalorder %v2185, %v4615
        %vm4651 = vcmp.eq.s32.totalorder %v2186, %v4615
        %vm4652 = vcmp.eq.s32.totalorder %v2187, %v4615
        %vm4653 = vcmp.eq.s32.totalorder %v2188, %v4615
        %vm4654 = vcmp.eq.s32.totalorder %v2189, %v4615
        %vm4655 = vcmp.eq.s32.totalorder %v2190, %v4615
        %vm4656 = vcmp.eq.s32.totalorder %v2191, %v4615
        %vm4657 = vcmp.eq.s32.totalorder %v2192, %v4615
        %vm4658 = vcmp.eq.s32.totalorder %v2193, %v4615
        %vm4659 = vcmp.eq.s32.totalorder %v2194, %v4615
        %vm4660 = vcmp.eq.s32.totalorder %v2195, %v4615
        %vm4661 = vcmp.eq.s32.totalorder %v2196, %v4615
        %vm4662 = vcmp.eq.s32.totalorder %v2197, %v4615
        %vm4663 = vcmp.eq.s32.totalorder %v2198, %v4615
        %vm4664 = vcmp.eq.s32.totalorder %v2199, %v4615
        %vm4665 = vcmp.eq.s32.totalorder %v2200, %v4615
        %vm4666 = vcmp.eq.s32.totalorder %v2201, %v4615
        %vm4667 = vcmp.eq.s32.totalorder %v2202, %v4615
        %vm4668 = vcmp.eq.s32.totalorder %v2203, %v4615
        %vm4669 = vcmp.eq.s32.totalorder %v2204, %v4615
        %vm4670 = vcmp.eq.s32.totalorder %v2205, %v4615
        %vm4671 = vcmp.eq.s32.totalorder %v2206, %v4615
        %v4672 = vsel %vm4616, 1, 0
        %v4673 = vsel %vm4617, 1, 0
        %v4674 = vsel %vm4618, 1, 0
        %v4675 = vsel %vm4619, 1, 0
        %v4676 = vsel %vm4620, 1, 0
        %v4677 = vsel %vm4621, 1, 0
        %v4678 = vsel %vm4622, 1, 0
        %v4679 = vsel %vm4623, 1, 0
        %v4680 = vsel %vm4624, 1, 0
        %v4681 = vsel %vm4625, 1, 0
        %v4682 = vsel %vm4626, 1, 0
        %v4683 = vsel %vm4627, 1, 0
        %v4684 = vsel %vm4628, 1, 0
        %v4685 = vsel %vm4629, 1, 0
        %v4686 = vsel %vm4630, 1, 0
        %v4687 = vsel %vm4631, 1, 0
        %v4688 = vsel %vm4632, 1, 0
        %v4689 = vsel %vm4633, 1, 0
        %v4690 = vsel %vm4634, 1, 0
        %v4691 = vsel %vm4635, 1, 0
        %v4692 = vsel %vm4636, 1, 0
        %v4693 = vsel %vm4637, 1, 0
        %v4694 = vsel %vm4638, 1, 0
        %v4695 = vsel %vm4639, 1, 0
        %v4696 = vsel %vm4640, 1, 0
        %v4697 = vsel %vm4641, 1, 0
        %v4698 = vsel %vm4642, 1, 0
        %v4699 = vsel %vm4643, 1, 0
        %v4700 = vsel %vm4644, 1, 0
        %v4701 = vsel %vm4645, 1, 0
        %v4702 = vsel %vm4646, 1, 0
        %v4703 = vsel %vm4647, 1, 0
        %v4704 = vsel %vm4648, 1, 0
        %v4705 = vsel %vm4649, 1, 0
        %v4706 = vsel %vm4650, 1, 0
        %v4707 = vsel %vm4651, 1, 0
        %v4708 = vsel %vm4652, 1, 0
        %v4709 = vsel %vm4653, 1, 0
        %v4710 = vsel %vm4654, 1, 0
        %v4711 = vsel %vm4655, 1, 0
        %v4712 = vsel %vm4656, 1, 0
        %v4713 = vsel %vm4657, 1, 0
        %v4714 = vsel %vm4658, 1, 0
        %v4715 = vsel %vm4659, 1, 0
        %v4716 = vsel %vm4660, 1, 0
        %v4717 = vsel %vm4661, 1, 0
        %v4718 = vsel %vm4662, 1, 0
        %v4719 = vsel %vm4663, 1, 0
        %v4720 = vsel %vm4664, 1, 0
        %v4721 = vsel %vm4665, 1, 0
        %v4722 = vsel %vm4666, 1, 0
        %v4723 = vsel %vm4667, 1, 0
        %v4724 = vsel %vm4668, 1, 0
        %v4725 = vsel %vm4669, 1, 0
        %v4726 = vsel %vm4670, 1, 0
        %v4727 = vsel %vm4671, 1, 0
        %v4728 = vcvt.s32.f32 %v4672
        %v4729 = vcvt.s32.f32 %v4673
        %v4730 = vcvt.s32.f32 %v4674
        %v4731 = vcvt.s32.f32 %v4675
        %v4732 = vcvt.s32.f32 %v4676
        %v4733 = vcvt.s32.f32 %v4677
        %v4734 = vcvt.s32.f32 %v4678
        %v4735 = vcvt.s32.f32 %v4679
        %v4736 = vcvt.s32.f32 %v4680
        %v4737 = vcvt.s32.f32 %v4681
        %v4738 = vcvt.s32.f32 %v4682
        %v4739 = vcvt.s32.f32 %v4683
        %v4740 = vcvt.s32.f32 %v4684
        %v4741 = vcvt.s32.f32 %v4685
        %v4742 = vcvt.s32.f32 %v4686
        %v4743 = vcvt.s32.f32 %v4687
        %v4744 = vcvt.s32.f32 %v4688
        %v4745 = vcvt.s32.f32 %v4689
        %v4746 = vcvt.s32.f32 %v4690
        %v4747 = vcvt.s32.f32 %v4691
        %v4748 = vcvt.s32.f32 %v4692
        %v4749 = vcvt.s32.f32 %v4693
        %v4750 = vcvt.s32.f32 %v4694
        %v4751 = vcvt.s32.f32 %v4695
        %v4752 = vcvt.s32.f32 %v4696
        %v4753 = vcvt.s32.f32 %v4697
        %v4754 = vcvt.s32.f32 %v4698
        %v4755 = vcvt.s32.f32 %v4699
        %v4756 = vcvt.s32.f32 %v4700
        %v4757 = vcvt.s32.f32 %v4701
        %v4758 = vcvt.s32.f32 %v4702
        %v4759 = vcvt.s32.f32 %v4703
        %v4760 = vcvt.s32.f32 %v4704
        %v4761 = vcvt.s32.f32 %v4705
        %v4762 = vcvt.s32.f32 %v4706
        %v4763 = vcvt.s32.f32 %v4707
        %v4764 = vcvt.s32.f32 %v4708
        %v4765 = vcvt.s32.f32 %v4709
        %v4766 = vcvt.s32.f32 %v4710
        %v4767 = vcvt.s32.f32 %v4711
        %v4768 = vcvt.s32.f32 %v4712
        %v4769 = vcvt.s32.f32 %v4713
        %v4770 = vcvt.s32.f32 %v4714
        %v4771 = vcvt.s32.f32 %v4715
        %v4772 = vcvt.s32.f32 %v4716
        %v4773 = vcvt.s32.f32 %v4717
        %v4774 = vcvt.s32.f32 %v4718
        %v4775 = vcvt.s32.f32 %v4719
        %v4776 = vcvt.s32.f32 %v4720
        %v4777 = vcvt.s32.f32 %v4721
        %v4778 = vcvt.s32.f32 %v4722
        %v4779 = vcvt.s32.f32 %v4723
        %v4780 = vcvt.s32.f32 %v4724
        %v4781 = vcvt.s32.f32 %v4725
        %v4782 = vcvt.s32.f32 %v4726
        %v4783 = vcvt.s32.f32 %v4727
        %s4784 = scalar_lea.vmem [#allocation3], 16
        %v4785 = vld [vmem:[%s4784] sm:$0xff]
        %v4786 = vld [vmem:[%s4784 + $0x8] sm:$0xf]
        %4787 = vmatprep.subr.mxu0 0.0
        %4788 = vmatpush1.xpose.msra.mxu0 0.0
        %4789 = vmatprep.subr.mxu0 0.0
        %4790 = vmatpush1.xpose.msra.mxu0 0.0
        %4791 = vmatprep.subr.mxu0 0.0
        %4792 = vmatpush1.xpose.msra.mxu0 0.0
        %4793 = vmatprep.subr.mxu0 0.0
        %4794 = vmatpush1.xpose.msra.mxu0 0.0
        %4795 = vmatprep.subr.mxu0 0.0
        %4796 = vmatpush1.xpose.msra.mxu0 0.0
        %4797 = vmatprep.subr.mxu0 0.0
        %4798 = vmatpush1.xpose.msra.mxu0 0.0
        %4799 = vmatprep.subr.mxu0 0.0
        %4800 = vmatpush1.xpose.msra.mxu0 0.0
        %4801 = vmatprep.subr.mxu0 0.0
        %4802 = vmatpush1.xpose.msra.mxu0 0.0
        %4803 = vmatprep.subr.mxu0 0.0
        %4804 = vmatpush1.xpose.msra.mxu0 0.0
        %4805 = vmatprep.subr.mxu0 0.0
        %4806 = vmatpush1.xpose.msra.mxu0 0.0
        %4807 = vmatprep.subr.mxu0 0.0
        %4808 = vmatpush1.xpose.msra.mxu0 0.0
        %4809 = vmatprep.subr.mxu0 0.0
        %4810 = vmatpush1.xpose.msra.mxu0 0.0
        %4811 = vmatprep.subr.mxu0 0.0
        %4812 = vmatpush1.xpose.msra.mxu0 0.0
        %4813 = vmatprep.subr.mxu0 0.0
        %4814 = vmatpush1.xpose.msra.mxu0 0.0
        %4815 = vmatprep.subr.mxu0 %v4757
        %4816 = vmatpush1.xpose.msra.mxu0 %v4756
        %4817 = vmatprep.subr.mxu0 %v4729
        %4818 = vmatpush1.xpose.msra.mxu0 %v4728
        %4819 = vmatprep.subr.mxu0 0.0
        %4820 = vmatpush2.xpose.msra.mxu0 0.0
        %4821 = vmatprep.subr.mxu0 0.0
        %4822 = vmatpush2.xpose.msra.mxu0 0.0
        %4823 = vmatprep.subr.mxu0 0.0
        %4824 = vmatpush2.xpose.msra.mxu0 0.0
        %4825 = vmatprep.subr.mxu0 0.0
        %4826 = vmatpush2.xpose.msra.mxu0 0.0
        %4827 = vmatprep.subr.mxu0 0.0
        %4828 = vmatpush2.xpose.msra.mxu0 0.0
        %4829 = vmatprep.subr.mxu0 0.0
        %4830 = vmatpush2.xpose.msra.mxu0 0.0
        %4831 = vmatprep.subr.mxu0 0.0
        %4832 = vmatpush2.xpose.msra.mxu0 0.0
        %4833 = vmatprep.subr.mxu0 0.0
        %4834 = vmatpush2.xpose.msra.mxu0 0.0
        %4835 = vmatprep.subr.mxu0 0.0
        %4836 = vmatpush2.xpose.msra.mxu0 0.0
        %4837 = vmatprep.subr.mxu0 0.0
        %4838 = vmatpush2.xpose.msra.mxu0 0.0
        %4839 = vmatprep.subr.mxu0 0.0
        %4840 = vmatpush2.xpose.msra.mxu0 0.0
        %4841 = vmatprep.subr.mxu0 0.0
        %4842 = vmatpush2.xpose.msra.mxu0 0.0
        %4843 = vmatprep.subr.mxu0 0.0
        %4844 = vmatpush2.xpose.msra.mxu0 0.0
        %4845 = vmatprep.subr.mxu0 0.0
        %4846 = vmatpush2.xpose.msra.mxu0 0.0
        %4847 = vmatprep.subr.mxu0 0.0
        %4848 = vmatpush2.xpose.msra.mxu0 0.0
        %4849 = vmatprep.subr.mxu0 0.0
        %4850 = vmatpush2.xpose.msra.mxu0 0.0
        %4851 = vmatprep.mubr.f32.mxu0 %v3489
        %4852 = vmatmul.mubr.f32.gmra.mxu0 %v3487
        %v4853 = vpop.f32.mrf.mxu0
        %v4854 = vadd.f32 0.0, %v4853
        %v4855 = vpop.f32.mrf.mxu0
        %4856 = vmatprep.mubr.f32.mxu0 %v3493
        %4857 = vmatmul.mubr.f32.gmra.mxu0 %v3491
        %v4858 = vpop.f32.mrf.mxu0
        %v4859 = vadd.f32 0.0, %v4858
        %v4860 = vpop.f32.mrf.mxu0
        %4861 = vdwg.mxu0
        %4862 = vmatprep.subr.mxu0 0.0
        %4863 = vmatpush1.xpose.msra.mxu0 0.0
        %4864 = vmatprep.subr.mxu0 0.0
        %4865 = vmatpush1.xpose.msra.mxu0 0.0
        %4866 = vmatprep.subr.mxu0 0.0
        %4867 = vmatpush1.xpose.msra.mxu0 0.0
        %4868 = vmatprep.subr.mxu0 0.0
        %4869 = vmatpush1.xpose.msra.mxu0 0.0
        %4870 = vmatprep.subr.mxu0 0.0
        %4871 = vmatpush1.xpose.msra.mxu0 0.0
        %4872 = vmatprep.subr.mxu0 0.0
        %4873 = vmatpush1.xpose.msra.mxu0 0.0
        %4874 = vmatprep.subr.mxu0 0.0
        %4875 = vmatpush1.xpose.msra.mxu0 0.0
        %4876 = vmatprep.subr.mxu0 0.0
        %4877 = vmatpush1.xpose.msra.mxu0 0.0
        %4878 = vmatprep.subr.mxu0 0.0
        %4879 = vmatpush1.xpose.msra.mxu0 0.0
        %4880 = vmatprep.subr.mxu0 0.0
        %4881 = vmatpush1.xpose.msra.mxu0 0.0
        %4882 = vmatprep.subr.mxu0 0.0
        %4883 = vmatpush1.xpose.msra.mxu0 0.0
        %4884 = vmatprep.subr.mxu0 0.0
        %4885 = vmatpush1.xpose.msra.mxu0 0.0
        %4886 = vmatprep.subr.mxu0 0.0
        %4887 = vmatpush1.xpose.msra.mxu0 0.0
        %4888 = vmatprep.subr.mxu0 0.0
        %4889 = vmatpush1.xpose.msra.mxu0 0.0
        %4890 = vmatprep.subr.mxu0 %v4759
        %4891 = vmatpush1.xpose.msra.mxu0 %v4758
        %4892 = vmatprep.subr.mxu0 %v4731
        %4893 = vmatpush1.xpose.msra.mxu0 %v4730
        %4894 = vmatprep.subr.mxu0 0.0
        %4895 = vmatpush2.xpose.msra.mxu0 0.0
        %4896 = vmatprep.subr.mxu0 0.0
        %4897 = vmatpush2.xpose.msra.mxu0 0.0
        %4898 = vmatprep.subr.mxu0 0.0
        %4899 = vmatpush2.xpose.msra.mxu0 0.0
        %4900 = vmatprep.subr.mxu0 0.0
        %4901 = vmatpush2.xpose.msra.mxu0 0.0
        %4902 = vmatprep.subr.mxu0 0.0
        %4903 = vmatpush2.xpose.msra.mxu0 0.0
        %4904 = vmatprep.subr.mxu0 0.0
        %4905 = vmatpush2.xpose.msra.mxu0 0.0
        %4906 = vmatprep.subr.mxu0 0.0
        %4907 = vmatpush2.xpose.msra.mxu0 0.0
        %4908 = vmatprep.subr.mxu0 0.0
        %4909 = vmatpush2.xpose.msra.mxu0 0.0
        %4910 = vmatprep.subr.mxu0 0.0
        %4911 = vmatpush2.xpose.msra.mxu0 0.0
        %4912 = vmatprep.subr.mxu0 0.0
        %4913 = vmatpush2.xpose.msra.mxu0 0.0
        %4914 = vmatprep.subr.mxu0 0.0
        %4915 = vmatpush2.xpose.msra.mxu0 0.0
        %4916 = vmatprep.subr.mxu0 0.0
        %4917 = vmatpush2.xpose.msra.mxu0 0.0
        %4918 = vmatprep.subr.mxu0 0.0
        %4919 = vmatpush2.xpose.msra.mxu0 0.0
        %4920 = vmatprep.subr.mxu0 0.0
        %4921 = vmatpush2.xpose.msra.mxu0 0.0
        %4922 = vmatprep.subr.mxu0 0.0
        %4923 = vmatpush2.xpose.msra.mxu0 0.0
        %4924 = vmatprep.subr.mxu0 0.0
        %4925 = vmatpush2.xpose.msra.mxu0 0.0
        %4926 = vmatprep.mubr.f32.mxu0 %v3532
        %4927 = vmatmul.mubr.f32.gmra.mxu0 %v3530
        %v4928 = vpop.f32.mrf.mxu0
        %v4929 = vadd.f32 %v4854, %v4928
        %v4930 = vpop.f32.mrf.mxu0
        %4931 = vmatprep.mubr.f32.mxu0 %v3536
        %4932 = vmatmul.mubr.f32.gmra.mxu0 %v3534
        %v4933 = vpop.f32.mrf.mxu0
        %v4934 = vadd.f32 %v4859, %v4933
        %v4935 = vpop.f32.mrf.mxu0
        %4936 = vdwg.mxu0
        %4937 = vmatprep.subr.mxu0 0.0
        %4938 = vmatpush1.xpose.msra.mxu0 0.0
        %4939 = vmatprep.subr.mxu0 0.0
        %4940 = vmatpush1.xpose.msra.mxu0 0.0
        %4941 = vmatprep.subr.mxu0 0.0
        %4942 = vmatpush1.xpose.msra.mxu0 0.0
        %4943 = vmatprep.subr.mxu0 0.0
        %4944 = vmatpush1.xpose.msra.mxu0 0.0
        %4945 = vmatprep.subr.mxu0 0.0
        %4946 = vmatpush1.xpose.msra.mxu0 0.0
        %4947 = vmatprep.subr.mxu0 0.0
        %4948 = vmatpush1.xpose.msra.mxu0 0.0
        %4949 = vmatprep.subr.mxu0 0.0
        %4950 = vmatpush1.xpose.msra.mxu0 0.0
        %4951 = vmatprep.subr.mxu0 0.0
        %4952 = vmatpush1.xpose.msra.mxu0 0.0
        %4953 = vmatprep.subr.mxu0 0.0
        %4954 = vmatpush1.xpose.msra.mxu0 0.0
        %4955 = vmatprep.subr.mxu0 0.0
        %4956 = vmatpush1.xpose.msra.mxu0 0.0
        %4957 = vmatprep.subr.mxu0 0.0
        %4958 = vmatpush1.xpose.msra.mxu0 0.0
        %4959 = vmatprep.subr.mxu0 0.0
        %4960 = vmatpush1.xpose.msra.mxu0 0.0
        %4961 = vmatprep.subr.mxu0 0.0
        %4962 = vmatpush1.xpose.msra.mxu0 0.0
        %4963 = vmatprep.subr.mxu0 0.0
        %4964 = vmatpush1.xpose.msra.mxu0 0.0
        %4965 = vmatprep.subr.mxu0 %v4761
        %4966 = vmatpush1.xpose.msra.mxu0 %v4760
        %4967 = vmatprep.subr.mxu0 %v4733
        %4968 = vmatpush1.xpose.msra.mxu0 %v4732
        %4969 = vmatprep.subr.mxu0 0.0
        %4970 = vmatpush2.xpose.msra.mxu0 0.0
        %4971 = vmatprep.subr.mxu0 0.0
        %4972 = vmatpush2.xpose.msra.mxu0 0.0
        %4973 = vmatprep.subr.mxu0 0.0
        %4974 = vmatpush2.xpose.msra.mxu0 0.0
        %4975 = vmatprep.subr.mxu0 0.0
        %4976 = vmatpush2.xpose.msra.mxu0 0.0
        %4977 = vmatprep.subr.mxu0 0.0
        %4978 = vmatpush2.xpose.msra.mxu0 0.0
        %4979 = vmatprep.subr.mxu0 0.0
        %4980 = vmatpush2.xpose.msra.mxu0 0.0
        %4981 = vmatprep.subr.mxu0 0.0
        %4982 = vmatpush2.xpose.msra.mxu0 0.0
        %4983 = vmatprep.subr.mxu0 0.0
        %4984 = vmatpush2.xpose.msra.mxu0 0.0
        %4985 = vmatprep.subr.mxu0 0.0
        %4986 = vmatpush2.xpose.msra.mxu0 0.0
        %4987 = vmatprep.subr.mxu0 0.0
        %4988 = vmatpush2.xpose.msra.mxu0 0.0
        %4989 = vmatprep.subr.mxu0 0.0
        %4990 = vmatpush2.xpose.msra.mxu0 0.0
        %4991 = vmatprep.subr.mxu0 0.0
        %4992 = vmatpush2.xpose.msra.mxu0 0.0
        %4993 = vmatprep.subr.mxu0 0.0
        %4994 = vmatpush2.xpose.msra.mxu0 0.0
        %4995 = vmatprep.subr.mxu0 0.0
        %4996 = vmatpush2.xpose.msra.mxu0 0.0
        %4997 = vmatprep.subr.mxu0 0.0
        %4998 = vmatpush2.xpose.msra.mxu0 0.0
        %4999 = vmatprep.subr.mxu0 0.0
        %5000 = vmatpush2.xpose.msra.mxu0 0.0
        %5001 = vmatprep.mubr.f32.mxu0 %v3575
        %5002 = vmatmul.mubr.f32.gmra.mxu0 %v3573
        %v5003 = vpop.f32.mrf.mxu0
        %v5004 = vadd.f32 %v4929, %v5003
        %v5005 = vpop.f32.mrf.mxu0
        %5006 = vmatprep.mubr.f32.mxu0 %v3579
        %5007 = vmatmul.mubr.f32.gmra.mxu0 %v3577
        %v5008 = vpop.f32.mrf.mxu0
        %v5009 = vadd.f32 %v4934, %v5008
        %v5010 = vpop.f32.mrf.mxu0
        %5011 = vdwg.mxu0
        %5012 = vmatprep.subr.mxu0 0.0
        %5013 = vmatpush1.xpose.msra.mxu0 0.0
        %5014 = vmatprep.subr.mxu0 0.0
        %5015 = vmatpush1.xpose.msra.mxu0 0.0
        %5016 = vmatprep.subr.mxu0 0.0
        %5017 = vmatpush1.xpose.msra.mxu0 0.0
        %5018 = vmatprep.subr.mxu0 0.0
        %5019 = vmatpush1.xpose.msra.mxu0 0.0
        %5020 = vmatprep.subr.mxu0 0.0
        %5021 = vmatpush1.xpose.msra.mxu0 0.0
        %5022 = vmatprep.subr.mxu0 0.0
        %5023 = vmatpush1.xpose.msra.mxu0 0.0
        %5024 = vmatprep.subr.mxu0 0.0
        %5025 = vmatpush1.xpose.msra.mxu0 0.0
        %5026 = vmatprep.subr.mxu0 0.0
        %5027 = vmatpush1.xpose.msra.mxu0 0.0
        %5028 = vmatprep.subr.mxu0 0.0
        %5029 = vmatpush1.xpose.msra.mxu0 0.0
        %5030 = vmatprep.subr.mxu0 0.0
        %5031 = vmatpush1.xpose.msra.mxu0 0.0
        %5032 = vmatprep.subr.mxu0 0.0
        %5033 = vmatpush1.xpose.msra.mxu0 0.0
        %5034 = vmatprep.subr.mxu0 0.0
        %5035 = vmatpush1.xpose.msra.mxu0 0.0
        %5036 = vmatprep.subr.mxu0 0.0
        %5037 = vmatpush1.xpose.msra.mxu0 0.0
        %5038 = vmatprep.subr.mxu0 0.0
        %5039 = vmatpush1.xpose.msra.mxu0 0.0
        %5040 = vmatprep.subr.mxu0 %v4763
        %5041 = vmatpush1.xpose.msra.mxu0 %v4762
        %5042 = vmatprep.subr.mxu0 %v4735
        %5043 = vmatpush1.xpose.msra.mxu0 %v4734
        %5044 = vmatprep.subr.mxu0 0.0
        %5045 = vmatpush2.xpose.msra.mxu0 0.0
        %5046 = vmatprep.subr.mxu0 0.0
        %5047 = vmatpush2.xpose.msra.mxu0 0.0
        %5048 = vmatprep.subr.mxu0 0.0
        %5049 = vmatpush2.xpose.msra.mxu0 0.0
        %5050 = vmatprep.subr.mxu0 0.0
        %5051 = vmatpush2.xpose.msra.mxu0 0.0
        %5052 = vmatprep.subr.mxu0 0.0
        %5053 = vmatpush2.xpose.msra.mxu0 0.0
        %5054 = vmatprep.subr.mxu0 0.0
        %5055 = vmatpush2.xpose.msra.mxu0 0.0
        %5056 = vmatprep.subr.mxu0 0.0
        %5057 = vmatpush2.xpose.msra.mxu0 0.0
        %5058 = vmatprep.subr.mxu0 0.0
        %5059 = vmatpush2.xpose.msra.mxu0 0.0
        %5060 = vmatprep.subr.mxu0 0.0
        %5061 = vmatpush2.xpose.msra.mxu0 0.0
        %5062 = vmatprep.subr.mxu0 0.0
        %5063 = vmatpush2.xpose.msra.mxu0 0.0
        %5064 = vmatprep.subr.mxu0 0.0
        %5065 = vmatpush2.xpose.msra.mxu0 0.0
        %5066 = vmatprep.subr.mxu0 0.0
        %5067 = vmatpush2.xpose.msra.mxu0 0.0
        %5068 = vmatprep.subr.mxu0 0.0
        %5069 = vmatpush2.xpose.msra.mxu0 0.0
        %5070 = vmatprep.subr.mxu0 0.0
        %5071 = vmatpush2.xpose.msra.mxu0 0.0
        %5072 = vmatprep.subr.mxu0 0.0
        %5073 = vmatpush2.xpose.msra.mxu0 0.0
        %5074 = vmatprep.subr.mxu0 0.0
        %5075 = vmatpush2.xpose.msra.mxu0 0.0
        %5076 = vmatprep.mubr.f32.mxu0 %v3618
        %5077 = vmatmul.mubr.f32.gmra.mxu0 %v3616
        %v5078 = vpop.f32.mrf.mxu0
        %v5079 = vadd.f32 %v5004, %v5078
        %v5080 = vpop.f32.mrf.mxu0
        %5081 = vmatprep.mubr.f32.mxu0 %v3622
        %5082 = vmatmul.mubr.f32.gmra.mxu0 %v3620
        %v5083 = vpop.f32.mrf.mxu0
        %v5084 = vadd.f32 %v5009, %v5083
        %v5085 = vpop.f32.mrf.mxu0
        %5086 = vdwg.mxu0
        %5087 = vmatprep.subr.mxu0 0.0
        %5088 = vmatpush1.xpose.msra.mxu0 0.0
        %5089 = vmatprep.subr.mxu0 0.0
        %5090 = vmatpush1.xpose.msra.mxu0 0.0
        %5091 = vmatprep.subr.mxu0 0.0
        %5092 = vmatpush1.xpose.msra.mxu0 0.0
        %5093 = vmatprep.subr.mxu0 0.0
        %5094 = vmatpush1.xpose.msra.mxu0 0.0
        %5095 = vmatprep.subr.mxu0 0.0
        %5096 = vmatpush1.xpose.msra.mxu0 0.0
        %5097 = vmatprep.subr.mxu0 0.0
        %5098 = vmatpush1.xpose.msra.mxu0 0.0
        %5099 = vmatprep.subr.mxu0 0.0
        %5100 = vmatpush1.xpose.msra.mxu0 0.0
        %5101 = vmatprep.subr.mxu0 0.0
        %5102 = vmatpush1.xpose.msra.mxu0 0.0
        %5103 = vmatprep.subr.mxu0 0.0
        %5104 = vmatpush1.xpose.msra.mxu0 0.0
        %5105 = vmatprep.subr.mxu0 0.0
        %5106 = vmatpush1.xpose.msra.mxu0 0.0
        %5107 = vmatprep.subr.mxu0 0.0
        %5108 = vmatpush1.xpose.msra.mxu0 0.0
        %5109 = vmatprep.subr.mxu0 0.0
        %5110 = vmatpush1.xpose.msra.mxu0 0.0
        %5111 = vmatprep.subr.mxu0 0.0
        %5112 = vmatpush1.xpose.msra.mxu0 0.0
        %5113 = vmatprep.subr.mxu0 0.0
        %5114 = vmatpush1.xpose.msra.mxu0 0.0
        %5115 = vmatprep.subr.mxu0 %v4765
        %5116 = vmatpush1.xpose.msra.mxu0 %v4764
        %5117 = vmatprep.subr.mxu0 %v4737
        %5118 = vmatpush1.xpose.msra.mxu0 %v4736
        %5119 = vmatprep.subr.mxu0 0.0
        %5120 = vmatpush2.xpose.msra.mxu0 0.0
        %5121 = vmatprep.subr.mxu0 0.0
        %5122 = vmatpush2.xpose.msra.mxu0 0.0
        %5123 = vmatprep.subr.mxu0 0.0
        %5124 = vmatpush2.xpose.msra.mxu0 0.0
        %5125 = vmatprep.subr.mxu0 0.0
        %5126 = vmatpush2.xpose.msra.mxu0 0.0
        %5127 = vmatprep.subr.mxu0 0.0
        %5128 = vmatpush2.xpose.msra.mxu0 0.0
        %5129 = vmatprep.subr.mxu0 0.0
        %5130 = vmatpush2.xpose.msra.mxu0 0.0
        %5131 = vmatprep.subr.mxu0 0.0
        %5132 = vmatpush2.xpose.msra.mxu0 0.0
        %5133 = vmatprep.subr.mxu0 0.0
        %5134 = vmatpush2.xpose.msra.mxu0 0.0
        %5135 = vmatprep.subr.mxu0 0.0
        %5136 = vmatpush2.xpose.msra.mxu0 0.0
        %5137 = vmatprep.subr.mxu0 0.0
        %5138 = vmatpush2.xpose.msra.mxu0 0.0
        %5139 = vmatprep.subr.mxu0 0.0
        %5140 = vmatpush2.xpose.msra.mxu0 0.0
        %5141 = vmatprep.subr.mxu0 0.0
        %5142 = vmatpush2.xpose.msra.mxu0 0.0
        %5143 = vmatprep.subr.mxu0 0.0
        %5144 = vmatpush2.xpose.msra.mxu0 0.0
        %5145 = vmatprep.subr.mxu0 0.0
        %5146 = vmatpush2.xpose.msra.mxu0 0.0
        %5147 = vmatprep.subr.mxu0 0.0
        %5148 = vmatpush2.xpose.msra.mxu0 0.0
        %5149 = vmatprep.subr.mxu0 0.0
        %5150 = vmatpush2.xpose.msra.mxu0 0.0
        %5151 = vmatprep.mubr.f32.mxu0 %v3661
        %5152 = vmatmul.mubr.f32.gmra.mxu0 %v3659
        %v5153 = vpop.f32.mrf.mxu0
        %v5154 = vadd.f32 %v5079, %v5153
        %v5155 = vpop.f32.mrf.mxu0
        %5156 = vmatprep.mubr.f32.mxu0 %v3665
        %5157 = vmatmul.mubr.f32.gmra.mxu0 %v3663
        %v5158 = vpop.f32.mrf.mxu0
        %v5159 = vadd.f32 %v5084, %v5158
        %v5160 = vpop.f32.mrf.mxu0
        %5161 = vdwg.mxu0
        %5162 = vmatprep.subr.mxu0 0.0
        %5163 = vmatpush1.xpose.msra.mxu0 0.0
        %5164 = vmatprep.subr.mxu0 0.0
        %5165 = vmatpush1.xpose.msra.mxu0 0.0
        %5166 = vmatprep.subr.mxu0 0.0
        %5167 = vmatpush1.xpose.msra.mxu0 0.0
        %5168 = vmatprep.subr.mxu0 0.0
        %5169 = vmatpush1.xpose.msra.mxu0 0.0
        %5170 = vmatprep.subr.mxu0 0.0
        %5171 = vmatpush1.xpose.msra.mxu0 0.0
        %5172 = vmatprep.subr.mxu0 0.0
        %5173 = vmatpush1.xpose.msra.mxu0 0.0
        %5174 = vmatprep.subr.mxu0 0.0
        %5175 = vmatpush1.xpose.msra.mxu0 0.0
        %5176 = vmatprep.subr.mxu0 0.0
        %5177 = vmatpush1.xpose.msra.mxu0 0.0
        %5178 = vmatprep.subr.mxu0 0.0
        %5179 = vmatpush1.xpose.msra.mxu0 0.0
        %5180 = vmatprep.subr.mxu0 0.0
        %5181 = vmatpush1.xpose.msra.mxu0 0.0
        %5182 = vmatprep.subr.mxu0 0.0
        %5183 = vmatpush1.xpose.msra.mxu0 0.0
        %5184 = vmatprep.subr.mxu0 0.0
        %5185 = vmatpush1.xpose.msra.mxu0 0.0
        %5186 = vmatprep.subr.mxu0 0.0
        %5187 = vmatpush1.xpose.msra.mxu0 0.0
        %5188 = vmatprep.subr.mxu0 0.0
        %5189 = vmatpush1.xpose.msra.mxu0 0.0
        %5190 = vmatprep.subr.mxu0 %v4767
        %5191 = vmatpush1.xpose.msra.mxu0 %v4766
        %5192 = vmatprep.subr.mxu0 %v4739
        %5193 = vmatpush1.xpose.msra.mxu0 %v4738
        %5194 = vmatprep.subr.mxu0 0.0
        %5195 = vmatpush2.xpose.msra.mxu0 0.0
        %5196 = vmatprep.subr.mxu0 0.0
        %5197 = vmatpush2.xpose.msra.mxu0 0.0
        %5198 = vmatprep.subr.mxu0 0.0
        %5199 = vmatpush2.xpose.msra.mxu0 0.0
        %5200 = vmatprep.subr.mxu0 0.0
        %5201 = vmatpush2.xpose.msra.mxu0 0.0
        %5202 = vmatprep.subr.mxu0 0.0
        %5203 = vmatpush2.xpose.msra.mxu0 0.0
        %5204 = vmatprep.subr.mxu0 0.0
        %5205 = vmatpush2.xpose.msra.mxu0 0.0
        %5206 = vmatprep.subr.mxu0 0.0
        %5207 = vmatpush2.xpose.msra.mxu0 0.0
        %5208 = vmatprep.subr.mxu0 0.0
        %5209 = vmatpush2.xpose.msra.mxu0 0.0
        %5210 = vmatprep.subr.mxu0 0.0
        %5211 = vmatpush2.xpose.msra.mxu0 0.0
        %5212 = vmatprep.subr.mxu0 0.0
        %5213 = vmatpush2.xpose.msra.mxu0 0.0
        %5214 = vmatprep.subr.mxu0 0.0
        %5215 = vmatpush2.xpose.msra.mxu0 0.0
        %5216 = vmatprep.subr.mxu0 0.0
        %5217 = vmatpush2.xpose.msra.mxu0 0.0
        %5218 = vmatprep.subr.mxu0 0.0
        %5219 = vmatpush2.xpose.msra.mxu0 0.0
        %5220 = vmatprep.subr.mxu0 0.0
        %5221 = vmatpush2.xpose.msra.mxu0 0.0
        %5222 = vmatprep.subr.mxu0 0.0
        %5223 = vmatpush2.xpose.msra.mxu0 0.0
        %5224 = vmatprep.subr.mxu0 0.0
        %5225 = vmatpush2.xpose.msra.mxu0 0.0
        %5226 = vmatprep.mubr.f32.mxu0 %v3704
        %5227 = vmatmul.mubr.f32.gmra.mxu0 %v3702
        %v5228 = vpop.f32.mrf.mxu0
        %v5229 = vadd.f32 %v5154, %v5228
        %v5230 = vpop.f32.mrf.mxu0
        %5231 = vmatprep.mubr.f32.mxu0 %v3708
        %5232 = vmatmul.mubr.f32.gmra.mxu0 %v3706
        %v5233 = vpop.f32.mrf.mxu0
        %v5234 = vadd.f32 %v5159, %v5233
        %v5235 = vpop.f32.mrf.mxu0
        %5236 = vdwg.mxu0
        %5237 = vmatprep.subr.mxu0 0.0
        %5238 = vmatpush1.xpose.msra.mxu0 0.0
        %5239 = vmatprep.subr.mxu0 0.0
        %5240 = vmatpush1.xpose.msra.mxu0 0.0
        %5241 = vmatprep.subr.mxu0 0.0
        %5242 = vmatpush1.xpose.msra.mxu0 0.0
        %5243 = vmatprep.subr.mxu0 0.0
        %5244 = vmatpush1.xpose.msra.mxu0 0.0
        %5245 = vmatprep.subr.mxu0 0.0
        %5246 = vmatpush1.xpose.msra.mxu0 0.0
        %5247 = vmatprep.subr.mxu0 0.0
        %5248 = vmatpush1.xpose.msra.mxu0 0.0
        %5249 = vmatprep.subr.mxu0 0.0
        %5250 = vmatpush1.xpose.msra.mxu0 0.0
        %5251 = vmatprep.subr.mxu0 0.0
        %5252 = vmatpush1.xpose.msra.mxu0 0.0
        %5253 = vmatprep.subr.mxu0 0.0
        %5254 = vmatpush1.xpose.msra.mxu0 0.0
        %5255 = vmatprep.subr.mxu0 0.0
        %5256 = vmatpush1.xpose.msra.mxu0 0.0
        %5257 = vmatprep.subr.mxu0 0.0
        %5258 = vmatpush1.xpose.msra.mxu0 0.0
        %5259 = vmatprep.subr.mxu0 0.0
        %5260 = vmatpush1.xpose.msra.mxu0 0.0
        %5261 = vmatprep.subr.mxu0 0.0
        %5262 = vmatpush1.xpose.msra.mxu0 0.0
        %5263 = vmatprep.subr.mxu0 0.0
        %5264 = vmatpush1.xpose.msra.mxu0 0.0
        %5265 = vmatprep.subr.mxu0 %v4769
        %5266 = vmatpush1.xpose.msra.mxu0 %v4768
        %5267 = vmatprep.subr.mxu0 %v4741
        %5268 = vmatpush1.xpose.msra.mxu0 %v4740
        %5269 = vmatprep.subr.mxu0 0.0
        %5270 = vmatpush2.xpose.msra.mxu0 0.0
        %5271 = vmatprep.subr.mxu0 0.0
        %5272 = vmatpush2.xpose.msra.mxu0 0.0
        %5273 = vmatprep.subr.mxu0 0.0
        %5274 = vmatpush2.xpose.msra.mxu0 0.0
        %5275 = vmatprep.subr.mxu0 0.0
        %5276 = vmatpush2.xpose.msra.mxu0 0.0
        %5277 = vmatprep.subr.mxu0 0.0
        %5278 = vmatpush2.xpose.msra.mxu0 0.0
        %5279 = vmatprep.subr.mxu0 0.0
        %5280 = vmatpush2.xpose.msra.mxu0 0.0
        %5281 = vmatprep.subr.mxu0 0.0
        %5282 = vmatpush2.xpose.msra.mxu0 0.0
        %5283 = vmatprep.subr.mxu0 0.0
        %5284 = vmatpush2.xpose.msra.mxu0 0.0
        %5285 = vmatprep.subr.mxu0 0.0
        %5286 = vmatpush2.xpose.msra.mxu0 0.0
        %5287 = vmatprep.subr.mxu0 0.0
        %5288 = vmatpush2.xpose.msra.mxu0 0.0
        %5289 = vmatprep.subr.mxu0 0.0
        %5290 = vmatpush2.xpose.msra.mxu0 0.0
        %5291 = vmatprep.subr.mxu0 0.0
        %5292 = vmatpush2.xpose.msra.mxu0 0.0
        %5293 = vmatprep.subr.mxu0 0.0
        %5294 = vmatpush2.xpose.msra.mxu0 0.0
        %5295 = vmatprep.subr.mxu0 0.0
        %5296 = vmatpush2.xpose.msra.mxu0 0.0
        %5297 = vmatprep.subr.mxu0 0.0
        %5298 = vmatpush2.xpose.msra.mxu0 0.0
        %5299 = vmatprep.subr.mxu0 0.0
        %5300 = vmatpush2.xpose.msra.mxu0 0.0
        %5301 = vmatprep.mubr.f32.mxu0 %v3747
        %5302 = vmatmul.mubr.f32.gmra.mxu0 %v3745
        %v5303 = vpop.f32.mrf.mxu0
        %v5304 = vadd.f32 %v5229, %v5303
        %v5305 = vpop.f32.mrf.mxu0
        %5306 = vmatprep.mubr.f32.mxu0 %v3751
        %5307 = vmatmul.mubr.f32.gmra.mxu0 %v3749
        %v5308 = vpop.f32.mrf.mxu0
        %v5309 = vadd.f32 %v5234, %v5308
        %v5310 = vpop.f32.mrf.mxu0
        %5311 = vdwg.mxu0
        %5312 = vmatprep.subr.mxu0 0.0
        %5313 = vmatpush1.xpose.msra.mxu0 0.0
        %5314 = vmatprep.subr.mxu0 0.0
        %5315 = vmatpush1.xpose.msra.mxu0 0.0
        %5316 = vmatprep.subr.mxu0 0.0
        %5317 = vmatpush1.xpose.msra.mxu0 0.0
        %5318 = vmatprep.subr.mxu0 0.0
        %5319 = vmatpush1.xpose.msra.mxu0 0.0
        %5320 = vmatprep.subr.mxu0 0.0
        %5321 = vmatpush1.xpose.msra.mxu0 0.0
        %5322 = vmatprep.subr.mxu0 0.0
        %5323 = vmatpush1.xpose.msra.mxu0 0.0
        %5324 = vmatprep.subr.mxu0 0.0
        %5325 = vmatpush1.xpose.msra.mxu0 0.0
        %5326 = vmatprep.subr.mxu0 0.0
        %5327 = vmatpush1.xpose.msra.mxu0 0.0
        %5328 = vmatprep.subr.mxu0 0.0
        %5329 = vmatpush1.xpose.msra.mxu0 0.0
        %5330 = vmatprep.subr.mxu0 0.0
        %5331 = vmatpush1.xpose.msra.mxu0 0.0
        %5332 = vmatprep.subr.mxu0 0.0
        %5333 = vmatpush1.xpose.msra.mxu0 0.0
        %5334 = vmatprep.subr.mxu0 0.0
        %5335 = vmatpush1.xpose.msra.mxu0 0.0
        %5336 = vmatprep.subr.mxu0 0.0
        %5337 = vmatpush1.xpose.msra.mxu0 0.0
        %5338 = vmatprep.subr.mxu0 0.0
        %5339 = vmatpush1.xpose.msra.mxu0 0.0
        %5340 = vmatprep.subr.mxu0 %v4771
        %5341 = vmatpush1.xpose.msra.mxu0 %v4770
        %5342 = vmatprep.subr.mxu0 %v4743
        %5343 = vmatpush1.xpose.msra.mxu0 %v4742
        %5344 = vmatprep.subr.mxu0 0.0
        %5345 = vmatpush2.xpose.msra.mxu0 0.0
        %5346 = vmatprep.subr.mxu0 0.0
        %5347 = vmatpush2.xpose.msra.mxu0 0.0
        %5348 = vmatprep.subr.mxu0 0.0
        %5349 = vmatpush2.xpose.msra.mxu0 0.0
        %5350 = vmatprep.subr.mxu0 0.0
        %5351 = vmatpush2.xpose.msra.mxu0 0.0
        %5352 = vmatprep.subr.mxu0 0.0
        %5353 = vmatpush2.xpose.msra.mxu0 0.0
        %5354 = vmatprep.subr.mxu0 0.0
        %5355 = vmatpush2.xpose.msra.mxu0 0.0
        %5356 = vmatprep.subr.mxu0 0.0
        %5357 = vmatpush2.xpose.msra.mxu0 0.0
        %5358 = vmatprep.subr.mxu0 0.0
        %5359 = vmatpush2.xpose.msra.mxu0 0.0
        %5360 = vmatprep.subr.mxu0 0.0
        %5361 = vmatpush2.xpose.msra.mxu0 0.0
        %5362 = vmatprep.subr.mxu0 0.0
        %5363 = vmatpush2.xpose.msra.mxu0 0.0
        %5364 = vmatprep.subr.mxu0 0.0
        %5365 = vmatpush2.xpose.msra.mxu0 0.0
        %5366 = vmatprep.subr.mxu0 0.0
        %5367 = vmatpush2.xpose.msra.mxu0 0.0
        %5368 = vmatprep.subr.mxu0 0.0
        %5369 = vmatpush2.xpose.msra.mxu0 0.0
        %5370 = vmatprep.subr.mxu0 0.0
        %5371 = vmatpush2.xpose.msra.mxu0 0.0
        %5372 = vmatprep.subr.mxu0 0.0
        %5373 = vmatpush2.xpose.msra.mxu0 0.0
        %5374 = vmatprep.subr.mxu0 0.0
        %5375 = vmatpush2.xpose.msra.mxu0 0.0
        %5376 = vmatprep.mubr.f32.mxu0 %v3790
        %5377 = vmatmul.mubr.f32.gmra.mxu0 %v3788
        %v5378 = vpop.f32.mrf.mxu0
        %v5379 = vadd.f32 %v5304, %v5378
        %v5380 = vpop.f32.mrf.mxu0
        %5381 = vmatprep.mubr.f32.mxu0 %v3794
        %5382 = vmatmul.mubr.f32.gmra.mxu0 %v3792
        %v5383 = vpop.f32.mrf.mxu0
        %v5384 = vadd.f32 %v5309, %v5383
        %v5385 = vpop.f32.mrf.mxu0
        %5386 = vdwg.mxu0
        %5387 = vmatprep.subr.mxu0 0.0
        %5388 = vmatpush1.xpose.msra.mxu0 0.0
        %5389 = vmatprep.subr.mxu0 0.0
        %5390 = vmatpush1.xpose.msra.mxu0 0.0
        %5391 = vmatprep.subr.mxu0 0.0
        %5392 = vmatpush1.xpose.msra.mxu0 0.0
        %5393 = vmatprep.subr.mxu0 0.0
        %5394 = vmatpush1.xpose.msra.mxu0 0.0
        %5395 = vmatprep.subr.mxu0 0.0
        %5396 = vmatpush1.xpose.msra.mxu0 0.0
        %5397 = vmatprep.subr.mxu0 0.0
        %5398 = vmatpush1.xpose.msra.mxu0 0.0
        %5399 = vmatprep.subr.mxu0 0.0
        %5400 = vmatpush1.xpose.msra.mxu0 0.0
        %5401 = vmatprep.subr.mxu0 0.0
        %5402 = vmatpush1.xpose.msra.mxu0 0.0
        %5403 = vmatprep.subr.mxu0 0.0
        %5404 = vmatpush1.xpose.msra.mxu0 0.0
        %5405 = vmatprep.subr.mxu0 0.0
        %5406 = vmatpush1.xpose.msra.mxu0 0.0
        %5407 = vmatprep.subr.mxu0 0.0
        %5408 = vmatpush1.xpose.msra.mxu0 0.0
        %5409 = vmatprep.subr.mxu0 0.0
        %5410 = vmatpush1.xpose.msra.mxu0 0.0
        %5411 = vmatprep.subr.mxu0 0.0
        %5412 = vmatpush1.xpose.msra.mxu0 0.0
        %5413 = vmatprep.subr.mxu0 0.0
        %5414 = vmatpush1.xpose.msra.mxu0 0.0
        %5415 = vmatprep.subr.mxu0 %v4773
        %5416 = vmatpush1.xpose.msra.mxu0 %v4772
        %5417 = vmatprep.subr.mxu0 %v4745
        %5418 = vmatpush1.xpose.msra.mxu0 %v4744
        %5419 = vmatprep.subr.mxu0 0.0
        %5420 = vmatpush2.xpose.msra.mxu0 0.0
        %5421 = vmatprep.subr.mxu0 0.0
        %5422 = vmatpush2.xpose.msra.mxu0 0.0
        %5423 = vmatprep.subr.mxu0 0.0
        %5424 = vmatpush2.xpose.msra.mxu0 0.0
        %5425 = vmatprep.subr.mxu0 0.0
        %5426 = vmatpush2.xpose.msra.mxu0 0.0
        %5427 = vmatprep.subr.mxu0 0.0
        %5428 = vmatpush2.xpose.msra.mxu0 0.0
        %5429 = vmatprep.subr.mxu0 0.0
        %5430 = vmatpush2.xpose.msra.mxu0 0.0
        %5431 = vmatprep.subr.mxu0 0.0
        %5432 = vmatpush2.xpose.msra.mxu0 0.0
        %5433 = vmatprep.subr.mxu0 0.0
        %5434 = vmatpush2.xpose.msra.mxu0 0.0
        %5435 = vmatprep.subr.mxu0 0.0
        %5436 = vmatpush2.xpose.msra.mxu0 0.0
        %5437 = vmatprep.subr.mxu0 0.0
        %5438 = vmatpush2.xpose.msra.mxu0 0.0
        %5439 = vmatprep.subr.mxu0 0.0
        %5440 = vmatpush2.xpose.msra.mxu0 0.0
        %5441 = vmatprep.subr.mxu0 0.0
        %5442 = vmatpush2.xpose.msra.mxu0 0.0
        %5443 = vmatprep.subr.mxu0 0.0
        %5444 = vmatpush2.xpose.msra.mxu0 0.0
        %5445 = vmatprep.subr.mxu0 0.0
        %5446 = vmatpush2.xpose.msra.mxu0 0.0
        %5447 = vmatprep.subr.mxu0 0.0
        %5448 = vmatpush2.xpose.msra.mxu0 0.0
        %5449 = vmatprep.subr.mxu0 0.0
        %5450 = vmatpush2.xpose.msra.mxu0 0.0
        %5451 = vmatprep.mubr.f32.mxu0 %v3833
        %5452 = vmatmul.mubr.f32.gmra.mxu0 %v3831
        %v5453 = vpop.f32.mrf.mxu0
        %v5454 = vadd.f32 %v5379, %v5453
        %v5455 = vpop.f32.mrf.mxu0
        %5456 = vmatprep.mubr.f32.mxu0 %v3837
        %5457 = vmatmul.mubr.f32.gmra.mxu0 %v3835
        %v5458 = vpop.f32.mrf.mxu0
        %v5459 = vadd.f32 %v5384, %v5458
        %v5460 = vpop.f32.mrf.mxu0
        %5461 = vdwg.mxu0
        %5462 = vmatprep.subr.mxu0 0.0
        %5463 = vmatpush1.xpose.msra.mxu0 0.0
        %5464 = vmatprep.subr.mxu0 0.0
        %5465 = vmatpush1.xpose.msra.mxu0 0.0
        %5466 = vmatprep.subr.mxu0 0.0
        %5467 = vmatpush1.xpose.msra.mxu0 0.0
        %5468 = vmatprep.subr.mxu0 0.0
        %5469 = vmatpush1.xpose.msra.mxu0 0.0
        %5470 = vmatprep.subr.mxu0 0.0
        %5471 = vmatpush1.xpose.msra.mxu0 0.0
        %5472 = vmatprep.subr.mxu0 0.0
        %5473 = vmatpush1.xpose.msra.mxu0 0.0
        %5474 = vmatprep.subr.mxu0 0.0
        %5475 = vmatpush1.xpose.msra.mxu0 0.0
        %5476 = vmatprep.subr.mxu0 0.0
        %5477 = vmatpush1.xpose.msra.mxu0 0.0
        %5478 = vmatprep.subr.mxu0 0.0
        %5479 = vmatpush1.xpose.msra.mxu0 0.0
        %5480 = vmatprep.subr.mxu0 0.0
        %5481 = vmatpush1.xpose.msra.mxu0 0.0
        %5482 = vmatprep.subr.mxu0 0.0
        %5483 = vmatpush1.xpose.msra.mxu0 0.0
        %5484 = vmatprep.subr.mxu0 0.0
        %5485 = vmatpush1.xpose.msra.mxu0 0.0
        %5486 = vmatprep.subr.mxu0 0.0
        %5487 = vmatpush1.xpose.msra.mxu0 0.0
        %5488 = vmatprep.subr.mxu0 0.0
        %5489 = vmatpush1.xpose.msra.mxu0 0.0
        %5490 = vmatprep.subr.mxu0 %v4775
        %5491 = vmatpush1.xpose.msra.mxu0 %v4774
        %5492 = vmatprep.subr.mxu0 %v4747
        %5493 = vmatpush1.xpose.msra.mxu0 %v4746
        %5494 = vmatprep.subr.mxu0 0.0
        %5495 = vmatpush2.xpose.msra.mxu0 0.0
        %5496 = vmatprep.subr.mxu0 0.0
        %5497 = vmatpush2.xpose.msra.mxu0 0.0
        %5498 = vmatprep.subr.mxu0 0.0
        %5499 = vmatpush2.xpose.msra.mxu0 0.0
        %5500 = vmatprep.subr.mxu0 0.0
        %5501 = vmatpush2.xpose.msra.mxu0 0.0
        %5502 = vmatprep.subr.mxu0 0.0
        %5503 = vmatpush2.xpose.msra.mxu0 0.0
        %5504 = vmatprep.subr.mxu0 0.0
        %5505 = vmatpush2.xpose.msra.mxu0 0.0
        %5506 = vmatprep.subr.mxu0 0.0
        %5507 = vmatpush2.xpose.msra.mxu0 0.0
        %5508 = vmatprep.subr.mxu0 0.0
        %5509 = vmatpush2.xpose.msra.mxu0 0.0
        %5510 = vmatprep.subr.mxu0 0.0
        %5511 = vmatpush2.xpose.msra.mxu0 0.0
        %5512 = vmatprep.subr.mxu0 0.0
        %5513 = vmatpush2.xpose.msra.mxu0 0.0
        %5514 = vmatprep.subr.mxu0 0.0
        %5515 = vmatpush2.xpose.msra.mxu0 0.0
        %5516 = vmatprep.subr.mxu0 0.0
        %5517 = vmatpush2.xpose.msra.mxu0 0.0
        %5518 = vmatprep.subr.mxu0 0.0
        %5519 = vmatpush2.xpose.msra.mxu0 0.0
        %5520 = vmatprep.subr.mxu0 0.0
        %5521 = vmatpush2.xpose.msra.mxu0 0.0
        %5522 = vmatprep.subr.mxu0 0.0
        %5523 = vmatpush2.xpose.msra.mxu0 0.0
        %5524 = vmatprep.subr.mxu0 0.0
        %5525 = vmatpush2.xpose.msra.mxu0 0.0
        %5526 = vmatprep.mubr.f32.mxu0 %v3876
        %5527 = vmatmul.mubr.f32.gmra.mxu0 %v3874
        %v5528 = vpop.f32.mrf.mxu0
        %v5529 = vadd.f32 %v5454, %v5528
        %v5530 = vpop.f32.mrf.mxu0
        %5531 = vmatprep.mubr.f32.mxu0 %v3880
        %5532 = vmatmul.mubr.f32.gmra.mxu0 %v3878
        %v5533 = vpop.f32.mrf.mxu0
        %v5534 = vadd.f32 %v5459, %v5533
        %v5535 = vpop.f32.mrf.mxu0
        %5536 = vdwg.mxu0
        %5537 = vmatprep.subr.mxu0 0.0
        %5538 = vmatpush1.xpose.msra.mxu0 0.0
        %5539 = vmatprep.subr.mxu0 0.0
        %5540 = vmatpush1.xpose.msra.mxu0 0.0
        %5541 = vmatprep.subr.mxu0 0.0
        %5542 = vmatpush1.xpose.msra.mxu0 0.0
        %5543 = vmatprep.subr.mxu0 0.0
        %5544 = vmatpush1.xpose.msra.mxu0 0.0
        %5545 = vmatprep.subr.mxu0 0.0
        %5546 = vmatpush1.xpose.msra.mxu0 0.0
        %5547 = vmatprep.subr.mxu0 0.0
        %5548 = vmatpush1.xpose.msra.mxu0 0.0
        %5549 = vmatprep.subr.mxu0 0.0
        %5550 = vmatpush1.xpose.msra.mxu0 0.0
        %5551 = vmatprep.subr.mxu0 0.0
        %5552 = vmatpush1.xpose.msra.mxu0 0.0
        %5553 = vmatprep.subr.mxu0 0.0
        %5554 = vmatpush1.xpose.msra.mxu0 0.0
        %5555 = vmatprep.subr.mxu0 0.0
        %5556 = vmatpush1.xpose.msra.mxu0 0.0
        %5557 = vmatprep.subr.mxu0 0.0
        %5558 = vmatpush1.xpose.msra.mxu0 0.0
        %5559 = vmatprep.subr.mxu0 0.0
        %5560 = vmatpush1.xpose.msra.mxu0 0.0
        %5561 = vmatprep.subr.mxu0 0.0
        %5562 = vmatpush1.xpose.msra.mxu0 0.0
        %5563 = vmatprep.subr.mxu0 0.0
        %5564 = vmatpush1.xpose.msra.mxu0 0.0
        %5565 = vmatprep.subr.mxu0 %v4777
        %5566 = vmatpush1.xpose.msra.mxu0 %v4776
        %5567 = vmatprep.subr.mxu0 %v4749
        %5568 = vmatpush1.xpose.msra.mxu0 %v4748
        %5569 = vmatprep.subr.mxu0 0.0
        %5570 = vmatpush2.xpose.msra.mxu0 0.0
        %5571 = vmatprep.subr.mxu0 0.0
        %5572 = vmatpush2.xpose.msra.mxu0 0.0
        %5573 = vmatprep.subr.mxu0 0.0
        %5574 = vmatpush2.xpose.msra.mxu0 0.0
        %5575 = vmatprep.subr.mxu0 0.0
        %5576 = vmatpush2.xpose.msra.mxu0 0.0
        %5577 = vmatprep.subr.mxu0 0.0
        %5578 = vmatpush2.xpose.msra.mxu0 0.0
        %5579 = vmatprep.subr.mxu0 0.0
        %5580 = vmatpush2.xpose.msra.mxu0 0.0
        %5581 = vmatprep.subr.mxu0 0.0
        %5582 = vmatpush2.xpose.msra.mxu0 0.0
        %5583 = vmatprep.subr.mxu0 0.0
        %5584 = vmatpush2.xpose.msra.mxu0 0.0
        %5585 = vmatprep.subr.mxu0 0.0
        %5586 = vmatpush2.xpose.msra.mxu0 0.0
        %5587 = vmatprep.subr.mxu0 0.0
        %5588 = vmatpush2.xpose.msra.mxu0 0.0
        %5589 = vmatprep.subr.mxu0 0.0
        %5590 = vmatpush2.xpose.msra.mxu0 0.0
        %5591 = vmatprep.subr.mxu0 0.0
        %5592 = vmatpush2.xpose.msra.mxu0 0.0
        %5593 = vmatprep.subr.mxu0 0.0
        %5594 = vmatpush2.xpose.msra.mxu0 0.0
        %5595 = vmatprep.subr.mxu0 0.0
        %5596 = vmatpush2.xpose.msra.mxu0 0.0
        %5597 = vmatprep.subr.mxu0 0.0
        %5598 = vmatpush2.xpose.msra.mxu0 0.0
        %5599 = vmatprep.subr.mxu0 0.0
        %5600 = vmatpush2.xpose.msra.mxu0 0.0
        %5601 = vmatprep.mubr.f32.mxu0 %v3919
        %5602 = vmatmul.mubr.f32.gmra.mxu0 %v3917
        %v5603 = vpop.f32.mrf.mxu0
        %v5604 = vadd.f32 %v5529, %v5603
        %v5605 = vpop.f32.mrf.mxu0
        %5606 = vmatprep.mubr.f32.mxu0 %v3923
        %5607 = vmatmul.mubr.f32.gmra.mxu0 %v3921
        %v5608 = vpop.f32.mrf.mxu0
        %v5609 = vadd.f32 %v5534, %v5608
        %v5610 = vpop.f32.mrf.mxu0
        %5611 = vdwg.mxu0
        %5612 = vmatprep.subr.mxu0 0.0
        %5613 = vmatpush1.xpose.msra.mxu0 0.0
        %5614 = vmatprep.subr.mxu0 0.0
        %5615 = vmatpush1.xpose.msra.mxu0 0.0
        %5616 = vmatprep.subr.mxu0 0.0
        %5617 = vmatpush1.xpose.msra.mxu0 0.0
        %5618 = vmatprep.subr.mxu0 0.0
        %5619 = vmatpush1.xpose.msra.mxu0 0.0
        %5620 = vmatprep.subr.mxu0 0.0
        %5621 = vmatpush1.xpose.msra.mxu0 0.0
        %5622 = vmatprep.subr.mxu0 0.0
        %5623 = vmatpush1.xpose.msra.mxu0 0.0
        %5624 = vmatprep.subr.mxu0 0.0
        %5625 = vmatpush1.xpose.msra.mxu0 0.0
        %5626 = vmatprep.subr.mxu0 0.0
        %5627 = vmatpush1.xpose.msra.mxu0 0.0
        %5628 = vmatprep.subr.mxu0 0.0
        %5629 = vmatpush1.xpose.msra.mxu0 0.0
        %5630 = vmatprep.subr.mxu0 0.0
        %5631 = vmatpush1.xpose.msra.mxu0 0.0
        %5632 = vmatprep.subr.mxu0 0.0
        %5633 = vmatpush1.xpose.msra.mxu0 0.0
        %5634 = vmatprep.subr.mxu0 0.0
        %5635 = vmatpush1.xpose.msra.mxu0 0.0
        %5636 = vmatprep.subr.mxu0 0.0
        %5637 = vmatpush1.xpose.msra.mxu0 0.0
        %5638 = vmatprep.subr.mxu0 0.0
        %5639 = vmatpush1.xpose.msra.mxu0 0.0
        %5640 = vmatprep.subr.mxu0 %v4779
        %5641 = vmatpush1.xpose.msra.mxu0 %v4778
        %5642 = vmatprep.subr.mxu0 %v4751
        %5643 = vmatpush1.xpose.msra.mxu0 %v4750
        %5644 = vmatprep.subr.mxu0 0.0
        %5645 = vmatpush2.xpose.msra.mxu0 0.0
        %5646 = vmatprep.subr.mxu0 0.0
        %5647 = vmatpush2.xpose.msra.mxu0 0.0
        %5648 = vmatprep.subr.mxu0 0.0
        %5649 = vmatpush2.xpose.msra.mxu0 0.0
        %5650 = vmatprep.subr.mxu0 0.0
        %5651 = vmatpush2.xpose.msra.mxu0 0.0
        %5652 = vmatprep.subr.mxu0 0.0
        %5653 = vmatpush2.xpose.msra.mxu0 0.0
        %5654 = vmatprep.subr.mxu0 0.0
        %5655 = vmatpush2.xpose.msra.mxu0 0.0
        %5656 = vmatprep.subr.mxu0 0.0
        %5657 = vmatpush2.xpose.msra.mxu0 0.0
        %5658 = vmatprep.subr.mxu0 0.0
        %5659 = vmatpush2.xpose.msra.mxu0 0.0
        %5660 = vmatprep.subr.mxu0 0.0
        %5661 = vmatpush2.xpose.msra.mxu0 0.0
        %5662 = vmatprep.subr.mxu0 0.0
        %5663 = vmatpush2.xpose.msra.mxu0 0.0
        %5664 = vmatprep.subr.mxu0 0.0
        %5665 = vmatpush2.xpose.msra.mxu0 0.0
        %5666 = vmatprep.subr.mxu0 0.0
        %5667 = vmatpush2.xpose.msra.mxu0 0.0
        %5668 = vmatprep.subr.mxu0 0.0
        %5669 = vmatpush2.xpose.msra.mxu0 0.0
        %5670 = vmatprep.subr.mxu0 0.0
        %5671 = vmatpush2.xpose.msra.mxu0 0.0
        %5672 = vmatprep.subr.mxu0 0.0
        %5673 = vmatpush2.xpose.msra.mxu0 0.0
        %5674 = vmatprep.subr.mxu0 0.0
        %5675 = vmatpush2.xpose.msra.mxu0 0.0
        %5676 = vmatprep.mubr.f32.mxu0 %v3962
        %5677 = vmatmul.mubr.f32.gmra.mxu0 %v3960
        %v5678 = vpop.f32.mrf.mxu0
        %v5679 = vadd.f32 %v5604, %v5678
        %v5680 = vpop.f32.mrf.mxu0
        %5681 = vmatprep.mubr.f32.mxu0 %v3966
        %5682 = vmatmul.mubr.f32.gmra.mxu0 %v3964
        %v5683 = vpop.f32.mrf.mxu0
        %v5684 = vadd.f32 %v5609, %v5683
        %v5685 = vpop.f32.mrf.mxu0
        %5686 = vdwg.mxu0
        %5687 = vmatprep.subr.mxu0 0.0
        %5688 = vmatpush1.xpose.msra.mxu0 0.0
        %5689 = vmatprep.subr.mxu0 0.0
        %5690 = vmatpush1.xpose.msra.mxu0 0.0
        %5691 = vmatprep.subr.mxu0 0.0
        %5692 = vmatpush1.xpose.msra.mxu0 0.0
        %5693 = vmatprep.subr.mxu0 0.0
        %5694 = vmatpush1.xpose.msra.mxu0 0.0
        %5695 = vmatprep.subr.mxu0 0.0
        %5696 = vmatpush1.xpose.msra.mxu0 0.0
        %5697 = vmatprep.subr.mxu0 0.0
        %5698 = vmatpush1.xpose.msra.mxu0 0.0
        %5699 = vmatprep.subr.mxu0 0.0
        %5700 = vmatpush1.xpose.msra.mxu0 0.0
        %5701 = vmatprep.subr.mxu0 0.0
        %5702 = vmatpush1.xpose.msra.mxu0 0.0
        %5703 = vmatprep.subr.mxu0 0.0
        %5704 = vmatpush1.xpose.msra.mxu0 0.0
        %5705 = vmatprep.subr.mxu0 0.0
        %5706 = vmatpush1.xpose.msra.mxu0 0.0
        %5707 = vmatprep.subr.mxu0 0.0
        %5708 = vmatpush1.xpose.msra.mxu0 0.0
        %5709 = vmatprep.subr.mxu0 0.0
        %5710 = vmatpush1.xpose.msra.mxu0 0.0
        %5711 = vmatprep.subr.mxu0 0.0
        %5712 = vmatpush1.xpose.msra.mxu0 0.0
        %5713 = vmatprep.subr.mxu0 0.0
        %5714 = vmatpush1.xpose.msra.mxu0 0.0
        %5715 = vmatprep.subr.mxu0 %v4781
        %5716 = vmatpush1.xpose.msra.mxu0 %v4780
        %5717 = vmatprep.subr.mxu0 %v4753
        %5718 = vmatpush1.xpose.msra.mxu0 %v4752
        %5719 = vmatprep.subr.mxu0 0.0
        %5720 = vmatpush2.xpose.msra.mxu0 0.0
        %5721 = vmatprep.subr.mxu0 0.0
        %5722 = vmatpush2.xpose.msra.mxu0 0.0
        %5723 = vmatprep.subr.mxu0 0.0
        %5724 = vmatpush2.xpose.msra.mxu0 0.0
        %5725 = vmatprep.subr.mxu0 0.0
        %5726 = vmatpush2.xpose.msra.mxu0 0.0
        %5727 = vmatprep.subr.mxu0 0.0
        %5728 = vmatpush2.xpose.msra.mxu0 0.0
        %5729 = vmatprep.subr.mxu0 0.0
        %5730 = vmatpush2.xpose.msra.mxu0 0.0
        %5731 = vmatprep.subr.mxu0 0.0
        %5732 = vmatpush2.xpose.msra.mxu0 0.0
        %5733 = vmatprep.subr.mxu0 0.0
        %5734 = vmatpush2.xpose.msra.mxu0 0.0
        %5735 = vmatprep.subr.mxu0 0.0
        %5736 = vmatpush2.xpose.msra.mxu0 0.0
        %5737 = vmatprep.subr.mxu0 0.0
        %5738 = vmatpush2.xpose.msra.mxu0 0.0
        %5739 = vmatprep.subr.mxu0 0.0
        %5740 = vmatpush2.xpose.msra.mxu0 0.0
        %5741 = vmatprep.subr.mxu0 0.0
        %5742 = vmatpush2.xpose.msra.mxu0 0.0
        %5743 = vmatprep.subr.mxu0 0.0
        %5744 = vmatpush2.xpose.msra.mxu0 0.0
        %5745 = vmatprep.subr.mxu0 0.0
        %5746 = vmatpush2.xpose.msra.mxu0 0.0
        %5747 = vmatprep.subr.mxu0 0.0
        %5748 = vmatpush2.xpose.msra.mxu0 0.0
        %5749 = vmatprep.subr.mxu0 0.0
        %5750 = vmatpush2.xpose.msra.mxu0 0.0
        %5751 = vmatprep.mubr.f32.mxu0 %v4005
        %5752 = vmatmul.mubr.f32.gmra.mxu0 %v4003
        %v5753 = vpop.f32.mrf.mxu0
        %v5754 = vadd.f32 %v5679, %v5753
        %v5755 = vpop.f32.mrf.mxu0
        %5756 = vmatprep.mubr.f32.mxu0 %v4009
        %5757 = vmatmul.mubr.f32.gmra.mxu0 %v4007
        %v5758 = vpop.f32.mrf.mxu0
        %v5759 = vadd.f32 %v5684, %v5758
        %v5760 = vpop.f32.mrf.mxu0
        %5761 = vdwg.mxu0
        %5762 = vmatprep.subr.mxu0 0.0
        %5763 = vmatpush1.xpose.msra.mxu0 0.0
        %5764 = vmatprep.subr.mxu0 0.0
        %5765 = vmatpush1.xpose.msra.mxu0 0.0
        %5766 = vmatprep.subr.mxu0 0.0
        %5767 = vmatpush1.xpose.msra.mxu0 0.0
        %5768 = vmatprep.subr.mxu0 0.0
        %5769 = vmatpush1.xpose.msra.mxu0 0.0
        %5770 = vmatprep.subr.mxu0 0.0
        %5771 = vmatpush1.xpose.msra.mxu0 0.0
        %5772 = vmatprep.subr.mxu0 0.0
        %5773 = vmatpush1.xpose.msra.mxu0 0.0
        %5774 = vmatprep.subr.mxu0 0.0
        %5775 = vmatpush1.xpose.msra.mxu0 0.0
        %5776 = vmatprep.subr.mxu0 0.0
        %5777 = vmatpush1.xpose.msra.mxu0 0.0
        %5778 = vmatprep.subr.mxu0 0.0
        %5779 = vmatpush1.xpose.msra.mxu0 0.0
        %5780 = vmatprep.subr.mxu0 0.0
        %5781 = vmatpush1.xpose.msra.mxu0 0.0
        %5782 = vmatprep.subr.mxu0 0.0
        %5783 = vmatpush1.xpose.msra.mxu0 0.0
        %5784 = vmatprep.subr.mxu0 0.0
        %5785 = vmatpush1.xpose.msra.mxu0 0.0
        %5786 = vmatprep.subr.mxu0 0.0
        %5787 = vmatpush1.xpose.msra.mxu0 0.0
        %5788 = vmatprep.subr.mxu0 0.0
        %5789 = vmatpush1.xpose.msra.mxu0 0.0
        %5790 = vmatprep.subr.mxu0 %v4783
        %5791 = vmatpush1.xpose.msra.mxu0 %v4782
        %5792 = vmatprep.subr.mxu0 %v4755
        %5793 = vmatpush1.xpose.msra.mxu0 %v4754
        %5794 = vmatprep.subr.mxu0 0.0
        %5795 = vmatpush2.xpose.msra.mxu0 0.0
        %5796 = vmatprep.subr.mxu0 0.0
        %5797 = vmatpush2.xpose.msra.mxu0 0.0
        %5798 = vmatprep.subr.mxu0 0.0
        %5799 = vmatpush2.xpose.msra.mxu0 0.0
        %5800 = vmatprep.subr.mxu0 0.0
        %5801 = vmatpush2.xpose.msra.mxu0 0.0
        %5802 = vmatprep.subr.mxu0 0.0
        %5803 = vmatpush2.xpose.msra.mxu0 0.0
        %5804 = vmatprep.subr.mxu0 0.0
        %5805 = vmatpush2.xpose.msra.mxu0 0.0
        %5806 = vmatprep.subr.mxu0 0.0
        %5807 = vmatpush2.xpose.msra.mxu0 0.0
        %5808 = vmatprep.subr.mxu0 0.0
        %5809 = vmatpush2.xpose.msra.mxu0 0.0
        %5810 = vmatprep.subr.mxu0 0.0
        %5811 = vmatpush2.xpose.msra.mxu0 0.0
        %5812 = vmatprep.subr.mxu0 0.0
        %5813 = vmatpush2.xpose.msra.mxu0 0.0
        %5814 = vmatprep.subr.mxu0 0.0
        %5815 = vmatpush2.xpose.msra.mxu0 0.0
        %5816 = vmatprep.subr.mxu0 0.0
        %5817 = vmatpush2.xpose.msra.mxu0 0.0
        %5818 = vmatprep.subr.mxu0 0.0
        %5819 = vmatpush2.xpose.msra.mxu0 0.0
        %5820 = vmatprep.subr.mxu0 0.0
        %5821 = vmatpush2.xpose.msra.mxu0 0.0
        %5822 = vmatprep.subr.mxu0 0.0
        %5823 = vmatpush2.xpose.msra.mxu0 0.0
        %5824 = vmatprep.subr.mxu0 0.0
        %5825 = vmatpush2.xpose.msra.mxu0 0.0
        %5826 = vmatprep.mubr.f32.mxu0 %v4048
        %5827 = vmatmul.mubr.f32.gmra.mxu0 %v4046
        %v5828 = vpop.f32.mrf.mxu0
        %v5829 = vadd.f32 %v5754, %v5828
        %v5830 = vpop.f32.mrf.mxu0
        %5831 = vmatprep.mubr.f32.mxu0 %v4052
        %5832 = vmatmul.mubr.f32.gmra.mxu0 %v4050
        %v5833 = vpop.f32.mrf.mxu0
        %v5834 = vadd.f32 %v5759, %v5833
        %v5835 = vpop.f32.mrf.mxu0
        %5836 = vdwg.mxu0
        %v5837 = vadd.f32 %v4785, %v5829
        %v5838 = vadd.f32 %v4786, %v5834
        %5839 = vst.msk [vmem:[%s4784] sm:$0xff] %vm3437, %v5837
        %5840 = vst.msk [vmem:[%s4784 + $0x8] sm:$0xf] %vm3439, %v5838
        %p5841 = scmp.eq.s32.totalorder %s21, 6
        // Predicated region
        $region65: #{forward.3} parent=43 // pred_check
          %p5842 = pneg %p5841
        $region66: #{forward.3} parent=43 // pred_check_branch
          %5844 = sbr.rel (%p5842) target = $region68
        $region67: #{forward.3} parent=43 // pred_region
          %v5845 = vld [vmem:[#allocation4] sm:$0xff]
          %v5846 = vld [vmem:[#allocation4 + $0x8] sm:$0xf]
          %v5847 = vld [vmem:[#allocation4 + $0x10] sm:$0xff]
          %v5848 = vld [vmem:[#allocation4 + $0x18] sm:$0xf]
          %v5849 = vld [vmem:[#allocation5] sm:$0xff]
          %v5850 = vld [vmem:[#allocation5 + $0x8] sm:$0xf]
          %v5851 = vld [vmem:[#allocation5 + $0x10] sm:$0xff]
          %v5852 = vld [vmem:[#allocation5 + $0x18] sm:$0xf]
          %v5853 = vlog2.pop %v5849
          %v5854 = vmul.f32 %v5853, 0.6931472
          %v5855 = vlog2.pop %v5850
          %v5856 = vmul.f32 %v5855, 0.6931472
          %v5857 = vlog2.pop %v5851
          %v5858 = vmul.f32 %v5857, 0.6931472
          %v5859 = vlog2.pop %v5852
          %v5860 = vmul.f32 %v5859, 0.6931472
          %v5861 = vadd.f32 %v5845, %v5854
          %v5862 = vadd.f32 %v5846, %v5856
          %v5863 = vadd.f32 %v5847, %v5858
          %v5864 = vadd.f32 %v5848, %v5860
          %v5865 = vld [vmem:[#allocation3] sm:$0xff]
          %v5866 = vld [vmem:[#allocation3 + $0x8] sm:$0xf]
          %v5867 = vld [vmem:[#allocation3 + $0x10] sm:$0xff]
          %v5868 = vld [vmem:[#allocation3 + $0x18] sm:$0xf]
          %5870 = vset.pattern.permute.xlu0 0
          %5871 = vperm.xlu0 %5870, %v5861
          %v5872 = vpop.permute.xlu0 %5871
          %5875 = vset.pattern.permute.xlu0 0
          %5876 = vperm.xlu0 %5875, %v5862
          %v5877 = vpop.permute.xlu0 %5876
          %5880 = vset.pattern.permute.xlu0 0
          %5881 = vperm.xlu0 %5880, %v5863
          %v5882 = vpop.permute.xlu0 %5881
          %5885 = vset.pattern.permute.xlu0 0
          %5886 = vperm.xlu0 %5885, %v5864
          %v5887 = vpop.permute.xlu0 %5886
          %v5889 = vsub.f32 %v5865, %v5872
          %v5890 = vsub.f32 %v5866, %v5877
          %v5891 = vsub.f32 %v5867, %v5882
          %v5892 = vsub.f32 %v5868, %v5887
          %5893 = vst.msk [vmem:[%s6] sm:$0xff] %vm3437, %v5889
          %5894 = vst.msk [vmem:[%s6 + $0x8] sm:$0xf] %vm3439, %v5890
          %5895 = vst.msk [vmem:[%s6 + $0x10] sm:$0xff] %vm3437, %v5891
          %5896 = vst.msk [vmem:[%s6 + $0x18] sm:$0xf] %vm3439, %v5892
          %v5897 = vld [vmem:[#allocation7] sm:$0xf]
          %v5898 = vld [vmem:[#allocation7 + $0x4] sm:$0xf]
          %v5899 = vcvt.f32.s32.to.zero.pseudo %v5897
          %v5900 = vcvt.f32.s32.to.zero.pseudo %v5898
          %5901 = vst.msk [vmem:[%s7] sm:$0xf] %vm1937, %v5899
          %5902 = vst.msk [vmem:[%s7 + $0x4] sm:$0xf] %vm1937, %v5900
        $region68: #{forward.3} parent=43 // pred_fallthru
          _
        // Predicated region
        $region69: #{forward.3} parent=43 // pred_check
          %p5903 = pneg %p170
        $region70: #{forward.3} parent=43 // pred_check_branch
          %5905 = sbr.rel (%p5903) target = $region72
        $region71: #{forward.3} parent=43 // pred_region
          _
        $region72: #{forward.3} parent=43 // pred_fallthru
          _
        // Predicated region
        $region73: #{forward.3} parent=43 // pred_check
          %p5906 = pneg %p191
        $region74: #{forward.3} parent=43 // pred_check_branch
          %5908 = sbr.rel (%p5906) target = $region76
        $region75: #{forward.3} parent=43 // pred_region
          _
        $region76: #{forward.3} parent=43 // pred_fallthru
          _
        // Predicated region
        $region77: #{forward.3} parent=43 // pred_check
          %p5909 = pneg %p170
        $region78: #{forward.3} parent=43 // pred_check_branch
          %5911 = sbr.rel (%p5909) target = $region80
        $region79: #{forward.3} parent=43 // pred_region
          _
        $region80: #{forward.3} parent=43 // pred_fallthru
          _
        // Predicated region
        $region81: #{forward.3} parent=43 // pred_check
          %p5912 = pneg %p191
        $region82: #{forward.3} parent=43 // pred_check_branch
          %5914 = sbr.rel (%p5912) target = $region84
        $region83: #{forward.3} parent=43 // pred_region
          _
        $region84: #{forward.3} parent=43 // pred_fallthru
          _
      $region44: #{forward.3} parent=5 // pred_fallthru
        _
      %p5915 = scmp.le.s32.totalorder 2, %s16
      // Predicated region
      $region85: #{forward.3} parent=5 // pred_check
        %p5916 = pneg %p5915
      $region86: #{forward.3} parent=5 // pred_check_branch
        %5918 = sbr.rel (%p5916) target = $region88
      $region87: #{forward.3} parent=5 // pred_region
        %s5919 = ssub.s32 %s16, 2
      $region88: #{forward.3} parent=5 // pred_fallthru
        _
    $region6: #{forward.3} parent=1 // loop_footer
      %s20 = sadd.s32 1, %s16
    $region7: #{forward.3} parent=1 // loop_footer_branch
      %15 = sbr.rel target = $region3
    $region8: #{forward.3} parent=1 // loop_exit
      _
    %5920 = vsyncpa [#allocation9], 1
    %s5921 = scalar_lea.sflag [#allocation9], 1
    %5922 = vsyncpa %s5921, 1
    %5923 = vsyncpa [#allocation11], 1

</llo_original>
